<compile_context>
chip_gen: v6e
topology: v6e:2x2x1
jax: 0.10.0
libtpu: 0.0.40
codegen_flags: <defaults>
</compile_context>

<pallas_src>
import functools

import jax
import jax.numpy as jnp
from jax.experimental import pallas as pl
from jax.experimental.pallas import tpu as pltpu

EPS = 1e-5
NEG_SLOPE = 0.2
ACT_DTYPE = jnp.bfloat16  # storage dtype; all accumulation / norm math stays f32


def _round_up(x, m):
    return ((x + m - 1) // m) * m


# Explicit scoped-VMEM budget (review: ~100 MiB on v5e/v6e, ~48 MiB on v7x).
try:
    _VMEM_CAP = int(pltpu.get_tpu_info().vmem_capacity_bytes)
except Exception:  # pragma: no cover - conservative fallback
    _VMEM_CAP = 64 * 1024 * 1024
VMEM_LIMIT = 100 * 1024 * 1024 if _VMEM_CAP >= 120 * 1024 * 1024 else 48 * 1024 * 1024


def _cparams(sem):
    return pltpu.CompilerParams(dimension_semantics=sem,
                                vmem_limit_bytes=VMEM_LIMIT)


# -----------------------------------------------------------------------------
# Pallas kernels
# -----------------------------------------------------------------------------
def _make_conv3_kernel(h_out, wq, c_out):
    """3x3x3 conv, one output D-plane per (b, d) with kd as reduction grid axis.

    x_ref:   (1, 1, (H+2)*Wq, 3*Cin)   one padded input plane, kw folded into lanes
    w_ref:   (1, 3, 3*Cin, Cout)       the 3 kh taps for this kd
    o_ref:   (1, 1, H*Wq, Cout)
    acc_ref: (H*Wq, Cout) f32 VMEM scratch accumulator
    """
    rows = h_out * wq

    def kernel(x_ref, w_ref, o_ref, acc_ref):
        kd = pl.program_id(2)

        @pl.when(kd == 0)
        def _init():
            acc_ref[...] = jnp.zeros_like(acc_ref)

        # kh taps: static, sublane-aligned slices (wq is a multiple of 8).
        for kh in range(3):
            acc_ref[...] += jnp.dot(
                x_ref[0, 0, kh * wq:kh * wq + rows, :],
                w_ref[0, kh],
                preferred_element_type=jnp.float32)

        @pl.when(kd == pl.num_programs(2) - 1)
        def _finalize():
            o_ref[0, 0] = acc_ref[...].astype(o_ref.dtype)

    return kernel


def _matmul_bias_kernel(x_ref, w_ref, b_ref, o_ref):
    """1x1 conv (with bias) over a row tile: (TM, Cin) @ (Cin, Cout) + b."""
    acc = jnp.dot(x_ref[0], w_ref[...], preferred_element_type=jnp.float32)
    o_ref[0] = (acc + b_ref[...]).astype(o_ref.dtype)


def _make_tconv_kernel(h, wd, cout):
    """ConvTranspose3d(k=2, s=2): one fused matmul for all 8 taps per input plane.

    x_ref: (1, 1, H*W, Cin)
    w_ref: (Cin, 8*Cout)          lane order (kd, kh, kw, cout)
    o_ref: (1, 1, 2, H, 2, W, 2*Cout)  -> free reshape to interleaved layout
    """
    def kernel(x_ref, w_ref, o_ref):
        y = jnp.dot(x_ref[0, 0], w_ref[...],
                    preferred_element_type=jnp.float32)      # (H*W, 8*Cout)
        for kd in range(2):
            for kh in range(2):
                lo = (kd * 2 + kh) * 2 * cout
                blk = y[:, lo:lo + 2 * cout]                  # lanes = (kw, cout)
                o_ref[0, 0, kd, :, kh, :, :] = (
                    blk.reshape(h, wd, 2 * cout).astype(o_ref.dtype))

    return kernel


def _stats_kernel(x_ref, o_ref):
    """Per-sample partial sums / sums-of-squares over a row tile.

    x_ref: (1, TR, G*C) bf16 ; o_ref: (1, 2, G*C) f32 accumulated across tiles.
    """
    @pl.when(pl.program_id(1) == 0)
    def _init():
        o_ref[...] = jnp.zeros_like(o_ref)

    x = x_ref[0].astype(jnp.float32)
    s1 = jnp.sum(x, axis=0, keepdims=True)
    s2 = jnp.sum(x * x, axis=0, keepdims=True)
    o_ref[0] += jnp.concatenate([s1, s2], axis=0)


def _norm_lrelu_kernel(x_ref, sc_ref, sh_ref, o_ref):
    """y = x * scale + shift, then LeakyReLU(0.2).  Lane-dense (TR, G*C) tiles."""
    x = x_ref[0].astype(jnp.float32)
    y = x * sc_ref[0] + sh_ref[0]
    o_ref[0] = jnp.where(y >= 0, y, NEG_SLOPE * y).astype(o_ref.dtype)


# -----------------------------------------------------------------------------
# Pallas-call wrappers
# -----------------------------------------------------------------------------
def conv3d_3x3_same(x, w):
    """Conv3d(kernel=3, stride=1, padding=1, bias=False). x: (B, D, H, W, Cin)."""
    x = x.astype(ACT_DTYPE)
    bsz, d, h, wd, cin = x.shape
    cout = w.shape[-1]
    wq = max(8, _round_up(wd, 8))                       # sublane-aligned W stride
    # zero pad: D/H by 1 each side, W by 1 left and (wq + 1 - wd) right
    xp = jnp.pad(x, ((0, 0), (1, 1), (1, 1), (1, wq + 1 - wd), (0, 0)))
    # fold kw into the channel (lane) axis: 3 pre-shifted views -> K = 3*Cin
    x3 = jnp.concatenate([xp[:, :, :, kw:kw + wq, :] for kw in range(3)], axis=-1)
    x3 = x3.reshape(bsz, d + 2, (h + 2) * wq, 3 * cin)
    wt = w.reshape(3, 3, 3 * cin, cout).astype(ACT_DTYPE)   # (kd, kh, (kw,cin), cout)

    out = pl.pallas_call(
        _make_conv3_kernel(h, wq, cout),
        out_shape=jax.ShapeDtypeStruct((bsz, d, h * wq, cout), ACT_DTYPE),
        grid=(bsz, d, 3),
        in_specs=[
            pl.BlockSpec((1, 1, (h + 2) * wq, 3 * cin),
                         lambda b, i, k: (b, i + k, 0, 0)),
            pl.BlockSpec((1, 3, 3 * cin, cout), lambda b, i, k: (k, 0, 0, 0)),
        ],
        out_specs=pl.BlockSpec((1, 1, h * wq, cout), lambda b, i, k: (b, i, 0, 0)),
        scratch_shapes=[pltpu.VMEM((h * wq, cout), jnp.float32)],
        compiler_params=_cparams(("parallel", "parallel", "arbitrary")),
    )(x3, wt)

    out = out.reshape(bsz, d, h, wq, cout)
    if wq != wd:                      # crop the W-alignment padding (keeps boundary
        out = out[:, :, :, :wd, :]    # garbage out of downstream statistics)
    return out


def conv1x1(x, w, bias, stride=1):
    """Conv3d(kernel=1) with bias; stride applied on (D, H, W). x: (B,D,H,W,Cin)."""
    x = x.astype(ACT_DTYPE)
    if stride != 1:
        x = x[:, ::stride, ::stride, ::stride, :]
    bsz, d, h, wd, cin = x.shape
    cout = w.shape[-1]
    rows = bsz * d * h * wd
    tm = min(512, _round_up(rows, 8))
    rows_p = _round_up(rows, tm)
    xf = x.reshape(rows, cin)
    if rows_p != rows:
        xf = jnp.pad(xf, ((0, rows_p - rows), (0, 0)))
    n_tiles = rows_p // tm
    xf = xf.reshape(n_tiles, tm, cin)

    out = pl.pallas_call(
        _matmul_bias_kernel,
        out_shape=jax.ShapeDtypeStruct((n_tiles, tm, cout), ACT_DTYPE),
        grid=(n_tiles,),
        in_specs=[
            pl.BlockSpec((1, tm, cin), lambda i: (i, 0, 0)),
            pl.BlockSpec((cin, cout), lambda i: (0, 0)),
            pl.BlockSpec((1, cout), lambda i: (0, 0)),
        ],
        out_specs=pl.BlockSpec((1, tm, cout), lambda i: (i, 0, 0)),
        compiler_params=_cparams(("parallel",)),
    )(xf, w.astype(ACT_DTYPE), bias.reshape(1, cout).astype(jnp.float32))

    out = out.reshape(rows_p, cout)[:rows]
    return out.reshape(bsz, d, h, wd, cout)


def conv_transpose_2x2(x, w):
    """ConvTranspose3d(kernel=2, stride=2, bias=False). x: (N, O, D, H, W, Cin)."""
    x = x.astype(ACT_DTYPE)
    n, o, d, h, wd, cin = x.shape
    cout = w.shape[-1]
    b = n * o
    xf = x.reshape(b, d, h * wd, cin)
    # lane order (kd, kh, kw, cout) so (kw, cout) is contiguous in the output layout
    wm = jnp.transpose(w, (3, 0, 1, 2, 4)).reshape(cin, 8 * cout).astype(ACT_DTYPE)

    out = pl.pallas_call(
        _make_tconv_kernel(h, wd, cout),
        out_shape=jax.ShapeDtypeStruct((b, d, 2, h, 2, wd, 2 * cout), ACT_DTYPE),
        grid=(b, d),
        in_specs=[
            pl.BlockSpec((1, 1, h * wd, cin), lambda i, j: (i, j, 0, 0)),
            pl.BlockSpec((cin, 8 * cout), lambda i, j: (0, 0)),
        ],
        out_specs=pl.BlockSpec((1, 1, 2, h, 2, wd, 2 * cout),
                               lambda i, j: (i, j, 0, 0, 0, 0, 0)),
        compiler_params=_cparams(("parallel", "parallel")),
    )(xf, wm)

    # adjacent-axis merges only -> free reshape, no extra HBM transpose pass
    return out.reshape(n, o, 2 * d, 2 * h, 2 * wd, cout)


def instnorm_lrelu(x):
    """InstanceNorm4d (over O, D, H, W per sample/channel) + LeakyReLU(0.2)."""
    n, o, d, h, wd, c = x.shape
    l = o * d * h * wd
    # widen lanes: group G spatial positions with the C channels (lane dim = G*C)
    g = 1
    while l % (g * 2) == 0 and (g * 2) * c <= 512:
        g *= 2
    gc = g * c
    rows = l // g
    tr = min(256, _round_up(rows, 8))
    rows_p = _round_up(rows, tr)
    n_tiles = rows_p // tr

    xf = x.astype(ACT_DTYPE).reshape(n, rows, gc)
    if rows_p != rows:
        xf = jnp.pad(xf, ((0, 0), (0, rows_p - rows), (0, 0)))  # zero rows: no effect on sums

    # pass 1: tiled partial sums / sums-of-squares (accumulated across tiles)
    stats = pl.pallas_call(
        _stats_kernel,
        out_shape=jax.ShapeDtypeStruct((n, 2, gc), jnp.float32),
        grid=(n, n_tiles),
        in_specs=[pl.BlockSpec((1, tr, gc), lambda i, t: (i, t, 0))],
        out_specs=pl.BlockSpec((1, 2, gc), lambda i, t: (i, 0, 0)),
        compiler_params=_cparams(("parallel", "arbitrary")),
    )(xf)

    sums = stats.reshape(n, 2, g, c).sum(axis=2)          # tiny (n, 2, c) reduce
    mean = sums[:, 0, :] / float(l)
    var = sums[:, 1, :] / float(l) - mean * mean          # biased variance (PyTorch)
    scale = jax.lax.rsqrt(var + EPS)
    shift = -mean * scale
    scale_g = jnp.tile(scale, (1, g)).reshape(n, 1, gc)
    shift_g = jnp.tile(shift, (1, g)).reshape(n, 1, gc)

    # pass 2: tiled normalize + LeakyReLU
    out = pl.pallas_call(
        _norm_lrelu_kernel,
        out_shape=jax.ShapeDtypeStruct((n, rows_p, gc), ACT_DTYPE),
        grid=(n, n_tiles),
        in_specs=[
            pl.BlockSpec((1, tr, gc), lambda i, t: (i, t, 0)),
            pl.BlockSpec((1, 1, gc), lambda i, t: (i, 0, 0)),
            pl.BlockSpec((1, 1, gc), lambda i, t: (i, 0, 0)),
        ],
        out_specs=pl.BlockSpec((1, tr, gc), lambda i, t: (i, t, 0)),
        compiler_params=_cparams(("parallel", "parallel")),
    )(xf, scale_g, shift_g)

    return out[:, :rows, :].reshape(n, o, d, h, wd, c)


# -----------------------------------------------------------------------------
# Module forward (structure mirrors Unet3D1D.forward)
# -----------------------------------------------------------------------------
def _fold(t):
    # (N, O, D, H, W, C) -> (N*O, D, H, W, C)  == Conv3dMod.offset_to_batch_dim
    return t.reshape((t.shape[0] * t.shape[1],) + t.shape[2:])


def _unfold(t, n, o):
    return t.reshape((n, o) + t.shape[1:])


def conv_block(x, p):
    """ConvBlock: (conv3x3 -> IN -> LReLU) x 2.  x: (N, O, D, H, W, Cin)."""
    n, o = x.shape[:2]
    y = _unfold(conv3d_3x3_same(_fold(x), p["w1"]), n, o)
    y = instnorm_lrelu(y)
    y = _unfold(conv3d_3x3_same(_fold(y), p["w2"]), n, o)
    y = instnorm_lrelu(y)
    return y


def transpose_conv_block(x, p):
    """TransposeConvBlock: tconv2x2(stride 2) -> IN -> LReLU."""
    return instnorm_lrelu(conv_transpose_2x2(x, p["w"]))


def unet3d1d_forward(image, params):
    """image: (N, C, O, D, H, W)  ->  (N, out_chans, O, D, H, W)."""
    x = jnp.transpose(image, (0, 2, 3, 4, 5, 1)).astype(ACT_DTYPE)  # channels-last
    n, o = x.shape[:2]

    stack = []
    for blk, pool in zip(params["down"], params["down_pool"]):
        x = conv_block(x, blk)
        stack.append(x)
        x = _unfold(conv1x1(_fold(x), pool["w"], pool["b"], stride=2), n, o)

    x = conv_block(x, params["bottleneck"])

    for pt, pc in zip(params["up_t"], params["up_c"]):
        skip = stack.pop()
        x = transpose_conv_block(x, pt)
        # shape-mismatch padding (axes: D=2, H=3, W=4 in our layout)
        pad = [(0, 0)] * 6
        if x.shape[4] != skip.shape[4]:
            pad[4] = (0, 1)
        if x.shape[3] != skip.shape[3]:
            pad[3] = (0, 1)
        if x.shape[2] != skip.shape[2]:
            pad[2] = (0, 1)
        if any(p != (0, 0) for p in pad):
            x = jnp.pad(x, pad)
        x = jnp.concatenate([x, skip], axis=-1)  # channel concat
        x = conv_block(x, pc)
        if "wf" in pc:  # final 1x1 Conv3dMod (with bias) of the last up block
            x = _unfold(conv1x1(_fold(x), pc["wf"], pc["bf"], stride=1), n, o)

    x = x.astype(jnp.float32)
    return jnp.transpose(x, (0, 5, 1, 2, 3, 4))  # back to (N, C, O, D, H, W)


# -----------------------------------------------------------------------------
# Deterministic parameter init (shapes follow Unet3D1D.__init__)
# -----------------------------------------------------------------------------
def init_params(key, in_chans, out_chans, chans, num_pool_layers):
    state = {"key": key}

    def w(shape):
        state["key"], sub = jax.random.split(state["key"])
        return 0.1 * jax.random.normal(sub, shape, jnp.float32)

    params = {"down": [], "down_pool": [], "up_t": [], "up_c": []}
    ch = chans
    params["down"].append({"w1": w((3, 3, 3, in_chans, ch)),
                           "w2": w((3, 3, 3, ch, ch))})
    params["down_pool"].append({"w": w((ch, ch)), "b": w((ch,))})
    for _ in range(num_pool_layers - 1):
        params["down"].append({"w1": w((3, 3, 3, ch, ch * 2)),
                               "w2": w((3, 3, 3, ch * 2, ch * 2))})
        ch *= 2
        params["down_pool"].append({"w": w((ch, ch)), "b": w((ch,))})
    params["bottleneck"] = {"w1": w((3, 3, 3, ch, ch * 2)),
                            "w2": w((3, 3, 3, ch * 2, ch * 2))}
    for _ in range(num_pool_layers - 1):
        params["up_t"].append({"w": w((2, 2, 2, ch * 2, ch))})
        params["up_c"].append({"w1": w((3, 3, 3, ch * 2, ch)),
                               "w2": w((3, 3, 3, ch, ch))})
        ch //= 2
    params["up_t"].append({"w": w((2, 2, 2, ch * 2, ch))})
    params["up_c"].append({"w1": w((3, 3, 3, ch * 2, ch)),
                           "w2": w((3, 3, 3, ch, ch)),
                           "wf": w((ch, out_chans)),
                           "bf": w((out_chans,))})
    return params


# -----------------------------------------------------------------------------
if __name__ == "__main__":
    # Small config consistent with the module: image (N, in_chans, O, D, H, W)
    N, IN_CHANS, OUT_CHANS = 2, 2, 2
    O, D, H, W = 2, 8, 8, 8
    CHANS, NUM_POOL_LAYERS = 4, 2

    key = jax.random.PRNGKey(0)
    k_img, k_par = jax.random.split(key)
    image = jax.random.normal(k_img, (N, IN_CHANS, O, D, H, W), jnp.float32)
    params = init_params(k_par, IN_CHANS, OUT_CHANS, CHANS, NUM_POOL_LAYERS)

    fwd = jax.jit(functools.partial(unet3d1d_forward, params=params))
    out = jax.block_until_ready(fwd(image))

    assert out.shape == (N, OUT_CHANS, O, D, H, W), out.shape
    assert bool(jnp.all(jnp.isfinite(out)))
    print("KERNEL_OK")
</pallas_src>

<mosaic_0001>
module attributes {stable_mosaic.version = 11 : i64} {
  func.func @kernel(%arg0: i32, %arg1: i32, %arg2: i32, %arg3: memref<1x1x80x6xbf16, #tpu.memory_space<vmem>>, %arg4: memref<1x3x6x4xbf16, #tpu.memory_space<vmem>>, %arg5: memref<1x1x64x4xbf16, #tpu.memory_space<vmem>>, %arg6: memref<64x4xf32, #tpu.memory_space<vmem>>) attributes {dimension_semantics = [#tpu.dimension_semantics<parallel>, #tpu.dimension_semantics<parallel>, #tpu.dimension_semantics<arbitrary>], iteration_bounds = array<i64: 4, 8, 3>, scalar_prefetch = 0 : i64, scratch_operands = 1 : i64, tpu.core_type = #tpu.core_type<tc>, window_params = [{transform_indices = @transform_0, window_bounds = array<i64: 1, 1, 80, 6>}, {transform_indices = @transform_1, window_bounds = array<i64: 1, 3, 6, 4>}, {transform_indices = @transform_2, window_bounds = array<i64: 1, 1, 64, 4>}]} {
    %c0_i32 = arith.constant 0 : i32
    %0 = arith.cmpi eq, %arg2, %c0_i32 : i32
    %1 = arith.extui %0 : i1 to i32
    %c0_i32_0 = arith.constant 0 : i32
    %2 = arith.cmpi ne, %1, %c0_i32_0 : i32
    scf.if %2 {
      %cst_35 = arith.constant 0.000000e+00 : f32
      %30 = vector.broadcast %cst_35 : f32 to vector<64x4xf32>
      %c0_36 = arith.constant 0 : index
      %c0_37 = arith.constant 0 : index
      %31 = vector.load %arg6[%c0_36, %c0_37] : memref<64x4xf32, #tpu.memory_space<vmem>>, vector<64x4xf32>
      tpu.vector_store %arg6[%c0_36, %c0_37], %30 {strides = array<i32>} : memref<64x4xf32, #tpu.memory_space<vmem>>, vector<64x4xf32>,
    } else {
    }
    %c0 = arith.constant 0 : index
    %c0_1 = arith.constant 0 : index
    %3 = vector.load %arg6[%c0, %c0_1] : memref<64x4xf32, #tpu.memory_space<vmem>>, vector<64x4xf32>
    %c0_2 = arith.constant 0 : index
    %c0_3 = arith.constant 0 : index
    %c0_4 = arith.constant 0 : index
    %c0_5 = arith.constant 0 : index
    %4 = vector.load %arg3[%c0_2, %c0_3, %c0_4, %c0_5] : memref<1x1x80x6xbf16, #tpu.memory_space<vmem>>, vector<1x1x64x6xbf16>
    %5 = vector.shape_cast %4 : vector<1x1x64x6xbf16> to vector<64x6xbf16>
    %c0_6 = arith.constant 0 : index
    %c0_7 = arith.constant 0 : index
    %c0_8 = arith.constant 0 : index
    %c0_9 = arith.constant 0 : index
    %6 = vector.load %arg4[%c0_6, %c0_7, %c0_8, %c0_9] : memref<1x3x6x4xbf16, #tpu.memory_space<vmem>>, vector<1x1x6x4xbf16>
    %7 = vector.shape_cast %6 : vector<1x1x6x4xbf16> to vector<6x4xbf16>
    %cst = arith.constant dense<0.000000e+00> : vector<64x4xf32>
    %8 = tpu.matmul %5, %7, %cst {dimension_numbers = #tpu.dot_dimension_numbers<[1], [0], [0], [1], [0, 0, 1, 1], [], []>} : vector<64x6xbf16>, vector<6x4xbf16>, vector<64x4xf32> -> vector<64x4xf32>
    %9 = arith.addf %3, %8 : vector<64x4xf32>
    %c0_10 = arith.constant 0 : index
    %c0_11 = arith.constant 0 : index
    %10 = vector.load %arg6[%c0_10, %c0_11] : memref<64x4xf32, #tpu.memory_space<vmem>>, vector<64x4xf32>
    tpu.vector_store %arg6[%c0_10, %c0_11], %9 {strides = array<i32>} : memref<64x4xf32, #tpu.memory_space<vmem>>, vector<64x4xf32>,
    %c0_12 = arith.constant 0 : index
    %c0_13 = arith.constant 0 : index
    %11 = vector.load %arg6[%c0_12, %c0_13] : memref<64x4xf32, #tpu.memory_space<vmem>>, vector<64x4xf32>
    %c0_14 = arith.constant 0 : index
    %c0_15 = arith.constant 0 : index
    %c8 = arith.constant 8 : index
    %c0_16 = arith.constant 0 : index
    %12 = vector.load %arg3[%c0_14, %c0_15, %c8, %c0_16] : memref<1x1x80x6xbf16, #tpu.memory_space<vmem>>, vector<1x1x64x6xbf16>
    %13 = vector.shape_cast %12 : vector<1x1x64x6xbf16> to vector<64x6xbf16>
    %c0_17 = arith.constant 0 : index
    %c1 = arith.constant 1 : index
    %c0_18 = arith.constant 0 : index
    %c0_19 = arith.constant 0 : index
    %14 = vector.load %arg4[%c0_17, %c1, %c0_18, %c0_19] : memref<1x3x6x4xbf16, #tpu.memory_space<vmem>>, vector<1x1x6x4xbf16>
    %15 = vector.shape_cast %14 : vector<1x1x6x4xbf16> to vector<6x4xbf16>
    %cst_20 = arith.constant dense<0.000000e+00> : vector<64x4xf32>
    %16 = tpu.matmul %13, %15, %cst_20 {dimension_numbers = #tpu.dot_dimension_numbers<[1], [0], [0], [1], [0, 0, 1, 1], [], []>} : vector<64x6xbf16>, vector<6x4xbf16>, vector<64x4xf32> -> vector<64x4xf32>
    %17 = arith.addf %11, %16 : vector<64x4xf32>
    %c0_21 = arith.constant 0 : index
    %c0_22 = arith.constant 0 : index
    %18 = vector.load %arg6[%c0_21, %c0_22] : memref<64x4xf32, #tpu.memory_space<vmem>>, vector<64x4xf32>
    tpu.vector_store %arg6[%c0_21, %c0_22], %17 {strides = array<i32>} : memref<64x4xf32, #tpu.memory_space<vmem>>, vector<64x4xf32>,
    %c0_23 = arith.constant 0 : index
    %c0_24 = arith.constant 0 : index
    %19 = vector.load %arg6[%c0_23, %c0_24] : memref<64x4xf32, #tpu.memory_space<vmem>>, vector<64x4xf32>
    %c0_25 = arith.constant 0 : index
    %c0_26 = arith.constant 0 : index
    %c16 = arith.constant 16 : index
    %c0_27 = arith.constant 0 : index
    %20 = vector.load %arg3[%c0_25, %c0_26, %c16, %c0_27] : memref<1x1x80x6xbf16, #tpu.memory_space<vmem>>, vector<1x1x64x6xbf16>
    %21 = vector.shape_cast %20 : vector<1x1x64x6xbf16> to vector<64x6xbf16>
    %c0_28 = arith.constant 0 : index
    %c2 = arith.constant 2 : index
    %c0_29 = arith.constant 0 : index
    %c0_30 = arith.constant 0 : index
    %22 = vector.load %arg4[%c0_28, %c2, %c0_29, %c0_30] : memref<1x3x6x4xbf16, #tpu.memory_space<vmem>>, vector<1x1x6x4xbf16>
    %23 = vector.shape_cast %22 : vector<1x1x6x4xbf16> to vector<6x4xbf16>
    %cst_31 = arith.constant dense<0.000000e+00> : vector<64x4xf32>
    %24 = tpu.matmul %21, %23, %cst_31 {dimension_numbers = #tpu.dot_dimension_numbers<[1], [0], [0], [1], [0, 0, 1, 1], [], []>} : vector<64x6xbf16>, vector<6x4xbf16>, vector<64x4xf32> -> vector<64x4xf32>
    %25 = arith.addf %19, %24 : vector<64x4xf32>
    %c0_32 = arith.constant 0 : index
    %c0_33 = arith.constant 0 : index
    %26 = vector.load %arg6[%c0_32, %c0_33] : memref<64x4xf32, #tpu.memory_space<vmem>>, vector<64x4xf32>
    tpu.vector_store %arg6[%c0_32, %c0_33], %25 {strides = array<i32>} : memref<64x4xf32, #tpu.memory_space<vmem>>, vector<64x4xf32>,
    %c2_i32 = arith.constant 2 : i32
    %27 = arith.cmpi eq, %arg2, %c2_i32 : i32
    %28 = arith.extui %27 : i1 to i32
    %c0_i32_34 = arith.constant 0 : i32
    %29 = arith.cmpi ne, %28, %c0_i32_34 : i32
    scf.if %29 {
      %c0_35 = arith.constant 0 : index
      %c0_36 = arith.constant 0 : index
      %30 = vector.load %arg6[%c0_35, %c0_36] : memref<64x4xf32, #tpu.memory_space<vmem>>, vector<64x4xf32>
      %31 = arith.truncf %30 : vector<64x4xf32> to vector<64x4xbf16>
      %c0_37 = arith.constant 0 : index
      %c0_38 = arith.constant 0 : index
      %c0_39 = arith.constant 0 : index
      %c0_40 = arith.constant 0 : index
      %32 = vector.load %arg5[%c0_37, %c0_38, %c0_39, %c0_40] : memref<1x1x64x4xbf16, #tpu.memory_space<vmem>>, vector<1x1x64x4xbf16>
      %33 = vector.shape_cast %32 : vector<1x1x64x4xbf16> to vector<64x4xbf16>
      %34 = vector.shape_cast %31 : vector<64x4xbf16> to vector<1x1x64x4xbf16>
      tpu.vector_store %arg5[%c0_37, %c0_38, %c0_39, %c0_40], %34 {strides = array<i32>} : memref<1x1x64x4xbf16, #tpu.memory_space<vmem>>, vector<1x1x64x4xbf16>,
    } else {
    }
    return
  }
  func.func @transform_0(%arg0: i32, %arg1: i32, %arg2: i32) -> (i32, i32, i32, i32) {
    %0 = arith.addi %arg1, %arg2 : i32
    %c0_i32 = arith.constant 0 : i32
    %c0_i32_0 = arith.constant 0 : i32
    %c0_i32_1 = arith.constant 0 : i32
    return %arg0, %0, %c0_i32, %c0_i32_0 : i32, i32, i32, i32
  }
  func.func @transform_1(%arg0: i32, %arg1: i32, %arg2: i32) -> (i32, i32, i32, i32) {
    %c0_i32 = arith.constant 0 : i32
    %c0_i32_0 = arith.constant 0 : i32
    %c0_i32_1 = arith.constant 0 : i32
    %c0_i32_2 = arith.constant 0 : i32
    return %arg2, %c0_i32, %c0_i32_0, %c0_i32_1 : i32, i32, i32, i32
  }
  func.func @transform_2(%arg0: i32, %arg1: i32, %arg2: i32) -> (i32, i32, i32, i32) {
    %c0_i32 = arith.constant 0 : i32
    %c0_i32_0 = arith.constant 0 : i32
    %c0_i32_1 = arith.constant 0 : i32
    return %arg0, %arg1, %c0_i32, %c0_i32_0 : i32, i32, i32, i32
  }
}

module attributes {stable_mosaic.version = 11 : i64} {
  func.func @_stats_kernel(%arg0: i32, %arg1: i32, %arg2: memref<1x8x512xbf16, #tpu.memory_space<vmem>>, %arg3: memref<1x2x512xf32, #tpu.memory_space<vmem>>) attributes {dimension_semantics = [#tpu.dimension_semantics<parallel>, #tpu.dimension_semantics<arbitrary>], iteration_bounds = array<i64: 2, 1>, scalar_prefetch = 0 : i64, scratch_operands = 0 : i64, tpu.core_type = #tpu.core_type<tc>, window_params = [{transform_indices = @transform_0, window_bounds = array<i64: 1, 8, 512>}, {transform_indices = @transform_1, window_bounds = array<i64: 1, 2, 512>}]} {
    %c0_i32 = arith.constant 0 : i32
    %0 = arith.cmpi eq, %arg1, %c0_i32 : i32
    %1 = arith.extui %0 : i1 to i32
    %c0_i32_0 = arith.constant 0 : i32
    %2 = arith.cmpi ne, %1, %c0_i32_0 : i32
    scf.if %2 {
      %cst_10 = arith.constant 0.000000e+00 : f32
      %18 = vector.broadcast %cst_10 : f32 to vector<1x2x512xf32>
      %c0_11 = arith.constant 0 : index
      %c0_12 = arith.constant 0 : index
      %c0_13 = arith.constant 0 : index
      %19 = vector.load %arg3[%c0_11, %c0_12, %c0_13] : memref<1x2x512xf32, #tpu.memory_space<vmem>>, vector<1x2x512xf32>
      tpu.vector_store %arg3[%c0_11, %c0_12, %c0_13], %18 {strides = array<i32>} : memref<1x2x512xf32, #tpu.memory_space<vmem>>, vector<1x2x512xf32>,
    } else {
    }
    %c0 = arith.constant 0 : index
    %c0_1 = arith.constant 0 : index
    %c0_2 = arith.constant 0 : index
    %3 = vector.load %arg2[%c0, %c0_1, %c0_2] : memref<1x8x512xbf16, #tpu.memory_space<vmem>>, vector<1x8x512xbf16>
    %4 = vector.shape_cast %3 : vector<1x8x512xbf16> to vector<8x512xbf16>
    %5 = arith.extf %4 : vector<8x512xbf16> to vector<8x512xf32>
    %cst = arith.constant dense<0.000000e+00> : vector<512xf32>
    %6 = vector.multi_reduction <add>, %5, %cst [0] : vector<8x512xf32> to vector<512xf32>
    %7 = vector.shape_cast %6 : vector<512xf32> to vector<1x512xf32>
    %8 = arith.mulf %5, %5 : vector<8x512xf32>
    %cst_3 = arith.constant dense<0.000000e+00> : vector<512xf32>
    %9 = vector.multi_reduction <add>, %8, %cst_3 [0] : vector<8x512xf32> to vector<512xf32>
    %10 = vector.shape_cast %9 : vector<512xf32> to vector<1x512xf32>
    %c0_4 = arith.constant 0 : index
    %c0_5 = arith.constant 0 : index
    %c0_6 = arith.constant 0 : index
    %11 = vector.load %arg3[%c0_4, %c0_5, %c0_6] : memref<1x2x512xf32, #tpu.memory_space<vmem>>, vector<1x2x512xf32>
    %12 = vector.shape_cast %11 : vector<1x2x512xf32> to vector<2x512xf32>
    %13 = tpu.concatenate %7, %10 in 0 : vector<1x512xf32>, vector<1x512xf32> -> vector<2x512xf32>
    %14 = arith.addf %12, %13 : vector<2x512xf32>
    %c0_7 = arith.constant 0 : index
    %c0_8 = arith.constant 0 : index
    %c0_9 = arith.constant 0 : index
    %15 = vector.load %arg3[%c0_7, %c0_8, %c0_9] : memref<1x2x512xf32, #tpu.memory_space<vmem>>, vector<1x2x512xf32>
    %16 = vector.shape_cast %15 : vector<1x2x512xf32> to vector<2x512xf32>
    %17 = vector.shape_cast %14 : vector<2x512xf32> to vector<1x2x512xf32>
    tpu.vector_store %arg3[%c0_7, %c0_8, %c0_9], %17 {strides = array<i32>} : memref<1x2x512xf32, #tpu.memory_space<vmem>>, vector<1x2x512xf32>,
    return
  }
  func.func @transform_0(%arg0: i32, %arg1: i32) -> (i32, i32, i32) {
    %c0_i32 = arith.constant 0 : i32
    %c0_i32_0 = arith.constant 0 : i32
    return %arg0, %arg1, %c0_i32 : i32, i32, i32
  }
  func.func @transform_1(%arg0: i32, %arg1: i32) -> (i32, i32, i32) {
    %c0_i32 = arith.constant 0 : i32
    %c0_i32_0 = arith.constant 0 : i32
    %c0_i32_1 = arith.constant 0 : i32
    return %arg0, %c0_i32, %c0_i32_0 : i32, i32, i32
  }
}

module attributes {stable_mosaic.version = 11 : i64} {
  func.func @_norm_lrelu_kernel(%arg0: i32, %arg1: i32, %arg2: memref<1x8x512xbf16, #tpu.memory_space<vmem>>, %arg3: memref<1x1x512xf32, #tpu.memory_space<vmem>>, %arg4: memref<1x1x512xf32, #tpu.memory_space<vmem>>, %arg5: memref<1x8x512xbf16, #tpu.memory_space<vmem>>) attributes {dimension_semantics = [#tpu.dimension_semantics<parallel>, #tpu.dimension_semantics<parallel>], iteration_bounds = array<i64: 2, 1>, scalar_prefetch = 0 : i64, scratch_operands = 0 : i64, tpu.core_type = #tpu.core_type<tc>, window_params = [{transform_indices = @transform_0, window_bounds = array<i64: 1, 8, 512>}, {transform_indices = @transform_1, window_bounds = array<i64: 1, 1, 512>}, {transform_indices = @transform_2, window_bounds = array<i64: 1, 1, 512>}, {transform_indices = @transform_3, window_bounds = array<i64: 1, 8, 512>}]} {
    %c0 = arith.constant 0 : index
    %c0_0 = arith.constant 0 : index
    %c0_1 = arith.constant 0 : index
    %0 = vector.load %arg2[%c0, %c0_0, %c0_1] : memref<1x8x512xbf16, #tpu.memory_space<vmem>>, vector<1x8x512xbf16>
    %1 = vector.shape_cast %0 : vector<1x8x512xbf16> to vector<8x512xbf16>
    %2 = arith.extf %1 : vector<8x512xbf16> to vector<8x512xf32>
    %c0_2 = arith.constant 0 : index
    %c0_3 = arith.constant 0 : index
    %c0_4 = arith.constant 0 : index
    %3 = vector.load %arg3[%c0_2, %c0_3, %c0_4] : memref<1x1x512xf32, #tpu.memory_space<vmem>>, vector<1x1x512xf32>
    %4 = vector.shape_cast %3 : vector<1x1x512xf32> to vector<1x512xf32>
    %5 = vector.broadcast %4 : vector<1x512xf32> to vector<8x512xf32>
    %6 = arith.mulf %2, %5 : vector<8x512xf32>
    %c0_5 = arith.constant 0 : index
    %c0_6 = arith.constant 0 : index
    %c0_7 = arith.constant 0 : index
    %7 = vector.load %arg4[%c0_5, %c0_6, %c0_7] : memref<1x1x512xf32, #tpu.memory_space<vmem>>, vector<1x1x512xf32>
    %8 = vector.shape_cast %7 : vector<1x1x512xf32> to vector<1x512xf32>
    %9 = vector.broadcast %8 : vector<1x512xf32> to vector<8x512xf32>
    %10 = arith.addf %6, %9 : vector<8x512xf32>
    %cst = arith.constant 0.000000e+00 : f32
    %11 = vector.broadcast %cst : f32 to vector<8x512xf32>
    %12 = arith.cmpf oge, %10, %11 : vector<8x512xf32>
    %cst_8 = arith.constant 2.000000e-01 : f32
    %13 = vector.broadcast %cst_8 : f32 to vector<8x512xf32>
    %14 = arith.mulf %13, %10 : vector<8x512xf32>
    %15 = arith.select %12, %10, %14 : vector<8x512xi1>, vector<8x512xf32>
    %16 = arith.truncf %15 : vector<8x512xf32> to vector<8x512xbf16>
    %c0_9 = arith.constant 0 : index
    %c0_10 = arith.constant 0 : index
    %c0_11 = arith.constant 0 : index
    %17 = vector.load %arg5[%c0_9, %c0_10, %c0_11] : memref<1x8x512xbf16, #tpu.memory_space<vmem>>, vector<1x8x512xbf16>
    %18 = vector.shape_cast %17 : vector<1x8x512xbf16> to vector<8x512xbf16>
    %19 = vector.shape_cast %16 : vector<8x512xbf16> to vector<1x8x512xbf16>
    tpu.vector_store %arg5[%c0_9, %c0_10, %c0_11], %19 {strides = array<i32>} : memref<1x8x512xbf16, #tpu.memory_space<vmem>>, vector<1x8x512xbf16>,
    return
  }
  func.func @transform_0(%arg0: i32, %arg1: i32) -> (i32, i32, i32) {
    %c0_i32 = arith.constant 0 : i32
    %c0_i32_0 = arith.constant 0 : i32
    return %arg0, %arg1, %c0_i32 : i32, i32, i32
  }
  func.func @transform_1(%arg0: i32, %arg1: i32) -> (i32, i32, i32) {
    %c0_i32 = arith.constant 0 : i32
    %c0_i32_0 = arith.constant 0 : i32
    %c0_i32_1 = arith.constant 0 : i32
    return %arg0, %c0_i32, %c0_i32_0 : i32, i32, i32
  }
  func.func @transform_2(%arg0: i32, %arg1: i32) -> (i32, i32, i32) {
    %c0_i32 = arith.constant 0 : i32
    %c0_i32_0 = arith.constant 0 : i32
    %c0_i32_1 = arith.constant 0 : i32
    return %arg0, %c0_i32, %c0_i32_0 : i32, i32, i32
  }
  func.func @transform_3(%arg0: i32, %arg1: i32) -> (i32, i32, i32) {
    %c0_i32 = arith.constant 0 : i32
    %c0_i32_0 = arith.constant 0 : i32
    return %arg0, %arg1, %c0_i32 : i32, i32, i32
  }
}

module attributes {stable_mosaic.version = 11 : i64} {
  func.func @kernel(%arg0: i32, %arg1: i32, %arg2: i32, %arg3: memref<1x1x80x12xbf16, #tpu.memory_space<vmem>>, %arg4: memref<1x3x12x4xbf16, #tpu.memory_space<vmem>>, %arg5: memref<1x1x64x4xbf16, #tpu.memory_space<vmem>>, %arg6: memref<64x4xf32, #tpu.memory_space<vmem>>) attributes {dimension_semantics = [#tpu.dimension_semantics<parallel>, #tpu.dimension_semantics<parallel>, #tpu.dimension_semantics<arbitrary>], iteration_bounds = array<i64: 4, 8, 3>, scalar_prefetch = 0 : i64, scratch_operands = 1 : i64, tpu.core_type = #tpu.core_type<tc>, window_params = [{transform_indices = @transform_0, window_bounds = array<i64: 1, 1, 80, 12>}, {transform_indices = @transform_1, window_bounds = array<i64: 1, 3, 12, 4>}, {transform_indices = @transform_2, window_bounds = array<i64: 1, 1, 64, 4>}]} {
    %c0_i32 = arith.constant 0 : i32
    %0 = arith.cmpi eq, %arg2, %c0_i32 : i32
    %1 = arith.extui %0 : i1 to i32
    %c0_i32_0 = arith.constant 0 : i32
    %2 = arith.cmpi ne, %1, %c0_i32_0 : i32
    scf.if %2 {
      %cst_35 = arith.constant 0.000000e+00 : f32
      %30 = vector.broadcast %cst_35 : f32 to vector<64x4xf32>
      %c0_36 = arith.constant 0 : index
      %c0_37 = arith.constant 0 : index
      %31 = vector.load %arg6[%c0_36, %c0_37] : memref<64x4xf32, #tpu.memory_space<vmem>>, vector<64x4xf32>
      tpu.vector_store %arg6[%c0_36, %c0_37], %30 {strides = array<i32>} : memref<64x4xf32, #tpu.memory_space<vmem>>, vector<64x4xf32>,
    } else {
    }
    %c0 = arith.constant 0 : index
    %c0_1 = arith.constant 0 : index
    %3 = vector.load %arg6[%c0, %c0_1] : memref<64x4xf32, #tpu.memory_space<vmem>>, vector<64x4xf32>
    %c0_2 = arith.constant 0 : index
    %c0_3 = arith.constant 0 : index
    %c0_4 = arith.constant 0 : index
    %c0_5 = arith.constant 0 : index
    %4 = vector.load %arg3[%c0_2, %c0_3, %c0_4, %c0_5] : memref<1x1x80x12xbf16, #tpu.memory_space<vmem>>, vector<1x1x64x12xbf16>
    %5 = vector.shape_cast %4 : vector<1x1x64x12xbf16> to vector<64x12xbf16>
    %c0_6 = arith.constant 0 : index
    %c0_7 = arith.constant 0 : index
    %c0_8 = arith.constant 0 : index
    %c0_9 = arith.constant 0 : index
    %6 = vector.load %arg4[%c0_6, %c0_7, %c0_8, %c0_9] : memref<1x3x12x4xbf16, #tpu.memory_space<vmem>>, vector<1x1x12x4xbf16>
    %7 = vector.shape_cast %6 : vector<1x1x12x4xbf16> to vector<12x4xbf16>
    %cst = arith.constant dense<0.000000e+00> : vector<64x4xf32>
    %8 = tpu.matmul %5, %7, %cst {dimension_numbers = #tpu.dot_dimension_numbers<[1], [0], [0], [1], [0, 0, 1, 1], [], []>} : vector<64x12xbf16>, vector<12x4xbf16>, vector<64x4xf32> -> vector<64x4xf32>
    %9 = arith.addf %3, %8 : vector<64x4xf32>
    %c0_10 = arith.constant 0 : index
    %c0_11 = arith.constant 0 : index
    %10 = vector.load %arg6[%c0_10, %c0_11] : memref<64x4xf32, #tpu.memory_space<vmem>>, vector<64x4xf32>
    tpu.vector_store %arg6[%c0_10, %c0_11], %9 {strides = array<i32>} : memref<64x4xf32, #tpu.memory_space<vmem>>, vector<64x4xf32>,
    %c0_12 = arith.constant 0 : index
    %c0_13 = arith.constant 0 : index
    %11 = vector.load %arg6[%c0_12, %c0_13] : memref<64x4xf32, #tpu.memory_space<vmem>>, vector<64x4xf32>
    %c0_14 = arith.constant 0 : index
    %c0_15 = arith.constant 0 : index
    %c8 = arith.constant 8 : index
    %c0_16 = arith.constant 0 : index
    %12 = vector.load %arg3[%c0_14, %c0_15, %c8, %c0_16] : memref<1x1x80x12xbf16, #tpu.memory_space<vmem>>, vector<1x1x64x12xbf16>
    %13 = vector.shape_cast %12 : vector<1x1x64x12xbf16> to vector<64x12xbf16>
    %c0_17 = arith.constant 0 : index
    %c1 = arith.constant 1 : index
    %c0_18 = arith.constant 0 : index
    %c0_19 = arith.constant 0 : index
    %14 = vector.load %arg4[%c0_17, %c1, %c0_18, %c0_19] : memref<1x3x12x4xbf16, #tpu.memory_space<vmem>>, vector<1x1x12x4xbf16>
    %15 = vector.shape_cast %14 : vector<1x1x12x4xbf16> to vector<12x4xbf16>
    %cst_20 = arith.constant dense<0.000000e+00> : vector<64x4xf32>
    %16 = tpu.matmul %13, %15, %cst_20 {dimension_numbers = #tpu.dot_dimension_numbers<[1], [0], [0], [1], [0, 0, 1, 1], [], []>} : vector<64x12xbf16>, vector<12x4xbf16>, vector<64x4xf32> -> vector<64x4xf32>
    %17 = arith.addf %11, %16 : vector<64x4xf32>
    %c0_21 = arith.constant 0 : index
    %c0_22 = arith.constant 0 : index
    %18 = vector.load %arg6[%c0_21, %c0_22] : memref<64x4xf32, #tpu.memory_space<vmem>>, vector<64x4xf32>
    tpu.vector_store %arg6[%c0_21, %c0_22], %17 {strides = array<i32>} : memref<64x4xf32, #tpu.memory_space<vmem>>, vector<64x4xf32>,
    %c0_23 = arith.constant 0 : index
    %c0_24 = arith.constant 0 : index
    %19 = vector.load %arg6[%c0_23, %c0_24] : memref<64x4xf32, #tpu.memory_space<vmem>>, vector<64x4xf32>
    %c0_25 = arith.constant 0 : index
    %c0_26 = arith.constant 0 : index
    %c16 = arith.constant 16 : index
    %c0_27 = arith.constant 0 : index
    %20 = vector.load %arg3[%c0_25, %c0_26, %c16, %c0_27] : memref<1x1x80x12xbf16, #tpu.memory_space<vmem>>, vector<1x1x64x12xbf16>
    %21 = vector.shape_cast %20 : vector<1x1x64x12xbf16> to vector<64x12xbf16>
    %c0_28 = arith.constant 0 : index
    %c2 = arith.constant 2 : index
    %c0_29 = arith.constant 0 : index
    %c0_30 = arith.constant 0 : index
    %22 = vector.load %arg4[%c0_28, %c2, %c0_29, %c0_30] : memref<1x3x12x4xbf16, #tpu.memory_space<vmem>>, vector<1x1x12x4xbf16>
    %23 = vector.shape_cast %22 : vector<1x1x12x4xbf16> to vector<12x4xbf16>
    %cst_31 = arith.constant dense<0.000000e+00> : vector<64x4xf32>
    %24 = tpu.matmul %21, %23, %cst_31 {dimension_numbers = #tpu.dot_dimension_numbers<[1], [0], [0], [1], [0, 0, 1, 1], [], []>} : vector<64x12xbf16>, vector<12x4xbf16>, vector<64x4xf32> -> vector<64x4xf32>
    %25 = arith.addf %19, %24 : vector<64x4xf32>
    %c0_32 = arith.constant 0 : index
    %c0_33 = arith.constant 0 : index
    %26 = vector.load %arg6[%c0_32, %c0_33] : memref<64x4xf32, #tpu.memory_space<vmem>>, vector<64x4xf32>
    tpu.vector_store %arg6[%c0_32, %c0_33], %25 {strides = array<i32>} : memref<64x4xf32, #tpu.memory_space<vmem>>, vector<64x4xf32>,
    %c2_i32 = arith.constant 2 : i32
    %27 = arith.cmpi eq, %arg2, %c2_i32 : i32
    %28 = arith.extui %27 : i1 to i32
    %c0_i32_34 = arith.constant 0 : i32
    %29 = arith.cmpi ne, %28, %c0_i32_34 : i32
    scf.if %29 {
      %c0_35 = arith.constant 0 : index
      %c0_36 = arith.constant 0 : index
      %30 = vector.load %arg6[%c0_35, %c0_36] : memref<64x4xf32, #tpu.memory_space<vmem>>, vector<64x4xf32>
      %31 = arith.truncf %30 : vector<64x4xf32> to vector<64x4xbf16>
      %c0_37 = arith.constant 0 : index
      %c0_38 = arith.constant 0 : index
      %c0_39 = arith.constant 0 : index
      %c0_40 = arith.constant 0 : index
      %32 = vector.load %arg5[%c0_37, %c0_38, %c0_39, %c0_40] : memref<1x1x64x4xbf16, #tpu.memory_space<vmem>>, vector<1x1x64x4xbf16>
      %33 = vector.shape_cast %32 : vector<1x1x64x4xbf16> to vector<64x4xbf16>
      %34 = vector.shape_cast %31 : vector<64x4xbf16> to vector<1x1x64x4xbf16>
      tpu.vector_store %arg5[%c0_37, %c0_38, %c0_39, %c0_40], %34 {strides = array<i32>} : memref<1x1x64x4xbf16, #tpu.memory_space<vmem>>, vector<1x1x64x4xbf16>,
    } else {
    }
    return
  }
  func.func @transform_0(%arg0: i32, %arg1: i32, %arg2: i32) -> (i32, i32, i32, i32) {
    %0 = arith.addi %arg1, %arg2 : i32
    %c0_i32 = arith.constant 0 : i32
    %c0_i32_0 = arith.constant 0 : i32
    %c0_i32_1 = arith.constant 0 : i32
    return %arg0, %0, %c0_i32, %c0_i32_0 : i32, i32, i32, i32
  }
  func.func @transform_1(%arg0: i32, %arg1: i32, %arg2: i32) -> (i32, i32, i32, i32) {
    %c0_i32 = arith.constant 0 : i32
    %c0_i32_0 = arith.constant 0 : i32
    %c0_i32_1 = arith.constant 0 : i32
    %c0_i32_2 = arith.constant 0 : i32
    return %arg2, %c0_i32, %c0_i32_0, %c0_i32_1 : i32, i32, i32, i32
  }
  func.func @transform_2(%arg0: i32, %arg1: i32, %arg2: i32) -> (i32, i32, i32, i32) {
    %c0_i32 = arith.constant 0 : i32
    %c0_i32_0 = arith.constant 0 : i32
    %c0_i32_1 = arith.constant 0 : i32
    return %arg0, %arg1, %c0_i32, %c0_i32_0 : i32, i32, i32, i32
  }
}

module attributes {stable_mosaic.version = 11 : i64} {
  func.func @_matmul_bias_kernel(%arg0: i32, %arg1: memref<1x256x4xbf16, #tpu.memory_space<vmem>>, %arg2: memref<4x4xbf16, #tpu.memory_space<vmem>>, %arg3: memref<1x4xf32, #tpu.memory_space<vmem>>, %arg4: memref<1x256x4xbf16, #tpu.memory_space<vmem>>) attributes {dimension_semantics = [#tpu.dimension_semantics<parallel>], iteration_bounds = array<i64: 1>, scalar_prefetch = 0 : i64, scratch_operands = 0 : i64, tpu.core_type = #tpu.core_type<tc>, window_params = [{transform_indices = @transform_0, window_bounds = array<i64: 1, 256, 4>}, {pipeline_mode = #tpu.pipeline_mode<synchronous>, transform_indices = @transform_1, window_bounds = array<i64: 4, 4>}, {pipeline_mode = #tpu.pipeline_mode<synchronous>, transform_indices = @transform_2, window_bounds = array<i64: 1, 4>}, {transform_indices = @transform_3, window_bounds = array<i64: 1, 256, 4>}]} {
    %c0 = arith.constant 0 : index
    %c0_0 = arith.constant 0 : index
    %c0_1 = arith.constant 0 : index
    %0 = vector.load %arg1[%c0, %c0_0, %c0_1] : memref<1x256x4xbf16, #tpu.memory_space<vmem>>, vector<1x256x4xbf16>
    %1 = vector.shape_cast %0 : vector<1x256x4xbf16> to vector<256x4xbf16>
    %c0_2 = arith.constant 0 : index
    %c0_3 = arith.constant 0 : index
    %2 = vector.load %arg2[%c0_2, %c0_3] : memref<4x4xbf16, #tpu.memory_space<vmem>>, vector<4x4xbf16>
    %cst = arith.constant dense<0.000000e+00> : vector<256x4xf32>
    %3 = tpu.matmul %1, %2, %cst {dimension_numbers = #tpu.dot_dimension_numbers<[1], [0], [0], [1], [0, 0, 1, 1], [], []>} : vector<256x4xbf16>, vector<4x4xbf16>, vector<256x4xf32> -> vector<256x4xf32>
    %c0_4 = arith.constant 0 : index
    %c0_5 = arith.constant 0 : index
    %4 = vector.load %arg3[%c0_4, %c0_5] : memref<1x4xf32, #tpu.memory_space<vmem>>, vector<1x4xf32>
    %5 = vector.broadcast %4 : vector<1x4xf32> to vector<256x4xf32>
    %6 = arith.addf %3, %5 : vector<256x4xf32>
    %7 = arith.truncf %6 : vector<256x4xf32> to vector<256x4xbf16>
    %c0_6 = arith.constant 0 : index
    %c0_7 = arith.constant 0 : index
    %c0_8 = arith.constant 0 : index
    %8 = vector.load %arg4[%c0_6, %c0_7, %c0_8] : memref<1x256x4xbf16, #tpu.memory_space<vmem>>, vector<1x256x4xbf16>
    %9 = vector.shape_cast %8 : vector<1x256x4xbf16> to vector<256x4xbf16>
    %10 = vector.shape_cast %7 : vector<256x4xbf16> to vector<1x256x4xbf16>
    tpu.vector_store %arg4[%c0_6, %c0_7, %c0_8], %10 {strides = array<i32>} : memref<1x256x4xbf16, #tpu.memory_space<vmem>>, vector<1x256x4xbf16>,
    return
  }
  func.func @transform_0(%arg0: i32) -> (i32, i32, i32) {
    %c0_i32 = arith.constant 0 : i32
    %c0_i32_0 = arith.constant 0 : i32
    %c0_i32_1 = arith.constant 0 : i32
    return %arg0, %c0_i32, %c0_i32_0 : i32, i32, i32
  }
  func.func @transform_1(%arg0: i32) -> (i32, i32) {
    %c0_i32 = arith.constant 0 : i32
    %c0_i32_0 = arith.constant 0 : i32
    %c0_i32_1 = arith.constant 0 : i32
    return %c0_i32, %c0_i32_0 : i32, i32
  }
  func.func @transform_2(%arg0: i32) -> (i32, i32) {
    %c0_i32 = arith.constant 0 : i32
    %c0_i32_0 = arith.constant 0 : i32
    %c0_i32_1 = arith.constant 0 : i32
    return %c0_i32, %c0_i32_0 : i32, i32
  }
  func.func @transform_3(%arg0: i32) -> (i32, i32, i32) {
    %c0_i32 = arith.constant 0 : i32
    %c0_i32_0 = arith.constant 0 : i32
    %c0_i32_1 = arith.constant 0 : i32
    return %arg0, %c0_i32, %c0_i32_0 : i32, i32, i32
  }
}

module attributes {stable_mosaic.version = 11 : i64} {
  func.func @kernel(%arg0: i32, %arg1: i32, %arg2: i32, %arg3: memref<1x1x48x12xbf16, #tpu.memory_space<vmem>>, %arg4: memref<1x3x12x8xbf16, #tpu.memory_space<vmem>>, %arg5: memref<1x1x32x8xbf16, #tpu.memory_space<vmem>>, %arg6: memref<32x8xf32, #tpu.memory_space<vmem>>) attributes {dimension_semantics = [#tpu.dimension_semantics<parallel>, #tpu.dimension_semantics<parallel>, #tpu.dimension_semantics<arbitrary>], iteration_bounds = array<i64: 4, 4, 3>, scalar_prefetch = 0 : i64, scratch_operands = 1 : i64, tpu.core_type = #tpu.core_type<tc>, window_params = [{transform_indices = @transform_0, window_bounds = array<i64: 1, 1, 48, 12>}, {transform_indices = @transform_1, window_bounds = array<i64: 1, 3, 12, 8>}, {transform_indices = @transform_2, window_bounds = array<i64: 1, 1, 32, 8>}]} {
    %c0_i32 = arith.constant 0 : i32
    %0 = arith.cmpi eq, %arg2, %c0_i32 : i32
    %1 = arith.extui %0 : i1 to i32
    %c0_i32_0 = arith.constant 0 : i32
    %2 = arith.cmpi ne, %1, %c0_i32_0 : i32
    scf.if %2 {
      %cst_35 = arith.constant 0.000000e+00 : f32
      %30 = vector.broadcast %cst_35 : f32 to vector<32x8xf32>
      %c0_36 = arith.constant 0 : index
      %c0_37 = arith.constant 0 : index
      %31 = vector.load %arg6[%c0_36, %c0_37] : memref<32x8xf32, #tpu.memory_space<vmem>>, vector<32x8xf32>
      tpu.vector_store %arg6[%c0_36, %c0_37], %30 {strides = array<i32>} : memref<32x8xf32, #tpu.memory_space<vmem>>, vector<32x8xf32>,
    } else {
    }
    %c0 = arith.constant 0 : index
    %c0_1 = arith.constant 0 : index
    %3 = vector.load %arg6[%c0, %c0_1] : memref<32x8xf32, #tpu.memory_space<vmem>>, vector<32x8xf32>
    %c0_2 = arith.constant 0 : index
    %c0_3 = arith.constant 0 : index
    %c0_4 = arith.constant 0 : index
    %c0_5 = arith.constant 0 : index
    %4 = vector.load %arg3[%c0_2, %c0_3, %c0_4, %c0_5] : memref<1x1x48x12xbf16, #tpu.memory_space<vmem>>, vector<1x1x32x12xbf16>
    %5 = vector.shape_cast %4 : vector<1x1x32x12xbf16> to vector<32x12xbf16>
    %c0_6 = arith.constant 0 : index
    %c0_7 = arith.constant 0 : index
    %c0_8 = arith.constant 0 : index
    %c0_9 = arith.constant 0 : index
    %6 = vector.load %arg4[%c0_6, %c0_7, %c0_8, %c0_9] : memref<1x3x12x8xbf16, #tpu.memory_space<vmem>>, vector<1x1x12x8xbf16>
    %7 = vector.shape_cast %6 : vector<1x1x12x8xbf16> to vector<12x8xbf16>
    %cst = arith.constant dense<0.000000e+00> : vector<32x8xf32>
    %8 = tpu.matmul %5, %7, %cst {dimension_numbers = #tpu.dot_dimension_numbers<[1], [0], [0], [1], [0, 0, 1, 1], [], []>} : vector<32x12xbf16>, vector<12x8xbf16>, vector<32x8xf32> -> vector<32x8xf32>
    %9 = arith.addf %3, %8 : vector<32x8xf32>
    %c0_10 = arith.constant 0 : index
    %c0_11 = arith.constant 0 : index
    %10 = vector.load %arg6[%c0_10, %c0_11] : memref<32x8xf32, #tpu.memory_space<vmem>>, vector<32x8xf32>
    tpu.vector_store %arg6[%c0_10, %c0_11], %9 {strides = array<i32>} : memref<32x8xf32, #tpu.memory_space<vmem>>, vector<32x8xf32>,
    %c0_12 = arith.constant 0 : index
    %c0_13 = arith.constant 0 : index
    %11 = vector.load %arg6[%c0_12, %c0_13] : memref<32x8xf32, #tpu.memory_space<vmem>>, vector<32x8xf32>
    %c0_14 = arith.constant 0 : index
    %c0_15 = arith.constant 0 : index
    %c8 = arith.constant 8 : index
    %c0_16 = arith.constant 0 : index
    %12 = vector.load %arg3[%c0_14, %c0_15, %c8, %c0_16] : memref<1x1x48x12xbf16, #tpu.memory_space<vmem>>, vector<1x1x32x12xbf16>
    %13 = vector.shape_cast %12 : vector<1x1x32x12xbf16> to vector<32x12xbf16>
    %c0_17 = arith.constant 0 : index
    %c1 = arith.constant 1 : index
    %c0_18 = arith.constant 0 : index
    %c0_19 = arith.constant 0 : index
    %14 = vector.load %arg4[%c0_17, %c1, %c0_18, %c0_19] : memref<1x3x12x8xbf16, #tpu.memory_space<vmem>>, vector<1x1x12x8xbf16>
    %15 = vector.shape_cast %14 : vector<1x1x12x8xbf16> to vector<12x8xbf16>
    %cst_20 = arith.constant dense<0.000000e+00> : vector<32x8xf32>
    %16 = tpu.matmul %13, %15, %cst_20 {dimension_numbers = #tpu.dot_dimension_numbers<[1], [0], [0], [1], [0, 0, 1, 1], [], []>} : vector<32x12xbf16>, vector<12x8xbf16>, vector<32x8xf32> -> vector<32x8xf32>
    %17 = arith.addf %11, %16 : vector<32x8xf32>
    %c0_21 = arith.constant 0 : index
    %c0_22 = arith.constant 0 : index
    %18 = vector.load %arg6[%c0_21, %c0_22] : memref<32x8xf32, #tpu.memory_space<vmem>>, vector<32x8xf32>
    tpu.vector_store %arg6[%c0_21, %c0_22], %17 {strides = array<i32>} : memref<32x8xf32, #tpu.memory_space<vmem>>, vector<32x8xf32>,
    %c0_23 = arith.constant 0 : index
    %c0_24 = arith.constant 0 : index
    %19 = vector.load %arg6[%c0_23, %c0_24] : memref<32x8xf32, #tpu.memory_space<vmem>>, vector<32x8xf32>
    %c0_25 = arith.constant 0 : index
    %c0_26 = arith.constant 0 : index
    %c16 = arith.constant 16 : index
    %c0_27 = arith.constant 0 : index
    %20 = vector.load %arg3[%c0_25, %c0_26, %c16, %c0_27] : memref<1x1x48x12xbf16, #tpu.memory_space<vmem>>, vector<1x1x32x12xbf16>
    %21 = vector.shape_cast %20 : vector<1x1x32x12xbf16> to vector<32x12xbf16>
    %c0_28 = arith.constant 0 : index
    %c2 = arith.constant 2 : index
    %c0_29 = arith.constant 0 : index
    %c0_30 = arith.constant 0 : index
    %22 = vector.load %arg4[%c0_28, %c2, %c0_29, %c0_30] : memref<1x3x12x8xbf16, #tpu.memory_space<vmem>>, vector<1x1x12x8xbf16>
    %23 = vector.shape_cast %22 : vector<1x1x12x8xbf16> to vector<12x8xbf16>
    %cst_31 = arith.constant dense<0.000000e+00> : vector<32x8xf32>
    %24 = tpu.matmul %21, %23, %cst_31 {dimension_numbers = #tpu.dot_dimension_numbers<[1], [0], [0], [1], [0, 0, 1, 1], [], []>} : vector<32x12xbf16>, vector<12x8xbf16>, vector<32x8xf32> -> vector<32x8xf32>
    %25 = arith.addf %19, %24 : vector<32x8xf32>
    %c0_32 = arith.constant 0 : index
    %c0_33 = arith.constant 0 : index
    %26 = vector.load %arg6[%c0_32, %c0_33] : memref<32x8xf32, #tpu.memory_space<vmem>>, vector<32x8xf32>
    tpu.vector_store %arg6[%c0_32, %c0_33], %25 {strides = array<i32>} : memref<32x8xf32, #tpu.memory_space<vmem>>, vector<32x8xf32>,
    %c2_i32 = arith.constant 2 : i32
    %27 = arith.cmpi eq, %arg2, %c2_i32 : i32
    %28 = arith.extui %27 : i1 to i32
    %c0_i32_34 = arith.constant 0 : i32
    %29 = arith.cmpi ne, %28, %c0_i32_34 : i32
    scf.if %29 {
      %c0_35 = arith.constant 0 : index
      %c0_36 = arith.constant 0 : index
      %30 = vector.load %arg6[%c0_35, %c0_36] : memref<32x8xf32, #tpu.memory_space<vmem>>, vector<32x8xf32>
      %31 = arith.truncf %30 : vector<32x8xf32> to vector<32x8xbf16>
      %c0_37 = arith.constant 0 : index
      %c0_38 = arith.constant 0 : index
      %c0_39 = arith.constant 0 : index
      %c0_40 = arith.constant 0 : index
      %32 = vector.load %arg5[%c0_37, %c0_38, %c0_39, %c0_40] : memref<1x1x32x8xbf16, #tpu.memory_space<vmem>>, vector<1x1x32x8xbf16>
      %33 = vector.shape_cast %32 : vector<1x1x32x8xbf16> to vector<32x8xbf16>
      %34 = vector.shape_cast %31 : vector<32x8xbf16> to vector<1x1x32x8xbf16>
      tpu.vector_store %arg5[%c0_37, %c0_38, %c0_39, %c0_40], %34 {strides = array<i32>} : memref<1x1x32x8xbf16, #tpu.memory_space<vmem>>, vector<1x1x32x8xbf16>,
    } else {
    }
    return
  }
  func.func @transform_0(%arg0: i32, %arg1: i32, %arg2: i32) -> (i32, i32, i32, i32) {
    %0 = arith.addi %arg1, %arg2 : i32
    %c0_i32 = arith.constant 0 : i32
    %c0_i32_0 = arith.constant 0 : i32
    %c0_i32_1 = arith.constant 0 : i32
    return %arg0, %0, %c0_i32, %c0_i32_0 : i32, i32, i32, i32
  }
  func.func @transform_1(%arg0: i32, %arg1: i32, %arg2: i32) -> (i32, i32, i32, i32) {
    %c0_i32 = arith.constant 0 : i32
    %c0_i32_0 = arith.constant 0 : i32
    %c0_i32_1 = arith.constant 0 : i32
    %c0_i32_2 = arith.constant 0 : i32
    return %arg2, %c0_i32, %c0_i32_0, %c0_i32_1 : i32, i32, i32, i32
  }
  func.func @transform_2(%arg0: i32, %arg1: i32, %arg2: i32) -> (i32, i32, i32, i32) {
    %c0_i32 = arith.constant 0 : i32
    %c0_i32_0 = arith.constant 0 : i32
    %c0_i32_1 = arith.constant 0 : i32
    return %arg0, %arg1, %c0_i32, %c0_i32_0 : i32, i32, i32, i32
  }
}

module attributes {stable_mosaic.version = 11 : i64} {
  func.func @kernel(%arg0: i32, %arg1: i32, %arg2: i32, %arg3: memref<1x1x48x24xbf16, #tpu.memory_space<vmem>>, %arg4: memref<1x3x24x8xbf16, #tpu.memory_space<vmem>>, %arg5: memref<1x1x32x8xbf16, #tpu.memory_space<vmem>>, %arg6: memref<32x8xf32, #tpu.memory_space<vmem>>) attributes {dimension_semantics = [#tpu.dimension_semantics<parallel>, #tpu.dimension_semantics<parallel>, #tpu.dimension_semantics<arbitrary>], iteration_bounds = array<i64: 4, 4, 3>, scalar_prefetch = 0 : i64, scratch_operands = 1 : i64, tpu.core_type = #tpu.core_type<tc>, window_params = [{transform_indices = @transform_0, window_bounds = array<i64: 1, 1, 48, 24>}, {transform_indices = @transform_1, window_bounds = array<i64: 1, 3, 24, 8>}, {transform_indices = @transform_2, window_bounds = array<i64: 1, 1, 32, 8>}]} {
    %c0_i32 = arith.constant 0 : i32
    %0 = arith.cmpi eq, %arg2, %c0_i32 : i32
    %1 = arith.extui %0 : i1 to i32
    %c0_i32_0 = arith.constant 0 : i32
    %2 = arith.cmpi ne, %1, %c0_i32_0 : i32
    scf.if %2 {
      %cst_35 = arith.constant 0.000000e+00 : f32
      %30 = vector.broadcast %cst_35 : f32 to vector<32x8xf32>
      %c0_36 = arith.constant 0 : index
      %c0_37 = arith.constant 0 : index
      %31 = vector.load %arg6[%c0_36, %c0_37] : memref<32x8xf32, #tpu.memory_space<vmem>>, vector<32x8xf32>
      tpu.vector_store %arg6[%c0_36, %c0_37], %30 {strides = array<i32>} : memref<32x8xf32, #tpu.memory_space<vmem>>, vector<32x8xf32>,
    } else {
    }
    %c0 = arith.constant 0 : index
    %c0_1 = arith.constant 0 : index
    %3 = vector.load %arg6[%c0, %c0_1] : memref<32x8xf32, #tpu.memory_space<vmem>>, vector<32x8xf32>
    %c0_2 = arith.constant 0 : index
    %c0_3 = arith.constant 0 : index
    %c0_4 = arith.constant 0 : index
    %c0_5 = arith.constant 0 : index
    %4 = vector.load %arg3[%c0_2, %c0_3, %c0_4, %c0_5] : memref<1x1x48x24xbf16, #tpu.memory_space<vmem>>, vector<1x1x32x24xbf16>
    %5 = vector.shape_cast %4 : vector<1x1x32x24xbf16> to vector<32x24xbf16>
    %c0_6 = arith.constant 0 : index
    %c0_7 = arith.constant 0 : index
    %c0_8 = arith.constant 0 : index
    %c0_9 = arith.constant 0 : index
    %6 = vector.load %arg4[%c0_6, %c0_7, %c0_8, %c0_9] : memref<1x3x24x8xbf16, #tpu.memory_space<vmem>>, vector<1x1x24x8xbf16>
    %7 = vector.shape_cast %6 : vector<1x1x24x8xbf16> to vector<24x8xbf16>
    %cst = arith.constant dense<0.000000e+00> : vector<32x8xf32>
    %8 = tpu.matmul %5, %7, %cst {dimension_numbers = #tpu.dot_dimension_numbers<[1], [0], [0], [1], [0, 0, 1, 1], [], []>} : vector<32x24xbf16>, vector<24x8xbf16>, vector<32x8xf32> -> vector<32x8xf32>
    %9 = arith.addf %3, %8 : vector<32x8xf32>
    %c0_10 = arith.constant 0 : index
    %c0_11 = arith.constant 0 : index
    %10 = vector.load %arg6[%c0_10, %c0_11] : memref<32x8xf32, #tpu.memory_space<vmem>>, vector<32x8xf32>
    tpu.vector_store %arg6[%c0_10, %c0_11], %9 {strides = array<i32>} : memref<32x8xf32, #tpu.memory_space<vmem>>, vector<32x8xf32>,
    %c0_12 = arith.constant 0 : index
    %c0_13 = arith.constant 0 : index
    %11 = vector.load %arg6[%c0_12, %c0_13] : memref<32x8xf32, #tpu.memory_space<vmem>>, vector<32x8xf32>
    %c0_14 = arith.constant 0 : index
    %c0_15 = arith.constant 0 : index
    %c8 = arith.constant 8 : index
    %c0_16 = arith.constant 0 : index
    %12 = vector.load %arg3[%c0_14, %c0_15, %c8, %c0_16] : memref<1x1x48x24xbf16, #tpu.memory_space<vmem>>, vector<1x1x32x24xbf16>
    %13 = vector.shape_cast %12 : vector<1x1x32x24xbf16> to vector<32x24xbf16>
    %c0_17 = arith.constant 0 : index
    %c1 = arith.constant 1 : index
    %c0_18 = arith.constant 0 : index
    %c0_19 = arith.constant 0 : index
    %14 = vector.load %arg4[%c0_17, %c1, %c0_18, %c0_19] : memref<1x3x24x8xbf16, #tpu.memory_space<vmem>>, vector<1x1x24x8xbf16>
    %15 = vector.shape_cast %14 : vector<1x1x24x8xbf16> to vector<24x8xbf16>
    %cst_20 = arith.constant dense<0.000000e+00> : vector<32x8xf32>
    %16 = tpu.matmul %13, %15, %cst_20 {dimension_numbers = #tpu.dot_dimension_numbers<[1], [0], [0], [1], [0, 0, 1, 1], [], []>} : vector<32x24xbf16>, vector<24x8xbf16>, vector<32x8xf32> -> vector<32x8xf32>
    %17 = arith.addf %11, %16 : vector<32x8xf32>
    %c0_21 = arith.constant 0 : index
    %c0_22 = arith.constant 0 : index
    %18 = vector.load %arg6[%c0_21, %c0_22] : memref<32x8xf32, #tpu.memory_space<vmem>>, vector<32x8xf32>
    tpu.vector_store %arg6[%c0_21, %c0_22], %17 {strides = array<i32>} : memref<32x8xf32, #tpu.memory_space<vmem>>, vector<32x8xf32>,
    %c0_23 = arith.constant 0 : index
    %c0_24 = arith.constant 0 : index
    %19 = vector.load %arg6[%c0_23, %c0_24] : memref<32x8xf32, #tpu.memory_space<vmem>>, vector<32x8xf32>
    %c0_25 = arith.constant 0 : index
    %c0_26 = arith.constant 0 : index
    %c16 = arith.constant 16 : index
    %c0_27 = arith.constant 0 : index
    %20 = vector.load %arg3[%c0_25, %c0_26, %c16, %c0_27] : memref<1x1x48x24xbf16, #tpu.memory_space<vmem>>, vector<1x1x32x24xbf16>
    %21 = vector.shape_cast %20 : vector<1x1x32x24xbf16> to vector<32x24xbf16>
    %c0_28 = arith.constant 0 : index
    %c2 = arith.constant 2 : index
    %c0_29 = arith.constant 0 : index
    %c0_30 = arith.constant 0 : index
    %22 = vector.load %arg4[%c0_28, %c2, %c0_29, %c0_30] : memref<1x3x24x8xbf16, #tpu.memory_space<vmem>>, vector<1x1x24x8xbf16>
    %23 = vector.shape_cast %22 : vector<1x1x24x8xbf16> to vector<24x8xbf16>
    %cst_31 = arith.constant dense<0.000000e+00> : vector<32x8xf32>
    %24 = tpu.matmul %21, %23, %cst_31 {dimension_numbers = #tpu.dot_dimension_numbers<[1], [0], [0], [1], [0, 0, 1, 1], [], []>} : vector<32x24xbf16>, vector<24x8xbf16>, vector<32x8xf32> -> vector<32x8xf32>
    %25 = arith.addf %19, %24 : vector<32x8xf32>
    %c0_32 = arith.constant 0 : index
    %c0_33 = arith.constant 0 : index
    %26 = vector.load %arg6[%c0_32, %c0_33] : memref<32x8xf32, #tpu.memory_space<vmem>>, vector<32x8xf32>
    tpu.vector_store %arg6[%c0_32, %c0_33], %25 {strides = array<i32>} : memref<32x8xf32, #tpu.memory_space<vmem>>, vector<32x8xf32>,
    %c2_i32 = arith.constant 2 : i32
    %27 = arith.cmpi eq, %arg2, %c2_i32 : i32
    %28 = arith.extui %27 : i1 to i32
    %c0_i32_34 = arith.constant 0 : i32
    %29 = arith.cmpi ne, %28, %c0_i32_34 : i32
    scf.if %29 {
      %c0_35 = arith.constant 0 : index
      %c0_36 = arith.constant 0 : index
      %30 = vector.load %arg6[%c0_35, %c0_36] : memref<32x8xf32, #tpu.memory_space<vmem>>, vector<32x8xf32>
      %31 = arith.truncf %30 : vector<32x8xf32> to vector<32x8xbf16>
      %c0_37 = arith.constant 0 : index
      %c0_38 = arith.constant 0 : index
      %c0_39 = arith.constant 0 : index
      %c0_40 = arith.constant 0 : index
      %32 = vector.load %arg5[%c0_37, %c0_38, %c0_39, %c0_40] : memref<1x1x32x8xbf16, #tpu.memory_space<vmem>>, vector<1x1x32x8xbf16>
      %33 = vector.shape_cast %32 : vector<1x1x32x8xbf16> to vector<32x8xbf16>
      %34 = vector.shape_cast %31 : vector<32x8xbf16> to vector<1x1x32x8xbf16>
      tpu.vector_store %arg5[%c0_37, %c0_38, %c0_39, %c0_40], %34 {strides = array<i32>} : memref<1x1x32x8xbf16, #tpu.memory_space<vmem>>, vector<1x1x32x8xbf16>,
    } else {
    }
    return
  }
  func.func @transform_0(%arg0: i32, %arg1: i32, %arg2: i32) -> (i32, i32, i32, i32) {
    %0 = arith.addi %arg1, %arg2 : i32
    %c0_i32 = arith.constant 0 : i32
    %c0_i32_0 = arith.constant 0 : i32
    %c0_i32_1 = arith.constant 0 : i32
    return %arg0, %0, %c0_i32, %c0_i32_0 : i32, i32, i32, i32
  }
  func.func @transform_1(%arg0: i32, %arg1: i32, %arg2: i32) -> (i32, i32, i32, i32) {
    %c0_i32 = arith.constant 0 : i32
    %c0_i32_0 = arith.constant 0 : i32
    %c0_i32_1 = arith.constant 0 : i32
    %c0_i32_2 = arith.constant 0 : i32
    return %arg2, %c0_i32, %c0_i32_0, %c0_i32_1 : i32, i32, i32, i32
  }
  func.func @transform_2(%arg0: i32, %arg1: i32, %arg2: i32) -> (i32, i32, i32, i32) {
    %c0_i32 = arith.constant 0 : i32
    %c0_i32_0 = arith.constant 0 : i32
    %c0_i32_1 = arith.constant 0 : i32
    return %arg0, %arg1, %c0_i32, %c0_i32_0 : i32, i32, i32, i32
  }
}

module attributes {stable_mosaic.version = 11 : i64} {
  func.func @_matmul_bias_kernel(%arg0: i32, %arg1: memref<1x32x8xbf16, #tpu.memory_space<vmem>>, %arg2: memref<8x8xbf16, #tpu.memory_space<vmem>>, %arg3: memref<1x8xf32, #tpu.memory_space<vmem>>, %arg4: memref<1x32x8xbf16, #tpu.memory_space<vmem>>) attributes {dimension_semantics = [#tpu.dimension_semantics<parallel>], iteration_bounds = array<i64: 1>, scalar_prefetch = 0 : i64, scratch_operands = 0 : i64, tpu.core_type = #tpu.core_type<tc>, window_params = [{transform_indices = @transform_0, window_bounds = array<i64: 1, 32, 8>}, {pipeline_mode = #tpu.pipeline_mode<synchronous>, transform_indices = @transform_1, window_bounds = array<i64: 8, 8>}, {pipeline_mode = #tpu.pipeline_mode<synchronous>, transform_indices = @transform_2, window_bounds = array<i64: 1, 8>}, {transform_indices = @transform_3, window_bounds = array<i64: 1, 32, 8>}]} {
    %c0 = arith.constant 0 : index
    %c0_0 = arith.constant 0 : index
    %c0_1 = arith.constant 0 : index
    %0 = vector.load %arg1[%c0, %c0_0, %c0_1] : memref<1x32x8xbf16, #tpu.memory_space<vmem>>, vector<1x32x8xbf16>
    %1 = vector.shape_cast %0 : vector<1x32x8xbf16> to vector<32x8xbf16>
    %c0_2 = arith.constant 0 : index
    %c0_3 = arith.constant 0 : index
    %2 = vector.load %arg2[%c0_2, %c0_3] : memref<8x8xbf16, #tpu.memory_space<vmem>>, vector<8x8xbf16>
    %cst = arith.constant dense<0.000000e+00> : vector<32x8xf32>
    %3 = tpu.matmul %1, %2, %cst {dimension_numbers = #tpu.dot_dimension_numbers<[1], [0], [0], [1], [0, 0, 1, 1], [], []>} : vector<32x8xbf16>, vector<8x8xbf16>, vector<32x8xf32> -> vector<32x8xf32>
    %c0_4 = arith.constant 0 : index
    %c0_5 = arith.constant 0 : index
    %4 = vector.load %arg3[%c0_4, %c0_5] : memref<1x8xf32, #tpu.memory_space<vmem>>, vector<1x8xf32>
    %5 = vector.broadcast %4 : vector<1x8xf32> to vector<32x8xf32>
    %6 = arith.addf %3, %5 : vector<32x8xf32>
    %7 = arith.truncf %6 : vector<32x8xf32> to vector<32x8xbf16>
    %c0_6 = arith.constant 0 : index
    %c0_7 = arith.constant 0 : index
    %c0_8 = arith.constant 0 : index
    %8 = vector.load %arg4[%c0_6, %c0_7, %c0_8] : memref<1x32x8xbf16, #tpu.memory_space<vmem>>, vector<1x32x8xbf16>
    %9 = vector.shape_cast %8 : vector<1x32x8xbf16> to vector<32x8xbf16>
    %10 = vector.shape_cast %7 : vector<32x8xbf16> to vector<1x32x8xbf16>
    tpu.vector_store %arg4[%c0_6, %c0_7, %c0_8], %10 {strides = array<i32>} : memref<1x32x8xbf16, #tpu.memory_space<vmem>>, vector<1x32x8xbf16>,
    return
  }
  func.func @transform_0(%arg0: i32) -> (i32, i32, i32) {
    %c0_i32 = arith.constant 0 : i32
    %c0_i32_0 = arith.constant 0 : i32
    %c0_i32_1 = arith.constant 0 : i32
    return %arg0, %c0_i32, %c0_i32_0 : i32, i32, i32
  }
  func.func @transform_1(%arg0: i32) -> (i32, i32) {
    %c0_i32 = arith.constant 0 : i32
    %c0_i32_0 = arith.constant 0 : i32
    %c0_i32_1 = arith.constant 0 : i32
    return %c0_i32, %c0_i32_0 : i32, i32
  }
  func.func @transform_2(%arg0: i32) -> (i32, i32) {
    %c0_i32 = arith.constant 0 : i32
    %c0_i32_0 = arith.constant 0 : i32
    %c0_i32_1 = arith.constant 0 : i32
    return %c0_i32, %c0_i32_0 : i32, i32
  }
  func.func @transform_3(%arg0: i32) -> (i32, i32, i32) {
    %c0_i32 = arith.constant 0 : i32
    %c0_i32_0 = arith.constant 0 : i32
    %c0_i32_1 = arith.constant 0 : i32
    return %arg0, %c0_i32, %c0_i32_0 : i32, i32, i32
  }
}

module attributes {stable_mosaic.version = 11 : i64} {
  func.func @kernel(%arg0: i32, %arg1: i32, %arg2: i32, %arg3: memref<1x1x32x24xbf16, #tpu.memory_space<vmem>>, %arg4: memref<1x3x24x16xbf16, #tpu.memory_space<vmem>>, %arg5: memref<1x1x16x16xbf16, #tpu.memory_space<vmem>>, %arg6: memref<16x16xf32, #tpu.memory_space<vmem>>) attributes {dimension_semantics = [#tpu.dimension_semantics<parallel>, #tpu.dimension_semantics<parallel>, #tpu.dimension_semantics<arbitrary>], iteration_bounds = array<i64: 4, 2, 3>, scalar_prefetch = 0 : i64, scratch_operands = 1 : i64, tpu.core_type = #tpu.core_type<tc>, window_params = [{transform_indices = @transform_0, window_bounds = array<i64: 1, 1, 32, 24>}, {transform_indices = @transform_1, window_bounds = array<i64: 1, 3, 24, 16>}, {transform_indices = @transform_2, window_bounds = array<i64: 1, 1, 16, 16>}]} {
    %c0_i32 = arith.constant 0 : i32
    %0 = arith.cmpi eq, %arg2, %c0_i32 : i32
    %1 = arith.extui %0 : i1 to i32
    %c0_i32_0 = arith.constant 0 : i32
    %2 = arith.cmpi ne, %1, %c0_i32_0 : i32
    scf.if %2 {
      %cst_35 = arith.constant 0.000000e+00 : f32
      %30 = vector.broadcast %cst_35 : f32 to vector<16x16xf32>
      %c0_36 = arith.constant 0 : index
      %c0_37 = arith.constant 0 : index
      %31 = vector.load %arg6[%c0_36, %c0_37] : memref<16x16xf32, #tpu.memory_space<vmem>>, vector<16x16xf32>
      tpu.vector_store %arg6[%c0_36, %c0_37], %30 {strides = array<i32>} : memref<16x16xf32, #tpu.memory_space<vmem>>, vector<16x16xf32>,
    } else {
    }
    %c0 = arith.constant 0 : index
    %c0_1 = arith.constant 0 : index
    %3 = vector.load %arg6[%c0, %c0_1] : memref<16x16xf32, #tpu.memory_space<vmem>>, vector<16x16xf32>
    %c0_2 = arith.constant 0 : index
    %c0_3 = arith.constant 0 : index
    %c0_4 = arith.constant 0 : index
    %c0_5 = arith.constant 0 : index
    %4 = vector.load %arg3[%c0_2, %c0_3, %c0_4, %c0_5] : memref<1x1x32x24xbf16, #tpu.memory_space<vmem>>, vector<1x1x16x24xbf16>
    %5 = vector.shape_cast %4 : vector<1x1x16x24xbf16> to vector<16x24xbf16>
    %c0_6 = arith.constant 0 : index
    %c0_7 = arith.constant 0 : index
    %c0_8 = arith.constant 0 : index
    %c0_9 = arith.constant 0 : index
    %6 = vector.load %arg4[%c0_6, %c0_7, %c0_8, %c0_9] : memref<1x3x24x16xbf16, #tpu.memory_space<vmem>>, vector<1x1x24x16xbf16>
    %7 = vector.shape_cast %6 : vector<1x1x24x16xbf16> to vector<24x16xbf16>
    %cst = arith.constant dense<0.000000e+00> : vector<16x16xf32>
    %8 = tpu.matmul %5, %7, %cst {dimension_numbers = #tpu.dot_dimension_numbers<[1], [0], [0], [1], [0, 0, 1, 1], [], []>} : vector<16x24xbf16>, vector<24x16xbf16>, vector<16x16xf32> -> vector<16x16xf32>
    %9 = arith.addf %3, %8 : vector<16x16xf32>
    %c0_10 = arith.constant 0 : index
    %c0_11 = arith.constant 0 : index
    %10 = vector.load %arg6[%c0_10, %c0_11] : memref<16x16xf32, #tpu.memory_space<vmem>>, vector<16x16xf32>
    tpu.vector_store %arg6[%c0_10, %c0_11], %9 {strides = array<i32>} : memref<16x16xf32, #tpu.memory_space<vmem>>, vector<16x16xf32>,
    %c0_12 = arith.constant 0 : index
    %c0_13 = arith.constant 0 : index
    %11 = vector.load %arg6[%c0_12, %c0_13] : memref<16x16xf32, #tpu.memory_space<vmem>>, vector<16x16xf32>
    %c0_14 = arith.constant 0 : index
    %c0_15 = arith.constant 0 : index
    %c8 = arith.constant 8 : index
    %c0_16 = arith.constant 0 : index
    %12 = vector.load %arg3[%c0_14, %c0_15, %c8, %c0_16] : memref<1x1x32x24xbf16, #tpu.memory_space<vmem>>, vector<1x1x16x24xbf16>
    %13 = vector.shape_cast %12 : vector<1x1x16x24xbf16> to vector<16x24xbf16>
    %c0_17 = arith.constant 0 : index
    %c1 = arith.constant 1 : index
    %c0_18 = arith.constant 0 : index
    %c0_19 = arith.constant 0 : index
    %14 = vector.load %arg4[%c0_17, %c1, %c0_18, %c0_19] : memref<1x3x24x16xbf16, #tpu.memory_space<vmem>>, vector<1x1x24x16xbf16>
    %15 = vector.shape_cast %14 : vector<1x1x24x16xbf16> to vector<24x16xbf16>
    %cst_20 = arith.constant dense<0.000000e+00> : vector<16x16xf32>
    %16 = tpu.matmul %13, %15, %cst_20 {dimension_numbers = #tpu.dot_dimension_numbers<[1], [0], [0], [1], [0, 0, 1, 1], [], []>} : vector<16x24xbf16>, vector<24x16xbf16>, vector<16x16xf32> -> vector<16x16xf32>
    %17 = arith.addf %11, %16 : vector<16x16xf32>
    %c0_21 = arith.constant 0 : index
    %c0_22 = arith.constant 0 : index
    %18 = vector.load %arg6[%c0_21, %c0_22] : memref<16x16xf32, #tpu.memory_space<vmem>>, vector<16x16xf32>
    tpu.vector_store %arg6[%c0_21, %c0_22], %17 {strides = array<i32>} : memref<16x16xf32, #tpu.memory_space<vmem>>, vector<16x16xf32>,
    %c0_23 = arith.constant 0 : index
    %c0_24 = arith.constant 0 : index
    %19 = vector.load %arg6[%c0_23, %c0_24] : memref<16x16xf32, #tpu.memory_space<vmem>>, vector<16x16xf32>
    %c0_25 = arith.constant 0 : index
    %c0_26 = arith.constant 0 : index
    %c16 = arith.constant 16 : index
    %c0_27 = arith.constant 0 : index
    %20 = vector.load %arg3[%c0_25, %c0_26, %c16, %c0_27] : memref<1x1x32x24xbf16, #tpu.memory_space<vmem>>, vector<1x1x16x24xbf16>
    %21 = vector.shape_cast %20 : vector<1x1x16x24xbf16> to vector<16x24xbf16>
    %c0_28 = arith.constant 0 : index
    %c2 = arith.constant 2 : index
    %c0_29 = arith.constant 0 : index
    %c0_30 = arith.constant 0 : index
    %22 = vector.load %arg4[%c0_28, %c2, %c0_29, %c0_30] : memref<1x3x24x16xbf16, #tpu.memory_space<vmem>>, vector<1x1x24x16xbf16>
    %23 = vector.shape_cast %22 : vector<1x1x24x16xbf16> to vector<24x16xbf16>
    %cst_31 = arith.constant dense<0.000000e+00> : vector<16x16xf32>
    %24 = tpu.matmul %21, %23, %cst_31 {dimension_numbers = #tpu.dot_dimension_numbers<[1], [0], [0], [1], [0, 0, 1, 1], [], []>} : vector<16x24xbf16>, vector<24x16xbf16>, vector<16x16xf32> -> vector<16x16xf32>
    %25 = arith.addf %19, %24 : vector<16x16xf32>
    %c0_32 = arith.constant 0 : index
    %c0_33 = arith.constant 0 : index
    %26 = vector.load %arg6[%c0_32, %c0_33] : memref<16x16xf32, #tpu.memory_space<vmem>>, vector<16x16xf32>
    tpu.vector_store %arg6[%c0_32, %c0_33], %25 {strides = array<i32>} : memref<16x16xf32, #tpu.memory_space<vmem>>, vector<16x16xf32>,
    %c2_i32 = arith.constant 2 : i32
    %27 = arith.cmpi eq, %arg2, %c2_i32 : i32
    %28 = arith.extui %27 : i1 to i32
    %c0_i32_34 = arith.constant 0 : i32
    %29 = arith.cmpi ne, %28, %c0_i32_34 : i32
    scf.if %29 {
      %c0_35 = arith.constant 0 : index
      %c0_36 = arith.constant 0 : index
      %30 = vector.load %arg6[%c0_35, %c0_36] : memref<16x16xf32, #tpu.memory_space<vmem>>, vector<16x16xf32>
      %31 = arith.truncf %30 : vector<16x16xf32> to vector<16x16xbf16>
      %c0_37 = arith.constant 0 : index
      %c0_38 = arith.constant 0 : index
      %c0_39 = arith.constant 0 : index
      %c0_40 = arith.constant 0 : index
      %32 = vector.load %arg5[%c0_37, %c0_38, %c0_39, %c0_40] : memref<1x1x16x16xbf16, #tpu.memory_space<vmem>>, vector<1x1x16x16xbf16>
      %33 = vector.shape_cast %32 : vector<1x1x16x16xbf16> to vector<16x16xbf16>
      %34 = vector.shape_cast %31 : vector<16x16xbf16> to vector<1x1x16x16xbf16>
      tpu.vector_store %arg5[%c0_37, %c0_38, %c0_39, %c0_40], %34 {strides = array<i32>} : memref<1x1x16x16xbf16, #tpu.memory_space<vmem>>, vector<1x1x16x16xbf16>,
    } else {
    }
    return
  }
  func.func @transform_0(%arg0: i32, %arg1: i32, %arg2: i32) -> (i32, i32, i32, i32) {
    %0 = arith.addi %arg1, %arg2 : i32
    %c0_i32 = arith.constant 0 : i32
    %c0_i32_0 = arith.constant 0 : i32
    %c0_i32_1 = arith.constant 0 : i32
    return %arg0, %0, %c0_i32, %c0_i32_0 : i32, i32, i32, i32
  }
  func.func @transform_1(%arg0: i32, %arg1: i32, %arg2: i32) -> (i32, i32, i32, i32) {
    %c0_i32 = arith.constant 0 : i32
    %c0_i32_0 = arith.constant 0 : i32
    %c0_i32_1 = arith.constant 0 : i32
    %c0_i32_2 = arith.constant 0 : i32
    return %arg2, %c0_i32, %c0_i32_0, %c0_i32_1 : i32, i32, i32, i32
  }
  func.func @transform_2(%arg0: i32, %arg1: i32, %arg2: i32) -> (i32, i32, i32, i32) {
    %c0_i32 = arith.constant 0 : i32
    %c0_i32_0 = arith.constant 0 : i32
    %c0_i32_1 = arith.constant 0 : i32
    return %arg0, %arg1, %c0_i32, %c0_i32_0 : i32, i32, i32, i32
  }
}

module attributes {stable_mosaic.version = 11 : i64} {
  func.func @_stats_kernel(%arg0: i32, %arg1: i32, %arg2: memref<1x8x256xbf16, #tpu.memory_space<vmem>>, %arg3: memref<1x2x256xf32, #tpu.memory_space<vmem>>) attributes {dimension_semantics = [#tpu.dimension_semantics<parallel>, #tpu.dimension_semantics<arbitrary>], iteration_bounds = array<i64: 2, 1>, scalar_prefetch = 0 : i64, scratch_operands = 0 : i64, tpu.core_type = #tpu.core_type<tc>, window_params = [{transform_indices = @transform_0, window_bounds = array<i64: 1, 8, 256>}, {transform_indices = @transform_1, window_bounds = array<i64: 1, 2, 256>}]} {
    %c0_i32 = arith.constant 0 : i32
    %0 = arith.cmpi eq, %arg1, %c0_i32 : i32
    %1 = arith.extui %0 : i1 to i32
    %c0_i32_0 = arith.constant 0 : i32
    %2 = arith.cmpi ne, %1, %c0_i32_0 : i32
    scf.if %2 {
      %cst_10 = arith.constant 0.000000e+00 : f32
      %18 = vector.broadcast %cst_10 : f32 to vector<1x2x256xf32>
      %c0_11 = arith.constant 0 : index
      %c0_12 = arith.constant 0 : index
      %c0_13 = arith.constant 0 : index
      %19 = vector.load %arg3[%c0_11, %c0_12, %c0_13] : memref<1x2x256xf32, #tpu.memory_space<vmem>>, vector<1x2x256xf32>
      tpu.vector_store %arg3[%c0_11, %c0_12, %c0_13], %18 {strides = array<i32>} : memref<1x2x256xf32, #tpu.memory_space<vmem>>, vector<1x2x256xf32>,
    } else {
    }
    %c0 = arith.constant 0 : index
    %c0_1 = arith.constant 0 : index
    %c0_2 = arith.constant 0 : index
    %3 = vector.load %arg2[%c0, %c0_1, %c0_2] : memref<1x8x256xbf16, #tpu.memory_space<vmem>>, vector<1x8x256xbf16>
    %4 = vector.shape_cast %3 : vector<1x8x256xbf16> to vector<8x256xbf16>
    %5 = arith.extf %4 : vector<8x256xbf16> to vector<8x256xf32>
    %cst = arith.constant dense<0.000000e+00> : vector<256xf32>
    %6 = vector.multi_reduction <add>, %5, %cst [0] : vector<8x256xf32> to vector<256xf32>
    %7 = vector.shape_cast %6 : vector<256xf32> to vector<1x256xf32>
    %8 = arith.mulf %5, %5 : vector<8x256xf32>
    %cst_3 = arith.constant dense<0.000000e+00> : vector<256xf32>
    %9 = vector.multi_reduction <add>, %8, %cst_3 [0] : vector<8x256xf32> to vector<256xf32>
    %10 = vector.shape_cast %9 : vector<256xf32> to vector<1x256xf32>
    %c0_4 = arith.constant 0 : index
    %c0_5 = arith.constant 0 : index
    %c0_6 = arith.constant 0 : index
    %11 = vector.load %arg3[%c0_4, %c0_5, %c0_6] : memref<1x2x256xf32, #tpu.memory_space<vmem>>, vector<1x2x256xf32>
    %12 = vector.shape_cast %11 : vector<1x2x256xf32> to vector<2x256xf32>
    %13 = tpu.concatenate %7, %10 in 0 : vector<1x256xf32>, vector<1x256xf32> -> vector<2x256xf32>
    %14 = arith.addf %12, %13 : vector<2x256xf32>
    %c0_7 = arith.constant 0 : index
    %c0_8 = arith.constant 0 : index
    %c0_9 = arith.constant 0 : index
    %15 = vector.load %arg3[%c0_7, %c0_8, %c0_9] : memref<1x2x256xf32, #tpu.memory_space<vmem>>, vector<1x2x256xf32>
    %16 = vector.shape_cast %15 : vector<1x2x256xf32> to vector<2x256xf32>
    %17 = vector.shape_cast %14 : vector<2x256xf32> to vector<1x2x256xf32>
    tpu.vector_store %arg3[%c0_7, %c0_8, %c0_9], %17 {strides = array<i32>} : memref<1x2x256xf32, #tpu.memory_space<vmem>>, vector<1x2x256xf32>,
    return
  }
  func.func @transform_0(%arg0: i32, %arg1: i32) -> (i32, i32, i32) {
    %c0_i32 = arith.constant 0 : i32
    %c0_i32_0 = arith.constant 0 : i32
    return %arg0, %arg1, %c0_i32 : i32, i32, i32
  }
  func.func @transform_1(%arg0: i32, %arg1: i32) -> (i32, i32, i32) {
    %c0_i32 = arith.constant 0 : i32
    %c0_i32_0 = arith.constant 0 : i32
    %c0_i32_1 = arith.constant 0 : i32
    return %arg0, %c0_i32, %c0_i32_0 : i32, i32, i32
  }
}

module attributes {stable_mosaic.version = 11 : i64} {
  func.func @_norm_lrelu_kernel(%arg0: i32, %arg1: i32, %arg2: memref<1x8x256xbf16, #tpu.memory_space<vmem>>, %arg3: memref<1x1x256xf32, #tpu.memory_space<vmem>>, %arg4: memref<1x1x256xf32, #tpu.memory_space<vmem>>, %arg5: memref<1x8x256xbf16, #tpu.memory_space<vmem>>) attributes {dimension_semantics = [#tpu.dimension_semantics<parallel>, #tpu.dimension_semantics<parallel>], iteration_bounds = array<i64: 2, 1>, scalar_prefetch = 0 : i64, scratch_operands = 0 : i64, tpu.core_type = #tpu.core_type<tc>, window_params = [{transform_indices = @transform_0, window_bounds = array<i64: 1, 8, 256>}, {transform_indices = @transform_1, window_bounds = array<i64: 1, 1, 256>}, {transform_indices = @transform_2, window_bounds = array<i64: 1, 1, 256>}, {transform_indices = @transform_3, window_bounds = array<i64: 1, 8, 256>}]} {
    %c0 = arith.constant 0 : index
    %c0_0 = arith.constant 0 : index
    %c0_1 = arith.constant 0 : index
    %0 = vector.load %arg2[%c0, %c0_0, %c0_1] : memref<1x8x256xbf16, #tpu.memory_space<vmem>>, vector<1x8x256xbf16>
    %1 = vector.shape_cast %0 : vector<1x8x256xbf16> to vector<8x256xbf16>
    %2 = arith.extf %1 : vector<8x256xbf16> to vector<8x256xf32>
    %c0_2 = arith.constant 0 : index
    %c0_3 = arith.constant 0 : index
    %c0_4 = arith.constant 0 : index
    %3 = vector.load %arg3[%c0_2, %c0_3, %c0_4] : memref<1x1x256xf32, #tpu.memory_space<vmem>>, vector<1x1x256xf32>
    %4 = vector.shape_cast %3 : vector<1x1x256xf32> to vector<1x256xf32>
    %5 = vector.broadcast %4 : vector<1x256xf32> to vector<8x256xf32>
    %6 = arith.mulf %2, %5 : vector<8x256xf32>
    %c0_5 = arith.constant 0 : index
    %c0_6 = arith.constant 0 : index
    %c0_7 = arith.constant 0 : index
    %7 = vector.load %arg4[%c0_5, %c0_6, %c0_7] : memref<1x1x256xf32, #tpu.memory_space<vmem>>, vector<1x1x256xf32>
    %8 = vector.shape_cast %7 : vector<1x1x256xf32> to vector<1x256xf32>
    %9 = vector.broadcast %8 : vector<1x256xf32> to vector<8x256xf32>
    %10 = arith.addf %6, %9 : vector<8x256xf32>
    %cst = arith.constant 0.000000e+00 : f32
    %11 = vector.broadcast %cst : f32 to vector<8x256xf32>
    %12 = arith.cmpf oge, %10, %11 : vector<8x256xf32>
    %cst_8 = arith.constant 2.000000e-01 : f32
    %13 = vector.broadcast %cst_8 : f32 to vector<8x256xf32>
    %14 = arith.mulf %13, %10 : vector<8x256xf32>
    %15 = arith.select %12, %10, %14 : vector<8x256xi1>, vector<8x256xf32>
    %16 = arith.truncf %15 : vector<8x256xf32> to vector<8x256xbf16>
    %c0_9 = arith.constant 0 : index
    %c0_10 = arith.constant 0 : index
    %c0_11 = arith.constant 0 : index
    %17 = vector.load %arg5[%c0_9, %c0_10, %c0_11] : memref<1x8x256xbf16, #tpu.memory_space<vmem>>, vector<1x8x256xbf16>
    %18 = vector.shape_cast %17 : vector<1x8x256xbf16> to vector<8x256xbf16>
    %19 = vector.shape_cast %16 : vector<8x256xbf16> to vector<1x8x256xbf16>
    tpu.vector_store %arg5[%c0_9, %c0_10, %c0_11], %19 {strides = array<i32>} : memref<1x8x256xbf16, #tpu.memory_space<vmem>>, vector<1x8x256xbf16>,
    return
  }
  func.func @transform_0(%arg0: i32, %arg1: i32) -> (i32, i32, i32) {
    %c0_i32 = arith.constant 0 : i32
    %c0_i32_0 = arith.constant 0 : i32
    return %arg0, %arg1, %c0_i32 : i32, i32, i32
  }
  func.func @transform_1(%arg0: i32, %arg1: i32) -> (i32, i32, i32) {
    %c0_i32 = arith.constant 0 : i32
    %c0_i32_0 = arith.constant 0 : i32
    %c0_i32_1 = arith.constant 0 : i32
    return %arg0, %c0_i32, %c0_i32_0 : i32, i32, i32
  }
  func.func @transform_2(%arg0: i32, %arg1: i32) -> (i32, i32, i32) {
    %c0_i32 = arith.constant 0 : i32
    %c0_i32_0 = arith.constant 0 : i32
    %c0_i32_1 = arith.constant 0 : i32
    return %arg0, %c0_i32, %c0_i32_0 : i32, i32, i32
  }
  func.func @transform_3(%arg0: i32, %arg1: i32) -> (i32, i32, i32) {
    %c0_i32 = arith.constant 0 : i32
    %c0_i32_0 = arith.constant 0 : i32
    return %arg0, %arg1, %c0_i32 : i32, i32, i32
  }
}

module attributes {stable_mosaic.version = 11 : i64} {
  func.func @kernel(%arg0: i32, %arg1: i32, %arg2: memref<1x1x4x16xbf16, #tpu.memory_space<vmem>>, %arg3: memref<16x64xbf16, #tpu.memory_space<vmem>>, %arg4: memref<1x1x2x2x2x2x16xbf16, #tpu.memory_space<vmem>>) attributes {dimension_semantics = [#tpu.dimension_semantics<parallel>, #tpu.dimension_semantics<parallel>], iteration_bounds = array<i64: 4, 2>, scalar_prefetch = 0 : i64, scratch_operands = 0 : i64, tpu.core_type = #tpu.core_type<tc>, window_params = [{transform_indices = @transform_0, window_bounds = array<i64: 1, 1, 4, 16>}, {pipeline_mode = #tpu.pipeline_mode<synchronous>, transform_indices = @transform_1, window_bounds = array<i64: 16, 64>}, {transform_indices = @transform_2, window_bounds = array<i64: 1, 1, 2, 2, 2, 2, 16>}]} {
    %c0 = arith.constant 0 : index
    %c0_0 = arith.constant 0 : index
    %c0_1 = arith.constant 0 : index
    %c0_2 = arith.constant 0 : index
    %0 = vector.load %arg2[%c0, %c0_0, %c0_1, %c0_2] : memref<1x1x4x16xbf16, #tpu.memory_space<vmem>>, vector<1x1x4x16xbf16>
    %1 = vector.shape_cast %0 : vector<1x1x4x16xbf16> to vector<4x16xbf16>
    %c0_3 = arith.constant 0 : index
    %c0_4 = arith.constant 0 : index
    %2 = vector.load %arg3[%c0_3, %c0_4] : memref<16x64xbf16, #tpu.memory_space<vmem>>, vector<16x64xbf16>
    %cst = arith.constant dense<0.000000e+00> : vector<4x64xf32>
    %3 = tpu.matmul %1, %2, %cst {dimension_numbers = #tpu.dot_dimension_numbers<[1], [0], [0], [1], [0, 0, 1, 1], [], []>} : vector<4x16xbf16>, vector<16x64xbf16>, vector<4x64xf32> -> vector<4x64xf32>
    %4 = vector.extract_strided_slice %3 {offsets = [0, 0], sizes = [4, 16], strides = [1, 1]} : vector<4x64xf32> to vector<4x16xf32>
    %5 = vector.shape_cast %4 : vector<4x16xf32> to vector<2x2x16xf32>
    %6 = arith.truncf %5 : vector<2x2x16xf32> to vector<2x2x16xbf16>
    %c0_5 = arith.constant 0 : index
    %c0_6 = arith.constant 0 : index
    %c0_7 = arith.constant 0 : index
    %c0_8 = arith.constant 0 : index
    %c0_9 = arith.constant 0 : index
    %c0_10 = arith.constant 0 : index
    %c0_11 = arith.constant 0 : index
    %7 = vector.load %arg4[%c0_5, %c0_6, %c0_7, %c0_8, %c0_9, %c0_10, %c0_11] : memref<1x1x2x2x2x2x16xbf16, #tpu.memory_space<vmem>>, vector<1x1x1x2x1x2x16xbf16>
    %8 = vector.shape_cast %7 : vector<1x1x1x2x1x2x16xbf16> to vector<2x2x16xbf16>
    %9 = vector.shape_cast %6 : vector<2x2x16xbf16> to vector<1x1x1x2x1x2x16xbf16>
    tpu.vector_store %arg4[%c0_5, %c0_6, %c0_7, %c0_8, %c0_9, %c0_10, %c0_11], %9 {strides = array<i32>} : memref<1x1x2x2x2x2x16xbf16, #tpu.memory_space<vmem>>, vector<1x1x1x2x1x2x16xbf16>,
    %10 = vector.extract_strided_slice %3 {offsets = [0, 16], sizes = [4, 16], strides = [1, 1]} : vector<4x64xf32> to vector<4x16xf32>
    %11 = vector.shape_cast %10 : vector<4x16xf32> to vector<2x2x16xf32>
    %12 = arith.truncf %11 : vector<2x2x16xf32> to vector<2x2x16xbf16>
    %c0_12 = arith.constant 0 : index
    %c0_13 = arith.constant 0 : index
    %c0_14 = arith.constant 0 : index
    %c0_15 = arith.constant 0 : index
    %c1 = arith.constant 1 : index
    %c0_16 = arith.constant 0 : index
    %c0_17 = arith.constant 0 : index
    %13 = vector.load %arg4[%c0_12, %c0_13, %c0_14, %c0_15, %c1, %c0_16, %c0_17] : memref<1x1x2x2x2x2x16xbf16, #tpu.memory_space<vmem>>, vector<1x1x1x2x1x2x16xbf16>
    %14 = vector.shape_cast %13 : vector<1x1x1x2x1x2x16xbf16> to vector<2x2x16xbf16>
    %15 = vector.shape_cast %12 : vector<2x2x16xbf16> to vector<1x1x1x2x1x2x16xbf16>
    tpu.vector_store %arg4[%c0_12, %c0_13, %c0_14, %c0_15, %c1, %c0_16, %c0_17], %15 {strides = array<i32>} : memref<1x1x2x2x2x2x16xbf16, #tpu.memory_space<vmem>>, vector<1x1x1x2x1x2x16xbf16>,
    %16 = vector.extract_strided_slice %3 {offsets = [0, 32], sizes = [4, 16], strides = [1, 1]} : vector<4x64xf32> to vector<4x16xf32>
    %17 = vector.shape_cast %16 : vector<4x16xf32> to vector<2x2x16xf32>
    %18 = arith.truncf %17 : vector<2x2x16xf32> to vector<2x2x16xbf16>
    %c0_18 = arith.constant 0 : index
    %c0_19 = arith.constant 0 : index
    %c1_20 = arith.constant 1 : index
    %c0_21 = arith.constant 0 : index
    %c0_22 = arith.constant 0 : index
    %c0_23 = arith.constant 0 : index
    %c0_24 = arith.constant 0 : index
    %19 = vector.load %arg4[%c0_18, %c0_19, %c1_20, %c0_21, %c0_22, %c0_23, %c0_24] : memref<1x1x2x2x2x2x16xbf16, #tpu.memory_space<vmem>>, vector<1x1x1x2x1x2x16xbf16>
    %20 = vector.shape_cast %19 : vector<1x1x1x2x1x2x16xbf16> to vector<2x2x16xbf16>
    %21 = vector.shape_cast %18 : vector<2x2x16xbf16> to vector<1x1x1x2x1x2x16xbf16>
    tpu.vector_store %arg4[%c0_18, %c0_19, %c1_20, %c0_21, %c0_22, %c0_23, %c0_24], %21 {strides = array<i32>} : memref<1x1x2x2x2x2x16xbf16, #tpu.memory_space<vmem>>, vector<1x1x1x2x1x2x16xbf16>,
    %22 = vector.extract_strided_slice %3 {offsets = [0, 48], sizes = [4, 16], strides = [1, 1]} : vector<4x64xf32> to vector<4x16xf32>
    %23 = vector.shape_cast %22 : vector<4x16xf32> to vector<2x2x16xf32>
    %24 = arith.truncf %23 : vector<2x2x16xf32> to vector<2x2x16xbf16>
    %c0_25 = arith.constant 0 : index
    %c0_26 = arith.constant 0 : index
    %c1_27 = arith.constant 1 : index
    %c0_28 = arith.constant 0 : index
    %c1_29 = arith.constant 1 : index
    %c0_30 = arith.constant 0 : index
    %c0_31 = arith.constant 0 : index
    %25 = vector.load %arg4[%c0_25, %c0_26, %c1_27, %c0_28, %c1_29, %c0_30, %c0_31] : memref<1x1x2x2x2x2x16xbf16, #tpu.memory_space<vmem>>, vector<1x1x1x2x1x2x16xbf16>
    %26 = vector.shape_cast %25 : vector<1x1x1x2x1x2x16xbf16> to vector<2x2x16xbf16>
    %27 = vector.shape_cast %24 : vector<2x2x16xbf16> to vector<1x1x1x2x1x2x16xbf16>
    tpu.vector_store %arg4[%c0_25, %c0_26, %c1_27, %c0_28, %c1_29, %c0_30, %c0_31], %27 {strides = array<i32>} : memref<1x1x2x2x2x2x16xbf16, #tpu.memory_space<vmem>>, vector<1x1x1x2x1x2x16xbf16>,
    return
  }
  func.func @transform_0(%arg0: i32, %arg1: i32) -> (i32, i32, i32, i32) {
    %c0_i32 = arith.constant 0 : i32
    %c0_i32_0 = arith.constant 0 : i32
    %c0_i32_1 = arith.constant 0 : i32
    return %arg0, %arg1, %c0_i32, %c0_i32_0 : i32, i32, i32, i32
  }
  func.func @transform_1(%arg0: i32, %arg1: i32) -> (i32, i32) {
    %c0_i32 = arith.constant 0 : i32
    %c0_i32_0 = arith.constant 0 : i32
    %c0_i32_1 = arith.constant 0 : i32
    return %c0_i32, %c0_i32_0 : i32, i32
  }
  func.func @transform_2(%arg0: i32, %arg1: i32) -> (i32, i32, i32, i32, i32, i32, i32) {
    %c0_i32 = arith.constant 0 : i32
    %c0_i32_0 = arith.constant 0 : i32
    %c0_i32_1 = arith.constant 0 : i32
    %c0_i32_2 = arith.constant 0 : i32
    %c0_i32_3 = arith.constant 0 : i32
    %c0_i32_4 = arith.constant 0 : i32
    return %arg0, %arg1, %c0_i32, %c0_i32_0, %c0_i32_1, %c0_i32_2, %c0_i32_3 : i32, i32, i32, i32, i32, i32, i32
  }
}

module attributes {stable_mosaic.version = 11 : i64} {
  func.func @kernel(%arg0: i32, %arg1: i32, %arg2: i32, %arg3: memref<1x1x32x48xbf16, #tpu.memory_space<vmem>>, %arg4: memref<1x3x48x16xbf16, #tpu.memory_space<vmem>>, %arg5: memref<1x1x16x16xbf16, #tpu.memory_space<vmem>>, %arg6: memref<16x16xf32, #tpu.memory_space<vmem>>) attributes {dimension_semantics = [#tpu.dimension_semantics<parallel>, #tpu.dimension_semantics<parallel>, #tpu.dimension_semantics<arbitrary>], iteration_bounds = array<i64: 4, 2, 3>, scalar_prefetch = 0 : i64, scratch_operands = 1 : i64, tpu.core_type = #tpu.core_type<tc>, window_params = [{transform_indices = @transform_0, window_bounds = array<i64: 1, 1, 32, 48>}, {transform_indices = @transform_1, window_bounds = array<i64: 1, 3, 48, 16>}, {transform_indices = @transform_2, window_bounds = array<i64: 1, 1, 16, 16>}]} {
    %c0_i32 = arith.constant 0 : i32
    %0 = arith.cmpi eq, %arg2, %c0_i32 : i32
    %1 = arith.extui %0 : i1 to i32
    %c0_i32_0 = arith.constant 0 : i32
    %2 = arith.cmpi ne, %1, %c0_i32_0 : i32
    scf.if %2 {
      %cst_35 = arith.constant 0.000000e+00 : f32
      %30 = vector.broadcast %cst_35 : f32 to vector<16x16xf32>
      %c0_36 = arith.constant 0 : index
      %c0_37 = arith.constant 0 : index
      %31 = vector.load %arg6[%c0_36, %c0_37] : memref<16x16xf32, #tpu.memory_space<vmem>>, vector<16x16xf32>
      tpu.vector_store %arg6[%c0_36, %c0_37], %30 {strides = array<i32>} : memref<16x16xf32, #tpu.memory_space<vmem>>, vector<16x16xf32>,
    } else {
    }
    %c0 = arith.constant 0 : index
    %c0_1 = arith.constant 0 : index
    %3 = vector.load %arg6[%c0, %c0_1] : memref<16x16xf32, #tpu.memory_space<vmem>>, vector<16x16xf32>
    %c0_2 = arith.constant 0 : index
    %c0_3 = arith.constant 0 : index
    %c0_4 = arith.constant 0 : index
    %c0_5 = arith.constant 0 : index
    %4 = vector.load %arg3[%c0_2, %c0_3, %c0_4, %c0_5] : memref<1x1x32x48xbf16, #tpu.memory_space<vmem>>, vector<1x1x16x48xbf16>
    %5 = vector.shape_cast %4 : vector<1x1x16x48xbf16> to vector<16x48xbf16>
    %c0_6 = arith.constant 0 : index
    %c0_7 = arith.constant 0 : index
    %c0_8 = arith.constant 0 : index
    %c0_9 = arith.constant 0 : index
    %6 = vector.load %arg4[%c0_6, %c0_7, %c0_8, %c0_9] : memref<1x3x48x16xbf16, #tpu.memory_space<vmem>>, vector<1x1x48x16xbf16>
    %7 = vector.shape_cast %6 : vector<1x1x48x16xbf16> to vector<48x16xbf16>
    %cst = arith.constant dense<0.000000e+00> : vector<16x16xf32>
    %8 = tpu.matmul %5, %7, %cst {dimension_numbers = #tpu.dot_dimension_numbers<[1], [0], [0], [1], [0, 0, 1, 1], [], []>} : vector<16x48xbf16>, vector<48x16xbf16>, vector<16x16xf32> -> vector<16x16xf32>
    %9 = arith.addf %3, %8 : vector<16x16xf32>
    %c0_10 = arith.constant 0 : index
    %c0_11 = arith.constant 0 : index
    %10 = vector.load %arg6[%c0_10, %c0_11] : memref<16x16xf32, #tpu.memory_space<vmem>>, vector<16x16xf32>
    tpu.vector_store %arg6[%c0_10, %c0_11], %9 {strides = array<i32>} : memref<16x16xf32, #tpu.memory_space<vmem>>, vector<16x16xf32>,
    %c0_12 = arith.constant 0 : index
    %c0_13 = arith.constant 0 : index
    %11 = vector.load %arg6[%c0_12, %c0_13] : memref<16x16xf32, #tpu.memory_space<vmem>>, vector<16x16xf32>
    %c0_14 = arith.constant 0 : index
    %c0_15 = arith.constant 0 : index
    %c8 = arith.constant 8 : index
    %c0_16 = arith.constant 0 : index
    %12 = vector.load %arg3[%c0_14, %c0_15, %c8, %c0_16] : memref<1x1x32x48xbf16, #tpu.memory_space<vmem>>, vector<1x1x16x48xbf16>
    %13 = vector.shape_cast %12 : vector<1x1x16x48xbf16> to vector<16x48xbf16>
    %c0_17 = arith.constant 0 : index
    %c1 = arith.constant 1 : index
    %c0_18 = arith.constant 0 : index
    %c0_19 = arith.constant 0 : index
    %14 = vector.load %arg4[%c0_17, %c1, %c0_18, %c0_19] : memref<1x3x48x16xbf16, #tpu.memory_space<vmem>>, vector<1x1x48x16xbf16>
    %15 = vector.shape_cast %14 : vector<1x1x48x16xbf16> to vector<48x16xbf16>
    %cst_20 = arith.constant dense<0.000000e+00> : vector<16x16xf32>
    %16 = tpu.matmul %13, %15, %cst_20 {dimension_numbers = #tpu.dot_dimension_numbers<[1], [0], [0], [1], [0, 0, 1, 1], [], []>} : vector<16x48xbf16>, vector<48x16xbf16>, vector<16x16xf32> -> vector<16x16xf32>
    %17 = arith.addf %11, %16 : vector<16x16xf32>
    %c0_21 = arith.constant 0 : index
    %c0_22 = arith.constant 0 : index
    %18 = vector.load %arg6[%c0_21, %c0_22] : memref<16x16xf32, #tpu.memory_space<vmem>>, vector<16x16xf32>
    tpu.vector_store %arg6[%c0_21, %c0_22], %17 {strides = array<i32>} : memref<16x16xf32, #tpu.memory_space<vmem>>, vector<16x16xf32>,
    %c0_23 = arith.constant 0 : index
    %c0_24 = arith.constant 0 : index
    %19 = vector.load %arg6[%c0_23, %c0_24] : memref<16x16xf32, #tpu.memory_space<vmem>>, vector<16x16xf32>
    %c0_25 = arith.constant 0 : index
    %c0_26 = arith.constant 0 : index
    %c16 = arith.constant 16 : index
    %c0_27 = arith.constant 0 : index
    %20 = vector.load %arg3[%c0_25, %c0_26, %c16, %c0_27] : memref<1x1x32x48xbf16, #tpu.memory_space<vmem>>, vector<1x1x16x48xbf16>
    %21 = vector.shape_cast %20 : vector<1x1x16x48xbf16> to vector<16x48xbf16>
    %c0_28 = arith.constant 0 : index
    %c2 = arith.constant 2 : index
    %c0_29 = arith.constant 0 : index
    %c0_30 = arith.constant 0 : index
    %22 = vector.load %arg4[%c0_28, %c2, %c0_29, %c0_30] : memref<1x3x48x16xbf16, #tpu.memory_space<vmem>>, vector<1x1x48x16xbf16>
    %23 = vector.shape_cast %22 : vector<1x1x48x16xbf16> to vector<48x16xbf16>
    %cst_31 = arith.constant dense<0.000000e+00> : vector<16x16xf32>
    %24 = tpu.matmul %21, %23, %cst_31 {dimension_numbers = #tpu.dot_dimension_numbers<[1], [0], [0], [1], [0, 0, 1, 1], [], []>} : vector<16x48xbf16>, vector<48x16xbf16>, vector<16x16xf32> -> vector<16x16xf32>
    %25 = arith.addf %19, %24 : vector<16x16xf32>
    %c0_32 = arith.constant 0 : index
    %c0_33 = arith.constant 0 : index
    %26 = vector.load %arg6[%c0_32, %c0_33] : memref<16x16xf32, #tpu.memory_space<vmem>>, vector<16x16xf32>
    tpu.vector_store %arg6[%c0_32, %c0_33], %25 {strides = array<i32>} : memref<16x16xf32, #tpu.memory_space<vmem>>, vector<16x16xf32>,
    %c2_i32 = arith.constant 2 : i32
    %27 = arith.cmpi eq, %arg2, %c2_i32 : i32
    %28 = arith.extui %27 : i1 to i32
    %c0_i32_34 = arith.constant 0 : i32
    %29 = arith.cmpi ne, %28, %c0_i32_34 : i32
    scf.if %29 {
      %c0_35 = arith.constant 0 : index
      %c0_36 = arith.constant 0 : index
      %30 = vector.load %arg6[%c0_35, %c0_36] : memref<16x16xf32, #tpu.memory_space<vmem>>, vector<16x16xf32>
      %31 = arith.truncf %30 : vector<16x16xf32> to vector<16x16xbf16>
      %c0_37 = arith.constant 0 : index
      %c0_38 = arith.constant 0 : index
      %c0_39 = arith.constant 0 : index
      %c0_40 = arith.constant 0 : index
      %32 = vector.load %arg5[%c0_37, %c0_38, %c0_39, %c0_40] : memref<1x1x16x16xbf16, #tpu.memory_space<vmem>>, vector<1x1x16x16xbf16>
      %33 = vector.shape_cast %32 : vector<1x1x16x16xbf16> to vector<16x16xbf16>
      %34 = vector.shape_cast %31 : vector<16x16xbf16> to vector<1x1x16x16xbf16>
      tpu.vector_store %arg5[%c0_37, %c0_38, %c0_39, %c0_40], %34 {strides = array<i32>} : memref<1x1x16x16xbf16, #tpu.memory_space<vmem>>, vector<1x1x16x16xbf16>,
    } else {
    }
    return
  }
  func.func @transform_0(%arg0: i32, %arg1: i32, %arg2: i32) -> (i32, i32, i32, i32) {
    %0 = arith.addi %arg1, %arg2 : i32
    %c0_i32 = arith.constant 0 : i32
    %c0_i32_0 = arith.constant 0 : i32
    %c0_i32_1 = arith.constant 0 : i32
    return %arg0, %0, %c0_i32, %c0_i32_0 : i32, i32, i32, i32
  }
  func.func @transform_1(%arg0: i32, %arg1: i32, %arg2: i32) -> (i32, i32, i32, i32) {
    %c0_i32 = arith.constant 0 : i32
    %c0_i32_0 = arith.constant 0 : i32
    %c0_i32_1 = arith.constant 0 : i32
    %c0_i32_2 = arith.constant 0 : i32
    return %arg2, %c0_i32, %c0_i32_0, %c0_i32_1 : i32, i32, i32, i32
  }
  func.func @transform_2(%arg0: i32, %arg1: i32, %arg2: i32) -> (i32, i32, i32, i32) {
    %c0_i32 = arith.constant 0 : i32
    %c0_i32_0 = arith.constant 0 : i32
    %c0_i32_1 = arith.constant 0 : i32
    return %arg0, %arg1, %c0_i32, %c0_i32_0 : i32, i32, i32, i32
  }
}

module attributes {stable_mosaic.version = 11 : i64} {
  func.func @kernel(%arg0: i32, %arg1: i32, %arg2: i32, %arg3: memref<1x1x48x48xbf16, #tpu.memory_space<vmem>>, %arg4: memref<1x3x48x8xbf16, #tpu.memory_space<vmem>>, %arg5: memref<1x1x32x8xbf16, #tpu.memory_space<vmem>>, %arg6: memref<32x8xf32, #tpu.memory_space<vmem>>) attributes {dimension_semantics = [#tpu.dimension_semantics<parallel>, #tpu.dimension_semantics<parallel>, #tpu.dimension_semantics<arbitrary>], iteration_bounds = array<i64: 4, 4, 3>, scalar_prefetch = 0 : i64, scratch_operands = 1 : i64, tpu.core_type = #tpu.core_type<tc>, window_params = [{transform_indices = @transform_0, window_bounds = array<i64: 1, 1, 48, 48>}, {transform_indices = @transform_1, window_bounds = array<i64: 1, 3, 48, 8>}, {transform_indices = @transform_2, window_bounds = array<i64: 1, 1, 32, 8>}]} {
    %c0_i32 = arith.constant 0 : i32
    %0 = arith.cmpi eq, %arg2, %c0_i32 : i32
    %1 = arith.extui %0 : i1 to i32
    %c0_i32_0 = arith.constant 0 : i32
    %2 = arith.cmpi ne, %1, %c0_i32_0 : i32
    scf.if %2 {
      %cst_35 = arith.constant 0.000000e+00 : f32
      %30 = vector.broadcast %cst_35 : f32 to vector<32x8xf32>
      %c0_36 = arith.constant 0 : index
      %c0_37 = arith.constant 0 : index
      %31 = vector.load %arg6[%c0_36, %c0_37] : memref<32x8xf32, #tpu.memory_space<vmem>>, vector<32x8xf32>
      tpu.vector_store %arg6[%c0_36, %c0_37], %30 {strides = array<i32>} : memref<32x8xf32, #tpu.memory_space<vmem>>, vector<32x8xf32>,
    } else {
    }
    %c0 = arith.constant 0 : index
    %c0_1 = arith.constant 0 : index
    %3 = vector.load %arg6[%c0, %c0_1] : memref<32x8xf32, #tpu.memory_space<vmem>>, vector<32x8xf32>
    %c0_2 = arith.constant 0 : index
    %c0_3 = arith.constant 0 : index
    %c0_4 = arith.constant 0 : index
    %c0_5 = arith.constant 0 : index
    %4 = vector.load %arg3[%c0_2, %c0_3, %c0_4, %c0_5] : memref<1x1x48x48xbf16, #tpu.memory_space<vmem>>, vector<1x1x32x48xbf16>
    %5 = vector.shape_cast %4 : vector<1x1x32x48xbf16> to vector<32x48xbf16>
    %c0_6 = arith.constant 0 : index
    %c0_7 = arith.constant 0 : index
    %c0_8 = arith.constant 0 : index
    %c0_9 = arith.constant 0 : index
    %6 = vector.load %arg4[%c0_6, %c0_7, %c0_8, %c0_9] : memref<1x3x48x8xbf16, #tpu.memory_space<vmem>>, vector<1x1x48x8xbf16>
    %7 = vector.shape_cast %6 : vector<1x1x48x8xbf16> to vector<48x8xbf16>
    %cst = arith.constant dense<0.000000e+00> : vector<32x8xf32>
    %8 = tpu.matmul %5, %7, %cst {dimension_numbers = #tpu.dot_dimension_numbers<[1], [0], [0], [1], [0, 0, 1, 1], [], []>} : vector<32x48xbf16>, vector<48x8xbf16>, vector<32x8xf32> -> vector<32x8xf32>
    %9 = arith.addf %3, %8 : vector<32x8xf32>
    %c0_10 = arith.constant 0 : index
    %c0_11 = arith.constant 0 : index
    %10 = vector.load %arg6[%c0_10, %c0_11] : memref<32x8xf32, #tpu.memory_space<vmem>>, vector<32x8xf32>
    tpu.vector_store %arg6[%c0_10, %c0_11], %9 {strides = array<i32>} : memref<32x8xf32, #tpu.memory_space<vmem>>, vector<32x8xf32>,
    %c0_12 = arith.constant 0 : index
    %c0_13 = arith.constant 0 : index
    %11 = vector.load %arg6[%c0_12, %c0_13] : memref<32x8xf32, #tpu.memory_space<vmem>>, vector<32x8xf32>
    %c0_14 = arith.constant 0 : index
    %c0_15 = arith.constant 0 : index
    %c8 = arith.constant 8 : index
    %c0_16 = arith.constant 0 : index
    %12 = vector.load %arg3[%c0_14, %c0_15, %c8, %c0_16] : memref<1x1x48x48xbf16, #tpu.memory_space<vmem>>, vector<1x1x32x48xbf16>
    %13 = vector.shape_cast %12 : vector<1x1x32x48xbf16> to vector<32x48xbf16>
    %c0_17 = arith.constant 0 : index
    %c1 = arith.constant 1 : index
    %c0_18 = arith.constant 0 : index
    %c0_19 = arith.constant 0 : index
    %14 = vector.load %arg4[%c0_17, %c1, %c0_18, %c0_19] : memref<1x3x48x8xbf16, #tpu.memory_space<vmem>>, vector<1x1x48x8xbf16>
    %15 = vector.shape_cast %14 : vector<1x1x48x8xbf16> to vector<48x8xbf16>
    %cst_20 = arith.constant dense<0.000000e+00> : vector<32x8xf32>
    %16 = tpu.matmul %13, %15, %cst_20 {dimension_numbers = #tpu.dot_dimension_numbers<[1], [0], [0], [1], [0, 0, 1, 1], [], []>} : vector<32x48xbf16>, vector<48x8xbf16>, vector<32x8xf32> -> vector<32x8xf32>
    %17 = arith.addf %11, %16 : vector<32x8xf32>
    %c0_21 = arith.constant 0 : index
    %c0_22 = arith.constant 0 : index
    %18 = vector.load %arg6[%c0_21, %c0_22] : memref<32x8xf32, #tpu.memory_space<vmem>>, vector<32x8xf32>
    tpu.vector_store %arg6[%c0_21, %c0_22], %17 {strides = array<i32>} : memref<32x8xf32, #tpu.memory_space<vmem>>, vector<32x8xf32>,
    %c0_23 = arith.constant 0 : index
    %c0_24 = arith.constant 0 : index
    %19 = vector.load %arg6[%c0_23, %c0_24] : memref<32x8xf32, #tpu.memory_space<vmem>>, vector<32x8xf32>
    %c0_25 = arith.constant 0 : index
    %c0_26 = arith.constant 0 : index
    %c16 = arith.constant 16 : index
    %c0_27 = arith.constant 0 : index
    %20 = vector.load %arg3[%c0_25, %c0_26, %c16, %c0_27] : memref<1x1x48x48xbf16, #tpu.memory_space<vmem>>, vector<1x1x32x48xbf16>
    %21 = vector.shape_cast %20 : vector<1x1x32x48xbf16> to vector<32x48xbf16>
    %c0_28 = arith.constant 0 : index
    %c2 = arith.constant 2 : index
    %c0_29 = arith.constant 0 : index
    %c0_30 = arith.constant 0 : index
    %22 = vector.load %arg4[%c0_28, %c2, %c0_29, %c0_30] : memref<1x3x48x8xbf16, #tpu.memory_space<vmem>>, vector<1x1x48x8xbf16>
    %23 = vector.shape_cast %22 : vector<1x1x48x8xbf16> to vector<48x8xbf16>
    %cst_31 = arith.constant dense<0.000000e+00> : vector<32x8xf32>
    %24 = tpu.matmul %21, %23, %cst_31 {dimension_numbers = #tpu.dot_dimension_numbers<[1], [0], [0], [1], [0, 0, 1, 1], [], []>} : vector<32x48xbf16>, vector<48x8xbf16>, vector<32x8xf32> -> vector<32x8xf32>
    %25 = arith.addf %19, %24 : vector<32x8xf32>
    %c0_32 = arith.constant 0 : index
    %c0_33 = arith.constant 0 : index
    %26 = vector.load %arg6[%c0_32, %c0_33] : memref<32x8xf32, #tpu.memory_space<vmem>>, vector<32x8xf32>
    tpu.vector_store %arg6[%c0_32, %c0_33], %25 {strides = array<i32>} : memref<32x8xf32, #tpu.memory_space<vmem>>, vector<32x8xf32>,
    %c2_i32 = arith.constant 2 : i32
    %27 = arith.cmpi eq, %arg2, %c2_i32 : i32
    %28 = arith.extui %27 : i1 to i32
    %c0_i32_34 = arith.constant 0 : i32
    %29 = arith.cmpi ne, %28, %c0_i32_34 : i32
    scf.if %29 {
      %c0_35 = arith.constant 0 : index
      %c0_36 = arith.constant 0 : index
      %30 = vector.load %arg6[%c0_35, %c0_36] : memref<32x8xf32, #tpu.memory_space<vmem>>, vector<32x8xf32>
      %31 = arith.truncf %30 : vector<32x8xf32> to vector<32x8xbf16>
      %c0_37 = arith.constant 0 : index
      %c0_38 = arith.constant 0 : index
      %c0_39 = arith.constant 0 : index
      %c0_40 = arith.constant 0 : index
      %32 = vector.load %arg5[%c0_37, %c0_38, %c0_39, %c0_40] : memref<1x1x32x8xbf16, #tpu.memory_space<vmem>>, vector<1x1x32x8xbf16>
      %33 = vector.shape_cast %32 : vector<1x1x32x8xbf16> to vector<32x8xbf16>
      %34 = vector.shape_cast %31 : vector<32x8xbf16> to vector<1x1x32x8xbf16>
      tpu.vector_store %arg5[%c0_37, %c0_38, %c0_39, %c0_40], %34 {strides = array<i32>} : memref<1x1x32x8xbf16, #tpu.memory_space<vmem>>, vector<1x1x32x8xbf16>,
    } else {
    }
    return
  }
  func.func @transform_0(%arg0: i32, %arg1: i32, %arg2: i32) -> (i32, i32, i32, i32) {
    %0 = arith.addi %arg1, %arg2 : i32
    %c0_i32 = arith.constant 0 : i32
    %c0_i32_0 = arith.constant 0 : i32
    %c0_i32_1 = arith.constant 0 : i32
    return %arg0, %0, %c0_i32, %c0_i32_0 : i32, i32, i32, i32
  }
  func.func @transform_1(%arg0: i32, %arg1: i32, %arg2: i32) -> (i32, i32, i32, i32) {
    %c0_i32 = arith.constant 0 : i32
    %c0_i32_0 = arith.constant 0 : i32
    %c0_i32_1 = arith.constant 0 : i32
    %c0_i32_2 = arith.constant 0 : i32
    return %arg2, %c0_i32, %c0_i32_0, %c0_i32_1 : i32, i32, i32, i32
  }
  func.func @transform_2(%arg0: i32, %arg1: i32, %arg2: i32) -> (i32, i32, i32, i32) {
    %c0_i32 = arith.constant 0 : i32
    %c0_i32_0 = arith.constant 0 : i32
    %c0_i32_1 = arith.constant 0 : i32
    return %arg0, %arg1, %c0_i32, %c0_i32_0 : i32, i32, i32, i32
  }
}

module attributes {stable_mosaic.version = 11 : i64} {
  func.func @kernel(%arg0: i32, %arg1: i32, %arg2: memref<1x1x16x8xbf16, #tpu.memory_space<vmem>>, %arg3: memref<8x32xbf16, #tpu.memory_space<vmem>>, %arg4: memref<1x1x2x4x2x4x8xbf16, #tpu.memory_space<vmem>>) attributes {dimension_semantics = [#tpu.dimension_semantics<parallel>, #tpu.dimension_semantics<parallel>], iteration_bounds = array<i64: 4, 4>, scalar_prefetch = 0 : i64, scratch_operands = 0 : i64, tpu.core_type = #tpu.core_type<tc>, window_params = [{transform_indices = @transform_0, window_bounds = array<i64: 1, 1, 16, 8>}, {pipeline_mode = #tpu.pipeline_mode<synchronous>, transform_indices = @transform_1, window_bounds = array<i64: 8, 32>}, {transform_indices = @transform_2, window_bounds = array<i64: 1, 1, 2, 4, 2, 4, 8>}]} {
    %c0 = arith.constant 0 : index
    %c0_0 = arith.constant 0 : index
    %c0_1 = arith.constant 0 : index
    %c0_2 = arith.constant 0 : index
    %0 = vector.load %arg2[%c0, %c0_0, %c0_1, %c0_2] : memref<1x1x16x8xbf16, #tpu.memory_space<vmem>>, vector<1x1x16x8xbf16>
    %1 = vector.shape_cast %0 : vector<1x1x16x8xbf16> to vector<16x8xbf16>
    %c0_3 = arith.constant 0 : index
    %c0_4 = arith.constant 0 : index
    %2 = vector.load %arg3[%c0_3, %c0_4] : memref<8x32xbf16, #tpu.memory_space<vmem>>, vector<8x32xbf16>
    %cst = arith.constant dense<0.000000e+00> : vector<16x32xf32>
    %3 = tpu.matmul %1, %2, %cst {dimension_numbers = #tpu.dot_dimension_numbers<[1], [0], [0], [1], [0, 0, 1, 1], [], []>} : vector<16x8xbf16>, vector<8x32xbf16>, vector<16x32xf32> -> vector<16x32xf32>
    %4 = vector.extract_strided_slice %3 {offsets = [0, 0], sizes = [16, 8], strides = [1, 1]} : vector<16x32xf32> to vector<16x8xf32>
    %5 = vector.shape_cast %4 : vector<16x8xf32> to vector<4x4x8xf32>
    %6 = arith.truncf %5 : vector<4x4x8xf32> to vector<4x4x8xbf16>
    %c0_5 = arith.constant 0 : index
    %c0_6 = arith.constant 0 : index
    %c0_7 = arith.constant 0 : index
    %c0_8 = arith.constant 0 : index
    %c0_9 = arith.constant 0 : index
    %c0_10 = arith.constant 0 : index
    %c0_11 = arith.constant 0 : index
    %7 = vector.load %arg4[%c0_5, %c0_6, %c0_7, %c0_8, %c0_9, %c0_10, %c0_11] : memref<1x1x2x4x2x4x8xbf16, #tpu.memory_space<vmem>>, vector<1x1x1x4x1x4x8xbf16>
    %8 = vector.shape_cast %7 : vector<1x1x1x4x1x4x8xbf16> to vector<4x4x8xbf16>
    %9 = vector.shape_cast %6 : vector<4x4x8xbf16> to vector<1x1x1x4x1x4x8xbf16>
    tpu.vector_store %arg4[%c0_5, %c0_6, %c0_7, %c0_8, %c0_9, %c0_10, %c0_11], %9 {strides = array<i32>} : memref<1x1x2x4x2x4x8xbf16, #tpu.memory_space<vmem>>, vector<1x1x1x4x1x4x8xbf16>,
    %10 = vector.extract_strided_slice %3 {offsets = [0, 8], sizes = [16, 8], strides = [1, 1]} : vector<16x32xf32> to vector<16x8xf32>
    %11 = vector.shape_cast %10 : vector<16x8xf32> to vector<4x4x8xf32>
    %12 = arith.truncf %11 : vector<4x4x8xf32> to vector<4x4x8xbf16>
    %c0_12 = arith.constant 0 : index
    %c0_13 = arith.constant 0 : index
    %c0_14 = arith.constant 0 : index
    %c0_15 = arith.constant 0 : index
    %c1 = arith.constant 1 : index
    %c0_16 = arith.constant 0 : index
    %c0_17 = arith.constant 0 : index
    %13 = vector.load %arg4[%c0_12, %c0_13, %c0_14, %c0_15, %c1, %c0_16, %c0_17] : memref<1x1x2x4x2x4x8xbf16, #tpu.memory_space<vmem>>, vector<1x1x1x4x1x4x8xbf16>
    %14 = vector.shape_cast %13 : vector<1x1x1x4x1x4x8xbf16> to vector<4x4x8xbf16>
    %15 = vector.shape_cast %12 : vector<4x4x8xbf16> to vector<1x1x1x4x1x4x8xbf16>
    tpu.vector_store %arg4[%c0_12, %c0_13, %c0_14, %c0_15, %c1, %c0_16, %c0_17], %15 {strides = array<i32>} : memref<1x1x2x4x2x4x8xbf16, #tpu.memory_space<vmem>>, vector<1x1x1x4x1x4x8xbf16>,
    %16 = vector.extract_strided_slice %3 {offsets = [0, 16], sizes = [16, 8], strides = [1, 1]} : vector<16x32xf32> to vector<16x8xf32>
    %17 = vector.shape_cast %16 : vector<16x8xf32> to vector<4x4x8xf32>
    %18 = arith.truncf %17 : vector<4x4x8xf32> to vector<4x4x8xbf16>
    %c0_18 = arith.constant 0 : index
    %c0_19 = arith.constant 0 : index
    %c1_20 = arith.constant 1 : index
    %c0_21 = arith.constant 0 : index
    %c0_22 = arith.constant 0 : index
    %c0_23 = arith.constant 0 : index
    %c0_24 = arith.constant 0 : index
    %19 = vector.load %arg4[%c0_18, %c0_19, %c1_20, %c0_21, %c0_22, %c0_23, %c0_24] : memref<1x1x2x4x2x4x8xbf16, #tpu.memory_space<vmem>>, vector<1x1x1x4x1x4x8xbf16>
    %20 = vector.shape_cast %19 : vector<1x1x1x4x1x4x8xbf16> to vector<4x4x8xbf16>
    %21 = vector.shape_cast %18 : vector<4x4x8xbf16> to vector<1x1x1x4x1x4x8xbf16>
    tpu.vector_store %arg4[%c0_18, %c0_19, %c1_20, %c0_21, %c0_22, %c0_23, %c0_24], %21 {strides = array<i32>} : memref<1x1x2x4x2x4x8xbf16, #tpu.memory_space<vmem>>, vector<1x1x1x4x1x4x8xbf16>,
    %22 = vector.extract_strided_slice %3 {offsets = [0, 24], sizes = [16, 8], strides = [1, 1]} : vector<16x32xf32> to vector<16x8xf32>
    %23 = vector.shape_cast %22 : vector<16x8xf32> to vector<4x4x8xf32>
    %24 = arith.truncf %23 : vector<4x4x8xf32> to vector<4x4x8xbf16>
    %c0_25 = arith.constant 0 : index
    %c0_26 = arith.constant 0 : index
    %c1_27 = arith.constant 1 : index
    %c0_28 = arith.constant 0 : index
    %c1_29 = arith.constant 1 : index
    %c0_30 = arith.constant 0 : index
    %c0_31 = arith.constant 0 : index
    %25 = vector.load %arg4[%c0_25, %c0_26, %c1_27, %c0_28, %c1_29, %c0_30, %c0_31] : memref<1x1x2x4x2x4x8xbf16, #tpu.memory_space<vmem>>, vector<1x1x1x4x1x4x8xbf16>
    %26 = vector.shape_cast %25 : vector<1x1x1x4x1x4x8xbf16> to vector<4x4x8xbf16>
    %27 = vector.shape_cast %24 : vector<4x4x8xbf16> to vector<1x1x1x4x1x4x8xbf16>
    tpu.vector_store %arg4[%c0_25, %c0_26, %c1_27, %c0_28, %c1_29, %c0_30, %c0_31], %27 {strides = array<i32>} : memref<1x1x2x4x2x4x8xbf16, #tpu.memory_space<vmem>>, vector<1x1x1x4x1x4x8xbf16>,
    return
  }
  func.func @transform_0(%arg0: i32, %arg1: i32) -> (i32, i32, i32, i32) {
    %c0_i32 = arith.constant 0 : i32
    %c0_i32_0 = arith.constant 0 : i32
    %c0_i32_1 = arith.constant 0 : i32
    return %arg0, %arg1, %c0_i32, %c0_i32_0 : i32, i32, i32, i32
  }
  func.func @transform_1(%arg0: i32, %arg1: i32) -> (i32, i32) {
    %c0_i32 = arith.constant 0 : i32
    %c0_i32_0 = arith.constant 0 : i32
    %c0_i32_1 = arith.constant 0 : i32
    return %c0_i32, %c0_i32_0 : i32, i32
  }
  func.func @transform_2(%arg0: i32, %arg1: i32) -> (i32, i32, i32, i32, i32, i32, i32) {
    %c0_i32 = arith.constant 0 : i32
    %c0_i32_0 = arith.constant 0 : i32
    %c0_i32_1 = arith.constant 0 : i32
    %c0_i32_2 = arith.constant 0 : i32
    %c0_i32_3 = arith.constant 0 : i32
    %c0_i32_4 = arith.constant 0 : i32
    return %arg0, %arg1, %c0_i32, %c0_i32_0, %c0_i32_1, %c0_i32_2, %c0_i32_3 : i32, i32, i32, i32, i32, i32, i32
  }
}

module attributes {stable_mosaic.version = 11 : i64} {
  func.func @kernel(%arg0: i32, %arg1: i32, %arg2: i32, %arg3: memref<1x1x80x24xbf16, #tpu.memory_space<vmem>>, %arg4: memref<1x3x24x4xbf16, #tpu.memory_space<vmem>>, %arg5: memref<1x1x64x4xbf16, #tpu.memory_space<vmem>>, %arg6: memref<64x4xf32, #tpu.memory_space<vmem>>) attributes {dimension_semantics = [#tpu.dimension_semantics<parallel>, #tpu.dimension_semantics<parallel>, #tpu.dimension_semantics<arbitrary>], iteration_bounds = array<i64: 4, 8, 3>, scalar_prefetch = 0 : i64, scratch_operands = 1 : i64, tpu.core_type = #tpu.core_type<tc>, window_params = [{transform_indices = @transform_0, window_bounds = array<i64: 1, 1, 80, 24>}, {transform_indices = @transform_1, window_bounds = array<i64: 1, 3, 24, 4>}, {transform_indices = @transform_2, window_bounds = array<i64: 1, 1, 64, 4>}]} {
    %c0_i32 = arith.constant 0 : i32
    %0 = arith.cmpi eq, %arg2, %c0_i32 : i32
    %1 = arith.extui %0 : i1 to i32
    %c0_i32_0 = arith.constant 0 : i32
    %2 = arith.cmpi ne, %1, %c0_i32_0 : i32
    scf.if %2 {
      %cst_35 = arith.constant 0.000000e+00 : f32
      %30 = vector.broadcast %cst_35 : f32 to vector<64x4xf32>
      %c0_36 = arith.constant 0 : index
      %c0_37 = arith.constant 0 : index
      %31 = vector.load %arg6[%c0_36, %c0_37] : memref<64x4xf32, #tpu.memory_space<vmem>>, vector<64x4xf32>
      tpu.vector_store %arg6[%c0_36, %c0_37], %30 {strides = array<i32>} : memref<64x4xf32, #tpu.memory_space<vmem>>, vector<64x4xf32>,
    } else {
    }
    %c0 = arith.constant 0 : index
    %c0_1 = arith.constant 0 : index
    %3 = vector.load %arg6[%c0, %c0_1] : memref<64x4xf32, #tpu.memory_space<vmem>>, vector<64x4xf32>
    %c0_2 = arith.constant 0 : index
    %c0_3 = arith.constant 0 : index
    %c0_4 = arith.constant 0 : index
    %c0_5 = arith.constant 0 : index
    %4 = vector.load %arg3[%c0_2, %c0_3, %c0_4, %c0_5] : memref<1x1x80x24xbf16, #tpu.memory_space<vmem>>, vector<1x1x64x24xbf16>
    %5 = vector.shape_cast %4 : vector<1x1x64x24xbf16> to vector<64x24xbf16>
    %c0_6 = arith.constant 0 : index
    %c0_7 = arith.constant 0 : index
    %c0_8 = arith.constant 0 : index
    %c0_9 = arith.constant 0 : index
    %6 = vector.load %arg4[%c0_6, %c0_7, %c0_8, %c0_9] : memref<1x3x24x4xbf16, #tpu.memory_space<vmem>>, vector<1x1x24x4xbf16>
    %7 = vector.shape_cast %6 : vector<1x1x24x4xbf16> to vector<24x4xbf16>
    %cst = arith.constant dense<0.000000e+00> : vector<64x4xf32>
    %8 = tpu.matmul %5, %7, %cst {dimension_numbers = #tpu.dot_dimension_numbers<[1], [0], [0], [1], [0, 0, 1, 1], [], []>} : vector<64x24xbf16>, vector<24x4xbf16>, vector<64x4xf32> -> vector<64x4xf32>
    %9 = arith.addf %3, %8 : vector<64x4xf32>
    %c0_10 = arith.constant 0 : index
    %c0_11 = arith.constant 0 : index
    %10 = vector.load %arg6[%c0_10, %c0_11] : memref<64x4xf32, #tpu.memory_space<vmem>>, vector<64x4xf32>
    tpu.vector_store %arg6[%c0_10, %c0_11], %9 {strides = array<i32>} : memref<64x4xf32, #tpu.memory_space<vmem>>, vector<64x4xf32>,
    %c0_12 = arith.constant 0 : index
    %c0_13 = arith.constant 0 : index
    %11 = vector.load %arg6[%c0_12, %c0_13] : memref<64x4xf32, #tpu.memory_space<vmem>>, vector<64x4xf32>
    %c0_14 = arith.constant 0 : index
    %c0_15 = arith.constant 0 : index
    %c8 = arith.constant 8 : index
    %c0_16 = arith.constant 0 : index
    %12 = vector.load %arg3[%c0_14, %c0_15, %c8, %c0_16] : memref<1x1x80x24xbf16, #tpu.memory_space<vmem>>, vector<1x1x64x24xbf16>
    %13 = vector.shape_cast %12 : vector<1x1x64x24xbf16> to vector<64x24xbf16>
    %c0_17 = arith.constant 0 : index
    %c1 = arith.constant 1 : index
    %c0_18 = arith.constant 0 : index
    %c0_19 = arith.constant 0 : index
    %14 = vector.load %arg4[%c0_17, %c1, %c0_18, %c0_19] : memref<1x3x24x4xbf16, #tpu.memory_space<vmem>>, vector<1x1x24x4xbf16>
    %15 = vector.shape_cast %14 : vector<1x1x24x4xbf16> to vector<24x4xbf16>
    %cst_20 = arith.constant dense<0.000000e+00> : vector<64x4xf32>
    %16 = tpu.matmul %13, %15, %cst_20 {dimension_numbers = #tpu.dot_dimension_numbers<[1], [0], [0], [1], [0, 0, 1, 1], [], []>} : vector<64x24xbf16>, vector<24x4xbf16>, vector<64x4xf32> -> vector<64x4xf32>
    %17 = arith.addf %11, %16 : vector<64x4xf32>
    %c0_21 = arith.constant 0 : index
    %c0_22 = arith.constant 0 : index
    %18 = vector.load %arg6[%c0_21, %c0_22] : memref<64x4xf32, #tpu.memory_space<vmem>>, vector<64x4xf32>
    tpu.vector_store %arg6[%c0_21, %c0_22], %17 {strides = array<i32>} : memref<64x4xf32, #tpu.memory_space<vmem>>, vector<64x4xf32>,
    %c0_23 = arith.constant 0 : index
    %c0_24 = arith.constant 0 : index
    %19 = vector.load %arg6[%c0_23, %c0_24] : memref<64x4xf32, #tpu.memory_space<vmem>>, vector<64x4xf32>
    %c0_25 = arith.constant 0 : index
    %c0_26 = arith.constant 0 : index
    %c16 = arith.constant 16 : index
    %c0_27 = arith.constant 0 : index
    %20 = vector.load %arg3[%c0_25, %c0_26, %c16, %c0_27] : memref<1x1x80x24xbf16, #tpu.memory_space<vmem>>, vector<1x1x64x24xbf16>
    %21 = vector.shape_cast %20 : vector<1x1x64x24xbf16> to vector<64x24xbf16>
    %c0_28 = arith.constant 0 : index
    %c2 = arith.constant 2 : index
    %c0_29 = arith.constant 0 : index
    %c0_30 = arith.constant 0 : index
    %22 = vector.load %arg4[%c0_28, %c2, %c0_29, %c0_30] : memref<1x3x24x4xbf16, #tpu.memory_space<vmem>>, vector<1x1x24x4xbf16>
    %23 = vector.shape_cast %22 : vector<1x1x24x4xbf16> to vector<24x4xbf16>
    %cst_31 = arith.constant dense<0.000000e+00> : vector<64x4xf32>
    %24 = tpu.matmul %21, %23, %cst_31 {dimension_numbers = #tpu.dot_dimension_numbers<[1], [0], [0], [1], [0, 0, 1, 1], [], []>} : vector<64x24xbf16>, vector<24x4xbf16>, vector<64x4xf32> -> vector<64x4xf32>
    %25 = arith.addf %19, %24 : vector<64x4xf32>
    %c0_32 = arith.constant 0 : index
    %c0_33 = arith.constant 0 : index
    %26 = vector.load %arg6[%c0_32, %c0_33] : memref<64x4xf32, #tpu.memory_space<vmem>>, vector<64x4xf32>
    tpu.vector_store %arg6[%c0_32, %c0_33], %25 {strides = array<i32>} : memref<64x4xf32, #tpu.memory_space<vmem>>, vector<64x4xf32>,
    %c2_i32 = arith.constant 2 : i32
    %27 = arith.cmpi eq, %arg2, %c2_i32 : i32
    %28 = arith.extui %27 : i1 to i32
    %c0_i32_34 = arith.constant 0 : i32
    %29 = arith.cmpi ne, %28, %c0_i32_34 : i32
    scf.if %29 {
      %c0_35 = arith.constant 0 : index
      %c0_36 = arith.constant 0 : index
      %30 = vector.load %arg6[%c0_35, %c0_36] : memref<64x4xf32, #tpu.memory_space<vmem>>, vector<64x4xf32>
      %31 = arith.truncf %30 : vector<64x4xf32> to vector<64x4xbf16>
      %c0_37 = arith.constant 0 : index
      %c0_38 = arith.constant 0 : index
      %c0_39 = arith.constant 0 : index
      %c0_40 = arith.constant 0 : index
      %32 = vector.load %arg5[%c0_37, %c0_38, %c0_39, %c0_40] : memref<1x1x64x4xbf16, #tpu.memory_space<vmem>>, vector<1x1x64x4xbf16>
      %33 = vector.shape_cast %32 : vector<1x1x64x4xbf16> to vector<64x4xbf16>
      %34 = vector.shape_cast %31 : vector<64x4xbf16> to vector<1x1x64x4xbf16>
      tpu.vector_store %arg5[%c0_37, %c0_38, %c0_39, %c0_40], %34 {strides = array<i32>} : memref<1x1x64x4xbf16, #tpu.memory_space<vmem>>, vector<1x1x64x4xbf16>,
    } else {
    }
    return
  }
  func.func @transform_0(%arg0: i32, %arg1: i32, %arg2: i32) -> (i32, i32, i32, i32) {
    %0 = arith.addi %arg1, %arg2 : i32
    %c0_i32 = arith.constant 0 : i32
    %c0_i32_0 = arith.constant 0 : i32
    %c0_i32_1 = arith.constant 0 : i32
    return %arg0, %0, %c0_i32, %c0_i32_0 : i32, i32, i32, i32
  }
  func.func @transform_1(%arg0: i32, %arg1: i32, %arg2: i32) -> (i32, i32, i32, i32) {
    %c0_i32 = arith.constant 0 : i32
    %c0_i32_0 = arith.constant 0 : i32
    %c0_i32_1 = arith.constant 0 : i32
    %c0_i32_2 = arith.constant 0 : i32
    return %arg2, %c0_i32, %c0_i32_0, %c0_i32_1 : i32, i32, i32, i32
  }
  func.func @transform_2(%arg0: i32, %arg1: i32, %arg2: i32) -> (i32, i32, i32, i32) {
    %c0_i32 = arith.constant 0 : i32
    %c0_i32_0 = arith.constant 0 : i32
    %c0_i32_1 = arith.constant 0 : i32
    return %arg0, %arg1, %c0_i32, %c0_i32_0 : i32, i32, i32, i32
  }
}

module attributes {stable_mosaic.version = 11 : i64} {
  func.func @_matmul_bias_kernel(%arg0: i32, %arg1: memref<1x512x4xbf16, #tpu.memory_space<vmem>>, %arg2: memref<4x2xbf16, #tpu.memory_space<vmem>>, %arg3: memref<1x2xf32, #tpu.memory_space<vmem>>, %arg4: memref<1x512x2xbf16, #tpu.memory_space<vmem>>) attributes {dimension_semantics = [#tpu.dimension_semantics<parallel>], iteration_bounds = array<i64: 4>, scalar_prefetch = 0 : i64, scratch_operands = 0 : i64, tpu.core_type = #tpu.core_type<tc>, window_params = [{transform_indices = @transform_0, window_bounds = array<i64: 1, 512, 4>}, {pipeline_mode = #tpu.pipeline_mode<synchronous>, transform_indices = @transform_1, window_bounds = array<i64: 4, 2>}, {pipeline_mode = #tpu.pipeline_mode<synchronous>, transform_indices = @transform_2, window_bounds = array<i64: 1, 2>}, {transform_indices = @transform_3, window_bounds = array<i64: 1, 512, 2>}]} {
    %c0 = arith.constant 0 : index
    %c0_0 = arith.constant 0 : index
    %c0_1 = arith.constant 0 : index
    %0 = vector.load %arg1[%c0, %c0_0, %c0_1] : memref<1x512x4xbf16, #tpu.memory_space<vmem>>, vector<1x512x4xbf16>
    %1 = vector.shape_cast %0 : vector<1x512x4xbf16> to vector<512x4xbf16>
    %c0_2 = arith.constant 0 : index
    %c0_3 = arith.constant 0 : index
    %2 = vector.load %arg2[%c0_2, %c0_3] : memref<4x2xbf16, #tpu.memory_space<vmem>>, vector<4x2xbf16>
    %cst = arith.constant dense<0.000000e+00> : vector<512x2xf32>
    %3 = tpu.matmul %1, %2, %cst {dimension_numbers = #tpu.dot_dimension_numbers<[1], [0], [0], [1], [0, 0, 1, 1], [], []>} : vector<512x4xbf16>, vector<4x2xbf16>, vector<512x2xf32> -> vector<512x2xf32>
    %c0_4 = arith.constant 0 : index
    %c0_5 = arith.constant 0 : index
    %4 = vector.load %arg3[%c0_4, %c0_5] : memref<1x2xf32, #tpu.memory_space<vmem>>, vector<1x2xf32>
    %5 = vector.broadcast %4 : vector<1x2xf32> to vector<512x2xf32>
    %6 = arith.addf %3, %5 : vector<512x2xf32>
    %7 = arith.truncf %6 : vector<512x2xf32> to vector<512x2xbf16>
    %c0_6 = arith.constant 0 : index
    %c0_7 = arith.constant 0 : index
    %c0_8 = arith.constant 0 : index
    %8 = vector.load %arg4[%c0_6, %c0_7, %c0_8] : memref<1x512x2xbf16, #tpu.memory_space<vmem>>, vector<1x512x2xbf16>
    %9 = vector.shape_cast %8 : vector<1x512x2xbf16> to vector<512x2xbf16>
    %10 = vector.shape_cast %7 : vector<512x2xbf16> to vector<1x512x2xbf16>
    tpu.vector_store %arg4[%c0_6, %c0_7, %c0_8], %10 {strides = array<i32>} : memref<1x512x2xbf16, #tpu.memory_space<vmem>>, vector<1x512x2xbf16>,
    return
  }
  func.func @transform_0(%arg0: i32) -> (i32, i32, i32) {
    %c0_i32 = arith.constant 0 : i32
    %c0_i32_0 = arith.constant 0 : i32
    %c0_i32_1 = arith.constant 0 : i32
    return %arg0, %c0_i32, %c0_i32_0 : i32, i32, i32
  }
  func.func @transform_1(%arg0: i32) -> (i32, i32) {
    %c0_i32 = arith.constant 0 : i32
    %c0_i32_0 = arith.constant 0 : i32
    %c0_i32_1 = arith.constant 0 : i32
    return %c0_i32, %c0_i32_0 : i32, i32
  }
  func.func @transform_2(%arg0: i32) -> (i32, i32) {
    %c0_i32 = arith.constant 0 : i32
    %c0_i32_0 = arith.constant 0 : i32
    %c0_i32_1 = arith.constant 0 : i32
    return %c0_i32, %c0_i32_0 : i32, i32
  }
  func.func @transform_3(%arg0: i32) -> (i32, i32, i32) {
    %c0_i32 = arith.constant 0 : i32
    %c0_i32_0 = arith.constant 0 : i32
    %c0_i32_1 = arith.constant 0 : i32
    return %arg0, %c0_i32, %c0_i32_0 : i32, i32, i32
  }
}

</mosaic_0001>

<llo_original>
// kernel: unet3d1d_forward.39
$region0: #{unet3d1d_forward.39}
  #allocation0 [shape = 'u32[]', space=smem, size = 0x4, offset = 0x4, fixed_abs, tag = 'smem constant byte address 0x4 - core index']
  #allocation1 [shape = 'u32[144,128]{1,0:T(1,128)}', space=vmem, size = 0x12000, scoped, tag = 'internal scratch']
  #allocation2 [shape = 'f32[64,4]{1,0:T(8,128)}', space=vmem, size = 0x8000, scoped, tag = 'scratch operand']
  %s0 = inlined_call_operand.vmem [shape: bf16[4,10,80,6], index: 0, kind: input, shape index: {}]
  %s1 = inlined_call_operand.vmem [shape: bf16[3,3,6,4], index: 1, kind: input, shape index: {}]
  %s2 = inlined_call_operand.vmem [shape: bf16[4,8,64,4], index: 2, kind: output, shape index: {}]
  %s3 = sld [smem:[#allocation0]]
  $region49: #{unet3d1d_forward.39} parent=0
    _
  %s5 = ssub.s32 1, %s3
  %s6 = scalar_select 0, %s5, %s3
  loop: start=0, step=1, limit=98
  $region2: #{unet3d1d_forward.39} parent=0 // loop_pre_header
    _
  $region3: #{unet3d1d_forward.39} parent=0 // loop_header
    %s8 = sphi 0, %s12
    %p9 = scmp.ge.s32.totalorder %s8, 98
    %s15 = sphi 0, %s34
    %s16 = sphi 0, %s30
    %s17 = sphi 0, %s26
    %s18 = sphi 0, %s15
    %s19 = sphi 0, %s16
    %s20 = sphi 0, %s17
    %s21 = sphi 0, %s18
    %s22 = sphi 0, %s19
    %s23 = sphi 0, %s20
    %s41 = sphi 0, %s43
    %s44 = sphi 0, %s41
    %s45 = sphi 0, %s44
    %s61 = sphi 0, %s45
    %s67 = sphi 0, %s69
    %s70 = sphi 0, %s67
    %s71 = sphi 0, %s70
    %s87 = sphi 0, %s71
    %s95 = sphi 0, %s97
    %s98 = sphi 0, %s95
    %s99 = sphi 0, %s98
    %s115 = sphi 0, %s99
  $region4: #{unet3d1d_forward.39} parent=0 // loop_header_branch
    %11 = sbr.rel (%p9) target = $region8
  $region5: #{unet3d1d_forward.39} parent=0 // loop_body
    %s13 = ssub.s32 %s8, 1
    %s14 = ssub.s32 %s8, 2
    %s24 = sadd.s32 1, %s17
    %p25 = scmp.ge.s32.totalorder %s24, 3
    %s26 = scalar_select %p25, 0, %s24
    %s27 = sadd.s32 1, %s16
    %s28 = scalar_select %p25, %s27, %s16
    %p29 = scmp.ge.s32.totalorder %s28, 8
    %s30 = scalar_select %p29, 0, %s28
    %s31 = sadd.s32 1, %s15
    %s32 = scalar_select %p29, %s31, %s15
    %p33 = scmp.ge.s32.totalorder %s32, 4
    %s34 = scalar_select %p33, 0, %s32
    %s35 = sadd.s32 %s16, %s17
    %s36 = sadd.s32 %s30, %s26
    %s37 = ssub.s32 %s15, %s34
    %s38 = ssub.s32 %s35, %s36
    %s39 = sor.u32 %s37, %s38
    %p40 = scmp.eq.s32.totalorder %s39, 0
    %s42 = sadd.s32 %s41, 1
    %s43 = scalar_select %p40, %s41, %s42
    %p46 = pneg %p40
    %p47 = scmp.eq.s32.totalorder %s8, 95
    %p48 = por %p46, %p47
    %p49 = scmp.ne.s32.totalorder %s41, %s44
    %p50 = scmp.eq.s32.totalorder %s8, 0
    %p51 = por %p49, %p50
    %p52 = scmp.ne.s32.totalorder %s41, %s44
    %p53 = scmp.eq.s32.totalorder %s13, 95
    %p54 = por %p52, %p53
    %p55 = scmp.ne.s32.totalorder %s44, %s45
    %p56 = scmp.eq.s32.totalorder %s13, 0
    %p57 = por %p55, %p56
    %p58 = scmp.ne.s32.totalorder %s44, %s45
    %p59 = scmp.eq.s32.totalorder %s14, 95
    %p60 = por %p58, %p59
    %p62 = scmp.ne.s32.totalorder %s45, %s61
    %p63 = scmp.eq.s32.totalorder %s14, 0
    %p64 = por %p62, %p63
    %s65 = ssub.s32 %s17, %s26
    %p66 = scmp.eq.s32.totalorder %s65, 0
    %s68 = sadd.s32 %s67, 1
    %s69 = scalar_select %p66, %s67, %s68
    %p72 = pneg %p66
    %p73 = scmp.eq.s32.totalorder %s8, 95
    %p74 = por %p72, %p73
    %p75 = scmp.ne.s32.totalorder %s67, %s70
    %p76 = scmp.eq.s32.totalorder %s8, 0
    %p77 = por %p75, %p76
    %p78 = scmp.ne.s32.totalorder %s67, %s70
    %p79 = scmp.eq.s32.totalorder %s13, 95
    %p80 = por %p78, %p79
    %p81 = scmp.ne.s32.totalorder %s70, %s71
    %p82 = scmp.eq.s32.totalorder %s13, 0
    %p83 = por %p81, %p82
    %p84 = scmp.ne.s32.totalorder %s70, %s71
    %p85 = scmp.eq.s32.totalorder %s14, 95
    %p86 = por %p84, %p85
    %p88 = scmp.ne.s32.totalorder %s71, %s87
    %p89 = scmp.eq.s32.totalorder %s14, 0
    %p90 = por %p88, %p89
    %s91 = ssub.s32 %s15, %s34
    %s92 = ssub.s32 %s16, %s30
    %s93 = sor.u32 %s91, %s92
    %p94 = scmp.eq.s32.totalorder %s93, 0
    %s96 = sadd.s32 %s95, 1
    %s97 = scalar_select %p94, %s95, %s96
    %p100 = pneg %p94
    %p101 = scmp.eq.s32.totalorder %s8, 95
    %p102 = por %p100, %p101
    %p103 = scmp.ne.s32.totalorder %s95, %s98
    %p104 = scmp.eq.s32.totalorder %s8, 0
    %p105 = por %p103, %p104
    %p106 = scmp.ne.s32.totalorder %s95, %s98
    %p107 = scmp.eq.s32.totalorder %s13, 95
    %p108 = por %p106, %p107
    %p109 = scmp.ne.s32.totalorder %s98, %s99
    %p110 = scmp.eq.s32.totalorder %s13, 0
    %p111 = por %p109, %p110
    %p112 = scmp.ne.s32.totalorder %s98, %s99
    %p113 = scmp.eq.s32.totalorder %s14, 95
    %p114 = por %p112, %p113
    %p116 = scmp.ne.s32.totalorder %s99, %s115
    %p117 = scmp.eq.s32.totalorder %s14, 0
    %p118 = por %p116, %p117
    %p119 = scmp.le.s32.totalorder 1, %s8
    %p120 = scmp.lt.s32.totalorder %s8, 97
    %p121 = pnand %p119, %p120
    %p122 = pneg %p121
    // Predicated region
    $region9: #{unet3d1d_forward.39} parent=5 // pred_check
      _
    $region10: #{unet3d1d_forward.39} parent=5 // pred_check_branch
      %124 = sbr.rel (%p121) target = $region12
    $region11: #{unet3d1d_forward.39} parent=5 // pred_region
      %s125 = ssub.s32 %s8, 1
    $region12: #{unet3d1d_forward.39} parent=5 // pred_fallthru
      _
    %p126 = scmp.lt.s32.totalorder %s8, 96
    // Predicated region
    $region13: #{unet3d1d_forward.39} parent=5 // pred_check
      %p127 = pneg %p126
    $region14: #{unet3d1d_forward.39} parent=5 // pred_check_branch
      %129 = sbr.rel (%p127) target = $region16
    $region15: #{unet3d1d_forward.39} parent=5 // pred_region
      // Predicated region
      $region17: #{unet3d1d_forward.39} parent=15 // pred_check
        %p130 = pneg %p51
      $region18: #{unet3d1d_forward.39} parent=15 // pred_check_branch
        %132 = sbr.rel (%p130) target = $region20
      $region19: #{unet3d1d_forward.39} parent=15 // pred_region
        %s133 = sadd.s32 %s16, %s17
        %p134 = scmp.lt.s32.totalorder %s15, 3
        %s135 = scalar_select %p134, %s15, 3
        %p136 = scmp.lt.s32.totalorder %s133, 9
        %s137 = scalar_select %p136, %s133, 9
        %s138 = smul.addr %s137, 10
        %s139 = smul.addr %s135, 100
        %s140 = sadd.s32 %s138, %s139
        %s141 = smul.addr %s140, 4
        %s142 = scalar_lea.vmem %s0, %s141
        %s143 = sadd.s32 %s16, %s17
      $region20: #{unet3d1d_forward.39} parent=15 // pred_fallthru
        _
      // Predicated region
      $region21: #{unet3d1d_forward.39} parent=15 // pred_check
        %p144 = pneg %p77
      $region22: #{unet3d1d_forward.39} parent=15 // pred_check_branch
        %146 = sbr.rel (%p144) target = $region24
      $region23: #{unet3d1d_forward.39} parent=15 // pred_region
        %p147 = scmp.lt.s32.totalorder %s17, 2
        %s148 = scalar_select %p147, %s17, 2
        %s149 = smul.addr %s148, 3
        %s150 = smul.addr %s149, 4
        %s151 = scalar_lea.vmem %s1, %s150
      $region24: #{unet3d1d_forward.39} parent=15 // pred_fallthru
        _
    $region16: #{unet3d1d_forward.39} parent=5 // pred_fallthru
      _
    %p152 = scmp.le.s32.totalorder 1, %s8
    %p153 = scmp.lt.s32.totalorder %s8, 97
    %p154 = pnand %p152, %p153
    %p155 = pneg %p154
    // Predicated region
    $region25: #{unet3d1d_forward.39} parent=5 // pred_check
      _
    $region26: #{unet3d1d_forward.39} parent=5 // pred_check_branch
      %157 = sbr.rel (%p154) target = $region28
    $region27: #{unet3d1d_forward.39} parent=5 // pred_region
      %s158 = ssub.s32 %s8, 1
      %s159 = sadd.s32 %s19, %s20
      %p160 = scmp.lt.s32.totalorder %s18, 3
      %s161 = scalar_select %p160, %s18, 3
      %p162 = scmp.lt.s32.totalorder %s159, 9
      %s163 = scalar_select %p162, %s159, 9
      %s164 = smul.addr %s163, 10
      %s165 = smul.addr %s161, 100
      %s166 = sadd.s32 %s164, %s165
      %s167 = smul.addr %s166, 4
      %s168 = scalar_lea.vmem %s0, %s167
      %p169 = pneg %p57
      %p170 = pneg %p54
      %p171 = scmp.lt.s32.totalorder %s20, 2
      %s172 = scalar_select %p171, %s20, 2
      %s173 = smul.addr %s172, 3
      %s174 = smul.addr %s173, 4
      %s175 = scalar_lea.vmem %s1, %s174
      %p176 = pneg %p83
      %p177 = pneg %p80
      %p178 = pneg %p111
      %p179 = pneg %p108
      %p180 = scmp.lt.s32.totalorder %s18, 3
      %s181 = scalar_select %p180, %s18, 3
      %p182 = scmp.lt.s32.totalorder %s19, 7
      %s183 = scalar_select %p182, %s19, 7
      %s184 = smul.addr %s183, 8
      %s185 = smul.addr %s181, 64
      %s186 = sadd.s32 %s184, %s185
      %s187 = smul.addr %s186, 4
      %s188 = scalar_lea.vmem %s2, %s187
      %s189 = sadd.s32 %s19, %s20
      %p190 = scmp.lt.s32.totalorder %s18, 3
      %s191 = scalar_select %p190, %s18, 3
      %p192 = scmp.lt.s32.totalorder %s189, 9
      %s193 = scalar_select %p192, %s189, 9
      %s194 = smul.addr %s193, 10
      %s195 = smul.addr %s191, 100
      %s196 = sadd.s32 %s194, %s195
      %s197 = smul.addr %s196, 4
      %s198 = scalar_lea.vmem %s0, %s197
      %s199 = sadd.s32 %s19, %s20
      %p200 = scmp.lt.s32.totalorder %s20, 2
      %s201 = scalar_select %p200, %s20, 2
      %s202 = smul.addr %s201, 3
      %s203 = smul.addr %s202, 4
      %s204 = scalar_lea.vmem %s1, %s203
      %p205 = scmp.lt.s32.totalorder %s18, 3
      %s206 = scalar_select %p205, %s18, 3
      %p207 = scmp.lt.s32.totalorder %s19, 7
      %s208 = scalar_select %p207, %s19, 7
      %s209 = smul.addr %s208, 8
      %s210 = smul.addr %s206, 64
      %s211 = sadd.s32 %s209, %s210
      %s212 = smul.addr %s211, 4
      %s213 = scalar_lea.vmem %s2, %s212
      %p215 = scmp.eq.s32.totalorder %s20, 0
      // Predicated region
      $region29: #{unet3d1d_forward.39} parent=27 // pred_check
        %p216 = pneg %p215
      $region30: #{unet3d1d_forward.39} parent=27 // pred_check_branch
        %218 = sbr.rel (%p216) target = $region32
      $region31: #{unet3d1d_forward.39} parent=27 // pred_region
        %vm219 = vcmask 31744
        %220 = vst.msk [vmem:[#allocation2] sm:$0xff] %vm219, 0.0
        %221 = vst.msk [vmem:[#allocation2 + $0x8] sm:$0xff] %vm219, 0.0
        %222 = vst.msk [vmem:[#allocation2 + $0x10] sm:$0xff] %vm219, 0.0
        %223 = vst.msk [vmem:[#allocation2 + $0x18] sm:$0xff] %vm219, 0.0
        %224 = vst.msk [vmem:[#allocation2 + $0x20] sm:$0xff] %vm219, 0.0
        %225 = vst.msk [vmem:[#allocation2 + $0x28] sm:$0xff] %vm219, 0.0
        %226 = vst.msk [vmem:[#allocation2 + $0x30] sm:$0xff] %vm219, 0.0
        %227 = vst.msk [vmem:[#allocation2 + $0x38] sm:$0xff] %vm219, 0.0
      $region32: #{unet3d1d_forward.39} parent=27 // pred_fallthru
        _
      %v228 = vld [vmem:[#allocation2] sm:$0xff]
      %v229 = vld [vmem:[#allocation2 + $0x8] sm:$0xff]
      %v230 = vld [vmem:[#allocation2 + $0x10] sm:$0xff]
      %v231 = vld [vmem:[#allocation2 + $0x18] sm:$0xff]
      %v232 = vld [vmem:[#allocation2 + $0x20] sm:$0xff]
      %v233 = vld [vmem:[#allocation2 + $0x28] sm:$0xff]
      %v234 = vld [vmem:[#allocation2 + $0x30] sm:$0xff]
      %v235 = vld [vmem:[#allocation2 + $0x38] sm:$0xff]
      %v236 = vld [vmem:[%s198] sm:$0xf]
      %v237 = vld [vmem:[%s198 + $0x4] sm:$0xf]
      %v238 = vld [vmem:[%s198 + $0x8] sm:$0xf]
      %v239 = vld [vmem:[%s198 + $0xc] sm:$0xf]
      %v240 = vld [vmem:[%s198 + $0x10] sm:$0xf]
      %v241 = vld [vmem:[%s198 + $0x14] sm:$0xf]
      %v242 = vld [vmem:[%s198 + $0x18] sm:$0xf]
      %v243 = vld [vmem:[%s198 + $0x1c] sm:$0xf]
      %v244 = vld [vmem:[%s204] sm:$0x7]
      %v253 = vunpack.c.l.b16 %v236
      %v254 = vunpack.c.l.b16 %v237
      %v255 = vunpack.c.l.b16 %v238
      %v256 = vunpack.c.l.b16 %v239
      %v257 = vunpack.c.l.b16 %v240
      %v258 = vunpack.c.l.b16 %v241
      %v259 = vunpack.c.l.b16 %v242
      %v260 = vunpack.c.l.b16 %v243
      %v261 = vpack.c.b16 %v254, %v253
      %v262 = vpack.c.b16 %v256, %v255
      %v263 = vpack.c.b16 %v258, %v257
      %v264 = vpack.c.b16 %v260, %v259
      %vm265 = vcmask 48128
      %v267 = vsel %vm265, %v261, 0
      %v270 = vsel %vm265, %v262, 0
      %v273 = vsel %vm265, %v263, 0
      %v276 = vsel %vm265, %v264, 0
      %vm278 = vcmask 1042432
      %v280 = vsel %vm278, %v244, 0
      %282 = vmatprep.subr.bf16.mxu0 0
      %283 = vmatpush1.bf16.msra.mxu0 0
      %284 = vmatprep.subr.bf16.mxu0 0
      %285 = vmatpush1.bf16.msra.mxu0 0
      %286 = vmatprep.subr.bf16.mxu0 0
      %287 = vmatpush1.bf16.msra.mxu0 0
      %288 = vmatprep.subr.bf16.mxu0 0
      %289 = vmatpush1.bf16.msra.mxu0 0
      %290 = vmatprep.subr.bf16.mxu0 0
      %291 = vmatpush1.bf16.msra.mxu0 0
      %292 = vmatprep.subr.bf16.mxu0 0
      %293 = vmatpush1.bf16.msra.mxu0 0
      %294 = vmatprep.subr.bf16.mxu0 0
      %295 = vmatpush1.bf16.msra.mxu0 0
      %296 = vmatprep.subr.bf16.mxu0 0
      %297 = vmatpush1.bf16.msra.mxu0 %v280
      %298 = vmatprep.subr.bf16.mxu0 0
      %299 = vmatpush2.bf16.msra.mxu0 0
      %300 = vmatprep.subr.bf16.mxu0 0
      %301 = vmatpush2.bf16.msra.mxu0 0
      %302 = vmatprep.subr.bf16.mxu0 0
      %303 = vmatpush2.bf16.msra.mxu0 0
      %304 = vmatprep.subr.bf16.mxu0 0
      %305 = vmatpush2.bf16.msra.mxu0 0
      %306 = vmatprep.subr.bf16.mxu0 0
      %307 = vmatpush2.bf16.msra.mxu0 0
      %308 = vmatprep.subr.bf16.mxu0 0
      %309 = vmatpush2.bf16.msra.mxu0 0
      %310 = vmatprep.subr.bf16.mxu0 0
      %311 = vmatpush2.bf16.msra.mxu0 0
      %312 = vmatprep.subr.bf16.mxu0 0
      %313 = vmatpush2.bf16.msra.mxu0 0
      %314 = vmatprep.mubr.bf16.mxu0 0
      %315 = vmatmul.mubr.bf16.gmra.mxu0 %v267
      %v316 = vpop.f32.mrf.mxu0
      %v317 = vadd.f32 0.0, %v316
      %v318 = vpop.f32.mrf.mxu0
      %v319 = vpop.f32.mrf.mxu0
      %v320 = vadd.f32 0.0, %v319
      %v321 = vpop.f32.mrf.mxu0
      %322 = vmatprep.mubr.bf16.mxu0 0
      %323 = vmatmul.mubr.bf16.gmra.mxu0 %v270
      %v324 = vpop.f32.mrf.mxu0
      %v325 = vadd.f32 0.0, %v324
      %v326 = vpop.f32.mrf.mxu0
      %v327 = vpop.f32.mrf.mxu0
      %v328 = vadd.f32 0.0, %v327
      %v329 = vpop.f32.mrf.mxu0
      %330 = vmatprep.mubr.bf16.mxu0 0
      %331 = vmatmul.mubr.bf16.gmra.mxu0 %v273
      %v332 = vpop.f32.mrf.mxu0
      %v333 = vadd.f32 0.0, %v332
      %v334 = vpop.f32.mrf.mxu0
      %v335 = vpop.f32.mrf.mxu0
      %v336 = vadd.f32 0.0, %v335
      %v337 = vpop.f32.mrf.mxu0
      %338 = vmatprep.mubr.bf16.mxu0 0
      %339 = vmatmul.mubr.bf16.gmra.mxu0 %v276
      %v340 = vpop.f32.mrf.mxu0
      %v341 = vadd.f32 0.0, %v340
      %v342 = vpop.f32.mrf.mxu0
      %v343 = vpop.f32.mrf.mxu0
      %v344 = vadd.f32 0.0, %v343
      %v345 = vpop.f32.mrf.mxu0
      %346 = vdwg.mxu0
      %v347 = vadd.f32 %v228, %v317
      %v348 = vadd.f32 %v229, %v320
      %v349 = vadd.f32 %v230, %v325
      %v350 = vadd.f32 %v231, %v328
      %v351 = vadd.f32 %v232, %v333
      %v352 = vadd.f32 %v233, %v336
      %v353 = vadd.f32 %v234, %v341
      %v354 = vadd.f32 %v235, %v344
      %vm355 = vcmask 31744
      %356 = vst.msk [vmem:[#allocation2] sm:$0xff] %vm355, %v347
      %357 = vst.msk [vmem:[#allocation2 + $0x8] sm:$0xff] %vm355, %v348
      %358 = vst.msk [vmem:[#allocation2 + $0x10] sm:$0xff] %vm355, %v349
      %359 = vst.msk [vmem:[#allocation2 + $0x18] sm:$0xff] %vm355, %v350
      %360 = vst.msk [vmem:[#allocation2 + $0x20] sm:$0xff] %vm355, %v351
      %361 = vst.msk [vmem:[#allocation2 + $0x28] sm:$0xff] %vm355, %v352
      %362 = vst.msk [vmem:[#allocation2 + $0x30] sm:$0xff] %vm355, %v353
      %363 = vst.msk [vmem:[#allocation2 + $0x38] sm:$0xff] %vm355, %v354
      %v364 = vld [vmem:[#allocation2] sm:$0xff]
      %v365 = vld [vmem:[#allocation2 + $0x8] sm:$0xff]
      %v366 = vld [vmem:[#allocation2 + $0x10] sm:$0xff]
      %v367 = vld [vmem:[#allocation2 + $0x18] sm:$0xff]
      %v368 = vld [vmem:[#allocation2 + $0x20] sm:$0xff]
      %v369 = vld [vmem:[#allocation2 + $0x28] sm:$0xff]
      %v370 = vld [vmem:[#allocation2 + $0x30] sm:$0xff]
      %v371 = vld [vmem:[#allocation2 + $0x38] sm:$0xff]
      %v372 = vld [vmem:[%s198 + $0x4] sm:$0xf]
      %v373 = vld [vmem:[%s198 + $0x8] sm:$0xf]
      %v374 = vld [vmem:[%s198 + $0xc] sm:$0xf]
      %v375 = vld [vmem:[%s198 + $0x10] sm:$0xf]
      %v376 = vld [vmem:[%s198 + $0x14] sm:$0xf]
      %v377 = vld [vmem:[%s198 + $0x18] sm:$0xf]
      %v378 = vld [vmem:[%s198 + $0x1c] sm:$0xf]
      %v379 = vld [vmem:[%s198 + $0x20] sm:$0xf]
      %s380 = scalar_lea.vmem %s204, 4
      %v381 = vld [vmem:[%s380] sm:$0x7]
      %v390 = vunpack.c.l.b16 %v372
      %v391 = vunpack.c.l.b16 %v373
      %v392 = vunpack.c.l.b16 %v374
      %v393 = vunpack.c.l.b16 %v375
      %v394 = vunpack.c.l.b16 %v376
      %v395 = vunpack.c.l.b16 %v377
      %v396 = vunpack.c.l.b16 %v378
      %v397 = vunpack.c.l.b16 %v379
      %v398 = vpack.c.b16 %v391, %v390
      %v399 = vpack.c.b16 %v393, %v392
      %v400 = vpack.c.b16 %v395, %v394
      %v401 = vpack.c.b16 %v397, %v396
      %v403 = vsel %vm265, %v398, 0
      %v406 = vsel %vm265, %v399, 0
      %v409 = vsel %vm265, %v400, 0
      %v412 = vsel %vm265, %v401, 0
      %v415 = vsel %vm278, %v381, 0
      %417 = vmatprep.subr.bf16.mxu0 0
      %418 = vmatpush1.bf16.msra.mxu0 0
      %419 = vmatprep.subr.bf16.mxu0 0
      %420 = vmatpush1.bf16.msra.mxu0 0
      %421 = vmatprep.subr.bf16.mxu0 0
      %422 = vmatpush1.bf16.msra.mxu0 0
      %423 = vmatprep.subr.bf16.mxu0 0
      %424 = vmatpush1.bf16.msra.mxu0 0
      %425 = vmatprep.subr.bf16.mxu0 0
      %426 = vmatpush1.bf16.msra.mxu0 0
      %427 = vmatprep.subr.bf16.mxu0 0
      %428 = vmatpush1.bf16.msra.mxu0 0
      %429 = vmatprep.subr.bf16.mxu0 0
      %430 = vmatpush1.bf16.msra.mxu0 0
      %431 = vmatprep.subr.bf16.mxu0 0
      %432 = vmatpush1.bf16.msra.mxu0 %v415
      %433 = vmatprep.subr.bf16.mxu0 0
      %434 = vmatpush2.bf16.msra.mxu0 0
      %435 = vmatprep.subr.bf16.mxu0 0
      %436 = vmatpush2.bf16.msra.mxu0 0
      %437 = vmatprep.subr.bf16.mxu0 0
      %438 = vmatpush2.bf16.msra.mxu0 0
      %439 = vmatprep.subr.bf16.mxu0 0
      %440 = vmatpush2.bf16.msra.mxu0 0
      %441 = vmatprep.subr.bf16.mxu0 0
      %442 = vmatpush2.bf16.msra.mxu0 0
      %443 = vmatprep.subr.bf16.mxu0 0
      %444 = vmatpush2.bf16.msra.mxu0 0
      %445 = vmatprep.subr.bf16.mxu0 0
      %446 = vmatpush2.bf16.msra.mxu0 0
      %447 = vmatprep.subr.bf16.mxu0 0
      %448 = vmatpush2.bf16.msra.mxu0 0
      %449 = vmatprep.mubr.bf16.mxu0 0
      %450 = vmatmul.mubr.bf16.gmra.mxu0 %v403
      %v451 = vpop.f32.mrf.mxu0
      %v452 = vadd.f32 0.0, %v451
      %v453 = vpop.f32.mrf.mxu0
      %v454 = vpop.f32.mrf.mxu0
      %v455 = vadd.f32 0.0, %v454
      %v456 = vpop.f32.mrf.mxu0
      %457 = vmatprep.mubr.bf16.mxu0 0
      %458 = vmatmul.mubr.bf16.gmra.mxu0 %v406
      %v459 = vpop.f32.mrf.mxu0
      %v460 = vadd.f32 0.0, %v459
      %v461 = vpop.f32.mrf.mxu0
      %v462 = vpop.f32.mrf.mxu0
      %v463 = vadd.f32 0.0, %v462
      %v464 = vpop.f32.mrf.mxu0
      %465 = vmatprep.mubr.bf16.mxu0 0
      %466 = vmatmul.mubr.bf16.gmra.mxu0 %v409
      %v467 = vpop.f32.mrf.mxu0
      %v468 = vadd.f32 0.0, %v467
      %v469 = vpop.f32.mrf.mxu0
      %v470 = vpop.f32.mrf.mxu0
      %v471 = vadd.f32 0.0, %v470
      %v472 = vpop.f32.mrf.mxu0
      %473 = vmatprep.mubr.bf16.mxu0 0
      %474 = vmatmul.mubr.bf16.gmra.mxu0 %v412
      %v475 = vpop.f32.mrf.mxu0
      %v476 = vadd.f32 0.0, %v475
      %v477 = vpop.f32.mrf.mxu0
      %v478 = vpop.f32.mrf.mxu0
      %v479 = vadd.f32 0.0, %v478
      %v480 = vpop.f32.mrf.mxu0
      %481 = vdwg.mxu0
      %v482 = vadd.f32 %v364, %v452
      %v483 = vadd.f32 %v365, %v455
      %v484 = vadd.f32 %v366, %v460
      %v485 = vadd.f32 %v367, %v463
      %v486 = vadd.f32 %v368, %v468
      %v487 = vadd.f32 %v369, %v471
      %v488 = vadd.f32 %v370, %v476
      %v489 = vadd.f32 %v371, %v479
      %490 = vst.msk [vmem:[#allocation2] sm:$0xff] %vm355, %v482
      %491 = vst.msk [vmem:[#allocation2 + $0x8] sm:$0xff] %vm355, %v483
      %492 = vst.msk [vmem:[#allocation2 + $0x10] sm:$0xff] %vm355, %v484
      %493 = vst.msk [vmem:[#allocation2 + $0x18] sm:$0xff] %vm355, %v485
      %494 = vst.msk [vmem:[#allocation2 + $0x20] sm:$0xff] %vm355, %v486
      %495 = vst.msk [vmem:[#allocation2 + $0x28] sm:$0xff] %vm355, %v487
      %496 = vst.msk [vmem:[#allocation2 + $0x30] sm:$0xff] %vm355, %v488
      %497 = vst.msk [vmem:[#allocation2 + $0x38] sm:$0xff] %vm355, %v489
      %v498 = vld [vmem:[#allocation2] sm:$0xff]
      %v499 = vld [vmem:[#allocation2 + $0x8] sm:$0xff]
      %v500 = vld [vmem:[#allocation2 + $0x10] sm:$0xff]
      %v501 = vld [vmem:[#allocation2 + $0x18] sm:$0xff]
      %v502 = vld [vmem:[#allocation2 + $0x20] sm:$0xff]
      %v503 = vld [vmem:[#allocation2 + $0x28] sm:$0xff]
      %v504 = vld [vmem:[#allocation2 + $0x30] sm:$0xff]
      %v505 = vld [vmem:[#allocation2 + $0x38] sm:$0xff]
      %v506 = vld [vmem:[%s198 + $0x8] sm:$0xf]
      %v507 = vld [vmem:[%s198 + $0xc] sm:$0xf]
      %v508 = vld [vmem:[%s198 + $0x10] sm:$0xf]
      %v509 = vld [vmem:[%s198 + $0x14] sm:$0xf]
      %v510 = vld [vmem:[%s198 + $0x18] sm:$0xf]
      %v511 = vld [vmem:[%s198 + $0x1c] sm:$0xf]
      %v512 = vld [vmem:[%s198 + $0x20] sm:$0xf]
      %v513 = vld [vmem:[%s198 + $0x24] sm:$0xf]
      %s514 = scalar_lea.vmem %s204, 8
      %v515 = vld [vmem:[%s514] sm:$0x7]
      %v524 = vunpack.c.l.b16 %v506
      %v525 = vunpack.c.l.b16 %v507
      %v526 = vunpack.c.l.b16 %v508
      %v527 = vunpack.c.l.b16 %v509
      %v528 = vunpack.c.l.b16 %v510
      %v529 = vunpack.c.l.b16 %v511
      %v530 = vunpack.c.l.b16 %v512
      %v531 = vunpack.c.l.b16 %v513
      %v532 = vpack.c.b16 %v525, %v524
      %v533 = vpack.c.b16 %v527, %v526
      %v534 = vpack.c.b16 %v529, %v528
      %v535 = vpack.c.b16 %v531, %v530
      %v537 = vsel %vm265, %v532, 0
      %v540 = vsel %vm265, %v533, 0
      %v543 = vsel %vm265, %v534, 0
      %v546 = vsel %vm265, %v535, 0
      %v549 = vsel %vm278, %v515, 0
      %551 = vmatprep.subr.bf16.mxu0 0
      %552 = vmatpush1.bf16.msra.mxu0 0
      %553 = vmatprep.subr.bf16.mxu0 0
      %554 = vmatpush1.bf16.msra.mxu0 0
      %555 = vmatprep.subr.bf16.mxu0 0
      %556 = vmatpush1.bf16.msra.mxu0 0
      %557 = vmatprep.subr.bf16.mxu0 0
      %558 = vmatpush1.bf16.msra.mxu0 0
      %559 = vmatprep.subr.bf16.mxu0 0
      %560 = vmatpush1.bf16.msra.mxu0 0
      %561 = vmatprep.subr.bf16.mxu0 0
      %562 = vmatpush1.bf16.msra.mxu0 0
      %563 = vmatprep.subr.bf16.mxu0 0
      %564 = vmatpush1.bf16.msra.mxu0 0
      %565 = vmatprep.subr.bf16.mxu0 0
      %566 = vmatpush1.bf16.msra.mxu0 %v549
      %567 = vmatprep.subr.bf16.mxu0 0
      %568 = vmatpush2.bf16.msra.mxu0 0
      %569 = vmatprep.subr.bf16.mxu0 0
      %570 = vmatpush2.bf16.msra.mxu0 0
      %571 = vmatprep.subr.bf16.mxu0 0
      %572 = vmatpush2.bf16.msra.mxu0 0
      %573 = vmatprep.subr.bf16.mxu0 0
      %574 = vmatpush2.bf16.msra.mxu0 0
      %575 = vmatprep.subr.bf16.mxu0 0
      %576 = vmatpush2.bf16.msra.mxu0 0
      %577 = vmatprep.subr.bf16.mxu0 0
      %578 = vmatpush2.bf16.msra.mxu0 0
      %579 = vmatprep.subr.bf16.mxu0 0
      %580 = vmatpush2.bf16.msra.mxu0 0
      %581 = vmatprep.subr.bf16.mxu0 0
      %582 = vmatpush2.bf16.msra.mxu0 0
      %583 = vmatprep.mubr.bf16.mxu0 0
      %584 = vmatmul.mubr.bf16.gmra.mxu0 %v537
      %v585 = vpop.f32.mrf.mxu0
      %v586 = vadd.f32 0.0, %v585
      %v587 = vpop.f32.mrf.mxu0
      %v588 = vpop.f32.mrf.mxu0
      %v589 = vadd.f32 0.0, %v588
      %v590 = vpop.f32.mrf.mxu0
      %591 = vmatprep.mubr.bf16.mxu0 0
      %592 = vmatmul.mubr.bf16.gmra.mxu0 %v540
      %v593 = vpop.f32.mrf.mxu0
      %v594 = vadd.f32 0.0, %v593
      %v595 = vpop.f32.mrf.mxu0
      %v596 = vpop.f32.mrf.mxu0
      %v597 = vadd.f32 0.0, %v596
      %v598 = vpop.f32.mrf.mxu0
      %599 = vmatprep.mubr.bf16.mxu0 0
      %600 = vmatmul.mubr.bf16.gmra.mxu0 %v543
      %v601 = vpop.f32.mrf.mxu0
      %v602 = vadd.f32 0.0, %v601
      %v603 = vpop.f32.mrf.mxu0
      %v604 = vpop.f32.mrf.mxu0
      %v605 = vadd.f32 0.0, %v604
      %v606 = vpop.f32.mrf.mxu0
      %607 = vmatprep.mubr.bf16.mxu0 0
      %608 = vmatmul.mubr.bf16.gmra.mxu0 %v546
      %v609 = vpop.f32.mrf.mxu0
      %v610 = vadd.f32 0.0, %v609
      %v611 = vpop.f32.mrf.mxu0
      %v612 = vpop.f32.mrf.mxu0
      %v613 = vadd.f32 0.0, %v612
      %v614 = vpop.f32.mrf.mxu0
      %615 = vdwg.mxu0
      %v616 = vadd.f32 %v498, %v586
      %v617 = vadd.f32 %v499, %v589
      %v618 = vadd.f32 %v500, %v594
      %v619 = vadd.f32 %v501, %v597
      %v620 = vadd.f32 %v502, %v602
      %v621 = vadd.f32 %v503, %v605
      %v622 = vadd.f32 %v504, %v610
      %v623 = vadd.f32 %v505, %v613
      %624 = vst.msk [vmem:[#allocation2] sm:$0xff] %vm355, %v616
      %625 = vst.msk [vmem:[#allocation2 + $0x8] sm:$0xff] %vm355, %v617
      %626 = vst.msk [vmem:[#allocation2 + $0x10] sm:$0xff] %vm355, %v618
      %627 = vst.msk [vmem:[#allocation2 + $0x18] sm:$0xff] %vm355, %v619
      %628 = vst.msk [vmem:[#allocation2 + $0x20] sm:$0xff] %vm355, %v620
      %629 = vst.msk [vmem:[#allocation2 + $0x28] sm:$0xff] %vm355, %v621
      %630 = vst.msk [vmem:[#allocation2 + $0x30] sm:$0xff] %vm355, %v622
      %631 = vst.msk [vmem:[#allocation2 + $0x38] sm:$0xff] %vm355, %v623
      %p632 = scmp.eq.s32.totalorder %s20, 2
      // Predicated region
      $region33: #{unet3d1d_forward.39} parent=27 // pred_check
        %p633 = pneg %p632
      $region34: #{unet3d1d_forward.39} parent=27 // pred_check_branch
        %635 = sbr.rel (%p633) target = $region36
      $region35: #{unet3d1d_forward.39} parent=27 // pred_region
        %v636 = vld [vmem:[#allocation2] sm:$0xff]
        %v637 = vld [vmem:[#allocation2 + $0x8] sm:$0xff]
        %v638 = vld [vmem:[#allocation2 + $0x10] sm:$0xff]
        %v639 = vld [vmem:[#allocation2 + $0x18] sm:$0xff]
        %v640 = vld [vmem:[#allocation2 + $0x20] sm:$0xff]
        %v641 = vld [vmem:[#allocation2 + $0x28] sm:$0xff]
        %v642 = vld [vmem:[#allocation2 + $0x30] sm:$0xff]
        %v643 = vld [vmem:[#allocation2 + $0x38] sm:$0xff]
        %v644 = vpack.c.bf16 %v637, %v636
        %v645 = vpack.c.bf16 %v639, %v638
        %v646 = vpack.c.bf16 %v641, %v640
        %v647 = vpack.c.bf16 %v643, %v642
        %v652 = vunpack.c.l.b16 %v644
        %v653 = vunpack.c.h.b16 %v644
        %v654 = vunpack.c.l.b16 %v645
        %v655 = vunpack.c.h.b16 %v645
        %v656 = vunpack.c.l.b16 %v646
        %v657 = vunpack.c.h.b16 %v646
        %v658 = vunpack.c.l.b16 %v647
        %v659 = vunpack.c.h.b16 %v647
        %v660 = vpack.c.b16 %v652, %v652
        %v661 = vpack.c.b16 %v653, %v653
        %v662 = vpack.c.b16 %v654, %v654
        %v663 = vpack.c.b16 %v655, %v655
        %v664 = vpack.c.b16 %v656, %v656
        %v665 = vpack.c.b16 %v657, %v657
        %v666 = vpack.c.b16 %v658, %v658
        %v667 = vpack.c.b16 %v659, %v659
        %vm676 = vcmask 27648
        %677 = vst.msk [vmem:[%s213] sm:$0xf] %vm676, %v660
        %678 = vst.msk [vmem:[%s213 + $0x4] sm:$0xf] %vm676, %v661
        %679 = vst.msk [vmem:[%s213 + $0x8] sm:$0xf] %vm676, %v662
        %680 = vst.msk [vmem:[%s213 + $0xc] sm:$0xf] %vm676, %v663
        %681 = vst.msk [vmem:[%s213 + $0x10] sm:$0xf] %vm676, %v664
        %682 = vst.msk [vmem:[%s213 + $0x14] sm:$0xf] %vm676, %v665
        %683 = vst.msk [vmem:[%s213 + $0x18] sm:$0xf] %vm676, %v666
        %684 = vst.msk [vmem:[%s213 + $0x1c] sm:$0xf] %vm676, %v667
      $region36: #{unet3d1d_forward.39} parent=27 // pred_fallthru
        _
      %p685 = scmp.lt.s32.totalorder %s18, 3
      %s686 = scalar_select %p685, %s18, 3
      %p687 = scmp.lt.s32.totalorder %s19, 7
      %s688 = scalar_select %p687, %s19, 7
      %s689 = smul.addr %s688, 8
      %s690 = smul.addr %s686, 64
      %s691 = sadd.s32 %s689, %s690
      %s692 = smul.addr %s691, 4
      %s693 = scalar_lea.vmem %s2, %s692
      // Predicated region
      $region37: #{unet3d1d_forward.39} parent=27 // pred_check
        %p694 = pneg %p108
      $region38: #{unet3d1d_forward.39} parent=27 // pred_check_branch
        %696 = sbr.rel (%p694) target = $region40
      $region39: #{unet3d1d_forward.39} parent=27 // pred_region
        _
      $region40: #{unet3d1d_forward.39} parent=27 // pred_fallthru
        _
    $region28: #{unet3d1d_forward.39} parent=5 // pred_fallthru
      _
    %p697 = scmp.le.s32.totalorder 2, %s8
    // Predicated region
    $region41: #{unet3d1d_forward.39} parent=5 // pred_check
      %p698 = pneg %p697
    $region42: #{unet3d1d_forward.39} parent=5 // pred_check_branch
      %700 = sbr.rel (%p698) target = $region44
    $region43: #{unet3d1d_forward.39} parent=5 // pred_region
      %s701 = ssub.s32 %s8, 2
      // Predicated region
      $region45: #{unet3d1d_forward.39} parent=43 // pred_check
        %p702 = pneg %p114
      $region46: #{unet3d1d_forward.39} parent=43 // pred_check_branch
        %704 = sbr.rel (%p702) target = $region48
      $region47: #{unet3d1d_forward.39} parent=43 // pred_region
        %p705 = scmp.lt.s32.totalorder %s21, 3
        %s706 = scalar_select %p705, %s21, 3
        %p707 = scmp.lt.s32.totalorder %s22, 7
        %s708 = scalar_select %p707, %s22, 7
        %s709 = smul.addr %s708, 8
        %s710 = smul.addr %s706, 64
        %s711 = sadd.s32 %s709, %s710
        %s712 = smul.addr %s711, 4
        %s713 = scalar_lea.vmem %s2, %s712
      $region48: #{unet3d1d_forward.39} parent=43 // pred_fallthru
        _
    $region44: #{unet3d1d_forward.39} parent=5 // pred_fallthru
      _
  $region6: #{unet3d1d_forward.39} parent=0 // loop_footer
    %s12 = sadd.s32 1, %s8
  $region7: #{unet3d1d_forward.39} parent=0 // loop_footer_branch
    %7 = sbr.rel target = $region3
  $region8: #{unet3d1d_forward.39} parent=0 // loop_exit
    _

// kernel: unet3d1d_forward.40
$region0: #{unet3d1d_forward.40}
  #allocation0 [shape = 'u32[]', space=smem, size = 0x4, offset = 0x4, fixed_abs, tag = 'smem constant byte address 0x4 - core index']
  #allocation1 [shape = 'u32[144,128]{1,0:T(1,128)}', space=vmem, size = 0x12000, scoped, tag = 'internal scratch']
  %s0 = inlined_call_operand.vmem [shape: bf16[2,8,512], index: 0, kind: input, shape index: {}]
  %s1 = inlined_call_operand.vmem [shape: f32[2,2,512], index: 1, kind: output, shape index: {}]
  %s2 = sld [smem:[#allocation0]]
  $region41: #{unet3d1d_forward.40} parent=0
    _
  %s4 = ssub.s32 1, %s2
  %s5 = scalar_select 0, %s4, %s2
  loop: start=0, step=1, limit=4
  $region2: #{unet3d1d_forward.40} parent=0 // loop_pre_header
    _
  $region3: #{unet3d1d_forward.40} parent=0 // loop_header
    %s7 = sphi 0, %s11
    %p8 = scmp.ge.s32.totalorder %s7, 4
    %s14 = sphi 0, %s26
    %s15 = sphi 0, %s22
    %s16 = sphi 0, %s14
    %s17 = sphi 0, %s15
    %s18 = sphi 0, %s16
    %s19 = sphi 0, %s17
    %s31 = sphi 0, %s33
    %s34 = sphi 0, %s31
    %s35 = sphi 0, %s34
    %s51 = sphi 0, %s35
    %s57 = sphi 0, %s59
    %s60 = sphi 0, %s57
    %s61 = sphi 0, %s60
    %s77 = sphi 0, %s61
  $region4: #{unet3d1d_forward.40} parent=0 // loop_header_branch
    %10 = sbr.rel (%p8) target = $region8
  $region5: #{unet3d1d_forward.40} parent=0 // loop_body
    %s12 = ssub.s32 %s7, 1
    %s13 = ssub.s32 %s7, 2
    %s20 = sadd.s32 1, %s15
    %p21 = scmp.ge.s32.totalorder %s20, 1
    %s22 = scalar_select %p21, 0, %s20
    %s23 = sadd.s32 1, %s14
    %s24 = scalar_select %p21, %s23, %s14
    %p25 = scmp.ge.s32.totalorder %s24, 2
    %s26 = scalar_select %p25, 0, %s24
    %s27 = ssub.s32 %s14, %s26
    %s28 = ssub.s32 %s15, %s22
    %s29 = sor.u32 %s27, %s28
    %p30 = scmp.eq.s32.totalorder %s29, 0
    %s32 = sadd.s32 %s31, 1
    %s33 = scalar_select %p30, %s31, %s32
    %p36 = pneg %p30
    %p37 = scmp.eq.s32.totalorder %s7, 1
    %p38 = por %p36, %p37
    %p39 = scmp.ne.s32.totalorder %s31, %s34
    %p40 = scmp.eq.s32.totalorder %s7, 0
    %p41 = por %p39, %p40
    %p42 = scmp.ne.s32.totalorder %s31, %s34
    %p43 = scmp.eq.s32.totalorder %s12, 1
    %p44 = por %p42, %p43
    %p45 = scmp.ne.s32.totalorder %s34, %s35
    %p46 = scmp.eq.s32.totalorder %s12, 0
    %p47 = por %p45, %p46
    %p48 = scmp.ne.s32.totalorder %s34, %s35
    %p49 = scmp.eq.s32.totalorder %s13, 1
    %p50 = por %p48, %p49
    %p52 = scmp.ne.s32.totalorder %s35, %s51
    %p53 = scmp.eq.s32.totalorder %s13, 0
    %p54 = por %p52, %p53
    %s55 = ssub.s32 %s14, %s26
    %p56 = scmp.eq.s32.totalorder %s55, 0
    %s58 = sadd.s32 %s57, 1
    %s59 = scalar_select %p56, %s57, %s58
    %p62 = pneg %p56
    %p63 = scmp.eq.s32.totalorder %s7, 1
    %p64 = por %p62, %p63
    %p65 = scmp.ne.s32.totalorder %s57, %s60
    %p66 = scmp.eq.s32.totalorder %s7, 0
    %p67 = por %p65, %p66
    %p68 = scmp.ne.s32.totalorder %s57, %s60
    %p69 = scmp.eq.s32.totalorder %s12, 1
    %p70 = por %p68, %p69
    %p71 = scmp.ne.s32.totalorder %s60, %s61
    %p72 = scmp.eq.s32.totalorder %s12, 0
    %p73 = por %p71, %p72
    %p74 = scmp.ne.s32.totalorder %s60, %s61
    %p75 = scmp.eq.s32.totalorder %s13, 1
    %p76 = por %p74, %p75
    %p78 = scmp.ne.s32.totalorder %s61, %s77
    %p79 = scmp.eq.s32.totalorder %s13, 0
    %p80 = por %p78, %p79
    %p81 = scmp.le.s32.totalorder 1, %s7
    %p82 = scmp.lt.s32.totalorder %s7, 3
    %p83 = pnand %p81, %p82
    %p84 = pneg %p83
    // Predicated region
    $region9: #{unet3d1d_forward.40} parent=5 // pred_check
      _
    $region10: #{unet3d1d_forward.40} parent=5 // pred_check_branch
      %86 = sbr.rel (%p83) target = $region12
    $region11: #{unet3d1d_forward.40} parent=5 // pred_region
      %s87 = ssub.s32 %s7, 1
    $region12: #{unet3d1d_forward.40} parent=5 // pred_fallthru
      _
    %p88 = scmp.lt.s32.totalorder %s7, 2
    // Predicated region
    $region13: #{unet3d1d_forward.40} parent=5 // pred_check
      %p89 = pneg %p88
    $region14: #{unet3d1d_forward.40} parent=5 // pred_check_branch
      %91 = sbr.rel (%p89) target = $region16
    $region15: #{unet3d1d_forward.40} parent=5 // pred_region
      // Predicated region
      $region17: #{unet3d1d_forward.40} parent=15 // pred_check
        %p92 = pneg %p41
      $region18: #{unet3d1d_forward.40} parent=15 // pred_check_branch
        %94 = sbr.rel (%p92) target = $region20
      $region19: #{unet3d1d_forward.40} parent=15 // pred_region
        %p95 = scmp.lt.s32.totalorder %s14, 1
        %s96 = scalar_select %p95, %s14, 1
        %p97 = scmp.lt.s32.totalorder %s15, 0
        %s98 = scalar_select %p97, %s15, 0
        %s99 = smul.addr %s98, 4
        %s100 = smul.addr %s96, 4
        %s101 = sadd.s32 %s99, %s100
        %s102 = smul.addr %s101, 4
        %s103 = scalar_lea.vmem %s0, %s102
      $region20: #{unet3d1d_forward.40} parent=15 // pred_fallthru
        _
    $region16: #{unet3d1d_forward.40} parent=5 // pred_fallthru
      _
    %p104 = scmp.le.s32.totalorder 1, %s7
    %p105 = scmp.lt.s32.totalorder %s7, 3
    %p106 = pnand %p104, %p105
    %p107 = pneg %p106
    // Predicated region
    $region21: #{unet3d1d_forward.40} parent=5 // pred_check
      _
    $region22: #{unet3d1d_forward.40} parent=5 // pred_check_branch
      %109 = sbr.rel (%p106) target = $region24
    $region23: #{unet3d1d_forward.40} parent=5 // pred_region
      %s110 = ssub.s32 %s7, 1
      %p111 = scmp.lt.s32.totalorder %s16, 1
      %s112 = scalar_select %p111, %s16, 1
      %p113 = scmp.lt.s32.totalorder %s17, 0
      %s114 = scalar_select %p113, %s17, 0
      %s115 = smul.addr %s114, 4
      %s116 = smul.addr %s112, 4
      %s117 = sadd.s32 %s115, %s116
      %s118 = smul.addr %s117, 4
      %s119 = scalar_lea.vmem %s0, %s118
      %p120 = pneg %p47
      %p121 = pneg %p44
      %p122 = pneg %p73
      %p123 = pneg %p70
      %p124 = scmp.lt.s32.totalorder %s16, 1
      %s125 = scalar_select %p124, %s16, 1
      %s126 = smul.addr %s125, 4
      %s127 = smul.addr %s126, 2
      %s128 = scalar_lea.vmem %s1, %s127
      %p129 = scmp.lt.s32.totalorder %s16, 1
      %s130 = scalar_select %p129, %s16, 1
      %p131 = scmp.lt.s32.totalorder %s17, 0
      %s132 = scalar_select %p131, %s17, 0
      %s133 = smul.addr %s132, 4
      %s134 = smul.addr %s130, 4
      %s135 = sadd.s32 %s133, %s134
      %s136 = smul.addr %s135, 4
      %s137 = scalar_lea.vmem %s0, %s136
      %p138 = scmp.lt.s32.totalorder %s16, 1
      %s139 = scalar_select %p138, %s16, 1
      %s140 = smul.addr %s139, 4
      %s141 = smul.addr %s140, 2
      %s142 = scalar_lea.vmem %s1, %s141
      %p143 = scmp.eq.s32.totalorder %s17, 0
      // Predicated region
      $region25: #{unet3d1d_forward.40} parent=23 // pred_check
        %p144 = pneg %p143
      $region26: #{unet3d1d_forward.40} parent=23 // pred_check_branch
        %146 = sbr.rel (%p144) target = $region28
      $region27: #{unet3d1d_forward.40} parent=23 // pred_region
        %147 = vst [vmem:[%s142] sm:$0xff] 0.0
      $region28: #{unet3d1d_forward.40} parent=23 // pred_fallthru
        _
      %v148 = vld [vmem:[%s137] sm:$0xff]
      %v149 = vld [vmem:[%s137 + $0x8] sm:$0xff]
      %v150 = vunpack.c.l.bf16 %v148
      %v151 = vunpack.c.h.bf16 %v148
      %v152 = vunpack.c.l.bf16 %v149
      %v153 = vunpack.c.h.bf16 %v149
      %v154 = vrot.slane %v150, 4
      %v155 = vadd.f32 %v150, %v154
      %v156 = vrot.slane %v155, 2
      %v157 = vadd.f32 %v155, %v156
      %v158 = vrot.slane %v157, 1
      %v159 = vadd.f32 %v157, %v158
      %v160 = vrot.slane %v151, 4
      %v161 = vadd.f32 %v151, %v160
      %v162 = vrot.slane %v161, 2
      %v163 = vadd.f32 %v161, %v162
      %v164 = vrot.slane %v163, 1
      %v165 = vadd.f32 %v163, %v164
      %v166 = vrot.slane %v152, 4
      %v167 = vadd.f32 %v152, %v166
      %v168 = vrot.slane %v167, 2
      %v169 = vadd.f32 %v167, %v168
      %v170 = vrot.slane %v169, 1
      %v171 = vadd.f32 %v169, %v170
      %v172 = vrot.slane %v153, 4
      %v173 = vadd.f32 %v153, %v172
      %v174 = vrot.slane %v173, 2
      %v175 = vadd.f32 %v173, %v174
      %v176 = vrot.slane %v175, 1
      %v177 = vadd.f32 %v175, %v176
      %v178 = vmul.f32 %v150, %v150
      %v179 = vmul.f32 %v151, %v151
      %v180 = vmul.f32 %v152, %v152
      %v181 = vmul.f32 %v153, %v153
      %v182 = vrot.slane %v178, 4
      %v183 = vadd.f32 %v178, %v182
      %v184 = vrot.slane %v183, 2
      %v185 = vadd.f32 %v183, %v184
      %v186 = vrot.slane %v185, 1
      %v187 = vadd.f32 %v185, %v186
      %v188 = vrot.slane %v179, 4
      %v189 = vadd.f32 %v179, %v188
      %v190 = vrot.slane %v189, 2
      %v191 = vadd.f32 %v189, %v190
      %v192 = vrot.slane %v191, 1
      %v193 = vadd.f32 %v191, %v192
      %v194 = vrot.slane %v180, 4
      %v195 = vadd.f32 %v180, %v194
      %v196 = vrot.slane %v195, 2
      %v197 = vadd.f32 %v195, %v196
      %v198 = vrot.slane %v197, 1
      %v199 = vadd.f32 %v197, %v198
      %v200 = vrot.slane %v181, 4
      %v201 = vadd.f32 %v181, %v200
      %v202 = vrot.slane %v201, 2
      %v203 = vadd.f32 %v201, %v202
      %v204 = vrot.slane %v203, 1
      %v205 = vadd.f32 %v203, %v204
      %v206 = vld [vmem:[%s142] sm:$0xff]
      %vm207 = vcmask 1040384
      %v208 = vsel %vm207, %v159, %v187
      %v209 = vsel %vm207, %v165, %v193
      %v210 = vsel %vm207, %v171, %v199
      %v211 = vsel %vm207, %v177, %v205
      %v216 = vcombine.low %v208, %v209
      %v217 = vcombine.low %v210, %v211
      %v219 = vunpack.c.l.s4 1983009808
      %v220 = vunpack.c.0.s8 %v219
      %v221 = vlaneseq
      %v222 = vshrl.u32 %v221, 7
      %v223 = vsub.s32 %v220, %v222
      %v224 = vrot.slane %v216, %v223
      %v226 = vunpack.c.l.s4 1983009808
      %v227 = vunpack.c.0.s8 %v226
      %v228 = vlaneseq
      %v229 = vshrl.u32 %v228, 7
      %v230 = vsub.s32 %v227, %v229
      %v231 = vrot.slane %v217, %v230
      %v232 = vcombine.low %v224, %v231
      %v234 = vadd.f32 %v206, %v232
      %235 = vst [vmem:[%s142] sm:$0xff] %v234
      %p236 = scmp.lt.s32.totalorder %s16, 1
      %s237 = scalar_select %p236, %s16, 1
      %s238 = smul.addr %s237, 4
      %s239 = smul.addr %s238, 2
      %s240 = scalar_lea.vmem %s1, %s239
      // Predicated region
      $region29: #{unet3d1d_forward.40} parent=23 // pred_check
        %p241 = pneg %p70
      $region30: #{unet3d1d_forward.40} parent=23 // pred_check_branch
        %243 = sbr.rel (%p241) target = $region32
      $region31: #{unet3d1d_forward.40} parent=23 // pred_region
        _
      $region32: #{unet3d1d_forward.40} parent=23 // pred_fallthru
        _
    $region24: #{unet3d1d_forward.40} parent=5 // pred_fallthru
      _
    %p244 = scmp.le.s32.totalorder 2, %s7
    // Predicated region
    $region33: #{unet3d1d_forward.40} parent=5 // pred_check
      %p245 = pneg %p244
    $region34: #{unet3d1d_forward.40} parent=5 // pred_check_branch
      %247 = sbr.rel (%p245) target = $region36
    $region35: #{unet3d1d_forward.40} parent=5 // pred_region
      %s248 = ssub.s32 %s7, 2
      // Predicated region
      $region37: #{unet3d1d_forward.40} parent=35 // pred_check
        %p249 = pneg %p76
      $region38: #{unet3d1d_forward.40} parent=35 // pred_check_branch
        %251 = sbr.rel (%p249) target = $region40
      $region39: #{unet3d1d_forward.40} parent=35 // pred_region
        %p252 = scmp.lt.s32.totalorder %s18, 1
        %s253 = scalar_select %p252, %s18, 1
        %s254 = smul.addr %s253, 4
        %s255 = smul.addr %s254, 2
        %s256 = scalar_lea.vmem %s1, %s255
      $region40: #{unet3d1d_forward.40} parent=35 // pred_fallthru
        _
    $region36: #{unet3d1d_forward.40} parent=5 // pred_fallthru
      _
  $region6: #{unet3d1d_forward.40} parent=0 // loop_footer
    %s11 = sadd.s32 1, %s7
  $region7: #{unet3d1d_forward.40} parent=0 // loop_footer_branch
    %6 = sbr.rel target = $region3
  $region8: #{unet3d1d_forward.40} parent=0 // loop_exit
    _

// kernel: mul.89
$region0: #{mul.89}
  #allocation0 [shape = 's32[1]{0}', space=sflag, size = 0x4, scoped, tag = 'scoped memory for mul.89']
  %s0 = inlined_call_operand.vmem [shape: f32[2,4], index: 0, kind: input, shape index: {}]
  %s1 = inlined_call_operand.vmem [shape: f32[2,4], index: 1, kind: input, shape index: {}]
  %s2 = inlined_call_operand.vmem [shape: f32[2,4], index: 2, kind: output, shape index: {}]
  %v3 = vld [vmem:[%s0] sm:$0x3]
  %v4 = vld [vmem:[%s1] sm:$0x3]
  %5 = xla_tuple %v3, %v4
  %6 = xla_tuple %5
  %v7 = vmul.f32 %v3, %v4
  %8 = xla_tuple %v7
  %9 = vst [vmem:[%s2] sm:$0x3] %v7

// kernel: unet3d1d_forward.41
$region0: #{unet3d1d_forward.41}
  #allocation0 [shape = 'u32[]', space=smem, size = 0x4, offset = 0x4, fixed_abs, tag = 'smem constant byte address 0x4 - core index']
  #allocation1 [shape = 'u32[144,128]{1,0:T(1,128)}', space=vmem, size = 0x12000, scoped, tag = 'internal scratch']
  %s0 = inlined_call_operand.vmem [shape: bf16[2,8,512], index: 0, kind: input, shape index: {}]
  %s1 = inlined_call_operand.vmem [shape: f32[2,1,512], index: 1, kind: input, shape index: {}]
  %s2 = inlined_call_operand.vmem [shape: f32[2,1,512], index: 2, kind: input, shape index: {}]
  %s3 = inlined_call_operand.vmem [shape: bf16[2,8,512], index: 3, kind: output, shape index: {}]
  %s4 = sld [smem:[#allocation0]]
  $region45: #{unet3d1d_forward.41} parent=0
    _
  %s6 = ssub.s32 1, %s4
  %s7 = scalar_select 0, %s6, %s4
  loop: start=0, step=1, limit=4
  $region2: #{unet3d1d_forward.41} parent=0 // loop_pre_header
    _
  $region3: #{unet3d1d_forward.41} parent=0 // loop_header
    %s9 = sphi 0, %s13
    %p10 = scmp.ge.s32.totalorder %s9, 4
    %s16 = sphi 0, %s28
    %s17 = sphi 0, %s24
    %s18 = sphi 0, %s16
    %s19 = sphi 0, %s17
    %s20 = sphi 0, %s18
    %s21 = sphi 0, %s19
    %s33 = sphi 0, %s35
    %s36 = sphi 0, %s33
    %s37 = sphi 0, %s36
    %s53 = sphi 0, %s37
    %s59 = sphi 0, %s61
    %s62 = sphi 0, %s59
    %s63 = sphi 0, %s62
    %s79 = sphi 0, %s63
    %s85 = sphi 0, %s87
    %s88 = sphi 0, %s85
    %s89 = sphi 0, %s88
    %s105 = sphi 0, %s89
    %s113 = sphi 0, %s115
    %s116 = sphi 0, %s113
    %s117 = sphi 0, %s116
    %s133 = sphi 0, %s117
  $region4: #{unet3d1d_forward.41} parent=0 // loop_header_branch
    %12 = sbr.rel (%p10) target = $region8
  $region5: #{unet3d1d_forward.41} parent=0 // loop_body
    %s14 = ssub.s32 %s9, 1
    %s15 = ssub.s32 %s9, 2
    %s22 = sadd.s32 1, %s17
    %p23 = scmp.ge.s32.totalorder %s22, 1
    %s24 = scalar_select %p23, 0, %s22
    %s25 = sadd.s32 1, %s16
    %s26 = scalar_select %p23, %s25, %s16
    %p27 = scmp.ge.s32.totalorder %s26, 2
    %s28 = scalar_select %p27, 0, %s26
    %s29 = ssub.s32 %s16, %s28
    %s30 = ssub.s32 %s17, %s24
    %s31 = sor.u32 %s29, %s30
    %p32 = scmp.eq.s32.totalorder %s31, 0
    %s34 = sadd.s32 %s33, 1
    %s35 = scalar_select %p32, %s33, %s34
    %p38 = pneg %p32
    %p39 = scmp.eq.s32.totalorder %s9, 1
    %p40 = por %p38, %p39
    %p41 = scmp.ne.s32.totalorder %s33, %s36
    %p42 = scmp.eq.s32.totalorder %s9, 0
    %p43 = por %p41, %p42
    %p44 = scmp.ne.s32.totalorder %s33, %s36
    %p45 = scmp.eq.s32.totalorder %s14, 1
    %p46 = por %p44, %p45
    %p47 = scmp.ne.s32.totalorder %s36, %s37
    %p48 = scmp.eq.s32.totalorder %s14, 0
    %p49 = por %p47, %p48
    %p50 = scmp.ne.s32.totalorder %s36, %s37
    %p51 = scmp.eq.s32.totalorder %s15, 1
    %p52 = por %p50, %p51
    %p54 = scmp.ne.s32.totalorder %s37, %s53
    %p55 = scmp.eq.s32.totalorder %s15, 0
    %p56 = por %p54, %p55
    %s57 = ssub.s32 %s16, %s28
    %p58 = scmp.eq.s32.totalorder %s57, 0
    %s60 = sadd.s32 %s59, 1
    %s61 = scalar_select %p58, %s59, %s60
    %p64 = pneg %p58
    %p65 = scmp.eq.s32.totalorder %s9, 1
    %p66 = por %p64, %p65
    %p67 = scmp.ne.s32.totalorder %s59, %s62
    %p68 = scmp.eq.s32.totalorder %s9, 0
    %p69 = por %p67, %p68
    %p70 = scmp.ne.s32.totalorder %s59, %s62
    %p71 = scmp.eq.s32.totalorder %s14, 1
    %p72 = por %p70, %p71
    %p73 = scmp.ne.s32.totalorder %s62, %s63
    %p74 = scmp.eq.s32.totalorder %s14, 0
    %p75 = por %p73, %p74
    %p76 = scmp.ne.s32.totalorder %s62, %s63
    %p77 = scmp.eq.s32.totalorder %s15, 1
    %p78 = por %p76, %p77
    %p80 = scmp.ne.s32.totalorder %s63, %s79
    %p81 = scmp.eq.s32.totalorder %s15, 0
    %p82 = por %p80, %p81
    %s83 = ssub.s32 %s16, %s28
    %p84 = scmp.eq.s32.totalorder %s83, 0
    %s86 = sadd.s32 %s85, 1
    %s87 = scalar_select %p84, %s85, %s86
    %p90 = pneg %p84
    %p91 = scmp.eq.s32.totalorder %s9, 1
    %p92 = por %p90, %p91
    %p93 = scmp.ne.s32.totalorder %s85, %s88
    %p94 = scmp.eq.s32.totalorder %s9, 0
    %p95 = por %p93, %p94
    %p96 = scmp.ne.s32.totalorder %s85, %s88
    %p97 = scmp.eq.s32.totalorder %s14, 1
    %p98 = por %p96, %p97
    %p99 = scmp.ne.s32.totalorder %s88, %s89
    %p100 = scmp.eq.s32.totalorder %s14, 0
    %p101 = por %p99, %p100
    %p102 = scmp.ne.s32.totalorder %s88, %s89
    %p103 = scmp.eq.s32.totalorder %s15, 1
    %p104 = por %p102, %p103
    %p106 = scmp.ne.s32.totalorder %s89, %s105
    %p107 = scmp.eq.s32.totalorder %s15, 0
    %p108 = por %p106, %p107
    %s109 = ssub.s32 %s16, %s28
    %s110 = ssub.s32 %s17, %s24
    %s111 = sor.u32 %s109, %s110
    %p112 = scmp.eq.s32.totalorder %s111, 0
    %s114 = sadd.s32 %s113, 1
    %s115 = scalar_select %p112, %s113, %s114
    %p118 = pneg %p112
    %p119 = scmp.eq.s32.totalorder %s9, 1
    %p120 = por %p118, %p119
    %p121 = scmp.ne.s32.totalorder %s113, %s116
    %p122 = scmp.eq.s32.totalorder %s9, 0
    %p123 = por %p121, %p122
    %p124 = scmp.ne.s32.totalorder %s113, %s116
    %p125 = scmp.eq.s32.totalorder %s14, 1
    %p126 = por %p124, %p125
    %p127 = scmp.ne.s32.totalorder %s116, %s117
    %p128 = scmp.eq.s32.totalorder %s14, 0
    %p129 = por %p127, %p128
    %p130 = scmp.ne.s32.totalorder %s116, %s117
    %p131 = scmp.eq.s32.totalorder %s15, 1
    %p132 = por %p130, %p131
    %p134 = scmp.ne.s32.totalorder %s117, %s133
    %p135 = scmp.eq.s32.totalorder %s15, 0
    %p136 = por %p134, %p135
    %p137 = scmp.le.s32.totalorder 1, %s9
    %p138 = scmp.lt.s32.totalorder %s9, 3
    %p139 = pnand %p137, %p138
    %p140 = pneg %p139
    // Predicated region
    $region9: #{unet3d1d_forward.41} parent=5 // pred_check
      _
    $region10: #{unet3d1d_forward.41} parent=5 // pred_check_branch
      %142 = sbr.rel (%p139) target = $region12
    $region11: #{unet3d1d_forward.41} parent=5 // pred_region
      %s143 = ssub.s32 %s9, 1
    $region12: #{unet3d1d_forward.41} parent=5 // pred_fallthru
      _
    %p144 = scmp.lt.s32.totalorder %s9, 2
    // Predicated region
    $region13: #{unet3d1d_forward.41} parent=5 // pred_check
      %p145 = pneg %p144
    $region14: #{unet3d1d_forward.41} parent=5 // pred_check_branch
      %147 = sbr.rel (%p145) target = $region16
    $region15: #{unet3d1d_forward.41} parent=5 // pred_region
      // Predicated region
      $region17: #{unet3d1d_forward.41} parent=15 // pred_check
        %p148 = pneg %p43
      $region18: #{unet3d1d_forward.41} parent=15 // pred_check_branch
        %150 = sbr.rel (%p148) target = $region20
      $region19: #{unet3d1d_forward.41} parent=15 // pred_region
        %p151 = scmp.lt.s32.totalorder %s16, 1
        %s152 = scalar_select %p151, %s16, 1
        %p153 = scmp.lt.s32.totalorder %s17, 0
        %s154 = scalar_select %p153, %s17, 0
        %s155 = smul.addr %s154, 4
        %s156 = smul.addr %s152, 4
        %s157 = sadd.s32 %s155, %s156
        %s158 = smul.addr %s157, 4
        %s159 = scalar_lea.vmem %s0, %s158
      $region20: #{unet3d1d_forward.41} parent=15 // pred_fallthru
        _
      // Predicated region
      $region21: #{unet3d1d_forward.41} parent=15 // pred_check
        %p160 = pneg %p69
      $region22: #{unet3d1d_forward.41} parent=15 // pred_check_branch
        %162 = sbr.rel (%p160) target = $region24
      $region23: #{unet3d1d_forward.41} parent=15 // pred_region
        %p163 = scmp.lt.s32.totalorder %s16, 1
        %s164 = scalar_select %p163, %s16, 1
        %s165 = smul.addr %s164, 4
        %s166 = scalar_lea.vmem %s1, %s165
      $region24: #{unet3d1d_forward.41} parent=15 // pred_fallthru
        _
      // Predicated region
      $region25: #{unet3d1d_forward.41} parent=15 // pred_check
        %p167 = pneg %p95
      $region26: #{unet3d1d_forward.41} parent=15 // pred_check_branch
        %169 = sbr.rel (%p167) target = $region28
      $region27: #{unet3d1d_forward.41} parent=15 // pred_region
        %p170 = scmp.lt.s32.totalorder %s16, 1
        %s171 = scalar_select %p170, %s16, 1
        %s172 = smul.addr %s171, 4
        %s173 = scalar_lea.vmem %s2, %s172
      $region28: #{unet3d1d_forward.41} parent=15 // pred_fallthru
        _
    $region16: #{unet3d1d_forward.41} parent=5 // pred_fallthru
      _
    %p174 = scmp.le.s32.totalorder 1, %s9
    %p175 = scmp.lt.s32.totalorder %s9, 3
    %p176 = pnand %p174, %p175
    %p177 = pneg %p176
    // Predicated region
    $region29: #{unet3d1d_forward.41} parent=5 // pred_check
      _
    $region30: #{unet3d1d_forward.41} parent=5 // pred_check_branch
      %179 = sbr.rel (%p176) target = $region32
    $region31: #{unet3d1d_forward.41} parent=5 // pred_region
      %s180 = ssub.s32 %s9, 1
      %p181 = scmp.lt.s32.totalorder %s18, 1
      %s182 = scalar_select %p181, %s18, 1
      %p183 = scmp.lt.s32.totalorder %s19, 0
      %s184 = scalar_select %p183, %s19, 0
      %s185 = smul.addr %s184, 4
      %s186 = smul.addr %s182, 4
      %s187 = sadd.s32 %s185, %s186
      %s188 = smul.addr %s187, 4
      %s189 = scalar_lea.vmem %s0, %s188
      %p190 = pneg %p49
      %p191 = pneg %p46
      %p192 = scmp.lt.s32.totalorder %s18, 1
      %s193 = scalar_select %p192, %s18, 1
      %s194 = smul.addr %s193, 4
      %s195 = scalar_lea.vmem %s1, %s194
      %p196 = pneg %p75
      %p197 = pneg %p72
      %p198 = scmp.lt.s32.totalorder %s18, 1
      %s199 = scalar_select %p198, %s18, 1
      %s200 = smul.addr %s199, 4
      %s201 = scalar_lea.vmem %s2, %s200
      %p202 = pneg %p101
      %p203 = pneg %p98
      %p204 = pneg %p129
      %p205 = pneg %p126
      %p206 = scmp.lt.s32.totalorder %s18, 1
      %s207 = scalar_select %p206, %s18, 1
      %p208 = scmp.lt.s32.totalorder %s19, 0
      %s209 = scalar_select %p208, %s19, 0
      %s210 = smul.addr %s209, 4
      %s211 = smul.addr %s207, 4
      %s212 = sadd.s32 %s210, %s211
      %s213 = smul.addr %s212, 4
      %s214 = scalar_lea.vmem %s3, %s213
      %p215 = scmp.lt.s32.totalorder %s18, 1
      %s216 = scalar_select %p215, %s18, 1
      %p217 = scmp.lt.s32.totalorder %s19, 0
      %s218 = scalar_select %p217, %s19, 0
      %s219 = smul.addr %s218, 4
      %s220 = smul.addr %s216, 4
      %s221 = sadd.s32 %s219, %s220
      %s222 = smul.addr %s221, 4
      %s223 = scalar_lea.vmem %s0, %s222
      %p224 = scmp.lt.s32.totalorder %s18, 1
      %s225 = scalar_select %p224, %s18, 1
      %s226 = smul.addr %s225, 4
      %s227 = scalar_lea.vmem %s1, %s226
      %p228 = scmp.lt.s32.totalorder %s18, 1
      %s229 = scalar_select %p228, %s18, 1
      %s230 = smul.addr %s229, 4
      %s231 = scalar_lea.vmem %s2, %s230
      %p232 = scmp.lt.s32.totalorder %s18, 1
      %s233 = scalar_select %p232, %s18, 1
      %p234 = scmp.lt.s32.totalorder %s19, 0
      %s235 = scalar_select %p234, %s19, 0
      %s236 = smul.addr %s235, 4
      %s237 = smul.addr %s233, 4
      %s238 = sadd.s32 %s236, %s237
      %s239 = smul.addr %s238, 4
      %s240 = scalar_lea.vmem %s3, %s239
      %v241 = vld [vmem:[%s223] sm:$0xff]
      %v242 = vld [vmem:[%s223 + $0x8] sm:$0xff]
      %v243 = vunpack.c.l.bf16 %v241
      %v244 = vunpack.c.h.bf16 %v241
      %v245 = vunpack.c.l.bf16 %v242
      %v246 = vunpack.c.h.bf16 %v242
      %v247 = vld [vmem:[%s227] sm:$0xf]
      %v249 = vlaneseq
      %v250 = vshrl.u32 %v249, 7
      %v251 = vsub.s32 0, %v250
      %v252 = vrot.slane %v247, %v251
      %v253 = vlaneseq
      %v254 = vshrl.u32 %v253, 7
      %v255 = vsub.s32 1, %v254
      %v256 = vrot.slane %v247, %v255
      %v257 = vlaneseq
      %v258 = vshrl.u32 %v257, 7
      %v259 = vsub.s32 2, %v258
      %v260 = vrot.slane %v247, %v259
      %v261 = vlaneseq
      %v262 = vshrl.u32 %v261, 7
      %v263 = vsub.s32 3, %v262
      %v264 = vrot.slane %v247, %v263
      %v269 = vmul.f32 %v243, %v252
      %v270 = vmul.f32 %v244, %v256
      %v271 = vmul.f32 %v245, %v260
      %v272 = vmul.f32 %v246, %v264
      %v273 = vld [vmem:[%s231] sm:$0xf]
      %v275 = vlaneseq
      %v276 = vshrl.u32 %v275, 7
      %v277 = vsub.s32 0, %v276
      %v278 = vrot.slane %v273, %v277
      %v279 = vlaneseq
      %v280 = vshrl.u32 %v279, 7
      %v281 = vsub.s32 1, %v280
      %v282 = vrot.slane %v273, %v281
      %v283 = vlaneseq
      %v284 = vshrl.u32 %v283, 7
      %v285 = vsub.s32 2, %v284
      %v286 = vrot.slane %v273, %v285
      %v287 = vlaneseq
      %v288 = vshrl.u32 %v287, 7
      %v289 = vsub.s32 3, %v288
      %v290 = vrot.slane %v273, %v289
      %v295 = vadd.f32 %v269, %v278
      %v296 = vadd.f32 %v270, %v282
      %v297 = vadd.f32 %v271, %v286
      %v298 = vadd.f32 %v272, %v290
      %vm299 = vcmp.ge.f32.partialorder %v295, 0.0
      %vm300 = vcmp.ge.f32.partialorder %v296, 0.0
      %vm301 = vcmp.ge.f32.partialorder %v297, 0.0
      %vm302 = vcmp.ge.f32.partialorder %v298, 0.0
      %v303 = vmul.f32 %v295, 0.2
      %v304 = vmul.f32 %v296, 0.2
      %v305 = vmul.f32 %v297, 0.2
      %v306 = vmul.f32 %v298, 0.2
      %v307 = vsel %vm299, %v295, %v303
      %v308 = vsel %vm300, %v296, %v304
      %v309 = vsel %vm301, %v297, %v305
      %v310 = vsel %vm302, %v298, %v306
      %v311 = vpack.c.bf16 %v307, %v307
      %v312 = vpack.c.bf16 %v308, %v308
      %v313 = vpack.c.bf16 %v309, %v309
      %v314 = vpack.c.bf16 %v310, %v310
      %v319 = vunpack.c.l.b16 %v311
      %v320 = vunpack.c.l.b16 %v312
      %v321 = vunpack.c.l.b16 %v313
      %v322 = vunpack.c.l.b16 %v314
      %v323 = vpack.c.b16 %v320, %v319
      %v324 = vpack.c.b16 %v322, %v321
      %327 = vst [vmem:[%s240] sm:$0xff] %v323
      %328 = vst [vmem:[%s240 + $0x8] sm:$0xff] %v324
      %p329 = scmp.lt.s32.totalorder %s18, 1
      %s330 = scalar_select %p329, %s18, 1
      %p331 = scmp.lt.s32.totalorder %s19, 0
      %s332 = scalar_select %p331, %s19, 0
      %s333 = smul.addr %s332, 4
      %s334 = smul.addr %s330, 4
      %s335 = sadd.s32 %s333, %s334
      %s336 = smul.addr %s335, 4
      %s337 = scalar_lea.vmem %s3, %s336
      // Predicated region
      $region33: #{unet3d1d_forward.41} parent=31 // pred_check
        %p338 = pneg %p126
      $region34: #{unet3d1d_forward.41} parent=31 // pred_check_branch
        %340 = sbr.rel (%p338) target = $region36
      $region35: #{unet3d1d_forward.41} parent=31 // pred_region
        _
      $region36: #{unet3d1d_forward.41} parent=31 // pred_fallthru
        _
    $region32: #{unet3d1d_forward.41} parent=5 // pred_fallthru
      _
    %p341 = scmp.le.s32.totalorder 2, %s9
    // Predicated region
    $region37: #{unet3d1d_forward.41} parent=5 // pred_check
      %p342 = pneg %p341
    $region38: #{unet3d1d_forward.41} parent=5 // pred_check_branch
      %344 = sbr.rel (%p342) target = $region40
    $region39: #{unet3d1d_forward.41} parent=5 // pred_region
      %s345 = ssub.s32 %s9, 2
      // Predicated region
      $region41: #{unet3d1d_forward.41} parent=39 // pred_check
        %p346 = pneg %p132
      $region42: #{unet3d1d_forward.41} parent=39 // pred_check_branch
        %348 = sbr.rel (%p346) target = $region44
      $region43: #{unet3d1d_forward.41} parent=39 // pred_region
        %p349 = scmp.lt.s32.totalorder %s20, 1
        %s350 = scalar_select %p349, %s20, 1
        %p351 = scmp.lt.s32.totalorder %s21, 0
        %s352 = scalar_select %p351, %s21, 0
        %s353 = smul.addr %s352, 4
        %s354 = smul.addr %s350, 4
        %s355 = sadd.s32 %s353, %s354
        %s356 = smul.addr %s355, 4
        %s357 = scalar_lea.vmem %s3, %s356
      $region44: #{unet3d1d_forward.41} parent=39 // pred_fallthru
        _
    $region40: #{unet3d1d_forward.41} parent=5 // pred_fallthru
      _
  $region6: #{unet3d1d_forward.41} parent=0 // loop_footer
    %s13 = sadd.s32 1, %s9
  $region7: #{unet3d1d_forward.41} parent=0 // loop_footer_branch
    %8 = sbr.rel target = $region3
  $region8: #{unet3d1d_forward.41} parent=0 // loop_exit
    _

// kernel: unet3d1d_forward.42
$region0: #{unet3d1d_forward.42}
  #allocation0 [shape = 'u32[]', space=smem, size = 0x4, offset = 0x4, fixed_abs, tag = 'smem constant byte address 0x4 - core index']
  #allocation1 [shape = 'u32[144,128]{1,0:T(1,128)}', space=vmem, size = 0x12000, scoped, tag = 'internal scratch']
  #allocation2 [shape = 'f32[64,4]{1,0:T(8,128)}', space=vmem, size = 0x8000, scoped, tag = 'scratch operand']
  %s0 = inlined_call_operand.vmem [shape: bf16[4,10,80,12], index: 0, kind: input, shape index: {}]
  %s1 = inlined_call_operand.vmem [shape: bf16[3,3,12,4], index: 1, kind: input, shape index: {}]
  %s2 = inlined_call_operand.vmem [shape: bf16[4,8,64,4], index: 2, kind: output, shape index: {}]
  %s3 = sld [smem:[#allocation0]]
  $region49: #{unet3d1d_forward.42} parent=0
    _
  %s5 = ssub.s32 1, %s3
  %s6 = scalar_select 0, %s5, %s3
  loop: start=0, step=1, limit=98
  $region2: #{unet3d1d_forward.42} parent=0 // loop_pre_header
    _
  $region3: #{unet3d1d_forward.42} parent=0 // loop_header
    %s8 = sphi 0, %s12
    %p9 = scmp.ge.s32.totalorder %s8, 98
    %s15 = sphi 0, %s34
    %s16 = sphi 0, %s30
    %s17 = sphi 0, %s26
    %s18 = sphi 0, %s15
    %s19 = sphi 0, %s16
    %s20 = sphi 0, %s17
    %s21 = sphi 0, %s18
    %s22 = sphi 0, %s19
    %s23 = sphi 0, %s20
    %s41 = sphi 0, %s43
    %s44 = sphi 0, %s41
    %s45 = sphi 0, %s44
    %s61 = sphi 0, %s45
    %s67 = sphi 0, %s69
    %s70 = sphi 0, %s67
    %s71 = sphi 0, %s70
    %s87 = sphi 0, %s71
    %s95 = sphi 0, %s97
    %s98 = sphi 0, %s95
    %s99 = sphi 0, %s98
    %s115 = sphi 0, %s99
  $region4: #{unet3d1d_forward.42} parent=0 // loop_header_branch
    %11 = sbr.rel (%p9) target = $region8
  $region5: #{unet3d1d_forward.42} parent=0 // loop_body
    %s13 = ssub.s32 %s8, 1
    %s14 = ssub.s32 %s8, 2
    %s24 = sadd.s32 1, %s17
    %p25 = scmp.ge.s32.totalorder %s24, 3
    %s26 = scalar_select %p25, 0, %s24
    %s27 = sadd.s32 1, %s16
    %s28 = scalar_select %p25, %s27, %s16
    %p29 = scmp.ge.s32.totalorder %s28, 8
    %s30 = scalar_select %p29, 0, %s28
    %s31 = sadd.s32 1, %s15
    %s32 = scalar_select %p29, %s31, %s15
    %p33 = scmp.ge.s32.totalorder %s32, 4
    %s34 = scalar_select %p33, 0, %s32
    %s35 = sadd.s32 %s16, %s17
    %s36 = sadd.s32 %s30, %s26
    %s37 = ssub.s32 %s15, %s34
    %s38 = ssub.s32 %s35, %s36
    %s39 = sor.u32 %s37, %s38
    %p40 = scmp.eq.s32.totalorder %s39, 0
    %s42 = sadd.s32 %s41, 1
    %s43 = scalar_select %p40, %s41, %s42
    %p46 = pneg %p40
    %p47 = scmp.eq.s32.totalorder %s8, 95
    %p48 = por %p46, %p47
    %p49 = scmp.ne.s32.totalorder %s41, %s44
    %p50 = scmp.eq.s32.totalorder %s8, 0
    %p51 = por %p49, %p50
    %p52 = scmp.ne.s32.totalorder %s41, %s44
    %p53 = scmp.eq.s32.totalorder %s13, 95
    %p54 = por %p52, %p53
    %p55 = scmp.ne.s32.totalorder %s44, %s45
    %p56 = scmp.eq.s32.totalorder %s13, 0
    %p57 = por %p55, %p56
    %p58 = scmp.ne.s32.totalorder %s44, %s45
    %p59 = scmp.eq.s32.totalorder %s14, 95
    %p60 = por %p58, %p59
    %p62 = scmp.ne.s32.totalorder %s45, %s61
    %p63 = scmp.eq.s32.totalorder %s14, 0
    %p64 = por %p62, %p63
    %s65 = ssub.s32 %s17, %s26
    %p66 = scmp.eq.s32.totalorder %s65, 0
    %s68 = sadd.s32 %s67, 1
    %s69 = scalar_select %p66, %s67, %s68
    %p72 = pneg %p66
    %p73 = scmp.eq.s32.totalorder %s8, 95
    %p74 = por %p72, %p73
    %p75 = scmp.ne.s32.totalorder %s67, %s70
    %p76 = scmp.eq.s32.totalorder %s8, 0
    %p77 = por %p75, %p76
    %p78 = scmp.ne.s32.totalorder %s67, %s70
    %p79 = scmp.eq.s32.totalorder %s13, 95
    %p80 = por %p78, %p79
    %p81 = scmp.ne.s32.totalorder %s70, %s71
    %p82 = scmp.eq.s32.totalorder %s13, 0
    %p83 = por %p81, %p82
    %p84 = scmp.ne.s32.totalorder %s70, %s71
    %p85 = scmp.eq.s32.totalorder %s14, 95
    %p86 = por %p84, %p85
    %p88 = scmp.ne.s32.totalorder %s71, %s87
    %p89 = scmp.eq.s32.totalorder %s14, 0
    %p90 = por %p88, %p89
    %s91 = ssub.s32 %s15, %s34
    %s92 = ssub.s32 %s16, %s30
    %s93 = sor.u32 %s91, %s92
    %p94 = scmp.eq.s32.totalorder %s93, 0
    %s96 = sadd.s32 %s95, 1
    %s97 = scalar_select %p94, %s95, %s96
    %p100 = pneg %p94
    %p101 = scmp.eq.s32.totalorder %s8, 95
    %p102 = por %p100, %p101
    %p103 = scmp.ne.s32.totalorder %s95, %s98
    %p104 = scmp.eq.s32.totalorder %s8, 0
    %p105 = por %p103, %p104
    %p106 = scmp.ne.s32.totalorder %s95, %s98
    %p107 = scmp.eq.s32.totalorder %s13, 95
    %p108 = por %p106, %p107
    %p109 = scmp.ne.s32.totalorder %s98, %s99
    %p110 = scmp.eq.s32.totalorder %s13, 0
    %p111 = por %p109, %p110
    %p112 = scmp.ne.s32.totalorder %s98, %s99
    %p113 = scmp.eq.s32.totalorder %s14, 95
    %p114 = por %p112, %p113
    %p116 = scmp.ne.s32.totalorder %s99, %s115
    %p117 = scmp.eq.s32.totalorder %s14, 0
    %p118 = por %p116, %p117
    %p119 = scmp.le.s32.totalorder 1, %s8
    %p120 = scmp.lt.s32.totalorder %s8, 97
    %p121 = pnand %p119, %p120
    %p122 = pneg %p121
    // Predicated region
    $region9: #{unet3d1d_forward.42} parent=5 // pred_check
      _
    $region10: #{unet3d1d_forward.42} parent=5 // pred_check_branch
      %124 = sbr.rel (%p121) target = $region12
    $region11: #{unet3d1d_forward.42} parent=5 // pred_region
      %s125 = ssub.s32 %s8, 1
    $region12: #{unet3d1d_forward.42} parent=5 // pred_fallthru
      _
    %p126 = scmp.lt.s32.totalorder %s8, 96
    // Predicated region
    $region13: #{unet3d1d_forward.42} parent=5 // pred_check
      %p127 = pneg %p126
    $region14: #{unet3d1d_forward.42} parent=5 // pred_check_branch
      %129 = sbr.rel (%p127) target = $region16
    $region15: #{unet3d1d_forward.42} parent=5 // pred_region
      // Predicated region
      $region17: #{unet3d1d_forward.42} parent=15 // pred_check
        %p130 = pneg %p51
      $region18: #{unet3d1d_forward.42} parent=15 // pred_check_branch
        %132 = sbr.rel (%p130) target = $region20
      $region19: #{unet3d1d_forward.42} parent=15 // pred_region
        %s133 = sadd.s32 %s16, %s17
        %p134 = scmp.lt.s32.totalorder %s15, 3
        %s135 = scalar_select %p134, %s15, 3
        %p136 = scmp.lt.s32.totalorder %s133, 9
        %s137 = scalar_select %p136, %s133, 9
        %s138 = smul.addr %s137, 10
        %s139 = smul.addr %s135, 100
        %s140 = sadd.s32 %s138, %s139
        %s141 = smul.addr %s140, 4
        %s142 = scalar_lea.vmem %s0, %s141
        %s143 = sadd.s32 %s16, %s17
      $region20: #{unet3d1d_forward.42} parent=15 // pred_fallthru
        _
      // Predicated region
      $region21: #{unet3d1d_forward.42} parent=15 // pred_check
        %p144 = pneg %p77
      $region22: #{unet3d1d_forward.42} parent=15 // pred_check_branch
        %146 = sbr.rel (%p144) target = $region24
      $region23: #{unet3d1d_forward.42} parent=15 // pred_region
        %p147 = scmp.lt.s32.totalorder %s17, 2
        %s148 = scalar_select %p147, %s17, 2
        %s149 = smul.addr %s148, 6
        %s150 = smul.addr %s149, 4
        %s151 = scalar_lea.vmem %s1, %s150
      $region24: #{unet3d1d_forward.42} parent=15 // pred_fallthru
        _
    $region16: #{unet3d1d_forward.42} parent=5 // pred_fallthru
      _
    %p152 = scmp.le.s32.totalorder 1, %s8
    %p153 = scmp.lt.s32.totalorder %s8, 97
    %p154 = pnand %p152, %p153
    %p155 = pneg %p154
    // Predicated region
    $region25: #{unet3d1d_forward.42} parent=5 // pred_check
      _
    $region26: #{unet3d1d_forward.42} parent=5 // pred_check_branch
      %157 = sbr.rel (%p154) target = $region28
    $region27: #{unet3d1d_forward.42} parent=5 // pred_region
      %s158 = ssub.s32 %s8, 1
      %s159 = sadd.s32 %s19, %s20
      %p160 = scmp.lt.s32.totalorder %s18, 3
      %s161 = scalar_select %p160, %s18, 3
      %p162 = scmp.lt.s32.totalorder %s159, 9
      %s163 = scalar_select %p162, %s159, 9
      %s164 = smul.addr %s163, 10
      %s165 = smul.addr %s161, 100
      %s166 = sadd.s32 %s164, %s165
      %s167 = smul.addr %s166, 4
      %s168 = scalar_lea.vmem %s0, %s167
      %p169 = pneg %p57
      %p170 = pneg %p54
      %p171 = scmp.lt.s32.totalorder %s20, 2
      %s172 = scalar_select %p171, %s20, 2
      %s173 = smul.addr %s172, 6
      %s174 = smul.addr %s173, 4
      %s175 = scalar_lea.vmem %s1, %s174
      %p176 = pneg %p83
      %p177 = pneg %p80
      %p178 = pneg %p111
      %p179 = pneg %p108
      %p180 = scmp.lt.s32.totalorder %s18, 3
      %s181 = scalar_select %p180, %s18, 3
      %p182 = scmp.lt.s32.totalorder %s19, 7
      %s183 = scalar_select %p182, %s19, 7
      %s184 = smul.addr %s183, 8
      %s185 = smul.addr %s181, 64
      %s186 = sadd.s32 %s184, %s185
      %s187 = smul.addr %s186, 4
      %s188 = scalar_lea.vmem %s2, %s187
      %s189 = sadd.s32 %s19, %s20
      %p190 = scmp.lt.s32.totalorder %s18, 3
      %s191 = scalar_select %p190, %s18, 3
      %p192 = scmp.lt.s32.totalorder %s189, 9
      %s193 = scalar_select %p192, %s189, 9
      %s194 = smul.addr %s193, 10
      %s195 = smul.addr %s191, 100
      %s196 = sadd.s32 %s194, %s195
      %s197 = smul.addr %s196, 4
      %s198 = scalar_lea.vmem %s0, %s197
      %s199 = sadd.s32 %s19, %s20
      %p200 = scmp.lt.s32.totalorder %s20, 2
      %s201 = scalar_select %p200, %s20, 2
      %s202 = smul.addr %s201, 6
      %s203 = smul.addr %s202, 4
      %s204 = scalar_lea.vmem %s1, %s203
      %p205 = scmp.lt.s32.totalorder %s18, 3
      %s206 = scalar_select %p205, %s18, 3
      %p207 = scmp.lt.s32.totalorder %s19, 7
      %s208 = scalar_select %p207, %s19, 7
      %s209 = smul.addr %s208, 8
      %s210 = smul.addr %s206, 64
      %s211 = sadd.s32 %s209, %s210
      %s212 = smul.addr %s211, 4
      %s213 = scalar_lea.vmem %s2, %s212
      %p215 = scmp.eq.s32.totalorder %s20, 0
      // Predicated region
      $region29: #{unet3d1d_forward.42} parent=27 // pred_check
        %p216 = pneg %p215
      $region30: #{unet3d1d_forward.42} parent=27 // pred_check_branch
        %218 = sbr.rel (%p216) target = $region32
      $region31: #{unet3d1d_forward.42} parent=27 // pred_region
        %vm219 = vcmask 31744
        %220 = vst.msk [vmem:[#allocation2] sm:$0xff] %vm219, 0.0
        %221 = vst.msk [vmem:[#allocation2 + $0x8] sm:$0xff] %vm219, 0.0
        %222 = vst.msk [vmem:[#allocation2 + $0x10] sm:$0xff] %vm219, 0.0
        %223 = vst.msk [vmem:[#allocation2 + $0x18] sm:$0xff] %vm219, 0.0
        %224 = vst.msk [vmem:[#allocation2 + $0x20] sm:$0xff] %vm219, 0.0
        %225 = vst.msk [vmem:[#allocation2 + $0x28] sm:$0xff] %vm219, 0.0
        %226 = vst.msk [vmem:[#allocation2 + $0x30] sm:$0xff] %vm219, 0.0
        %227 = vst.msk [vmem:[#allocation2 + $0x38] sm:$0xff] %vm219, 0.0
      $region32: #{unet3d1d_forward.42} parent=27 // pred_fallthru
        _
      %v228 = vld [vmem:[#allocation2] sm:$0xff]
      %v229 = vld [vmem:[#allocation2 + $0x8] sm:$0xff]
      %v230 = vld [vmem:[#allocation2 + $0x10] sm:$0xff]
      %v231 = vld [vmem:[#allocation2 + $0x18] sm:$0xff]
      %v232 = vld [vmem:[#allocation2 + $0x20] sm:$0xff]
      %v233 = vld [vmem:[#allocation2 + $0x28] sm:$0xff]
      %v234 = vld [vmem:[#allocation2 + $0x30] sm:$0xff]
      %v235 = vld [vmem:[#allocation2 + $0x38] sm:$0xff]
      %v236 = vld [vmem:[%s198] sm:$0xf]
      %v237 = vld [vmem:[%s198 + $0x4] sm:$0xf]
      %v238 = vld [vmem:[%s198 + $0x8] sm:$0xf]
      %v239 = vld [vmem:[%s198 + $0xc] sm:$0xf]
      %v240 = vld [vmem:[%s198 + $0x10] sm:$0xf]
      %v241 = vld [vmem:[%s198 + $0x14] sm:$0xf]
      %v242 = vld [vmem:[%s198 + $0x18] sm:$0xf]
      %v243 = vld [vmem:[%s198 + $0x1c] sm:$0xf]
      %v244 = vld [vmem:[%s204] sm:$0xf]
      %v245 = vld [vmem:[%s204 + $0x4] sm:$0x3]
      %v254 = vunpack.c.l.b16 %v236
      %v255 = vunpack.c.l.b16 %v237
      %v256 = vunpack.c.l.b16 %v238
      %v257 = vunpack.c.l.b16 %v239
      %v258 = vunpack.c.l.b16 %v240
      %v259 = vunpack.c.l.b16 %v241
      %v260 = vunpack.c.l.b16 %v242
      %v261 = vunpack.c.l.b16 %v243
      %v262 = vpack.c.b16 %v255, %v254
      %v263 = vpack.c.b16 %v257, %v256
      %v264 = vpack.c.b16 %v259, %v258
      %v265 = vpack.c.b16 %v261, %v260
      %v268 = vunpack.c.l.b16 %v244
      %v269 = vunpack.c.l.b16 %v245
      %v270 = vpack.c.b16 %v269, %v268
      %vm271 = vcmask 97280
      %v273 = vsel %vm271, %v262, 0
      %v276 = vsel %vm271, %v263, 0
      %v279 = vsel %vm271, %v264, 0
      %v282 = vsel %vm271, %v265, 0
      %vm284 = vcmask 1045504
      %v286 = vsel %vm284, %v270, 0
      %288 = vmatprep.subr.bf16.mxu0 0
      %289 = vmatpush1.bf16.msra.mxu0 0
      %290 = vmatprep.subr.bf16.mxu0 0
      %291 = vmatpush1.bf16.msra.mxu0 0
      %292 = vmatprep.subr.bf16.mxu0 0
      %293 = vmatpush1.bf16.msra.mxu0 0
      %294 = vmatprep.subr.bf16.mxu0 0
      %295 = vmatpush1.bf16.msra.mxu0 0
      %296 = vmatprep.subr.bf16.mxu0 0
      %297 = vmatpush1.bf16.msra.mxu0 0
      %298 = vmatprep.subr.bf16.mxu0 0
      %299 = vmatpush1.bf16.msra.mxu0 0
      %300 = vmatprep.subr.bf16.mxu0 0
      %301 = vmatpush1.bf16.msra.mxu0 0
      %302 = vmatprep.subr.bf16.mxu0 0
      %303 = vmatpush1.bf16.msra.mxu0 %v286
      %304 = vmatprep.subr.bf16.mxu0 0
      %305 = vmatpush2.bf16.msra.mxu0 0
      %306 = vmatprep.subr.bf16.mxu0 0
      %307 = vmatpush2.bf16.msra.mxu0 0
      %308 = vmatprep.subr.bf16.mxu0 0
      %309 = vmatpush2.bf16.msra.mxu0 0
      %310 = vmatprep.subr.bf16.mxu0 0
      %311 = vmatpush2.bf16.msra.mxu0 0
      %312 = vmatprep.subr.bf16.mxu0 0
      %313 = vmatpush2.bf16.msra.mxu0 0
      %314 = vmatprep.subr.bf16.mxu0 0
      %315 = vmatpush2.bf16.msra.mxu0 0
      %316 = vmatprep.subr.bf16.mxu0 0
      %317 = vmatpush2.bf16.msra.mxu0 0
      %318 = vmatprep.subr.bf16.mxu0 0
      %319 = vmatpush2.bf16.msra.mxu0 0
      %320 = vmatprep.mubr.bf16.mxu0 0
      %321 = vmatmul.mubr.bf16.gmra.mxu0 %v273
      %v322 = vpop.f32.mrf.mxu0
      %v323 = vadd.f32 0.0, %v322
      %v324 = vpop.f32.mrf.mxu0
      %v325 = vpop.f32.mrf.mxu0
      %v326 = vadd.f32 0.0, %v325
      %v327 = vpop.f32.mrf.mxu0
      %328 = vmatprep.mubr.bf16.mxu0 0
      %329 = vmatmul.mubr.bf16.gmra.mxu0 %v276
      %v330 = vpop.f32.mrf.mxu0
      %v331 = vadd.f32 0.0, %v330
      %v332 = vpop.f32.mrf.mxu0
      %v333 = vpop.f32.mrf.mxu0
      %v334 = vadd.f32 0.0, %v333
      %v335 = vpop.f32.mrf.mxu0
      %336 = vmatprep.mubr.bf16.mxu0 0
      %337 = vmatmul.mubr.bf16.gmra.mxu0 %v279
      %v338 = vpop.f32.mrf.mxu0
      %v339 = vadd.f32 0.0, %v338
      %v340 = vpop.f32.mrf.mxu0
      %v341 = vpop.f32.mrf.mxu0
      %v342 = vadd.f32 0.0, %v341
      %v343 = vpop.f32.mrf.mxu0
      %344 = vmatprep.mubr.bf16.mxu0 0
      %345 = vmatmul.mubr.bf16.gmra.mxu0 %v282
      %v346 = vpop.f32.mrf.mxu0
      %v347 = vadd.f32 0.0, %v346
      %v348 = vpop.f32.mrf.mxu0
      %v349 = vpop.f32.mrf.mxu0
      %v350 = vadd.f32 0.0, %v349
      %v351 = vpop.f32.mrf.mxu0
      %352 = vdwg.mxu0
      %v353 = vadd.f32 %v228, %v323
      %v354 = vadd.f32 %v229, %v326
      %v355 = vadd.f32 %v230, %v331
      %v356 = vadd.f32 %v231, %v334
      %v357 = vadd.f32 %v232, %v339
      %v358 = vadd.f32 %v233, %v342
      %v359 = vadd.f32 %v234, %v347
      %v360 = vadd.f32 %v235, %v350
      %vm361 = vcmask 31744
      %362 = vst.msk [vmem:[#allocation2] sm:$0xff] %vm361, %v353
      %363 = vst.msk [vmem:[#allocation2 + $0x8] sm:$0xff] %vm361, %v354
      %364 = vst.msk [vmem:[#allocation2 + $0x10] sm:$0xff] %vm361, %v355
      %365 = vst.msk [vmem:[#allocation2 + $0x18] sm:$0xff] %vm361, %v356
      %366 = vst.msk [vmem:[#allocation2 + $0x20] sm:$0xff] %vm361, %v357
      %367 = vst.msk [vmem:[#allocation2 + $0x28] sm:$0xff] %vm361, %v358
      %368 = vst.msk [vmem:[#allocation2 + $0x30] sm:$0xff] %vm361, %v359
      %369 = vst.msk [vmem:[#allocation2 + $0x38] sm:$0xff] %vm361, %v360
      %v370 = vld [vmem:[#allocation2] sm:$0xff]
      %v371 = vld [vmem:[#allocation2 + $0x8] sm:$0xff]
      %v372 = vld [vmem:[#allocation2 + $0x10] sm:$0xff]
      %v373 = vld [vmem:[#allocation2 + $0x18] sm:$0xff]
      %v374 = vld [vmem:[#allocation2 + $0x20] sm:$0xff]
      %v375 = vld [vmem:[#allocation2 + $0x28] sm:$0xff]
      %v376 = vld [vmem:[#allocation2 + $0x30] sm:$0xff]
      %v377 = vld [vmem:[#allocation2 + $0x38] sm:$0xff]
      %v378 = vld [vmem:[%s198 + $0x4] sm:$0xf]
      %v379 = vld [vmem:[%s198 + $0x8] sm:$0xf]
      %v380 = vld [vmem:[%s198 + $0xc] sm:$0xf]
      %v381 = vld [vmem:[%s198 + $0x10] sm:$0xf]
      %v382 = vld [vmem:[%s198 + $0x14] sm:$0xf]
      %v383 = vld [vmem:[%s198 + $0x18] sm:$0xf]
      %v384 = vld [vmem:[%s198 + $0x1c] sm:$0xf]
      %v385 = vld [vmem:[%s198 + $0x20] sm:$0xf]
      %s386 = scalar_lea.vmem %s204, 8
      %v387 = vld [vmem:[%s386] sm:$0xf]
      %v388 = vld [vmem:[%s386 + $0x4] sm:$0x3]
      %v397 = vunpack.c.l.b16 %v378
      %v398 = vunpack.c.l.b16 %v379
      %v399 = vunpack.c.l.b16 %v380
      %v400 = vunpack.c.l.b16 %v381
      %v401 = vunpack.c.l.b16 %v382
      %v402 = vunpack.c.l.b16 %v383
      %v403 = vunpack.c.l.b16 %v384
      %v404 = vunpack.c.l.b16 %v385
      %v405 = vpack.c.b16 %v398, %v397
      %v406 = vpack.c.b16 %v400, %v399
      %v407 = vpack.c.b16 %v402, %v401
      %v408 = vpack.c.b16 %v404, %v403
      %v411 = vunpack.c.l.b16 %v387
      %v412 = vunpack.c.l.b16 %v388
      %v413 = vpack.c.b16 %v412, %v411
      %v415 = vsel %vm271, %v405, 0
      %v418 = vsel %vm271, %v406, 0
      %v421 = vsel %vm271, %v407, 0
      %v424 = vsel %vm271, %v408, 0
      %v427 = vsel %vm284, %v413, 0
      %429 = vmatprep.subr.bf16.mxu0 0
      %430 = vmatpush1.bf16.msra.mxu0 0
      %431 = vmatprep.subr.bf16.mxu0 0
      %432 = vmatpush1.bf16.msra.mxu0 0
      %433 = vmatprep.subr.bf16.mxu0 0
      %434 = vmatpush1.bf16.msra.mxu0 0
      %435 = vmatprep.subr.bf16.mxu0 0
      %436 = vmatpush1.bf16.msra.mxu0 0
      %437 = vmatprep.subr.bf16.mxu0 0
      %438 = vmatpush1.bf16.msra.mxu0 0
      %439 = vmatprep.subr.bf16.mxu0 0
      %440 = vmatpush1.bf16.msra.mxu0 0
      %441 = vmatprep.subr.bf16.mxu0 0
      %442 = vmatpush1.bf16.msra.mxu0 0
      %443 = vmatprep.subr.bf16.mxu0 0
      %444 = vmatpush1.bf16.msra.mxu0 %v427
      %445 = vmatprep.subr.bf16.mxu0 0
      %446 = vmatpush2.bf16.msra.mxu0 0
      %447 = vmatprep.subr.bf16.mxu0 0
      %448 = vmatpush2.bf16.msra.mxu0 0
      %449 = vmatprep.subr.bf16.mxu0 0
      %450 = vmatpush2.bf16.msra.mxu0 0
      %451 = vmatprep.subr.bf16.mxu0 0
      %452 = vmatpush2.bf16.msra.mxu0 0
      %453 = vmatprep.subr.bf16.mxu0 0
      %454 = vmatpush2.bf16.msra.mxu0 0
      %455 = vmatprep.subr.bf16.mxu0 0
      %456 = vmatpush2.bf16.msra.mxu0 0
      %457 = vmatprep.subr.bf16.mxu0 0
      %458 = vmatpush2.bf16.msra.mxu0 0
      %459 = vmatprep.subr.bf16.mxu0 0
      %460 = vmatpush2.bf16.msra.mxu0 0
      %461 = vmatprep.mubr.bf16.mxu0 0
      %462 = vmatmul.mubr.bf16.gmra.mxu0 %v415
      %v463 = vpop.f32.mrf.mxu0
      %v464 = vadd.f32 0.0, %v463
      %v465 = vpop.f32.mrf.mxu0
      %v466 = vpop.f32.mrf.mxu0
      %v467 = vadd.f32 0.0, %v466
      %v468 = vpop.f32.mrf.mxu0
      %469 = vmatprep.mubr.bf16.mxu0 0
      %470 = vmatmul.mubr.bf16.gmra.mxu0 %v418
      %v471 = vpop.f32.mrf.mxu0
      %v472 = vadd.f32 0.0, %v471
      %v473 = vpop.f32.mrf.mxu0
      %v474 = vpop.f32.mrf.mxu0
      %v475 = vadd.f32 0.0, %v474
      %v476 = vpop.f32.mrf.mxu0
      %477 = vmatprep.mubr.bf16.mxu0 0
      %478 = vmatmul.mubr.bf16.gmra.mxu0 %v421
      %v479 = vpop.f32.mrf.mxu0
      %v480 = vadd.f32 0.0, %v479
      %v481 = vpop.f32.mrf.mxu0
      %v482 = vpop.f32.mrf.mxu0
      %v483 = vadd.f32 0.0, %v482
      %v484 = vpop.f32.mrf.mxu0
      %485 = vmatprep.mubr.bf16.mxu0 0
      %486 = vmatmul.mubr.bf16.gmra.mxu0 %v424
      %v487 = vpop.f32.mrf.mxu0
      %v488 = vadd.f32 0.0, %v487
      %v489 = vpop.f32.mrf.mxu0
      %v490 = vpop.f32.mrf.mxu0
      %v491 = vadd.f32 0.0, %v490
      %v492 = vpop.f32.mrf.mxu0
      %493 = vdwg.mxu0
      %v494 = vadd.f32 %v370, %v464
      %v495 = vadd.f32 %v371, %v467
      %v496 = vadd.f32 %v372, %v472
      %v497 = vadd.f32 %v373, %v475
      %v498 = vadd.f32 %v374, %v480
      %v499 = vadd.f32 %v375, %v483
      %v500 = vadd.f32 %v376, %v488
      %v501 = vadd.f32 %v377, %v491
      %502 = vst.msk [vmem:[#allocation2] sm:$0xff] %vm361, %v494
      %503 = vst.msk [vmem:[#allocation2 + $0x8] sm:$0xff] %vm361, %v495
      %504 = vst.msk [vmem:[#allocation2 + $0x10] sm:$0xff] %vm361, %v496
      %505 = vst.msk [vmem:[#allocation2 + $0x18] sm:$0xff] %vm361, %v497
      %506 = vst.msk [vmem:[#allocation2 + $0x20] sm:$0xff] %vm361, %v498
      %507 = vst.msk [vmem:[#allocation2 + $0x28] sm:$0xff] %vm361, %v499
      %508 = vst.msk [vmem:[#allocation2 + $0x30] sm:$0xff] %vm361, %v500
      %509 = vst.msk [vmem:[#allocation2 + $0x38] sm:$0xff] %vm361, %v501
      %v510 = vld [vmem:[#allocation2] sm:$0xff]
      %v511 = vld [vmem:[#allocation2 + $0x8] sm:$0xff]
      %v512 = vld [vmem:[#allocation2 + $0x10] sm:$0xff]
      %v513 = vld [vmem:[#allocation2 + $0x18] sm:$0xff]
      %v514 = vld [vmem:[#allocation2 + $0x20] sm:$0xff]
      %v515 = vld [vmem:[#allocation2 + $0x28] sm:$0xff]
      %v516 = vld [vmem:[#allocation2 + $0x30] sm:$0xff]
      %v517 = vld [vmem:[#allocation2 + $0x38] sm:$0xff]
      %v518 = vld [vmem:[%s198 + $0x8] sm:$0xf]
      %v519 = vld [vmem:[%s198 + $0xc] sm:$0xf]
      %v520 = vld [vmem:[%s198 + $0x10] sm:$0xf]
      %v521 = vld [vmem:[%s198 + $0x14] sm:$0xf]
      %v522 = vld [vmem:[%s198 + $0x18] sm:$0xf]
      %v523 = vld [vmem:[%s198 + $0x1c] sm:$0xf]
      %v524 = vld [vmem:[%s198 + $0x20] sm:$0xf]
      %v525 = vld [vmem:[%s198 + $0x24] sm:$0xf]
      %s526 = scalar_lea.vmem %s204, 16
      %v527 = vld [vmem:[%s526] sm:$0xf]
      %v528 = vld [vmem:[%s526 + $0x4] sm:$0x3]
      %v537 = vunpack.c.l.b16 %v518
      %v538 = vunpack.c.l.b16 %v519
      %v539 = vunpack.c.l.b16 %v520
      %v540 = vunpack.c.l.b16 %v521
      %v541 = vunpack.c.l.b16 %v522
      %v542 = vunpack.c.l.b16 %v523
      %v543 = vunpack.c.l.b16 %v524
      %v544 = vunpack.c.l.b16 %v525
      %v545 = vpack.c.b16 %v538, %v537
      %v546 = vpack.c.b16 %v540, %v539
      %v547 = vpack.c.b16 %v542, %v541
      %v548 = vpack.c.b16 %v544, %v543
      %v551 = vunpack.c.l.b16 %v527
      %v552 = vunpack.c.l.b16 %v528
      %v553 = vpack.c.b16 %v552, %v551
      %v555 = vsel %vm271, %v545, 0
      %v558 = vsel %vm271, %v546, 0
      %v561 = vsel %vm271, %v547, 0
      %v564 = vsel %vm271, %v548, 0
      %v567 = vsel %vm284, %v553, 0
      %569 = vmatprep.subr.bf16.mxu0 0
      %570 = vmatpush1.bf16.msra.mxu0 0
      %571 = vmatprep.subr.bf16.mxu0 0
      %572 = vmatpush1.bf16.msra.mxu0 0
      %573 = vmatprep.subr.bf16.mxu0 0
      %574 = vmatpush1.bf16.msra.mxu0 0
      %575 = vmatprep.subr.bf16.mxu0 0
      %576 = vmatpush1.bf16.msra.mxu0 0
      %577 = vmatprep.subr.bf16.mxu0 0
      %578 = vmatpush1.bf16.msra.mxu0 0
      %579 = vmatprep.subr.bf16.mxu0 0
      %580 = vmatpush1.bf16.msra.mxu0 0
      %581 = vmatprep.subr.bf16.mxu0 0
      %582 = vmatpush1.bf16.msra.mxu0 0
      %583 = vmatprep.subr.bf16.mxu0 0
      %584 = vmatpush1.bf16.msra.mxu0 %v567
      %585 = vmatprep.subr.bf16.mxu0 0
      %586 = vmatpush2.bf16.msra.mxu0 0
      %587 = vmatprep.subr.bf16.mxu0 0
      %588 = vmatpush2.bf16.msra.mxu0 0
      %589 = vmatprep.subr.bf16.mxu0 0
      %590 = vmatpush2.bf16.msra.mxu0 0
      %591 = vmatprep.subr.bf16.mxu0 0
      %592 = vmatpush2.bf16.msra.mxu0 0
      %593 = vmatprep.subr.bf16.mxu0 0
      %594 = vmatpush2.bf16.msra.mxu0 0
      %595 = vmatprep.subr.bf16.mxu0 0
      %596 = vmatpush2.bf16.msra.mxu0 0
      %597 = vmatprep.subr.bf16.mxu0 0
      %598 = vmatpush2.bf16.msra.mxu0 0
      %599 = vmatprep.subr.bf16.mxu0 0
      %600 = vmatpush2.bf16.msra.mxu0 0
      %601 = vmatprep.mubr.bf16.mxu0 0
      %602 = vmatmul.mubr.bf16.gmra.mxu0 %v555
      %v603 = vpop.f32.mrf.mxu0
      %v604 = vadd.f32 0.0, %v603
      %v605 = vpop.f32.mrf.mxu0
      %v606 = vpop.f32.mrf.mxu0
      %v607 = vadd.f32 0.0, %v606
      %v608 = vpop.f32.mrf.mxu0
      %609 = vmatprep.mubr.bf16.mxu0 0
      %610 = vmatmul.mubr.bf16.gmra.mxu0 %v558
      %v611 = vpop.f32.mrf.mxu0
      %v612 = vadd.f32 0.0, %v611
      %v613 = vpop.f32.mrf.mxu0
      %v614 = vpop.f32.mrf.mxu0
      %v615 = vadd.f32 0.0, %v614
      %v616 = vpop.f32.mrf.mxu0
      %617 = vmatprep.mubr.bf16.mxu0 0
      %618 = vmatmul.mubr.bf16.gmra.mxu0 %v561
      %v619 = vpop.f32.mrf.mxu0
      %v620 = vadd.f32 0.0, %v619
      %v621 = vpop.f32.mrf.mxu0
      %v622 = vpop.f32.mrf.mxu0
      %v623 = vadd.f32 0.0, %v622
      %v624 = vpop.f32.mrf.mxu0
      %625 = vmatprep.mubr.bf16.mxu0 0
      %626 = vmatmul.mubr.bf16.gmra.mxu0 %v564
      %v627 = vpop.f32.mrf.mxu0
      %v628 = vadd.f32 0.0, %v627
      %v629 = vpop.f32.mrf.mxu0
      %v630 = vpop.f32.mrf.mxu0
      %v631 = vadd.f32 0.0, %v630
      %v632 = vpop.f32.mrf.mxu0
      %633 = vdwg.mxu0
      %v634 = vadd.f32 %v510, %v604
      %v635 = vadd.f32 %v511, %v607
      %v636 = vadd.f32 %v512, %v612
      %v637 = vadd.f32 %v513, %v615
      %v638 = vadd.f32 %v514, %v620
      %v639 = vadd.f32 %v515, %v623
      %v640 = vadd.f32 %v516, %v628
      %v641 = vadd.f32 %v517, %v631
      %642 = vst.msk [vmem:[#allocation2] sm:$0xff] %vm361, %v634
      %643 = vst.msk [vmem:[#allocation2 + $0x8] sm:$0xff] %vm361, %v635
      %644 = vst.msk [vmem:[#allocation2 + $0x10] sm:$0xff] %vm361, %v636
      %645 = vst.msk [vmem:[#allocation2 + $0x18] sm:$0xff] %vm361, %v637
      %646 = vst.msk [vmem:[#allocation2 + $0x20] sm:$0xff] %vm361, %v638
      %647 = vst.msk [vmem:[#allocation2 + $0x28] sm:$0xff] %vm361, %v639
      %648 = vst.msk [vmem:[#allocation2 + $0x30] sm:$0xff] %vm361, %v640
      %649 = vst.msk [vmem:[#allocation2 + $0x38] sm:$0xff] %vm361, %v641
      %p650 = scmp.eq.s32.totalorder %s20, 2
      // Predicated region
      $region33: #{unet3d1d_forward.42} parent=27 // pred_check
        %p651 = pneg %p650
      $region34: #{unet3d1d_forward.42} parent=27 // pred_check_branch
        %653 = sbr.rel (%p651) target = $region36
      $region35: #{unet3d1d_forward.42} parent=27 // pred_region
        %v654 = vld [vmem:[#allocation2] sm:$0xff]
        %v655 = vld [vmem:[#allocation2 + $0x8] sm:$0xff]
        %v656 = vld [vmem:[#allocation2 + $0x10] sm:$0xff]
        %v657 = vld [vmem:[#allocation2 + $0x18] sm:$0xff]
        %v658 = vld [vmem:[#allocation2 + $0x20] sm:$0xff]
        %v659 = vld [vmem:[#allocation2 + $0x28] sm:$0xff]
        %v660 = vld [vmem:[#allocation2 + $0x30] sm:$0xff]
        %v661 = vld [vmem:[#allocation2 + $0x38] sm:$0xff]
        %v662 = vpack.c.bf16 %v655, %v654
        %v663 = vpack.c.bf16 %v657, %v656
        %v664 = vpack.c.bf16 %v659, %v658
        %v665 = vpack.c.bf16 %v661, %v660
        %v670 = vunpack.c.l.b16 %v662
        %v671 = vunpack.c.h.b16 %v662
        %v672 = vunpack.c.l.b16 %v663
        %v673 = vunpack.c.h.b16 %v663
        %v674 = vunpack.c.l.b16 %v664
        %v675 = vunpack.c.h.b16 %v664
        %v676 = vunpack.c.l.b16 %v665
        %v677 = vunpack.c.h.b16 %v665
        %v678 = vpack.c.b16 %v670, %v670
        %v679 = vpack.c.b16 %v671, %v671
        %v680 = vpack.c.b16 %v672, %v672
        %v681 = vpack.c.b16 %v673, %v673
        %v682 = vpack.c.b16 %v674, %v674
        %v683 = vpack.c.b16 %v675, %v675
        %v684 = vpack.c.b16 %v676, %v676
        %v685 = vpack.c.b16 %v677, %v677
        %vm694 = vcmask 27648
        %695 = vst.msk [vmem:[%s213] sm:$0xf] %vm694, %v678
        %696 = vst.msk [vmem:[%s213 + $0x4] sm:$0xf] %vm694, %v679
        %697 = vst.msk [vmem:[%s213 + $0x8] sm:$0xf] %vm694, %v680
        %698 = vst.msk [vmem:[%s213 + $0xc] sm:$0xf] %vm694, %v681
        %699 = vst.msk [vmem:[%s213 + $0x10] sm:$0xf] %vm694, %v682
        %700 = vst.msk [vmem:[%s213 + $0x14] sm:$0xf] %vm694, %v683
        %701 = vst.msk [vmem:[%s213 + $0x18] sm:$0xf] %vm694, %v684
        %702 = vst.msk [vmem:[%s213 + $0x1c] sm:$0xf] %vm694, %v685
      $region36: #{unet3d1d_forward.42} parent=27 // pred_fallthru
        _
      %p703 = scmp.lt.s32.totalorder %s18, 3
      %s704 = scalar_select %p703, %s18, 3
      %p705 = scmp.lt.s32.totalorder %s19, 7
      %s706 = scalar_select %p705, %s19, 7
      %s707 = smul.addr %s706, 8
      %s708 = smul.addr %s704, 64
      %s709 = sadd.s32 %s707, %s708
      %s710 = smul.addr %s709, 4
      %s711 = scalar_lea.vmem %s2, %s710
      // Predicated region
      $region37: #{unet3d1d_forward.42} parent=27 // pred_check
        %p712 = pneg %p108
      $region38: #{unet3d1d_forward.42} parent=27 // pred_check_branch
        %714 = sbr.rel (%p712) target = $region40
      $region39: #{unet3d1d_forward.42} parent=27 // pred_region
        _
      $region40: #{unet3d1d_forward.42} parent=27 // pred_fallthru
        _
    $region28: #{unet3d1d_forward.42} parent=5 // pred_fallthru
      _
    %p715 = scmp.le.s32.totalorder 2, %s8
    // Predicated region
    $region41: #{unet3d1d_forward.42} parent=5 // pred_check
      %p716 = pneg %p715
    $region42: #{unet3d1d_forward.42} parent=5 // pred_check_branch
      %718 = sbr.rel (%p716) target = $region44
    $region43: #{unet3d1d_forward.42} parent=5 // pred_region
      %s719 = ssub.s32 %s8, 2
      // Predicated region
      $region45: #{unet3d1d_forward.42} parent=43 // pred_check
        %p720 = pneg %p114
      $region46: #{unet3d1d_forward.42} parent=43 // pred_check_branch
        %722 = sbr.rel (%p720) target = $region48
      $region47: #{unet3d1d_forward.42} parent=43 // pred_region
        %p723 = scmp.lt.s32.totalorder %s21, 3
        %s724 = scalar_select %p723, %s21, 3
        %p725 = scmp.lt.s32.totalorder %s22, 7
        %s726 = scalar_select %p725, %s22, 7
        %s727 = smul.addr %s726, 8
        %s728 = smul.addr %s724, 64
        %s729 = sadd.s32 %s727, %s728
        %s730 = smul.addr %s729, 4
        %s731 = scalar_lea.vmem %s2, %s730
      $region48: #{unet3d1d_forward.42} parent=43 // pred_fallthru
        _
    $region44: #{unet3d1d_forward.42} parent=5 // pred_fallthru
      _
  $region6: #{unet3d1d_forward.42} parent=0 // loop_footer
    %s12 = sadd.s32 1, %s8
  $region7: #{unet3d1d_forward.42} parent=0 // loop_footer_branch
    %7 = sbr.rel target = $region3
  $region8: #{unet3d1d_forward.42} parent=0 // loop_exit
    _

// kernel: unet3d1d_forward.45
$region0: #{unet3d1d_forward.45}
  #allocation0 [shape = 'u32[]', space=smem, size = 0x4, offset = 0x4, fixed_abs, tag = 'smem constant byte address 0x4 - core index']
  #allocation1 [shape = 'u32[144,128]{1,0:T(1,128)}', space=vmem, size = 0x12000, scoped, tag = 'internal scratch']
  %s0 = inlined_call_operand.vmem [shape: bf16[1,256,4], index: 0, kind: input, shape index: {}]
  %s1 = inlined_call_operand.vmem [shape: bf16[4,4], index: 1, kind: input, shape index: {}]
  %s2 = inlined_call_operand.vmem [shape: f32[1,4], index: 2, kind: input, shape index: {}]
  %s3 = inlined_call_operand.vmem [shape: bf16[1,256,4], index: 3, kind: output, shape index: {}]
  %s4 = sld [smem:[#allocation0]]
  $region22: #{unet3d1d_forward.45} parent=0
    _
  %s6 = ssub.s32 1, %s4
  %s7 = scalar_select 0, %s6, %s4
  // Predicated region
  $region2: #{unet3d1d_forward.45} parent=0 // pred_check
    _
  $region3: #{unet3d1d_forward.45} parent=0 // pred_check_branch
    %9 = sbr.rel (0) target = $region5
  $region4: #{unet3d1d_forward.45} parent=0 // pred_region
    _
  $region5: #{unet3d1d_forward.45} parent=0 // pred_fallthru
    _
  // Predicated region
  $region6: #{unet3d1d_forward.45} parent=0 // pred_check
    _
  $region7: #{unet3d1d_forward.45} parent=0 // pred_check_branch
    %11 = sbr.rel (0) target = $region9
  $region8: #{unet3d1d_forward.45} parent=0 // pred_region
    _
  $region9: #{unet3d1d_forward.45} parent=0 // pred_fallthru
    _
  // Predicated region
  $region10: #{unet3d1d_forward.45} parent=0 // pred_check
    _
  $region11: #{unet3d1d_forward.45} parent=0 // pred_check_branch
    %13 = sbr.rel (0) target = $region13
  $region12: #{unet3d1d_forward.45} parent=0 // pred_region
    _
  $region13: #{unet3d1d_forward.45} parent=0 // pred_fallthru
    _
  %v15 = vld [vmem:[%s0] sm:$0xf]
  %v16 = vld [vmem:[%s0 + $0x4] sm:$0xf]
  %v17 = vld [vmem:[%s0 + $0x8] sm:$0xf]
  %v18 = vld [vmem:[%s0 + $0xc] sm:$0xf]
  %v19 = vld [vmem:[%s0 + $0x10] sm:$0xf]
  %v20 = vld [vmem:[%s0 + $0x14] sm:$0xf]
  %v21 = vld [vmem:[%s0 + $0x18] sm:$0xf]
  %v22 = vld [vmem:[%s0 + $0x1c] sm:$0xf]
  %v23 = vld [vmem:[%s0 + $0x20] sm:$0xf]
  %v24 = vld [vmem:[%s0 + $0x24] sm:$0xf]
  %v25 = vld [vmem:[%s0 + $0x28] sm:$0xf]
  %v26 = vld [vmem:[%s0 + $0x2c] sm:$0xf]
  %v27 = vld [vmem:[%s0 + $0x30] sm:$0xf]
  %v28 = vld [vmem:[%s0 + $0x34] sm:$0xf]
  %v29 = vld [vmem:[%s0 + $0x38] sm:$0xf]
  %v30 = vld [vmem:[%s0 + $0x3c] sm:$0xf]
  %v31 = vld [vmem:[%s0 + $0x40] sm:$0xf]
  %v32 = vld [vmem:[%s0 + $0x44] sm:$0xf]
  %v33 = vld [vmem:[%s0 + $0x48] sm:$0xf]
  %v34 = vld [vmem:[%s0 + $0x4c] sm:$0xf]
  %v35 = vld [vmem:[%s0 + $0x50] sm:$0xf]
  %v36 = vld [vmem:[%s0 + $0x54] sm:$0xf]
  %v37 = vld [vmem:[%s0 + $0x58] sm:$0xf]
  %v38 = vld [vmem:[%s0 + $0x5c] sm:$0xf]
  %v39 = vld [vmem:[%s0 + $0x60] sm:$0xf]
  %v40 = vld [vmem:[%s0 + $0x64] sm:$0xf]
  %v41 = vld [vmem:[%s0 + $0x68] sm:$0xf]
  %v42 = vld [vmem:[%s0 + $0x6c] sm:$0xf]
  %v43 = vld [vmem:[%s0 + $0x70] sm:$0xf]
  %v44 = vld [vmem:[%s0 + $0x74] sm:$0xf]
  %v45 = vld [vmem:[%s0 + $0x78] sm:$0xf]
  %v46 = vld [vmem:[%s0 + $0x7c] sm:$0xf]
  %v47 = vld [vmem:[%s1] sm:$0x3]
  %v48 = vld [vmem:[%s2] sm:$0x1]
  %v50 = vlaneseq
  %v51 = vshrl.u32 %v50, 7
  %v52 = vsub.s32 0, %v51
  %v53 = vrot.slane %v48, %v52
  %v87 = vunpack.c.l.b16 %v15
  %v88 = vunpack.c.l.b16 %v16
  %v89 = vunpack.c.l.b16 %v17
  %v90 = vunpack.c.l.b16 %v18
  %v91 = vunpack.c.l.b16 %v19
  %v92 = vunpack.c.l.b16 %v20
  %v93 = vunpack.c.l.b16 %v21
  %v94 = vunpack.c.l.b16 %v22
  %v95 = vunpack.c.l.b16 %v23
  %v96 = vunpack.c.l.b16 %v24
  %v97 = vunpack.c.l.b16 %v25
  %v98 = vunpack.c.l.b16 %v26
  %v99 = vunpack.c.l.b16 %v27
  %v100 = vunpack.c.l.b16 %v28
  %v101 = vunpack.c.l.b16 %v29
  %v102 = vunpack.c.l.b16 %v30
  %v103 = vunpack.c.l.b16 %v31
  %v104 = vunpack.c.l.b16 %v32
  %v105 = vunpack.c.l.b16 %v33
  %v106 = vunpack.c.l.b16 %v34
  %v107 = vunpack.c.l.b16 %v35
  %v108 = vunpack.c.l.b16 %v36
  %v109 = vunpack.c.l.b16 %v37
  %v110 = vunpack.c.l.b16 %v38
  %v111 = vunpack.c.l.b16 %v39
  %v112 = vunpack.c.l.b16 %v40
  %v113 = vunpack.c.l.b16 %v41
  %v114 = vunpack.c.l.b16 %v42
  %v115 = vunpack.c.l.b16 %v43
  %v116 = vunpack.c.l.b16 %v44
  %v117 = vunpack.c.l.b16 %v45
  %v118 = vunpack.c.l.b16 %v46
  %v119 = vpack.c.b16 %v88, %v87
  %v120 = vpack.c.b16 %v90, %v89
  %v121 = vpack.c.b16 %v92, %v91
  %v122 = vpack.c.b16 %v94, %v93
  %v123 = vpack.c.b16 %v96, %v95
  %v124 = vpack.c.b16 %v98, %v97
  %v125 = vpack.c.b16 %v100, %v99
  %v126 = vpack.c.b16 %v102, %v101
  %v127 = vpack.c.b16 %v104, %v103
  %v128 = vpack.c.b16 %v106, %v105
  %v129 = vpack.c.b16 %v108, %v107
  %v130 = vpack.c.b16 %v110, %v109
  %v131 = vpack.c.b16 %v112, %v111
  %v132 = vpack.c.b16 %v114, %v113
  %v133 = vpack.c.b16 %v116, %v115
  %v134 = vpack.c.b16 %v118, %v117
  %vm135 = vcmask 31744
  %v137 = vsel %vm135, %v119, 0
  %v140 = vsel %vm135, %v120, 0
  %v143 = vsel %vm135, %v121, 0
  %v146 = vsel %vm135, %v122, 0
  %v149 = vsel %vm135, %v123, 0
  %v152 = vsel %vm135, %v124, 0
  %v155 = vsel %vm135, %v125, 0
  %v158 = vsel %vm135, %v126, 0
  %v161 = vsel %vm135, %v127, 0
  %v164 = vsel %vm135, %v128, 0
  %v167 = vsel %vm135, %v129, 0
  %v170 = vsel %vm135, %v130, 0
  %v173 = vsel %vm135, %v131, 0
  %v176 = vsel %vm135, %v132, 0
  %v179 = vsel %vm135, %v133, 0
  %v182 = vsel %vm135, %v134, 0
  %vm184 = vcmask 1041408
  %v186 = vsel %vm184, %v47, 0
  %188 = vmatprep.subr.bf16.mxu0 0
  %189 = vmatpush1.bf16.msra.mxu0 0
  %190 = vmatprep.subr.bf16.mxu0 0
  %191 = vmatpush1.bf16.msra.mxu0 0
  %192 = vmatprep.subr.bf16.mxu0 0
  %193 = vmatpush1.bf16.msra.mxu0 0
  %194 = vmatprep.subr.bf16.mxu0 0
  %195 = vmatpush1.bf16.msra.mxu0 0
  %196 = vmatprep.subr.bf16.mxu0 0
  %197 = vmatpush1.bf16.msra.mxu0 0
  %198 = vmatprep.subr.bf16.mxu0 0
  %199 = vmatpush1.bf16.msra.mxu0 0
  %200 = vmatprep.subr.bf16.mxu0 0
  %201 = vmatpush1.bf16.msra.mxu0 0
  %202 = vmatprep.subr.bf16.mxu0 0
  %203 = vmatpush1.bf16.msra.mxu0 %v186
  %204 = vmatprep.subr.bf16.mxu0 0
  %205 = vmatpush2.bf16.msra.mxu0 0
  %206 = vmatprep.subr.bf16.mxu0 0
  %207 = vmatpush2.bf16.msra.mxu0 0
  %208 = vmatprep.subr.bf16.mxu0 0
  %209 = vmatpush2.bf16.msra.mxu0 0
  %210 = vmatprep.subr.bf16.mxu0 0
  %211 = vmatpush2.bf16.msra.mxu0 0
  %212 = vmatprep.subr.bf16.mxu0 0
  %213 = vmatpush2.bf16.msra.mxu0 0
  %214 = vmatprep.subr.bf16.mxu0 0
  %215 = vmatpush2.bf16.msra.mxu0 0
  %216 = vmatprep.subr.bf16.mxu0 0
  %217 = vmatpush2.bf16.msra.mxu0 0
  %218 = vmatprep.subr.bf16.mxu0 0
  %219 = vmatpush2.bf16.msra.mxu0 0
  %220 = vmatprep.mubr.bf16.mxu0 0
  %221 = vmatmul.mubr.bf16.gmra.mxu0 %v137
  %v222 = vpop.f32.mrf.mxu0
  %v223 = vadd.f32 %v53, %v222
  %v224 = vpop.f32.mrf.mxu0
  %v225 = vpop.f32.mrf.mxu0
  %v226 = vadd.f32 %v53, %v225
  %v227 = vpop.f32.mrf.mxu0
  %228 = vmatprep.mubr.bf16.mxu0 0
  %229 = vmatmul.mubr.bf16.gmra.mxu0 %v140
  %v230 = vpop.f32.mrf.mxu0
  %v231 = vadd.f32 %v53, %v230
  %v232 = vpop.f32.mrf.mxu0
  %v233 = vpop.f32.mrf.mxu0
  %v234 = vadd.f32 %v53, %v233
  %v235 = vpop.f32.mrf.mxu0
  %236 = vmatprep.mubr.bf16.mxu0 0
  %237 = vmatmul.mubr.bf16.gmra.mxu0 %v143
  %v238 = vpop.f32.mrf.mxu0
  %v239 = vadd.f32 %v53, %v238
  %v240 = vpop.f32.mrf.mxu0
  %v241 = vpop.f32.mrf.mxu0
  %v242 = vadd.f32 %v53, %v241
  %v243 = vpop.f32.mrf.mxu0
  %244 = vmatprep.mubr.bf16.mxu0 0
  %245 = vmatmul.mubr.bf16.gmra.mxu0 %v146
  %v246 = vpop.f32.mrf.mxu0
  %v247 = vadd.f32 %v53, %v246
  %v248 = vpop.f32.mrf.mxu0
  %v249 = vpop.f32.mrf.mxu0
  %v250 = vadd.f32 %v53, %v249
  %v251 = vpop.f32.mrf.mxu0
  %252 = vmatprep.mubr.bf16.mxu0 0
  %253 = vmatmul.mubr.bf16.gmra.mxu0 %v149
  %v254 = vpop.f32.mrf.mxu0
  %v255 = vadd.f32 %v53, %v254
  %v256 = vpop.f32.mrf.mxu0
  %v257 = vpop.f32.mrf.mxu0
  %v258 = vadd.f32 %v53, %v257
  %v259 = vpop.f32.mrf.mxu0
  %260 = vmatprep.mubr.bf16.mxu0 0
  %261 = vmatmul.mubr.bf16.gmra.mxu0 %v152
  %v262 = vpop.f32.mrf.mxu0
  %v263 = vadd.f32 %v53, %v262
  %v264 = vpop.f32.mrf.mxu0
  %v265 = vpop.f32.mrf.mxu0
  %v266 = vadd.f32 %v53, %v265
  %v267 = vpop.f32.mrf.mxu0
  %268 = vmatprep.mubr.bf16.mxu0 0
  %269 = vmatmul.mubr.bf16.gmra.mxu0 %v155
  %v270 = vpop.f32.mrf.mxu0
  %v271 = vadd.f32 %v53, %v270
  %v272 = vpop.f32.mrf.mxu0
  %v273 = vpop.f32.mrf.mxu0
  %v274 = vadd.f32 %v53, %v273
  %v275 = vpop.f32.mrf.mxu0
  %276 = vmatprep.mubr.bf16.mxu0 0
  %277 = vmatmul.mubr.bf16.gmra.mxu0 %v158
  %v278 = vpop.f32.mrf.mxu0
  %v279 = vadd.f32 %v53, %v278
  %v280 = vpop.f32.mrf.mxu0
  %v281 = vpop.f32.mrf.mxu0
  %v282 = vadd.f32 %v53, %v281
  %v283 = vpop.f32.mrf.mxu0
  %284 = vmatprep.mubr.bf16.mxu0 0
  %285 = vmatmul.mubr.bf16.gmra.mxu0 %v161
  %v286 = vpop.f32.mrf.mxu0
  %v287 = vadd.f32 %v53, %v286
  %v288 = vpop.f32.mrf.mxu0
  %v289 = vpop.f32.mrf.mxu0
  %v290 = vadd.f32 %v53, %v289
  %v291 = vpop.f32.mrf.mxu0
  %292 = vmatprep.mubr.bf16.mxu0 0
  %293 = vmatmul.mubr.bf16.gmra.mxu0 %v164
  %v294 = vpop.f32.mrf.mxu0
  %v295 = vadd.f32 %v53, %v294
  %v296 = vpop.f32.mrf.mxu0
  %v297 = vpop.f32.mrf.mxu0
  %v298 = vadd.f32 %v53, %v297
  %v299 = vpop.f32.mrf.mxu0
  %300 = vmatprep.mubr.bf16.mxu0 0
  %301 = vmatmul.mubr.bf16.gmra.mxu0 %v167
  %v302 = vpop.f32.mrf.mxu0
  %v303 = vadd.f32 %v53, %v302
  %v304 = vpop.f32.mrf.mxu0
  %v305 = vpop.f32.mrf.mxu0
  %v306 = vadd.f32 %v53, %v305
  %v307 = vpop.f32.mrf.mxu0
  %308 = vmatprep.mubr.bf16.mxu0 0
  %309 = vmatmul.mubr.bf16.gmra.mxu0 %v170
  %v310 = vpop.f32.mrf.mxu0
  %v311 = vadd.f32 %v53, %v310
  %v312 = vpop.f32.mrf.mxu0
  %v313 = vpop.f32.mrf.mxu0
  %v314 = vadd.f32 %v53, %v313
  %v315 = vpop.f32.mrf.mxu0
  %316 = vmatprep.mubr.bf16.mxu0 0
  %317 = vmatmul.mubr.bf16.gmra.mxu0 %v173
  %v318 = vpop.f32.mrf.mxu0
  %v319 = vadd.f32 %v53, %v318
  %v320 = vpop.f32.mrf.mxu0
  %v321 = vpop.f32.mrf.mxu0
  %v322 = vadd.f32 %v53, %v321
  %v323 = vpop.f32.mrf.mxu0
  %324 = vmatprep.mubr.bf16.mxu0 0
  %325 = vmatmul.mubr.bf16.gmra.mxu0 %v176
  %v326 = vpop.f32.mrf.mxu0
  %v327 = vadd.f32 %v53, %v326
  %v328 = vpop.f32.mrf.mxu0
  %v329 = vpop.f32.mrf.mxu0
  %v330 = vadd.f32 %v53, %v329
  %v331 = vpop.f32.mrf.mxu0
  %332 = vmatprep.mubr.bf16.mxu0 0
  %333 = vmatmul.mubr.bf16.gmra.mxu0 %v179
  %v334 = vpop.f32.mrf.mxu0
  %v335 = vadd.f32 %v53, %v334
  %v336 = vpop.f32.mrf.mxu0
  %v337 = vpop.f32.mrf.mxu0
  %v338 = vadd.f32 %v53, %v337
  %v339 = vpop.f32.mrf.mxu0
  %340 = vmatprep.mubr.bf16.mxu0 0
  %341 = vmatmul.mubr.bf16.gmra.mxu0 %v182
  %v342 = vpop.f32.mrf.mxu0
  %v343 = vadd.f32 %v53, %v342
  %v344 = vpop.f32.mrf.mxu0
  %v345 = vpop.f32.mrf.mxu0
  %v346 = vadd.f32 %v53, %v345
  %v347 = vpop.f32.mrf.mxu0
  %348 = vdwg.mxu0
  %v349 = vpack.c.bf16 %v226, %v223
  %v350 = vpack.c.bf16 %v234, %v231
  %v351 = vpack.c.bf16 %v242, %v239
  %v352 = vpack.c.bf16 %v250, %v247
  %v353 = vpack.c.bf16 %v258, %v255
  %v354 = vpack.c.bf16 %v266, %v263
  %v355 = vpack.c.bf16 %v274, %v271
  %v356 = vpack.c.bf16 %v282, %v279
  %v357 = vpack.c.bf16 %v290, %v287
  %v358 = vpack.c.bf16 %v298, %v295
  %v359 = vpack.c.bf16 %v306, %v303
  %v360 = vpack.c.bf16 %v314, %v311
  %v361 = vpack.c.bf16 %v322, %v319
  %v362 = vpack.c.bf16 %v330, %v327
  %v363 = vpack.c.bf16 %v338, %v335
  %v364 = vpack.c.bf16 %v346, %v343
  %v381 = vunpack.c.l.b16 %v349
  %v382 = vunpack.c.h.b16 %v349
  %v383 = vunpack.c.l.b16 %v350
  %v384 = vunpack.c.h.b16 %v350
  %v385 = vunpack.c.l.b16 %v351
  %v386 = vunpack.c.h.b16 %v351
  %v387 = vunpack.c.l.b16 %v352
  %v388 = vunpack.c.h.b16 %v352
  %v389 = vunpack.c.l.b16 %v353
  %v390 = vunpack.c.h.b16 %v353
  %v391 = vunpack.c.l.b16 %v354
  %v392 = vunpack.c.h.b16 %v354
  %v393 = vunpack.c.l.b16 %v355
  %v394 = vunpack.c.h.b16 %v355
  %v395 = vunpack.c.l.b16 %v356
  %v396 = vunpack.c.h.b16 %v356
  %v397 = vunpack.c.l.b16 %v357
  %v398 = vunpack.c.h.b16 %v357
  %v399 = vunpack.c.l.b16 %v358
  %v400 = vunpack.c.h.b16 %v358
  %v401 = vunpack.c.l.b16 %v359
  %v402 = vunpack.c.h.b16 %v359
  %v403 = vunpack.c.l.b16 %v360
  %v404 = vunpack.c.h.b16 %v360
  %v405 = vunpack.c.l.b16 %v361
  %v406 = vunpack.c.h.b16 %v361
  %v407 = vunpack.c.l.b16 %v362
  %v408 = vunpack.c.h.b16 %v362
  %v409 = vunpack.c.l.b16 %v363
  %v410 = vunpack.c.h.b16 %v363
  %v411 = vunpack.c.l.b16 %v364
  %v412 = vunpack.c.h.b16 %v364
  %v413 = vpack.c.b16 %v381, %v381
  %v414 = vpack.c.b16 %v382, %v382
  %v415 = vpack.c.b16 %v383, %v383
  %v416 = vpack.c.b16 %v384, %v384
  %v417 = vpack.c.b16 %v385, %v385
  %v418 = vpack.c.b16 %v386, %v386
  %v419 = vpack.c.b16 %v387, %v387
  %v420 = vpack.c.b16 %v388, %v388
  %v421 = vpack.c.b16 %v389, %v389
  %v422 = vpack.c.b16 %v390, %v390
  %v423 = vpack.c.b16 %v391, %v391
  %v424 = vpack.c.b16 %v392, %v392
  %v425 = vpack.c.b16 %v393, %v393
  %v426 = vpack.c.b16 %v394, %v394
  %v427 = vpack.c.b16 %v395, %v395
  %v428 = vpack.c.b16 %v396, %v396
  %v429 = vpack.c.b16 %v397, %v397
  %v430 = vpack.c.b16 %v398, %v398
  %v431 = vpack.c.b16 %v399, %v399
  %v432 = vpack.c.b16 %v400, %v400
  %v433 = vpack.c.b16 %v401, %v401
  %v434 = vpack.c.b16 %v402, %v402
  %v435 = vpack.c.b16 %v403, %v403
  %v436 = vpack.c.b16 %v404, %v404
  %v437 = vpack.c.b16 %v405, %v405
  %v438 = vpack.c.b16 %v406, %v406
  %v439 = vpack.c.b16 %v407, %v407
  %v440 = vpack.c.b16 %v408, %v408
  %v441 = vpack.c.b16 %v409, %v409
  %v442 = vpack.c.b16 %v410, %v410
  %v443 = vpack.c.b16 %v411, %v411
  %v444 = vpack.c.b16 %v412, %v412
  %vm477 = vcmask 27648
  %478 = vst.msk [vmem:[%s3] sm:$0xf] %vm477, %v413
  %479 = vst.msk [vmem:[%s3 + $0x4] sm:$0xf] %vm477, %v414
  %480 = vst.msk [vmem:[%s3 + $0x8] sm:$0xf] %vm477, %v415
  %481 = vst.msk [vmem:[%s3 + $0xc] sm:$0xf] %vm477, %v416
  %482 = vst.msk [vmem:[%s3 + $0x10] sm:$0xf] %vm477, %v417
  %483 = vst.msk [vmem:[%s3 + $0x14] sm:$0xf] %vm477, %v418
  %484 = vst.msk [vmem:[%s3 + $0x18] sm:$0xf] %vm477, %v419
  %485 = vst.msk [vmem:[%s3 + $0x1c] sm:$0xf] %vm477, %v420
  %486 = vst.msk [vmem:[%s3 + $0x20] sm:$0xf] %vm477, %v421
  %487 = vst.msk [vmem:[%s3 + $0x24] sm:$0xf] %vm477, %v422
  %488 = vst.msk [vmem:[%s3 + $0x28] sm:$0xf] %vm477, %v423
  %489 = vst.msk [vmem:[%s3 + $0x2c] sm:$0xf] %vm477, %v424
  %490 = vst.msk [vmem:[%s3 + $0x30] sm:$0xf] %vm477, %v425
  %491 = vst.msk [vmem:[%s3 + $0x34] sm:$0xf] %vm477, %v426
  %492 = vst.msk [vmem:[%s3 + $0x38] sm:$0xf] %vm477, %v427
  %493 = vst.msk [vmem:[%s3 + $0x3c] sm:$0xf] %vm477, %v428
  %494 = vst.msk [vmem:[%s3 + $0x40] sm:$0xf] %vm477, %v429
  %495 = vst.msk [vmem:[%s3 + $0x44] sm:$0xf] %vm477, %v430
  %496 = vst.msk [vmem:[%s3 + $0x48] sm:$0xf] %vm477, %v431
  %497 = vst.msk [vmem:[%s3 + $0x4c] sm:$0xf] %vm477, %v432
  %498 = vst.msk [vmem:[%s3 + $0x50] sm:$0xf] %vm477, %v433
  %499 = vst.msk [vmem:[%s3 + $0x54] sm:$0xf] %vm477, %v434
  %500 = vst.msk [vmem:[%s3 + $0x58] sm:$0xf] %vm477, %v435
  %501 = vst.msk [vmem:[%s3 + $0x5c] sm:$0xf] %vm477, %v436
  %502 = vst.msk [vmem:[%s3 + $0x60] sm:$0xf] %vm477, %v437
  %503 = vst.msk [vmem:[%s3 + $0x64] sm:$0xf] %vm477, %v438
  %504 = vst.msk [vmem:[%s3 + $0x68] sm:$0xf] %vm477, %v439
  %505 = vst.msk [vmem:[%s3 + $0x6c] sm:$0xf] %vm477, %v440
  %506 = vst.msk [vmem:[%s3 + $0x70] sm:$0xf] %vm477, %v441
  %507 = vst.msk [vmem:[%s3 + $0x74] sm:$0xf] %vm477, %v442
  %508 = vst.msk [vmem:[%s3 + $0x78] sm:$0xf] %vm477, %v443
  %509 = vst.msk [vmem:[%s3 + $0x7c] sm:$0xf] %vm477, %v444
  // Predicated region
  $region14: #{unet3d1d_forward.45} parent=0 // pred_check
    _
  $region15: #{unet3d1d_forward.45} parent=0 // pred_check_branch
    %511 = sbr.rel (0) target = $region17
  $region16: #{unet3d1d_forward.45} parent=0 // pred_region
    _
  $region17: #{unet3d1d_forward.45} parent=0 // pred_fallthru
    _
  // Predicated region
  $region18: #{unet3d1d_forward.45} parent=0 // pred_check
    _
  $region19: #{unet3d1d_forward.45} parent=0 // pred_check_branch
    %513 = sbr.rel (0) target = $region21
  $region20: #{unet3d1d_forward.45} parent=0 // pred_region
    _
  $region21: #{unet3d1d_forward.45} parent=0 // pred_fallthru
    _

// kernel: unet3d1d_forward.46
$region0: #{unet3d1d_forward.46}
  #allocation0 [shape = 'u32[]', space=smem, size = 0x4, offset = 0x4, fixed_abs, tag = 'smem constant byte address 0x4 - core index']
  #allocation1 [shape = 'u32[144,128]{1,0:T(1,128)}', space=vmem, size = 0x12000, scoped, tag = 'internal scratch']
  #allocation2 [shape = 'f32[32,8]{1,0:T(8,128)}', space=vmem, size = 0x4000, scoped, tag = 'scratch operand']
  %s0 = inlined_call_operand.vmem [shape: bf16[4,6,48,12], index: 0, kind: input, shape index: {}]
  %s1 = inlined_call_operand.vmem [shape: bf16[3,3,12,8], index: 1, kind: input, shape index: {}]
  %s2 = inlined_call_operand.vmem [shape: bf16[4,4,32,8], index: 2, kind: output, shape index: {}]
  %s3 = sld [smem:[#allocation0]]
  $region49: #{unet3d1d_forward.46} parent=0
    _
  %s5 = ssub.s32 1, %s3
  %s6 = scalar_select 0, %s5, %s3
  loop: start=0, step=1, limit=50
  $region2: #{unet3d1d_forward.46} parent=0 // loop_pre_header
    _
  $region3: #{unet3d1d_forward.46} parent=0 // loop_header
    %s8 = sphi 0, %s12
    %p9 = scmp.ge.s32.totalorder %s8, 50
    %s15 = sphi 0, %s34
    %s16 = sphi 0, %s30
    %s17 = sphi 0, %s26
    %s18 = sphi 0, %s15
    %s19 = sphi 0, %s16
    %s20 = sphi 0, %s17
    %s21 = sphi 0, %s18
    %s22 = sphi 0, %s19
    %s23 = sphi 0, %s20
    %s41 = sphi 0, %s43
    %s44 = sphi 0, %s41
    %s45 = sphi 0, %s44
    %s61 = sphi 0, %s45
    %s67 = sphi 0, %s69
    %s70 = sphi 0, %s67
    %s71 = sphi 0, %s70
    %s87 = sphi 0, %s71
    %s95 = sphi 0, %s97
    %s98 = sphi 0, %s95
    %s99 = sphi 0, %s98
    %s115 = sphi 0, %s99
  $region4: #{unet3d1d_forward.46} parent=0 // loop_header_branch
    %11 = sbr.rel (%p9) target = $region8
  $region5: #{unet3d1d_forward.46} parent=0 // loop_body
    %s13 = ssub.s32 %s8, 1
    %s14 = ssub.s32 %s8, 2
    %s24 = sadd.s32 1, %s17
    %p25 = scmp.ge.s32.totalorder %s24, 3
    %s26 = scalar_select %p25, 0, %s24
    %s27 = sadd.s32 1, %s16
    %s28 = scalar_select %p25, %s27, %s16
    %p29 = scmp.ge.s32.totalorder %s28, 4
    %s30 = scalar_select %p29, 0, %s28
    %s31 = sadd.s32 1, %s15
    %s32 = scalar_select %p29, %s31, %s15
    %p33 = scmp.ge.s32.totalorder %s32, 4
    %s34 = scalar_select %p33, 0, %s32
    %s35 = sadd.s32 %s16, %s17
    %s36 = sadd.s32 %s30, %s26
    %s37 = ssub.s32 %s15, %s34
    %s38 = ssub.s32 %s35, %s36
    %s39 = sor.u32 %s37, %s38
    %p40 = scmp.eq.s32.totalorder %s39, 0
    %s42 = sadd.s32 %s41, 1
    %s43 = scalar_select %p40, %s41, %s42
    %p46 = pneg %p40
    %p47 = scmp.eq.s32.totalorder %s8, 47
    %p48 = por %p46, %p47
    %p49 = scmp.ne.s32.totalorder %s41, %s44
    %p50 = scmp.eq.s32.totalorder %s8, 0
    %p51 = por %p49, %p50
    %p52 = scmp.ne.s32.totalorder %s41, %s44
    %p53 = scmp.eq.s32.totalorder %s13, 47
    %p54 = por %p52, %p53
    %p55 = scmp.ne.s32.totalorder %s44, %s45
    %p56 = scmp.eq.s32.totalorder %s13, 0
    %p57 = por %p55, %p56
    %p58 = scmp.ne.s32.totalorder %s44, %s45
    %p59 = scmp.eq.s32.totalorder %s14, 47
    %p60 = por %p58, %p59
    %p62 = scmp.ne.s32.totalorder %s45, %s61
    %p63 = scmp.eq.s32.totalorder %s14, 0
    %p64 = por %p62, %p63
    %s65 = ssub.s32 %s17, %s26
    %p66 = scmp.eq.s32.totalorder %s65, 0
    %s68 = sadd.s32 %s67, 1
    %s69 = scalar_select %p66, %s67, %s68
    %p72 = pneg %p66
    %p73 = scmp.eq.s32.totalorder %s8, 47
    %p74 = por %p72, %p73
    %p75 = scmp.ne.s32.totalorder %s67, %s70
    %p76 = scmp.eq.s32.totalorder %s8, 0
    %p77 = por %p75, %p76
    %p78 = scmp.ne.s32.totalorder %s67, %s70
    %p79 = scmp.eq.s32.totalorder %s13, 47
    %p80 = por %p78, %p79
    %p81 = scmp.ne.s32.totalorder %s70, %s71
    %p82 = scmp.eq.s32.totalorder %s13, 0
    %p83 = por %p81, %p82
    %p84 = scmp.ne.s32.totalorder %s70, %s71
    %p85 = scmp.eq.s32.totalorder %s14, 47
    %p86 = por %p84, %p85
    %p88 = scmp.ne.s32.totalorder %s71, %s87
    %p89 = scmp.eq.s32.totalorder %s14, 0
    %p90 = por %p88, %p89
    %s91 = ssub.s32 %s15, %s34
    %s92 = ssub.s32 %s16, %s30
    %s93 = sor.u32 %s91, %s92
    %p94 = scmp.eq.s32.totalorder %s93, 0
    %s96 = sadd.s32 %s95, 1
    %s97 = scalar_select %p94, %s95, %s96
    %p100 = pneg %p94
    %p101 = scmp.eq.s32.totalorder %s8, 47
    %p102 = por %p100, %p101
    %p103 = scmp.ne.s32.totalorder %s95, %s98
    %p104 = scmp.eq.s32.totalorder %s8, 0
    %p105 = por %p103, %p104
    %p106 = scmp.ne.s32.totalorder %s95, %s98
    %p107 = scmp.eq.s32.totalorder %s13, 47
    %p108 = por %p106, %p107
    %p109 = scmp.ne.s32.totalorder %s98, %s99
    %p110 = scmp.eq.s32.totalorder %s13, 0
    %p111 = por %p109, %p110
    %p112 = scmp.ne.s32.totalorder %s98, %s99
    %p113 = scmp.eq.s32.totalorder %s14, 47
    %p114 = por %p112, %p113
    %p116 = scmp.ne.s32.totalorder %s99, %s115
    %p117 = scmp.eq.s32.totalorder %s14, 0
    %p118 = por %p116, %p117
    %p119 = scmp.le.s32.totalorder 1, %s8
    %p120 = scmp.lt.s32.totalorder %s8, 49
    %p121 = pnand %p119, %p120
    %p122 = pneg %p121
    // Predicated region
    $region9: #{unet3d1d_forward.46} parent=5 // pred_check
      _
    $region10: #{unet3d1d_forward.46} parent=5 // pred_check_branch
      %124 = sbr.rel (%p121) target = $region12
    $region11: #{unet3d1d_forward.46} parent=5 // pred_region
      %s125 = ssub.s32 %s8, 1
    $region12: #{unet3d1d_forward.46} parent=5 // pred_fallthru
      _
    %p126 = scmp.lt.s32.totalorder %s8, 48
    // Predicated region
    $region13: #{unet3d1d_forward.46} parent=5 // pred_check
      %p127 = pneg %p126
    $region14: #{unet3d1d_forward.46} parent=5 // pred_check_branch
      %129 = sbr.rel (%p127) target = $region16
    $region15: #{unet3d1d_forward.46} parent=5 // pred_region
      // Predicated region
      $region17: #{unet3d1d_forward.46} parent=15 // pred_check
        %p130 = pneg %p51
      $region18: #{unet3d1d_forward.46} parent=15 // pred_check_branch
        %132 = sbr.rel (%p130) target = $region20
      $region19: #{unet3d1d_forward.46} parent=15 // pred_region
        %s133 = sadd.s32 %s16, %s17
        %p134 = scmp.lt.s32.totalorder %s15, 3
        %s135 = scalar_select %p134, %s15, 3
        %p136 = scmp.lt.s32.totalorder %s133, 5
        %s137 = scalar_select %p136, %s133, 5
        %s138 = smul.addr %s137, 6
        %s139 = smul.addr %s135, 36
        %s140 = sadd.s32 %s138, %s139
        %s141 = smul.addr %s140, 4
        %s142 = scalar_lea.vmem %s0, %s141
        %s143 = sadd.s32 %s16, %s17
      $region20: #{unet3d1d_forward.46} parent=15 // pred_fallthru
        _
      // Predicated region
      $region21: #{unet3d1d_forward.46} parent=15 // pred_check
        %p144 = pneg %p77
      $region22: #{unet3d1d_forward.46} parent=15 // pred_check_branch
        %146 = sbr.rel (%p144) target = $region24
      $region23: #{unet3d1d_forward.46} parent=15 // pred_region
        %p147 = scmp.lt.s32.totalorder %s17, 2
        %s148 = scalar_select %p147, %s17, 2
        %s149 = smul.addr %s148, 6
        %s150 = smul.addr %s149, 4
        %s151 = scalar_lea.vmem %s1, %s150
      $region24: #{unet3d1d_forward.46} parent=15 // pred_fallthru
        _
    $region16: #{unet3d1d_forward.46} parent=5 // pred_fallthru
      _
    %p152 = scmp.le.s32.totalorder 1, %s8
    %p153 = scmp.lt.s32.totalorder %s8, 49
    %p154 = pnand %p152, %p153
    %p155 = pneg %p154
    // Predicated region
    $region25: #{unet3d1d_forward.46} parent=5 // pred_check
      _
    $region26: #{unet3d1d_forward.46} parent=5 // pred_check_branch
      %157 = sbr.rel (%p154) target = $region28
    $region27: #{unet3d1d_forward.46} parent=5 // pred_region
      %s158 = ssub.s32 %s8, 1
      %s159 = sadd.s32 %s19, %s20
      %p160 = scmp.lt.s32.totalorder %s18, 3
      %s161 = scalar_select %p160, %s18, 3
      %p162 = scmp.lt.s32.totalorder %s159, 5
      %s163 = scalar_select %p162, %s159, 5
      %s164 = smul.addr %s163, 6
      %s165 = smul.addr %s161, 36
      %s166 = sadd.s32 %s164, %s165
      %s167 = smul.addr %s166, 4
      %s168 = scalar_lea.vmem %s0, %s167
      %p169 = pneg %p57
      %p170 = pneg %p54
      %p171 = scmp.lt.s32.totalorder %s20, 2
      %s172 = scalar_select %p171, %s20, 2
      %s173 = smul.addr %s172, 6
      %s174 = smul.addr %s173, 4
      %s175 = scalar_lea.vmem %s1, %s174
      %p176 = pneg %p83
      %p177 = pneg %p80
      %p178 = pneg %p111
      %p179 = pneg %p108
      %p180 = scmp.lt.s32.totalorder %s18, 3
      %s181 = scalar_select %p180, %s18, 3
      %p182 = scmp.lt.s32.totalorder %s19, 3
      %s183 = scalar_select %p182, %s19, 3
      %s184 = smul.addr %s183, 4
      %s185 = smul.addr %s181, 16
      %s186 = sadd.s32 %s184, %s185
      %s187 = smul.addr %s186, 4
      %s188 = scalar_lea.vmem %s2, %s187
      %s189 = sadd.s32 %s19, %s20
      %p190 = scmp.lt.s32.totalorder %s18, 3
      %s191 = scalar_select %p190, %s18, 3
      %p192 = scmp.lt.s32.totalorder %s189, 5
      %s193 = scalar_select %p192, %s189, 5
      %s194 = smul.addr %s193, 6
      %s195 = smul.addr %s191, 36
      %s196 = sadd.s32 %s194, %s195
      %s197 = smul.addr %s196, 4
      %s198 = scalar_lea.vmem %s0, %s197
      %s199 = sadd.s32 %s19, %s20
      %p200 = scmp.lt.s32.totalorder %s20, 2
      %s201 = scalar_select %p200, %s20, 2
      %s202 = smul.addr %s201, 6
      %s203 = smul.addr %s202, 4
      %s204 = scalar_lea.vmem %s1, %s203
      %p205 = scmp.lt.s32.totalorder %s18, 3
      %s206 = scalar_select %p205, %s18, 3
      %p207 = scmp.lt.s32.totalorder %s19, 3
      %s208 = scalar_select %p207, %s19, 3
      %s209 = smul.addr %s208, 4
      %s210 = smul.addr %s206, 16
      %s211 = sadd.s32 %s209, %s210
      %s212 = smul.addr %s211, 4
      %s213 = scalar_lea.vmem %s2, %s212
      %p215 = scmp.eq.s32.totalorder %s20, 0
      // Predicated region
      $region29: #{unet3d1d_forward.46} parent=27 // pred_check
        %p216 = pneg %p215
      $region30: #{unet3d1d_forward.46} parent=27 // pred_check_branch
        %218 = sbr.rel (%p216) target = $region32
      $region31: #{unet3d1d_forward.46} parent=27 // pred_region
        %vm219 = vcmask 64512
        %220 = vst.msk [vmem:[#allocation2] sm:$0xff] %vm219, 0.0
        %221 = vst.msk [vmem:[#allocation2 + $0x8] sm:$0xff] %vm219, 0.0
        %222 = vst.msk [vmem:[#allocation2 + $0x10] sm:$0xff] %vm219, 0.0
        %223 = vst.msk [vmem:[#allocation2 + $0x18] sm:$0xff] %vm219, 0.0
      $region32: #{unet3d1d_forward.46} parent=27 // pred_fallthru
        _
      %v224 = vld [vmem:[#allocation2] sm:$0xff]
      %v225 = vld [vmem:[#allocation2 + $0x8] sm:$0xff]
      %v226 = vld [vmem:[#allocation2 + $0x10] sm:$0xff]
      %v227 = vld [vmem:[#allocation2 + $0x18] sm:$0xff]
      %v228 = vld [vmem:[%s198] sm:$0xf]
      %v229 = vld [vmem:[%s198 + $0x4] sm:$0xf]
      %v230 = vld [vmem:[%s198 + $0x8] sm:$0xf]
      %v231 = vld [vmem:[%s198 + $0xc] sm:$0xf]
      %v232 = vld [vmem:[%s204] sm:$0xf]
      %v233 = vld [vmem:[%s204 + $0x4] sm:$0x3]
      %v238 = vunpack.c.l.b16 %v228
      %v239 = vunpack.c.l.b16 %v229
      %v240 = vunpack.c.l.b16 %v230
      %v241 = vunpack.c.l.b16 %v231
      %v242 = vpack.c.b16 %v239, %v238
      %v243 = vpack.c.b16 %v241, %v240
      %v246 = vunpack.c.l.b16 %v232
      %v247 = vunpack.c.l.b16 %v233
      %v248 = vpack.c.b16 %v247, %v246
      %vm249 = vcmask 97280
      %v251 = vsel %vm249, %v242, 0
      %v254 = vsel %vm249, %v243, 0
      %vm256 = vcmask 1045504
      %v258 = vsel %vm256, %v248, 0
      %260 = vmatprep.subr.bf16.mxu0 0
      %261 = vmatpush1.bf16.msra.mxu0 0
      %262 = vmatprep.subr.bf16.mxu0 0
      %263 = vmatpush1.bf16.msra.mxu0 0
      %264 = vmatprep.subr.bf16.mxu0 0
      %265 = vmatpush1.bf16.msra.mxu0 0
      %266 = vmatprep.subr.bf16.mxu0 0
      %267 = vmatpush1.bf16.msra.mxu0 0
      %268 = vmatprep.subr.bf16.mxu0 0
      %269 = vmatpush1.bf16.msra.mxu0 0
      %270 = vmatprep.subr.bf16.mxu0 0
      %271 = vmatpush1.bf16.msra.mxu0 0
      %272 = vmatprep.subr.bf16.mxu0 0
      %273 = vmatpush1.bf16.msra.mxu0 0
      %274 = vmatprep.subr.bf16.mxu0 0
      %275 = vmatpush1.bf16.msra.mxu0 %v258
      %276 = vmatprep.subr.bf16.mxu0 0
      %277 = vmatpush2.bf16.msra.mxu0 0
      %278 = vmatprep.subr.bf16.mxu0 0
      %279 = vmatpush2.bf16.msra.mxu0 0
      %280 = vmatprep.subr.bf16.mxu0 0
      %281 = vmatpush2.bf16.msra.mxu0 0
      %282 = vmatprep.subr.bf16.mxu0 0
      %283 = vmatpush2.bf16.msra.mxu0 0
      %284 = vmatprep.subr.bf16.mxu0 0
      %285 = vmatpush2.bf16.msra.mxu0 0
      %286 = vmatprep.subr.bf16.mxu0 0
      %287 = vmatpush2.bf16.msra.mxu0 0
      %288 = vmatprep.subr.bf16.mxu0 0
      %289 = vmatpush2.bf16.msra.mxu0 0
      %290 = vmatprep.subr.bf16.mxu0 0
      %291 = vmatpush2.bf16.msra.mxu0 0
      %292 = vmatprep.mubr.bf16.mxu0 0
      %293 = vmatmul.mubr.bf16.gmra.mxu0 %v251
      %v294 = vpop.f32.mrf.mxu0
      %v295 = vadd.f32 0.0, %v294
      %v296 = vpop.f32.mrf.mxu0
      %v297 = vpop.f32.mrf.mxu0
      %v298 = vadd.f32 0.0, %v297
      %v299 = vpop.f32.mrf.mxu0
      %300 = vmatprep.mubr.bf16.mxu0 0
      %301 = vmatmul.mubr.bf16.gmra.mxu0 %v254
      %v302 = vpop.f32.mrf.mxu0
      %v303 = vadd.f32 0.0, %v302
      %v304 = vpop.f32.mrf.mxu0
      %v305 = vpop.f32.mrf.mxu0
      %v306 = vadd.f32 0.0, %v305
      %v307 = vpop.f32.mrf.mxu0
      %308 = vdwg.mxu0
      %v309 = vadd.f32 %v224, %v295
      %v310 = vadd.f32 %v225, %v298
      %v311 = vadd.f32 %v226, %v303
      %v312 = vadd.f32 %v227, %v306
      %vm313 = vcmask 64512
      %314 = vst.msk [vmem:[#allocation2] sm:$0xff] %vm313, %v309
      %315 = vst.msk [vmem:[#allocation2 + $0x8] sm:$0xff] %vm313, %v310
      %316 = vst.msk [vmem:[#allocation2 + $0x10] sm:$0xff] %vm313, %v311
      %317 = vst.msk [vmem:[#allocation2 + $0x18] sm:$0xff] %vm313, %v312
      %v318 = vld [vmem:[#allocation2] sm:$0xff]
      %v319 = vld [vmem:[#allocation2 + $0x8] sm:$0xff]
      %v320 = vld [vmem:[#allocation2 + $0x10] sm:$0xff]
      %v321 = vld [vmem:[#allocation2 + $0x18] sm:$0xff]
      %v322 = vld [vmem:[%s198 + $0x4] sm:$0xf]
      %v323 = vld [vmem:[%s198 + $0x8] sm:$0xf]
      %v324 = vld [vmem:[%s198 + $0xc] sm:$0xf]
      %v325 = vld [vmem:[%s198 + $0x10] sm:$0xf]
      %s326 = scalar_lea.vmem %s204, 8
      %v327 = vld [vmem:[%s326] sm:$0xf]
      %v328 = vld [vmem:[%s326 + $0x4] sm:$0x3]
      %v333 = vunpack.c.l.b16 %v322
      %v334 = vunpack.c.l.b16 %v323
      %v335 = vunpack.c.l.b16 %v324
      %v336 = vunpack.c.l.b16 %v325
      %v337 = vpack.c.b16 %v334, %v333
      %v338 = vpack.c.b16 %v336, %v335
      %v341 = vunpack.c.l.b16 %v327
      %v342 = vunpack.c.l.b16 %v328
      %v343 = vpack.c.b16 %v342, %v341
      %v345 = vsel %vm249, %v337, 0
      %v348 = vsel %vm249, %v338, 0
      %v351 = vsel %vm256, %v343, 0
      %353 = vmatprep.subr.bf16.mxu0 0
      %354 = vmatpush1.bf16.msra.mxu0 0
      %355 = vmatprep.subr.bf16.mxu0 0
      %356 = vmatpush1.bf16.msra.mxu0 0
      %357 = vmatprep.subr.bf16.mxu0 0
      %358 = vmatpush1.bf16.msra.mxu0 0
      %359 = vmatprep.subr.bf16.mxu0 0
      %360 = vmatpush1.bf16.msra.mxu0 0
      %361 = vmatprep.subr.bf16.mxu0 0
      %362 = vmatpush1.bf16.msra.mxu0 0
      %363 = vmatprep.subr.bf16.mxu0 0
      %364 = vmatpush1.bf16.msra.mxu0 0
      %365 = vmatprep.subr.bf16.mxu0 0
      %366 = vmatpush1.bf16.msra.mxu0 0
      %367 = vmatprep.subr.bf16.mxu0 0
      %368 = vmatpush1.bf16.msra.mxu0 %v351
      %369 = vmatprep.subr.bf16.mxu0 0
      %370 = vmatpush2.bf16.msra.mxu0 0
      %371 = vmatprep.subr.bf16.mxu0 0
      %372 = vmatpush2.bf16.msra.mxu0 0
      %373 = vmatprep.subr.bf16.mxu0 0
      %374 = vmatpush2.bf16.msra.mxu0 0
      %375 = vmatprep.subr.bf16.mxu0 0
      %376 = vmatpush2.bf16.msra.mxu0 0
      %377 = vmatprep.subr.bf16.mxu0 0
      %378 = vmatpush2.bf16.msra.mxu0 0
      %379 = vmatprep.subr.bf16.mxu0 0
      %380 = vmatpush2.bf16.msra.mxu0 0
      %381 = vmatprep.subr.bf16.mxu0 0
      %382 = vmatpush2.bf16.msra.mxu0 0
      %383 = vmatprep.subr.bf16.mxu0 0
      %384 = vmatpush2.bf16.msra.mxu0 0
      %385 = vmatprep.mubr.bf16.mxu0 0
      %386 = vmatmul.mubr.bf16.gmra.mxu0 %v345
      %v387 = vpop.f32.mrf.mxu0
      %v388 = vadd.f32 0.0, %v387
      %v389 = vpop.f32.mrf.mxu0
      %v390 = vpop.f32.mrf.mxu0
      %v391 = vadd.f32 0.0, %v390
      %v392 = vpop.f32.mrf.mxu0
      %393 = vmatprep.mubr.bf16.mxu0 0
      %394 = vmatmul.mubr.bf16.gmra.mxu0 %v348
      %v395 = vpop.f32.mrf.mxu0
      %v396 = vadd.f32 0.0, %v395
      %v397 = vpop.f32.mrf.mxu0
      %v398 = vpop.f32.mrf.mxu0
      %v399 = vadd.f32 0.0, %v398
      %v400 = vpop.f32.mrf.mxu0
      %401 = vdwg.mxu0
      %v402 = vadd.f32 %v318, %v388
      %v403 = vadd.f32 %v319, %v391
      %v404 = vadd.f32 %v320, %v396
      %v405 = vadd.f32 %v321, %v399
      %406 = vst.msk [vmem:[#allocation2] sm:$0xff] %vm313, %v402
      %407 = vst.msk [vmem:[#allocation2 + $0x8] sm:$0xff] %vm313, %v403
      %408 = vst.msk [vmem:[#allocation2 + $0x10] sm:$0xff] %vm313, %v404
      %409 = vst.msk [vmem:[#allocation2 + $0x18] sm:$0xff] %vm313, %v405
      %v410 = vld [vmem:[#allocation2] sm:$0xff]
      %v411 = vld [vmem:[#allocation2 + $0x8] sm:$0xff]
      %v412 = vld [vmem:[#allocation2 + $0x10] sm:$0xff]
      %v413 = vld [vmem:[#allocation2 + $0x18] sm:$0xff]
      %v414 = vld [vmem:[%s198 + $0x8] sm:$0xf]
      %v415 = vld [vmem:[%s198 + $0xc] sm:$0xf]
      %v416 = vld [vmem:[%s198 + $0x10] sm:$0xf]
      %v417 = vld [vmem:[%s198 + $0x14] sm:$0xf]
      %s418 = scalar_lea.vmem %s204, 16
      %v419 = vld [vmem:[%s418] sm:$0xf]
      %v420 = vld [vmem:[%s418 + $0x4] sm:$0x3]
      %v425 = vunpack.c.l.b16 %v414
      %v426 = vunpack.c.l.b16 %v415
      %v427 = vunpack.c.l.b16 %v416
      %v428 = vunpack.c.l.b16 %v417
      %v429 = vpack.c.b16 %v426, %v425
      %v430 = vpack.c.b16 %v428, %v427
      %v433 = vunpack.c.l.b16 %v419
      %v434 = vunpack.c.l.b16 %v420
      %v435 = vpack.c.b16 %v434, %v433
      %v437 = vsel %vm249, %v429, 0
      %v440 = vsel %vm249, %v430, 0
      %v443 = vsel %vm256, %v435, 0
      %445 = vmatprep.subr.bf16.mxu0 0
      %446 = vmatpush1.bf16.msra.mxu0 0
      %447 = vmatprep.subr.bf16.mxu0 0
      %448 = vmatpush1.bf16.msra.mxu0 0
      %449 = vmatprep.subr.bf16.mxu0 0
      %450 = vmatpush1.bf16.msra.mxu0 0
      %451 = vmatprep.subr.bf16.mxu0 0
      %452 = vmatpush1.bf16.msra.mxu0 0
      %453 = vmatprep.subr.bf16.mxu0 0
      %454 = vmatpush1.bf16.msra.mxu0 0
      %455 = vmatprep.subr.bf16.mxu0 0
      %456 = vmatpush1.bf16.msra.mxu0 0
      %457 = vmatprep.subr.bf16.mxu0 0
      %458 = vmatpush1.bf16.msra.mxu0 0
      %459 = vmatprep.subr.bf16.mxu0 0
      %460 = vmatpush1.bf16.msra.mxu0 %v443
      %461 = vmatprep.subr.bf16.mxu0 0
      %462 = vmatpush2.bf16.msra.mxu0 0
      %463 = vmatprep.subr.bf16.mxu0 0
      %464 = vmatpush2.bf16.msra.mxu0 0
      %465 = vmatprep.subr.bf16.mxu0 0
      %466 = vmatpush2.bf16.msra.mxu0 0
      %467 = vmatprep.subr.bf16.mxu0 0
      %468 = vmatpush2.bf16.msra.mxu0 0
      %469 = vmatprep.subr.bf16.mxu0 0
      %470 = vmatpush2.bf16.msra.mxu0 0
      %471 = vmatprep.subr.bf16.mxu0 0
      %472 = vmatpush2.bf16.msra.mxu0 0
      %473 = vmatprep.subr.bf16.mxu0 0
      %474 = vmatpush2.bf16.msra.mxu0 0
      %475 = vmatprep.subr.bf16.mxu0 0
      %476 = vmatpush2.bf16.msra.mxu0 0
      %477 = vmatprep.mubr.bf16.mxu0 0
      %478 = vmatmul.mubr.bf16.gmra.mxu0 %v437
      %v479 = vpop.f32.mrf.mxu0
      %v480 = vadd.f32 0.0, %v479
      %v481 = vpop.f32.mrf.mxu0
      %v482 = vpop.f32.mrf.mxu0
      %v483 = vadd.f32 0.0, %v482
      %v484 = vpop.f32.mrf.mxu0
      %485 = vmatprep.mubr.bf16.mxu0 0
      %486 = vmatmul.mubr.bf16.gmra.mxu0 %v440
      %v487 = vpop.f32.mrf.mxu0
      %v488 = vadd.f32 0.0, %v487
      %v489 = vpop.f32.mrf.mxu0
      %v490 = vpop.f32.mrf.mxu0
      %v491 = vadd.f32 0.0, %v490
      %v492 = vpop.f32.mrf.mxu0
      %493 = vdwg.mxu0
      %v494 = vadd.f32 %v410, %v480
      %v495 = vadd.f32 %v411, %v483
      %v496 = vadd.f32 %v412, %v488
      %v497 = vadd.f32 %v413, %v491
      %498 = vst.msk [vmem:[#allocation2] sm:$0xff] %vm313, %v494
      %499 = vst.msk [vmem:[#allocation2 + $0x8] sm:$0xff] %vm313, %v495
      %500 = vst.msk [vmem:[#allocation2 + $0x10] sm:$0xff] %vm313, %v496
      %501 = vst.msk [vmem:[#allocation2 + $0x18] sm:$0xff] %vm313, %v497
      %p502 = scmp.eq.s32.totalorder %s20, 2
      // Predicated region
      $region33: #{unet3d1d_forward.46} parent=27 // pred_check
        %p503 = pneg %p502
      $region34: #{unet3d1d_forward.46} parent=27 // pred_check_branch
        %505 = sbr.rel (%p503) target = $region36
      $region35: #{unet3d1d_forward.46} parent=27 // pred_region
        %v506 = vld [vmem:[#allocation2] sm:$0xff]
        %v507 = vld [vmem:[#allocation2 + $0x8] sm:$0xff]
        %v508 = vld [vmem:[#allocation2 + $0x10] sm:$0xff]
        %v509 = vld [vmem:[#allocation2 + $0x18] sm:$0xff]
        %v510 = vpack.c.bf16 %v507, %v506
        %v511 = vpack.c.bf16 %v509, %v508
        %v514 = vunpack.c.l.b16 %v510
        %v515 = vunpack.c.h.b16 %v510
        %v516 = vunpack.c.l.b16 %v511
        %v517 = vunpack.c.h.b16 %v511
        %v518 = vpack.c.b16 %v514, %v514
        %v519 = vpack.c.b16 %v515, %v515
        %v520 = vpack.c.b16 %v516, %v516
        %v521 = vpack.c.b16 %v517, %v517
        %vm526 = vcmask 60416
        %527 = vst.msk [vmem:[%s213] sm:$0xf] %vm526, %v518
        %528 = vst.msk [vmem:[%s213 + $0x4] sm:$0xf] %vm526, %v519
        %529 = vst.msk [vmem:[%s213 + $0x8] sm:$0xf] %vm526, %v520
        %530 = vst.msk [vmem:[%s213 + $0xc] sm:$0xf] %vm526, %v521
      $region36: #{unet3d1d_forward.46} parent=27 // pred_fallthru
        _
      %p531 = scmp.lt.s32.totalorder %s18, 3
      %s532 = scalar_select %p531, %s18, 3
      %p533 = scmp.lt.s32.totalorder %s19, 3
      %s534 = scalar_select %p533, %s19, 3
      %s535 = smul.addr %s534, 4
      %s536 = smul.addr %s532, 16
      %s537 = sadd.s32 %s535, %s536
      %s538 = smul.addr %s537, 4
      %s539 = scalar_lea.vmem %s2, %s538
      // Predicated region
      $region37: #{unet3d1d_forward.46} parent=27 // pred_check
        %p540 = pneg %p108
      $region38: #{unet3d1d_forward.46} parent=27 // pred_check_branch
        %542 = sbr.rel (%p540) target = $region40
      $region39: #{unet3d1d_forward.46} parent=27 // pred_region
        _
      $region40: #{unet3d1d_forward.46} parent=27 // pred_fallthru
        _
    $region28: #{unet3d1d_forward.46} parent=5 // pred_fallthru
      _
    %p543 = scmp.le.s32.totalorder 2, %s8
    // Predicated region
    $region41: #{unet3d1d_forward.46} parent=5 // pred_check
      %p544 = pneg %p543
    $region42: #{unet3d1d_forward.46} parent=5 // pred_check_branch
      %546 = sbr.rel (%p544) target = $region44
    $region43: #{unet3d1d_forward.46} parent=5 // pred_region
      %s547 = ssub.s32 %s8, 2
      // Predicated region
      $region45: #{unet3d1d_forward.46} parent=43 // pred_check
        %p548 = pneg %p114
      $region46: #{unet3d1d_forward.46} parent=43 // pred_check_branch
        %550 = sbr.rel (%p548) target = $region48
      $region47: #{unet3d1d_forward.46} parent=43 // pred_region
        %p551 = scmp.lt.s32.totalorder %s21, 3
        %s552 = scalar_select %p551, %s21, 3
        %p553 = scmp.lt.s32.totalorder %s22, 3
        %s554 = scalar_select %p553, %s22, 3
        %s555 = smul.addr %s554, 4
        %s556 = smul.addr %s552, 16
        %s557 = sadd.s32 %s555, %s556
        %s558 = smul.addr %s557, 4
        %s559 = scalar_lea.vmem %s2, %s558
      $region48: #{unet3d1d_forward.46} parent=43 // pred_fallthru
        _
    $region44: #{unet3d1d_forward.46} parent=5 // pred_fallthru
      _
  $region6: #{unet3d1d_forward.46} parent=0 // loop_footer
    %s12 = sadd.s32 1, %s8
  $region7: #{unet3d1d_forward.46} parent=0 // loop_footer_branch
    %7 = sbr.rel target = $region3
  $region8: #{unet3d1d_forward.46} parent=0 // loop_exit
    _

// kernel: mul.101
$region0: #{mul.101}
  #allocation0 [shape = 's32[1]{0}', space=sflag, size = 0x4, scoped, tag = 'scoped memory for mul.101']
  %s0 = inlined_call_operand.vmem [shape: f32[2,8], index: 0, kind: input, shape index: {}]
  %s1 = inlined_call_operand.vmem [shape: f32[2,8], index: 1, kind: input, shape index: {}]
  %s2 = inlined_call_operand.vmem [shape: f32[2,8], index: 2, kind: output, shape index: {}]
  %v3 = vld [vmem:[%s0] sm:$0x3]
  %v4 = vld [vmem:[%s1] sm:$0x3]
  %5 = xla_tuple %v3, %v4
  %6 = xla_tuple %5
  %v7 = vmul.f32 %v3, %v4
  %8 = xla_tuple %v7
  %9 = vst [vmem:[%s2] sm:$0x3] %v7

// kernel: unet3d1d_forward.49
$region0: #{unet3d1d_forward.49}
  #allocation0 [shape = 'u32[]', space=smem, size = 0x4, offset = 0x4, fixed_abs, tag = 'smem constant byte address 0x4 - core index']
  #allocation1 [shape = 'u32[144,128]{1,0:T(1,128)}', space=vmem, size = 0x12000, scoped, tag = 'internal scratch']
  #allocation2 [shape = 'f32[32,8]{1,0:T(8,128)}', space=vmem, size = 0x4000, scoped, tag = 'scratch operand']
  %s0 = inlined_call_operand.vmem [shape: bf16[4,6,48,24], index: 0, kind: input, shape index: {}]
  %s1 = inlined_call_operand.vmem [shape: bf16[3,3,24,8], index: 1, kind: input, shape index: {}]
  %s2 = inlined_call_operand.vmem [shape: bf16[4,4,32,8], index: 2, kind: output, shape index: {}]
  %s3 = sld [smem:[#allocation0]]
  $region49: #{unet3d1d_forward.49} parent=0
    _
  %s5 = ssub.s32 1, %s3
  %s6 = scalar_select 0, %s5, %s3
  loop: start=0, step=1, limit=50
  $region2: #{unet3d1d_forward.49} parent=0 // loop_pre_header
    _
  $region3: #{unet3d1d_forward.49} parent=0 // loop_header
    %s8 = sphi 0, %s12
    %p9 = scmp.ge.s32.totalorder %s8, 50
    %s15 = sphi 0, %s34
    %s16 = sphi 0, %s30
    %s17 = sphi 0, %s26
    %s18 = sphi 0, %s15
    %s19 = sphi 0, %s16
    %s20 = sphi 0, %s17
    %s21 = sphi 0, %s18
    %s22 = sphi 0, %s19
    %s23 = sphi 0, %s20
    %s41 = sphi 0, %s43
    %s44 = sphi 0, %s41
    %s45 = sphi 0, %s44
    %s61 = sphi 0, %s45
    %s67 = sphi 0, %s69
    %s70 = sphi 0, %s67
    %s71 = sphi 0, %s70
    %s87 = sphi 0, %s71
    %s95 = sphi 0, %s97
    %s98 = sphi 0, %s95
    %s99 = sphi 0, %s98
    %s115 = sphi 0, %s99
  $region4: #{unet3d1d_forward.49} parent=0 // loop_header_branch
    %11 = sbr.rel (%p9) target = $region8
  $region5: #{unet3d1d_forward.49} parent=0 // loop_body
    %s13 = ssub.s32 %s8, 1
    %s14 = ssub.s32 %s8, 2
    %s24 = sadd.s32 1, %s17
    %p25 = scmp.ge.s32.totalorder %s24, 3
    %s26 = scalar_select %p25, 0, %s24
    %s27 = sadd.s32 1, %s16
    %s28 = scalar_select %p25, %s27, %s16
    %p29 = scmp.ge.s32.totalorder %s28, 4
    %s30 = scalar_select %p29, 0, %s28
    %s31 = sadd.s32 1, %s15
    %s32 = scalar_select %p29, %s31, %s15
    %p33 = scmp.ge.s32.totalorder %s32, 4
    %s34 = scalar_select %p33, 0, %s32
    %s35 = sadd.s32 %s16, %s17
    %s36 = sadd.s32 %s30, %s26
    %s37 = ssub.s32 %s15, %s34
    %s38 = ssub.s32 %s35, %s36
    %s39 = sor.u32 %s37, %s38
    %p40 = scmp.eq.s32.totalorder %s39, 0
    %s42 = sadd.s32 %s41, 1
    %s43 = scalar_select %p40, %s41, %s42
    %p46 = pneg %p40
    %p47 = scmp.eq.s32.totalorder %s8, 47
    %p48 = por %p46, %p47
    %p49 = scmp.ne.s32.totalorder %s41, %s44
    %p50 = scmp.eq.s32.totalorder %s8, 0
    %p51 = por %p49, %p50
    %p52 = scmp.ne.s32.totalorder %s41, %s44
    %p53 = scmp.eq.s32.totalorder %s13, 47
    %p54 = por %p52, %p53
    %p55 = scmp.ne.s32.totalorder %s44, %s45
    %p56 = scmp.eq.s32.totalorder %s13, 0
    %p57 = por %p55, %p56
    %p58 = scmp.ne.s32.totalorder %s44, %s45
    %p59 = scmp.eq.s32.totalorder %s14, 47
    %p60 = por %p58, %p59
    %p62 = scmp.ne.s32.totalorder %s45, %s61
    %p63 = scmp.eq.s32.totalorder %s14, 0
    %p64 = por %p62, %p63
    %s65 = ssub.s32 %s17, %s26
    %p66 = scmp.eq.s32.totalorder %s65, 0
    %s68 = sadd.s32 %s67, 1
    %s69 = scalar_select %p66, %s67, %s68
    %p72 = pneg %p66
    %p73 = scmp.eq.s32.totalorder %s8, 47
    %p74 = por %p72, %p73
    %p75 = scmp.ne.s32.totalorder %s67, %s70
    %p76 = scmp.eq.s32.totalorder %s8, 0
    %p77 = por %p75, %p76
    %p78 = scmp.ne.s32.totalorder %s67, %s70
    %p79 = scmp.eq.s32.totalorder %s13, 47
    %p80 = por %p78, %p79
    %p81 = scmp.ne.s32.totalorder %s70, %s71
    %p82 = scmp.eq.s32.totalorder %s13, 0
    %p83 = por %p81, %p82
    %p84 = scmp.ne.s32.totalorder %s70, %s71
    %p85 = scmp.eq.s32.totalorder %s14, 47
    %p86 = por %p84, %p85
    %p88 = scmp.ne.s32.totalorder %s71, %s87
    %p89 = scmp.eq.s32.totalorder %s14, 0
    %p90 = por %p88, %p89
    %s91 = ssub.s32 %s15, %s34
    %s92 = ssub.s32 %s16, %s30
    %s93 = sor.u32 %s91, %s92
    %p94 = scmp.eq.s32.totalorder %s93, 0
    %s96 = sadd.s32 %s95, 1
    %s97 = scalar_select %p94, %s95, %s96
    %p100 = pneg %p94
    %p101 = scmp.eq.s32.totalorder %s8, 47
    %p102 = por %p100, %p101
    %p103 = scmp.ne.s32.totalorder %s95, %s98
    %p104 = scmp.eq.s32.totalorder %s8, 0
    %p105 = por %p103, %p104
    %p106 = scmp.ne.s32.totalorder %s95, %s98
    %p107 = scmp.eq.s32.totalorder %s13, 47
    %p108 = por %p106, %p107
    %p109 = scmp.ne.s32.totalorder %s98, %s99
    %p110 = scmp.eq.s32.totalorder %s13, 0
    %p111 = por %p109, %p110
    %p112 = scmp.ne.s32.totalorder %s98, %s99
    %p113 = scmp.eq.s32.totalorder %s14, 47
    %p114 = por %p112, %p113
    %p116 = scmp.ne.s32.totalorder %s99, %s115
    %p117 = scmp.eq.s32.totalorder %s14, 0
    %p118 = por %p116, %p117
    %p119 = scmp.le.s32.totalorder 1, %s8
    %p120 = scmp.lt.s32.totalorder %s8, 49
    %p121 = pnand %p119, %p120
    %p122 = pneg %p121
    // Predicated region
    $region9: #{unet3d1d_forward.49} parent=5 // pred_check
      _
    $region10: #{unet3d1d_forward.49} parent=5 // pred_check_branch
      %124 = sbr.rel (%p121) target = $region12
    $region11: #{unet3d1d_forward.49} parent=5 // pred_region
      %s125 = ssub.s32 %s8, 1
    $region12: #{unet3d1d_forward.49} parent=5 // pred_fallthru
      _
    %p126 = scmp.lt.s32.totalorder %s8, 48
    // Predicated region
    $region13: #{unet3d1d_forward.49} parent=5 // pred_check
      %p127 = pneg %p126
    $region14: #{unet3d1d_forward.49} parent=5 // pred_check_branch
      %129 = sbr.rel (%p127) target = $region16
    $region15: #{unet3d1d_forward.49} parent=5 // pred_region
      // Predicated region
      $region17: #{unet3d1d_forward.49} parent=15 // pred_check
        %p130 = pneg %p51
      $region18: #{unet3d1d_forward.49} parent=15 // pred_check_branch
        %132 = sbr.rel (%p130) target = $region20
      $region19: #{unet3d1d_forward.49} parent=15 // pred_region
        %s133 = sadd.s32 %s16, %s17
        %p134 = scmp.lt.s32.totalorder %s15, 3
        %s135 = scalar_select %p134, %s15, 3
        %p136 = scmp.lt.s32.totalorder %s133, 5
        %s137 = scalar_select %p136, %s133, 5
        %s138 = smul.addr %s137, 6
        %s139 = smul.addr %s135, 36
        %s140 = sadd.s32 %s138, %s139
        %s141 = smul.addr %s140, 4
        %s142 = scalar_lea.vmem %s0, %s141
        %s143 = sadd.s32 %s16, %s17
      $region20: #{unet3d1d_forward.49} parent=15 // pred_fallthru
        _
      // Predicated region
      $region21: #{unet3d1d_forward.49} parent=15 // pred_check
        %p144 = pneg %p77
      $region22: #{unet3d1d_forward.49} parent=15 // pred_check_branch
        %146 = sbr.rel (%p144) target = $region24
      $region23: #{unet3d1d_forward.49} parent=15 // pred_region
        %p147 = scmp.lt.s32.totalorder %s17, 2
        %s148 = scalar_select %p147, %s17, 2
        %s149 = smul.addr %s148, 9
        %s150 = smul.addr %s149, 4
        %s151 = scalar_lea.vmem %s1, %s150
      $region24: #{unet3d1d_forward.49} parent=15 // pred_fallthru
        _
    $region16: #{unet3d1d_forward.49} parent=5 // pred_fallthru
      _
    %p152 = scmp.le.s32.totalorder 1, %s8
    %p153 = scmp.lt.s32.totalorder %s8, 49
    %p154 = pnand %p152, %p153
    %p155 = pneg %p154
    // Predicated region
    $region25: #{unet3d1d_forward.49} parent=5 // pred_check
      _
    $region26: #{unet3d1d_forward.49} parent=5 // pred_check_branch
      %157 = sbr.rel (%p154) target = $region28
    $region27: #{unet3d1d_forward.49} parent=5 // pred_region
      %s158 = ssub.s32 %s8, 1
      %s159 = sadd.s32 %s19, %s20
      %p160 = scmp.lt.s32.totalorder %s18, 3
      %s161 = scalar_select %p160, %s18, 3
      %p162 = scmp.lt.s32.totalorder %s159, 5
      %s163 = scalar_select %p162, %s159, 5
      %s164 = smul.addr %s163, 6
      %s165 = smul.addr %s161, 36
      %s166 = sadd.s32 %s164, %s165
      %s167 = smul.addr %s166, 4
      %s168 = scalar_lea.vmem %s0, %s167
      %p169 = pneg %p57
      %p170 = pneg %p54
      %p171 = scmp.lt.s32.totalorder %s20, 2
      %s172 = scalar_select %p171, %s20, 2
      %s173 = smul.addr %s172, 9
      %s174 = smul.addr %s173, 4
      %s175 = scalar_lea.vmem %s1, %s174
      %p176 = pneg %p83
      %p177 = pneg %p80
      %p178 = pneg %p111
      %p179 = pneg %p108
      %p180 = scmp.lt.s32.totalorder %s18, 3
      %s181 = scalar_select %p180, %s18, 3
      %p182 = scmp.lt.s32.totalorder %s19, 3
      %s183 = scalar_select %p182, %s19, 3
      %s184 = smul.addr %s183, 4
      %s185 = smul.addr %s181, 16
      %s186 = sadd.s32 %s184, %s185
      %s187 = smul.addr %s186, 4
      %s188 = scalar_lea.vmem %s2, %s187
      %s189 = sadd.s32 %s19, %s20
      %p190 = scmp.lt.s32.totalorder %s18, 3
      %s191 = scalar_select %p190, %s18, 3
      %p192 = scmp.lt.s32.totalorder %s189, 5
      %s193 = scalar_select %p192, %s189, 5
      %s194 = smul.addr %s193, 6
      %s195 = smul.addr %s191, 36
      %s196 = sadd.s32 %s194, %s195
      %s197 = smul.addr %s196, 4
      %s198 = scalar_lea.vmem %s0, %s197
      %s199 = sadd.s32 %s19, %s20
      %p200 = scmp.lt.s32.totalorder %s20, 2
      %s201 = scalar_select %p200, %s20, 2
      %s202 = smul.addr %s201, 9
      %s203 = smul.addr %s202, 4
      %s204 = scalar_lea.vmem %s1, %s203
      %p205 = scmp.lt.s32.totalorder %s18, 3
      %s206 = scalar_select %p205, %s18, 3
      %p207 = scmp.lt.s32.totalorder %s19, 3
      %s208 = scalar_select %p207, %s19, 3
      %s209 = smul.addr %s208, 4
      %s210 = smul.addr %s206, 16
      %s211 = sadd.s32 %s209, %s210
      %s212 = smul.addr %s211, 4
      %s213 = scalar_lea.vmem %s2, %s212
      %p215 = scmp.eq.s32.totalorder %s20, 0
      // Predicated region
      $region29: #{unet3d1d_forward.49} parent=27 // pred_check
        %p216 = pneg %p215
      $region30: #{unet3d1d_forward.49} parent=27 // pred_check_branch
        %218 = sbr.rel (%p216) target = $region32
      $region31: #{unet3d1d_forward.49} parent=27 // pred_region
        %vm219 = vcmask 64512
        %220 = vst.msk [vmem:[#allocation2] sm:$0xff] %vm219, 0.0
        %221 = vst.msk [vmem:[#allocation2 + $0x8] sm:$0xff] %vm219, 0.0
        %222 = vst.msk [vmem:[#allocation2 + $0x10] sm:$0xff] %vm219, 0.0
        %223 = vst.msk [vmem:[#allocation2 + $0x18] sm:$0xff] %vm219, 0.0
      $region32: #{unet3d1d_forward.49} parent=27 // pred_fallthru
        _
      %v224 = vld [vmem:[#allocation2] sm:$0xff]
      %v225 = vld [vmem:[#allocation2 + $0x8] sm:$0xff]
      %v226 = vld [vmem:[#allocation2 + $0x10] sm:$0xff]
      %v227 = vld [vmem:[#allocation2 + $0x18] sm:$0xff]
      %v228 = vld [vmem:[%s198] sm:$0xf]
      %v229 = vld [vmem:[%s198 + $0x4] sm:$0xf]
      %v230 = vld [vmem:[%s198 + $0x8] sm:$0xf]
      %v231 = vld [vmem:[%s198 + $0xc] sm:$0xf]
      %v232 = vld [vmem:[%s204] sm:$0xf]
      %v233 = vld [vmem:[%s204 + $0x4] sm:$0xf]
      %v234 = vld [vmem:[%s204 + $0x8] sm:$0xf]
      %v239 = vunpack.c.l.b16 %v228
      %v240 = vunpack.c.l.b16 %v229
      %v241 = vunpack.c.l.b16 %v230
      %v242 = vunpack.c.l.b16 %v231
      %v243 = vpack.c.b16 %v240, %v239
      %v244 = vpack.c.b16 %v242, %v241
      %v248 = vunpack.c.l.b16 %v232
      %v249 = vunpack.c.l.b16 %v233
      %v250 = vunpack.c.l.b16 %v234
      %v251 = vpack.c.b16 %v249, %v248
      %v252 = vpack.c.b16 %v250, %v250
      %vm254 = vcmask 195584
      %v256 = vsel %vm254, %v243, 0
      %v259 = vsel %vm254, %v244, 0
      %vm261 = vcmask 1043456
      %v263 = vsel %vm261, %v252, 0
      %265 = vmatprep.subr.bf16.mxu0 0
      %266 = vmatpush1.bf16.msra.mxu0 0
      %267 = vmatprep.subr.bf16.mxu0 0
      %268 = vmatpush1.bf16.msra.mxu0 0
      %269 = vmatprep.subr.bf16.mxu0 0
      %270 = vmatpush1.bf16.msra.mxu0 0
      %271 = vmatprep.subr.bf16.mxu0 0
      %272 = vmatpush1.bf16.msra.mxu0 0
      %273 = vmatprep.subr.bf16.mxu0 0
      %274 = vmatpush1.bf16.msra.mxu0 0
      %275 = vmatprep.subr.bf16.mxu0 0
      %276 = vmatpush1.bf16.msra.mxu0 0
      %277 = vmatprep.subr.bf16.mxu0 0
      %278 = vmatpush1.bf16.msra.mxu0 %v263
      %279 = vmatprep.subr.bf16.mxu0 0
      %280 = vmatpush1.bf16.msra.mxu0 %v251
      %281 = vmatprep.subr.bf16.mxu0 0
      %282 = vmatpush2.bf16.msra.mxu0 0
      %283 = vmatprep.subr.bf16.mxu0 0
      %284 = vmatpush2.bf16.msra.mxu0 0
      %285 = vmatprep.subr.bf16.mxu0 0
      %286 = vmatpush2.bf16.msra.mxu0 0
      %287 = vmatprep.subr.bf16.mxu0 0
      %288 = vmatpush2.bf16.msra.mxu0 0
      %289 = vmatprep.subr.bf16.mxu0 0
      %290 = vmatpush2.bf16.msra.mxu0 0
      %291 = vmatprep.subr.bf16.mxu0 0
      %292 = vmatpush2.bf16.msra.mxu0 0
      %293 = vmatprep.subr.bf16.mxu0 0
      %294 = vmatpush2.bf16.msra.mxu0 0
      %295 = vmatprep.subr.bf16.mxu0 0
      %296 = vmatpush2.bf16.msra.mxu0 0
      %297 = vmatprep.mubr.bf16.mxu0 0
      %298 = vmatmul.mubr.bf16.gmra.mxu0 %v256
      %v299 = vpop.f32.mrf.mxu0
      %v300 = vadd.f32 0.0, %v299
      %v301 = vpop.f32.mrf.mxu0
      %v302 = vpop.f32.mrf.mxu0
      %v303 = vadd.f32 0.0, %v302
      %v304 = vpop.f32.mrf.mxu0
      %305 = vmatprep.mubr.bf16.mxu0 0
      %306 = vmatmul.mubr.bf16.gmra.mxu0 %v259
      %v307 = vpop.f32.mrf.mxu0
      %v308 = vadd.f32 0.0, %v307
      %v309 = vpop.f32.mrf.mxu0
      %v310 = vpop.f32.mrf.mxu0
      %v311 = vadd.f32 0.0, %v310
      %v312 = vpop.f32.mrf.mxu0
      %313 = vdwg.mxu0
      %v314 = vadd.f32 %v224, %v300
      %v315 = vadd.f32 %v225, %v303
      %v316 = vadd.f32 %v226, %v308
      %v317 = vadd.f32 %v227, %v311
      %vm318 = vcmask 64512
      %319 = vst.msk [vmem:[#allocation2] sm:$0xff] %vm318, %v314
      %320 = vst.msk [vmem:[#allocation2 + $0x8] sm:$0xff] %vm318, %v315
      %321 = vst.msk [vmem:[#allocation2 + $0x10] sm:$0xff] %vm318, %v316
      %322 = vst.msk [vmem:[#allocation2 + $0x18] sm:$0xff] %vm318, %v317
      %v323 = vld [vmem:[#allocation2] sm:$0xff]
      %v324 = vld [vmem:[#allocation2 + $0x8] sm:$0xff]
      %v325 = vld [vmem:[#allocation2 + $0x10] sm:$0xff]
      %v326 = vld [vmem:[#allocation2 + $0x18] sm:$0xff]
      %v327 = vld [vmem:[%s198 + $0x4] sm:$0xf]
      %v328 = vld [vmem:[%s198 + $0x8] sm:$0xf]
      %v329 = vld [vmem:[%s198 + $0xc] sm:$0xf]
      %v330 = vld [vmem:[%s198 + $0x10] sm:$0xf]
      %s331 = scalar_lea.vmem %s204, 12
      %v332 = vld [vmem:[%s331] sm:$0xf]
      %v333 = vld [vmem:[%s331 + $0x4] sm:$0xf]
      %v334 = vld [vmem:[%s331 + $0x8] sm:$0xf]
      %v339 = vunpack.c.l.b16 %v327
      %v340 = vunpack.c.l.b16 %v328
      %v341 = vunpack.c.l.b16 %v329
      %v342 = vunpack.c.l.b16 %v330
      %v343 = vpack.c.b16 %v340, %v339
      %v344 = vpack.c.b16 %v342, %v341
      %v348 = vunpack.c.l.b16 %v332
      %v349 = vunpack.c.l.b16 %v333
      %v350 = vunpack.c.l.b16 %v334
      %v351 = vpack.c.b16 %v349, %v348
      %v352 = vpack.c.b16 %v350, %v350
      %v355 = vsel %vm254, %v343, 0
      %v358 = vsel %vm254, %v344, 0
      %v361 = vsel %vm261, %v352, 0
      %363 = vmatprep.subr.bf16.mxu0 0
      %364 = vmatpush1.bf16.msra.mxu0 0
      %365 = vmatprep.subr.bf16.mxu0 0
      %366 = vmatpush1.bf16.msra.mxu0 0
      %367 = vmatprep.subr.bf16.mxu0 0
      %368 = vmatpush1.bf16.msra.mxu0 0
      %369 = vmatprep.subr.bf16.mxu0 0
      %370 = vmatpush1.bf16.msra.mxu0 0
      %371 = vmatprep.subr.bf16.mxu0 0
      %372 = vmatpush1.bf16.msra.mxu0 0
      %373 = vmatprep.subr.bf16.mxu0 0
      %374 = vmatpush1.bf16.msra.mxu0 0
      %375 = vmatprep.subr.bf16.mxu0 0
      %376 = vmatpush1.bf16.msra.mxu0 %v361
      %377 = vmatprep.subr.bf16.mxu0 0
      %378 = vmatpush1.bf16.msra.mxu0 %v351
      %379 = vmatprep.subr.bf16.mxu0 0
      %380 = vmatpush2.bf16.msra.mxu0 0
      %381 = vmatprep.subr.bf16.mxu0 0
      %382 = vmatpush2.bf16.msra.mxu0 0
      %383 = vmatprep.subr.bf16.mxu0 0
      %384 = vmatpush2.bf16.msra.mxu0 0
      %385 = vmatprep.subr.bf16.mxu0 0
      %386 = vmatpush2.bf16.msra.mxu0 0
      %387 = vmatprep.subr.bf16.mxu0 0
      %388 = vmatpush2.bf16.msra.mxu0 0
      %389 = vmatprep.subr.bf16.mxu0 0
      %390 = vmatpush2.bf16.msra.mxu0 0
      %391 = vmatprep.subr.bf16.mxu0 0
      %392 = vmatpush2.bf16.msra.mxu0 0
      %393 = vmatprep.subr.bf16.mxu0 0
      %394 = vmatpush2.bf16.msra.mxu0 0
      %395 = vmatprep.mubr.bf16.mxu0 0
      %396 = vmatmul.mubr.bf16.gmra.mxu0 %v355
      %v397 = vpop.f32.mrf.mxu0
      %v398 = vadd.f32 0.0, %v397
      %v399 = vpop.f32.mrf.mxu0
      %v400 = vpop.f32.mrf.mxu0
      %v401 = vadd.f32 0.0, %v400
      %v402 = vpop.f32.mrf.mxu0
      %403 = vmatprep.mubr.bf16.mxu0 0
      %404 = vmatmul.mubr.bf16.gmra.mxu0 %v358
      %v405 = vpop.f32.mrf.mxu0
      %v406 = vadd.f32 0.0, %v405
      %v407 = vpop.f32.mrf.mxu0
      %v408 = vpop.f32.mrf.mxu0
      %v409 = vadd.f32 0.0, %v408
      %v410 = vpop.f32.mrf.mxu0
      %411 = vdwg.mxu0
      %v412 = vadd.f32 %v323, %v398
      %v413 = vadd.f32 %v324, %v401
      %v414 = vadd.f32 %v325, %v406
      %v415 = vadd.f32 %v326, %v409
      %416 = vst.msk [vmem:[#allocation2] sm:$0xff] %vm318, %v412
      %417 = vst.msk [vmem:[#allocation2 + $0x8] sm:$0xff] %vm318, %v413
      %418 = vst.msk [vmem:[#allocation2 + $0x10] sm:$0xff] %vm318, %v414
      %419 = vst.msk [vmem:[#allocation2 + $0x18] sm:$0xff] %vm318, %v415
      %v420 = vld [vmem:[#allocation2] sm:$0xff]
      %v421 = vld [vmem:[#allocation2 + $0x8] sm:$0xff]
      %v422 = vld [vmem:[#allocation2 + $0x10] sm:$0xff]
      %v423 = vld [vmem:[#allocation2 + $0x18] sm:$0xff]
      %v424 = vld [vmem:[%s198 + $0x8] sm:$0xf]
      %v425 = vld [vmem:[%s198 + $0xc] sm:$0xf]
      %v426 = vld [vmem:[%s198 + $0x10] sm:$0xf]
      %v427 = vld [vmem:[%s198 + $0x14] sm:$0xf]
      %s428 = scalar_lea.vmem %s204, 24
      %v429 = vld [vmem:[%s428] sm:$0xf]
      %v430 = vld [vmem:[%s428 + $0x4] sm:$0xf]
      %v431 = vld [vmem:[%s428 + $0x8] sm:$0xf]
      %v436 = vunpack.c.l.b16 %v424
      %v437 = vunpack.c.l.b16 %v425
      %v438 = vunpack.c.l.b16 %v426
      %v439 = vunpack.c.l.b16 %v427
      %v440 = vpack.c.b16 %v437, %v436
      %v441 = vpack.c.b16 %v439, %v438
      %v445 = vunpack.c.l.b16 %v429
      %v446 = vunpack.c.l.b16 %v430
      %v447 = vunpack.c.l.b16 %v431
      %v448 = vpack.c.b16 %v446, %v445
      %v449 = vpack.c.b16 %v447, %v447
      %v452 = vsel %vm254, %v440, 0
      %v455 = vsel %vm254, %v441, 0
      %v458 = vsel %vm261, %v449, 0
      %460 = vmatprep.subr.bf16.mxu0 0
      %461 = vmatpush1.bf16.msra.mxu0 0
      %462 = vmatprep.subr.bf16.mxu0 0
      %463 = vmatpush1.bf16.msra.mxu0 0
      %464 = vmatprep.subr.bf16.mxu0 0
      %465 = vmatpush1.bf16.msra.mxu0 0
      %466 = vmatprep.subr.bf16.mxu0 0
      %467 = vmatpush1.bf16.msra.mxu0 0
      %468 = vmatprep.subr.bf16.mxu0 0
      %469 = vmatpush1.bf16.msra.mxu0 0
      %470 = vmatprep.subr.bf16.mxu0 0
      %471 = vmatpush1.bf16.msra.mxu0 0
      %472 = vmatprep.subr.bf16.mxu0 0
      %473 = vmatpush1.bf16.msra.mxu0 %v458
      %474 = vmatprep.subr.bf16.mxu0 0
      %475 = vmatpush1.bf16.msra.mxu0 %v448
      %476 = vmatprep.subr.bf16.mxu0 0
      %477 = vmatpush2.bf16.msra.mxu0 0
      %478 = vmatprep.subr.bf16.mxu0 0
      %479 = vmatpush2.bf16.msra.mxu0 0
      %480 = vmatprep.subr.bf16.mxu0 0
      %481 = vmatpush2.bf16.msra.mxu0 0
      %482 = vmatprep.subr.bf16.mxu0 0
      %483 = vmatpush2.bf16.msra.mxu0 0
      %484 = vmatprep.subr.bf16.mxu0 0
      %485 = vmatpush2.bf16.msra.mxu0 0
      %486 = vmatprep.subr.bf16.mxu0 0
      %487 = vmatpush2.bf16.msra.mxu0 0
      %488 = vmatprep.subr.bf16.mxu0 0
      %489 = vmatpush2.bf16.msra.mxu0 0
      %490 = vmatprep.subr.bf16.mxu0 0
      %491 = vmatpush2.bf16.msra.mxu0 0
      %492 = vmatprep.mubr.bf16.mxu0 0
      %493 = vmatmul.mubr.bf16.gmra.mxu0 %v452
      %v494 = vpop.f32.mrf.mxu0
      %v495 = vadd.f32 0.0, %v494
      %v496 = vpop.f32.mrf.mxu0
      %v497 = vpop.f32.mrf.mxu0
      %v498 = vadd.f32 0.0, %v497
      %v499 = vpop.f32.mrf.mxu0
      %500 = vmatprep.mubr.bf16.mxu0 0
      %501 = vmatmul.mubr.bf16.gmra.mxu0 %v455
      %v502 = vpop.f32.mrf.mxu0
      %v503 = vadd.f32 0.0, %v502
      %v504 = vpop.f32.mrf.mxu0
      %v505 = vpop.f32.mrf.mxu0
      %v506 = vadd.f32 0.0, %v505
      %v507 = vpop.f32.mrf.mxu0
      %508 = vdwg.mxu0
      %v509 = vadd.f32 %v420, %v495
      %v510 = vadd.f32 %v421, %v498
      %v511 = vadd.f32 %v422, %v503
      %v512 = vadd.f32 %v423, %v506
      %513 = vst.msk [vmem:[#allocation2] sm:$0xff] %vm318, %v509
      %514 = vst.msk [vmem:[#allocation2 + $0x8] sm:$0xff] %vm318, %v510
      %515 = vst.msk [vmem:[#allocation2 + $0x10] sm:$0xff] %vm318, %v511
      %516 = vst.msk [vmem:[#allocation2 + $0x18] sm:$0xff] %vm318, %v512
      %p517 = scmp.eq.s32.totalorder %s20, 2
      // Predicated region
      $region33: #{unet3d1d_forward.49} parent=27 // pred_check
        %p518 = pneg %p517
      $region34: #{unet3d1d_forward.49} parent=27 // pred_check_branch
        %520 = sbr.rel (%p518) target = $region36
      $region35: #{unet3d1d_forward.49} parent=27 // pred_region
        %v521 = vld [vmem:[#allocation2] sm:$0xff]
        %v522 = vld [vmem:[#allocation2 + $0x8] sm:$0xff]
        %v523 = vld [vmem:[#allocation2 + $0x10] sm:$0xff]
        %v524 = vld [vmem:[#allocation2 + $0x18] sm:$0xff]
        %v525 = vpack.c.bf16 %v522, %v521
        %v526 = vpack.c.bf16 %v524, %v523
        %v529 = vunpack.c.l.b16 %v525
        %v530 = vunpack.c.h.b16 %v525
        %v531 = vunpack.c.l.b16 %v526
        %v532 = vunpack.c.h.b16 %v526
        %v533 = vpack.c.b16 %v529, %v529
        %v534 = vpack.c.b16 %v530, %v530
        %v535 = vpack.c.b16 %v531, %v531
        %v536 = vpack.c.b16 %v532, %v532
        %vm541 = vcmask 60416
        %542 = vst.msk [vmem:[%s213] sm:$0xf] %vm541, %v533
        %543 = vst.msk [vmem:[%s213 + $0x4] sm:$0xf] %vm541, %v534
        %544 = vst.msk [vmem:[%s213 + $0x8] sm:$0xf] %vm541, %v535
        %545 = vst.msk [vmem:[%s213 + $0xc] sm:$0xf] %vm541, %v536
      $region36: #{unet3d1d_forward.49} parent=27 // pred_fallthru
        _
      %p546 = scmp.lt.s32.totalorder %s18, 3
      %s547 = scalar_select %p546, %s18, 3
      %p548 = scmp.lt.s32.totalorder %s19, 3
      %s549 = scalar_select %p548, %s19, 3
      %s550 = smul.addr %s549, 4
      %s551 = smul.addr %s547, 16
      %s552 = sadd.s32 %s550, %s551
      %s553 = smul.addr %s552, 4
      %s554 = scalar_lea.vmem %s2, %s553
      // Predicated region
      $region37: #{unet3d1d_forward.49} parent=27 // pred_check
        %p555 = pneg %p108
      $region38: #{unet3d1d_forward.49} parent=27 // pred_check_branch
        %557 = sbr.rel (%p555) target = $region40
      $region39: #{unet3d1d_forward.49} parent=27 // pred_region
        _
      $region40: #{unet3d1d_forward.49} parent=27 // pred_fallthru
        _
    $region28: #{unet3d1d_forward.49} parent=5 // pred_fallthru
      _
    %p558 = scmp.le.s32.totalorder 2, %s8
    // Predicated region
    $region41: #{unet3d1d_forward.49} parent=5 // pred_check
      %p559 = pneg %p558
    $region42: #{unet3d1d_forward.49} parent=5 // pred_check_branch
      %561 = sbr.rel (%p559) target = $region44
    $region43: #{unet3d1d_forward.49} parent=5 // pred_region
      %s562 = ssub.s32 %s8, 2
      // Predicated region
      $region45: #{unet3d1d_forward.49} parent=43 // pred_check
        %p563 = pneg %p114
      $region46: #{unet3d1d_forward.49} parent=43 // pred_check_branch
        %565 = sbr.rel (%p563) target = $region48
      $region47: #{unet3d1d_forward.49} parent=43 // pred_region
        %p566 = scmp.lt.s32.totalorder %s21, 3
        %s567 = scalar_select %p566, %s21, 3
        %p568 = scmp.lt.s32.totalorder %s22, 3
        %s569 = scalar_select %p568, %s22, 3
        %s570 = smul.addr %s569, 4
        %s571 = smul.addr %s567, 16
        %s572 = sadd.s32 %s570, %s571
        %s573 = smul.addr %s572, 4
        %s574 = scalar_lea.vmem %s2, %s573
      $region48: #{unet3d1d_forward.49} parent=43 // pred_fallthru
        _
    $region44: #{unet3d1d_forward.49} parent=5 // pred_fallthru
      _
  $region6: #{unet3d1d_forward.49} parent=0 // loop_footer
    %s12 = sadd.s32 1, %s8
  $region7: #{unet3d1d_forward.49} parent=0 // loop_footer_branch
    %7 = sbr.rel target = $region3
  $region8: #{unet3d1d_forward.49} parent=0 // loop_exit
    _

// kernel: unet3d1d_forward.52
$region0: #{unet3d1d_forward.52}
  #allocation0 [shape = 'u32[]', space=smem, size = 0x4, offset = 0x4, fixed_abs, tag = 'smem constant byte address 0x4 - core index']
  #allocation1 [shape = 'u32[144,128]{1,0:T(1,128)}', space=vmem, size = 0x12000, scoped, tag = 'internal scratch']
  %s0 = inlined_call_operand.vmem [shape: bf16[1,32,8], index: 0, kind: input, shape index: {}]
  %s1 = inlined_call_operand.vmem [shape: bf16[8,8], index: 1, kind: input, shape index: {}]
  %s2 = inlined_call_operand.vmem [shape: f32[1,8], index: 2, kind: input, shape index: {}]
  %s3 = inlined_call_operand.vmem [shape: bf16[1,32,8], index: 3, kind: output, shape index: {}]
  %s4 = sld [smem:[#allocation0]]
  $region22: #{unet3d1d_forward.52} parent=0
    _
  %s6 = ssub.s32 1, %s4
  %s7 = scalar_select 0, %s6, %s4
  // Predicated region
  $region2: #{unet3d1d_forward.52} parent=0 // pred_check
    _
  $region3: #{unet3d1d_forward.52} parent=0 // pred_check_branch
    %9 = sbr.rel (0) target = $region5
  $region4: #{unet3d1d_forward.52} parent=0 // pred_region
    _
  $region5: #{unet3d1d_forward.52} parent=0 // pred_fallthru
    _
  // Predicated region
  $region6: #{unet3d1d_forward.52} parent=0 // pred_check
    _
  $region7: #{unet3d1d_forward.52} parent=0 // pred_check_branch
    %11 = sbr.rel (0) target = $region9
  $region8: #{unet3d1d_forward.52} parent=0 // pred_region
    _
  $region9: #{unet3d1d_forward.52} parent=0 // pred_fallthru
    _
  // Predicated region
  $region10: #{unet3d1d_forward.52} parent=0 // pred_check
    _
  $region11: #{unet3d1d_forward.52} parent=0 // pred_check_branch
    %13 = sbr.rel (0) target = $region13
  $region12: #{unet3d1d_forward.52} parent=0 // pred_region
    _
  $region13: #{unet3d1d_forward.52} parent=0 // pred_fallthru
    _
  %v15 = vld [vmem:[%s0] sm:$0xf]
  %v16 = vld [vmem:[%s0 + $0x4] sm:$0xf]
  %v17 = vld [vmem:[%s0 + $0x8] sm:$0xf]
  %v18 = vld [vmem:[%s0 + $0xc] sm:$0xf]
  %v19 = vld [vmem:[%s1] sm:$0xf]
  %v20 = vld [vmem:[%s2] sm:$0x1]
  %v22 = vlaneseq
  %v23 = vshrl.u32 %v22, 7
  %v24 = vsub.s32 0, %v23
  %v25 = vrot.slane %v20, %v24
  %v31 = vunpack.c.l.b16 %v15
  %v32 = vunpack.c.l.b16 %v16
  %v33 = vunpack.c.l.b16 %v17
  %v34 = vunpack.c.l.b16 %v18
  %v35 = vpack.c.b16 %v32, %v31
  %v36 = vpack.c.b16 %v34, %v33
  %vm37 = vcmask 64512
  %v39 = vsel %vm37, %v35, 0
  %v42 = vsel %vm37, %v36, 0
  %vm44 = vcmask 1043456
  %v46 = vsel %vm44, %v19, 0
  %48 = vmatprep.subr.bf16.mxu0 0
  %49 = vmatpush1.bf16.msra.mxu0 0
  %50 = vmatprep.subr.bf16.mxu0 0
  %51 = vmatpush1.bf16.msra.mxu0 0
  %52 = vmatprep.subr.bf16.mxu0 0
  %53 = vmatpush1.bf16.msra.mxu0 0
  %54 = vmatprep.subr.bf16.mxu0 0
  %55 = vmatpush1.bf16.msra.mxu0 0
  %56 = vmatprep.subr.bf16.mxu0 0
  %57 = vmatpush1.bf16.msra.mxu0 0
  %58 = vmatprep.subr.bf16.mxu0 0
  %59 = vmatpush1.bf16.msra.mxu0 0
  %60 = vmatprep.subr.bf16.mxu0 0
  %61 = vmatpush1.bf16.msra.mxu0 0
  %62 = vmatprep.subr.bf16.mxu0 0
  %63 = vmatpush1.bf16.msra.mxu0 %v46
  %64 = vmatprep.subr.bf16.mxu0 0
  %65 = vmatpush2.bf16.msra.mxu0 0
  %66 = vmatprep.subr.bf16.mxu0 0
  %67 = vmatpush2.bf16.msra.mxu0 0
  %68 = vmatprep.subr.bf16.mxu0 0
  %69 = vmatpush2.bf16.msra.mxu0 0
  %70 = vmatprep.subr.bf16.mxu0 0
  %71 = vmatpush2.bf16.msra.mxu0 0
  %72 = vmatprep.subr.bf16.mxu0 0
  %73 = vmatpush2.bf16.msra.mxu0 0
  %74 = vmatprep.subr.bf16.mxu0 0
  %75 = vmatpush2.bf16.msra.mxu0 0
  %76 = vmatprep.subr.bf16.mxu0 0
  %77 = vmatpush2.bf16.msra.mxu0 0
  %78 = vmatprep.subr.bf16.mxu0 0
  %79 = vmatpush2.bf16.msra.mxu0 0
  %80 = vmatprep.mubr.bf16.mxu0 0
  %81 = vmatmul.mubr.bf16.gmra.mxu0 %v39
  %v82 = vpop.f32.mrf.mxu0
  %v83 = vadd.f32 %v25, %v82
  %v84 = vpop.f32.mrf.mxu0
  %v85 = vpop.f32.mrf.mxu0
  %v86 = vadd.f32 %v25, %v85
  %v87 = vpop.f32.mrf.mxu0
  %88 = vmatprep.mubr.bf16.mxu0 0
  %89 = vmatmul.mubr.bf16.gmra.mxu0 %v42
  %v90 = vpop.f32.mrf.mxu0
  %v91 = vadd.f32 %v25, %v90
  %v92 = vpop.f32.mrf.mxu0
  %v93 = vpop.f32.mrf.mxu0
  %v94 = vadd.f32 %v25, %v93
  %v95 = vpop.f32.mrf.mxu0
  %96 = vdwg.mxu0
  %v97 = vpack.c.bf16 %v86, %v83
  %v98 = vpack.c.bf16 %v94, %v91
  %v101 = vunpack.c.l.b16 %v97
  %v102 = vunpack.c.h.b16 %v97
  %v103 = vunpack.c.l.b16 %v98
  %v104 = vunpack.c.h.b16 %v98
  %v105 = vpack.c.b16 %v101, %v101
  %v106 = vpack.c.b16 %v102, %v102
  %v107 = vpack.c.b16 %v103, %v103
  %v108 = vpack.c.b16 %v104, %v104
  %vm113 = vcmask 60416
  %114 = vst.msk [vmem:[%s3] sm:$0xf] %vm113, %v105
  %115 = vst.msk [vmem:[%s3 + $0x4] sm:$0xf] %vm113, %v106
  %116 = vst.msk [vmem:[%s3 + $0x8] sm:$0xf] %vm113, %v107
  %117 = vst.msk [vmem:[%s3 + $0xc] sm:$0xf] %vm113, %v108
  // Predicated region
  $region14: #{unet3d1d_forward.52} parent=0 // pred_check
    _
  $region15: #{unet3d1d_forward.52} parent=0 // pred_check_branch
    %119 = sbr.rel (0) target = $region17
  $region16: #{unet3d1d_forward.52} parent=0 // pred_region
    _
  $region17: #{unet3d1d_forward.52} parent=0 // pred_fallthru
    _
  // Predicated region
  $region18: #{unet3d1d_forward.52} parent=0 // pred_check
    _
  $region19: #{unet3d1d_forward.52} parent=0 // pred_check_branch
    %121 = sbr.rel (0) target = $region21
  $region20: #{unet3d1d_forward.52} parent=0 // pred_region
    _
  $region21: #{unet3d1d_forward.52} parent=0 // pred_fallthru
    _

// kernel: unet3d1d_forward.53
$region0: #{unet3d1d_forward.53}
  #allocation0 [shape = 'u32[]', space=smem, size = 0x4, offset = 0x4, fixed_abs, tag = 'smem constant byte address 0x4 - core index']
  #allocation1 [shape = 'u32[144,128]{1,0:T(1,128)}', space=vmem, size = 0x12000, scoped, tag = 'internal scratch']
  #allocation2 [shape = 'f32[16,16]{1,0:T(8,128)}', space=vmem, size = 0x2000, scoped, tag = 'scratch operand']
  %s0 = inlined_call_operand.vmem [shape: bf16[4,4,32,24], index: 0, kind: input, shape index: {}]
  %s1 = inlined_call_operand.vmem [shape: bf16[3,3,24,16], index: 1, kind: input, shape index: {}]
  %s2 = inlined_call_operand.vmem [shape: bf16[4,2,16,16], index: 2, kind: output, shape index: {}]
  %s3 = sld [smem:[#allocation0]]
  $region49: #{unet3d1d_forward.53} parent=0
    _
  %s5 = ssub.s32 1, %s3
  %s6 = scalar_select 0, %s5, %s3
  loop: start=0, step=1, limit=26
  $region2: #{unet3d1d_forward.53} parent=0 // loop_pre_header
    _
  $region3: #{unet3d1d_forward.53} parent=0 // loop_header
    %s8 = sphi 0, %s12
    %p9 = scmp.ge.s32.totalorder %s8, 26
    %s15 = sphi 0, %s34
    %s16 = sphi 0, %s30
    %s17 = sphi 0, %s26
    %s18 = sphi 0, %s15
    %s19 = sphi 0, %s16
    %s20 = sphi 0, %s17
    %s21 = sphi 0, %s18
    %s22 = sphi 0, %s19
    %s23 = sphi 0, %s20
    %s41 = sphi 0, %s43
    %s44 = sphi 0, %s41
    %s45 = sphi 0, %s44
    %s61 = sphi 0, %s45
    %s67 = sphi 0, %s69
    %s70 = sphi 0, %s67
    %s71 = sphi 0, %s70
    %s87 = sphi 0, %s71
    %s95 = sphi 0, %s97
    %s98 = sphi 0, %s95
    %s99 = sphi 0, %s98
    %s115 = sphi 0, %s99
  $region4: #{unet3d1d_forward.53} parent=0 // loop_header_branch
    %11 = sbr.rel (%p9) target = $region8
  $region5: #{unet3d1d_forward.53} parent=0 // loop_body
    %s13 = ssub.s32 %s8, 1
    %s14 = ssub.s32 %s8, 2
    %s24 = sadd.s32 1, %s17
    %p25 = scmp.ge.s32.totalorder %s24, 3
    %s26 = scalar_select %p25, 0, %s24
    %s27 = sadd.s32 1, %s16
    %s28 = scalar_select %p25, %s27, %s16
    %p29 = scmp.ge.s32.totalorder %s28, 2
    %s30 = scalar_select %p29, 0, %s28
    %s31 = sadd.s32 1, %s15
    %s32 = scalar_select %p29, %s31, %s15
    %p33 = scmp.ge.s32.totalorder %s32, 4
    %s34 = scalar_select %p33, 0, %s32
    %s35 = sadd.s32 %s16, %s17
    %s36 = sadd.s32 %s30, %s26
    %s37 = ssub.s32 %s15, %s34
    %s38 = ssub.s32 %s35, %s36
    %s39 = sor.u32 %s37, %s38
    %p40 = scmp.eq.s32.totalorder %s39, 0
    %s42 = sadd.s32 %s41, 1
    %s43 = scalar_select %p40, %s41, %s42
    %p46 = pneg %p40
    %p47 = scmp.eq.s32.totalorder %s8, 23
    %p48 = por %p46, %p47
    %p49 = scmp.ne.s32.totalorder %s41, %s44
    %p50 = scmp.eq.s32.totalorder %s8, 0
    %p51 = por %p49, %p50
    %p52 = scmp.ne.s32.totalorder %s41, %s44
    %p53 = scmp.eq.s32.totalorder %s13, 23
    %p54 = por %p52, %p53
    %p55 = scmp.ne.s32.totalorder %s44, %s45
    %p56 = scmp.eq.s32.totalorder %s13, 0
    %p57 = por %p55, %p56
    %p58 = scmp.ne.s32.totalorder %s44, %s45
    %p59 = scmp.eq.s32.totalorder %s14, 23
    %p60 = por %p58, %p59
    %p62 = scmp.ne.s32.totalorder %s45, %s61
    %p63 = scmp.eq.s32.totalorder %s14, 0
    %p64 = por %p62, %p63
    %s65 = ssub.s32 %s17, %s26
    %p66 = scmp.eq.s32.totalorder %s65, 0
    %s68 = sadd.s32 %s67, 1
    %s69 = scalar_select %p66, %s67, %s68
    %p72 = pneg %p66
    %p73 = scmp.eq.s32.totalorder %s8, 23
    %p74 = por %p72, %p73
    %p75 = scmp.ne.s32.totalorder %s67, %s70
    %p76 = scmp.eq.s32.totalorder %s8, 0
    %p77 = por %p75, %p76
    %p78 = scmp.ne.s32.totalorder %s67, %s70
    %p79 = scmp.eq.s32.totalorder %s13, 23
    %p80 = por %p78, %p79
    %p81 = scmp.ne.s32.totalorder %s70, %s71
    %p82 = scmp.eq.s32.totalorder %s13, 0
    %p83 = por %p81, %p82
    %p84 = scmp.ne.s32.totalorder %s70, %s71
    %p85 = scmp.eq.s32.totalorder %s14, 23
    %p86 = por %p84, %p85
    %p88 = scmp.ne.s32.totalorder %s71, %s87
    %p89 = scmp.eq.s32.totalorder %s14, 0
    %p90 = por %p88, %p89
    %s91 = ssub.s32 %s15, %s34
    %s92 = ssub.s32 %s16, %s30
    %s93 = sor.u32 %s91, %s92
    %p94 = scmp.eq.s32.totalorder %s93, 0
    %s96 = sadd.s32 %s95, 1
    %s97 = scalar_select %p94, %s95, %s96
    %p100 = pneg %p94
    %p101 = scmp.eq.s32.totalorder %s8, 23
    %p102 = por %p100, %p101
    %p103 = scmp.ne.s32.totalorder %s95, %s98
    %p104 = scmp.eq.s32.totalorder %s8, 0
    %p105 = por %p103, %p104
    %p106 = scmp.ne.s32.totalorder %s95, %s98
    %p107 = scmp.eq.s32.totalorder %s13, 23
    %p108 = por %p106, %p107
    %p109 = scmp.ne.s32.totalorder %s98, %s99
    %p110 = scmp.eq.s32.totalorder %s13, 0
    %p111 = por %p109, %p110
    %p112 = scmp.ne.s32.totalorder %s98, %s99
    %p113 = scmp.eq.s32.totalorder %s14, 23
    %p114 = por %p112, %p113
    %p116 = scmp.ne.s32.totalorder %s99, %s115
    %p117 = scmp.eq.s32.totalorder %s14, 0
    %p118 = por %p116, %p117
    %p119 = scmp.le.s32.totalorder 1, %s8
    %p120 = scmp.lt.s32.totalorder %s8, 25
    %p121 = pnand %p119, %p120
    %p122 = pneg %p121
    // Predicated region
    $region9: #{unet3d1d_forward.53} parent=5 // pred_check
      _
    $region10: #{unet3d1d_forward.53} parent=5 // pred_check_branch
      %124 = sbr.rel (%p121) target = $region12
    $region11: #{unet3d1d_forward.53} parent=5 // pred_region
      %s125 = ssub.s32 %s8, 1
    $region12: #{unet3d1d_forward.53} parent=5 // pred_fallthru
      _
    %p126 = scmp.lt.s32.totalorder %s8, 24
    // Predicated region
    $region13: #{unet3d1d_forward.53} parent=5 // pred_check
      %p127 = pneg %p126
    $region14: #{unet3d1d_forward.53} parent=5 // pred_check_branch
      %129 = sbr.rel (%p127) target = $region16
    $region15: #{unet3d1d_forward.53} parent=5 // pred_region
      // Predicated region
      $region17: #{unet3d1d_forward.53} parent=15 // pred_check
        %p130 = pneg %p51
      $region18: #{unet3d1d_forward.53} parent=15 // pred_check_branch
        %132 = sbr.rel (%p130) target = $region20
      $region19: #{unet3d1d_forward.53} parent=15 // pred_region
        %s133 = sadd.s32 %s16, %s17
        %p134 = scmp.lt.s32.totalorder %s15, 3
        %s135 = scalar_select %p134, %s15, 3
        %p136 = scmp.lt.s32.totalorder %s133, 3
        %s137 = scalar_select %p136, %s133, 3
        %s138 = smul.addr %s137, 4
        %s139 = smul.addr %s135, 16
        %s140 = sadd.s32 %s138, %s139
        %s141 = smul.addr %s140, 4
        %s142 = scalar_lea.vmem %s0, %s141
        %s143 = sadd.s32 %s16, %s17
      $region20: #{unet3d1d_forward.53} parent=15 // pred_fallthru
        _
      // Predicated region
      $region21: #{unet3d1d_forward.53} parent=15 // pred_check
        %p144 = pneg %p77
      $region22: #{unet3d1d_forward.53} parent=15 // pred_check_branch
        %146 = sbr.rel (%p144) target = $region24
      $region23: #{unet3d1d_forward.53} parent=15 // pred_region
        %p147 = scmp.lt.s32.totalorder %s17, 2
        %s148 = scalar_select %p147, %s17, 2
        %s149 = smul.addr %s148, 9
        %s150 = smul.addr %s149, 4
        %s151 = scalar_lea.vmem %s1, %s150
      $region24: #{unet3d1d_forward.53} parent=15 // pred_fallthru
        _
    $region16: #{unet3d1d_forward.53} parent=5 // pred_fallthru
      _
    %p152 = scmp.le.s32.totalorder 1, %s8
    %p153 = scmp.lt.s32.totalorder %s8, 25
    %p154 = pnand %p152, %p153
    %p155 = pneg %p154
    // Predicated region
    $region25: #{unet3d1d_forward.53} parent=5 // pred_check
      _
    $region26: #{unet3d1d_forward.53} parent=5 // pred_check_branch
      %157 = sbr.rel (%p154) target = $region28
    $region27: #{unet3d1d_forward.53} parent=5 // pred_region
      %s158 = ssub.s32 %s8, 1
      %s159 = sadd.s32 %s19, %s20
      %p160 = scmp.lt.s32.totalorder %s18, 3
      %s161 = scalar_select %p160, %s18, 3
      %p162 = scmp.lt.s32.totalorder %s159, 3
      %s163 = scalar_select %p162, %s159, 3
      %s164 = smul.addr %s163, 4
      %s165 = smul.addr %s161, 16
      %s166 = sadd.s32 %s164, %s165
      %s167 = smul.addr %s166, 4
      %s168 = scalar_lea.vmem %s0, %s167
      %p169 = pneg %p57
      %p170 = pneg %p54
      %p171 = scmp.lt.s32.totalorder %s20, 2
      %s172 = scalar_select %p171, %s20, 2
      %s173 = smul.addr %s172, 9
      %s174 = smul.addr %s173, 4
      %s175 = scalar_lea.vmem %s1, %s174
      %p176 = pneg %p83
      %p177 = pneg %p80
      %p178 = pneg %p111
      %p179 = pneg %p108
      %p180 = scmp.lt.s32.totalorder %s18, 3
      %s181 = scalar_select %p180, %s18, 3
      %p182 = scmp.lt.s32.totalorder %s19, 1
      %s183 = scalar_select %p182, %s19, 1
      %s184 = smul.addr %s183, 2
      %s185 = smul.addr %s181, 4
      %s186 = sadd.s32 %s184, %s185
      %s187 = smul.addr %s186, 4
      %s188 = scalar_lea.vmem %s2, %s187
      %s189 = sadd.s32 %s19, %s20
      %p190 = scmp.lt.s32.totalorder %s18, 3
      %s191 = scalar_select %p190, %s18, 3
      %p192 = scmp.lt.s32.totalorder %s189, 3
      %s193 = scalar_select %p192, %s189, 3
      %s194 = smul.addr %s193, 4
      %s195 = smul.addr %s191, 16
      %s196 = sadd.s32 %s194, %s195
      %s197 = smul.addr %s196, 4
      %s198 = scalar_lea.vmem %s0, %s197
      %s199 = sadd.s32 %s19, %s20
      %p200 = scmp.lt.s32.totalorder %s20, 2
      %s201 = scalar_select %p200, %s20, 2
      %s202 = smul.addr %s201, 9
      %s203 = smul.addr %s202, 4
      %s204 = scalar_lea.vmem %s1, %s203
      %p205 = scmp.lt.s32.totalorder %s18, 3
      %s206 = scalar_select %p205, %s18, 3
      %p207 = scmp.lt.s32.totalorder %s19, 1
      %s208 = scalar_select %p207, %s19, 1
      %s209 = smul.addr %s208, 2
      %s210 = smul.addr %s206, 4
      %s211 = sadd.s32 %s209, %s210
      %s212 = smul.addr %s211, 4
      %s213 = scalar_lea.vmem %s2, %s212
      %p215 = scmp.eq.s32.totalorder %s20, 0
      // Predicated region
      $region29: #{unet3d1d_forward.53} parent=27 // pred_check
        %p216 = pneg %p215
      $region30: #{unet3d1d_forward.53} parent=27 // pred_check_branch
        %218 = sbr.rel (%p216) target = $region32
      $region31: #{unet3d1d_forward.53} parent=27 // pred_region
        %vm219 = vcmask 130048
        %220 = vst.msk [vmem:[#allocation2] sm:$0xff] %vm219, 0.0
        %221 = vst.msk [vmem:[#allocation2 + $0x8] sm:$0xff] %vm219, 0.0
      $region32: #{unet3d1d_forward.53} parent=27 // pred_fallthru
        _
      %v222 = vld [vmem:[#allocation2] sm:$0xff]
      %v223 = vld [vmem:[#allocation2 + $0x8] sm:$0xff]
      %v224 = vld [vmem:[%s198] sm:$0xf]
      %v225 = vld [vmem:[%s198 + $0x4] sm:$0xf]
      %v226 = vld [vmem:[%s204] sm:$0xf]
      %v227 = vld [vmem:[%s204 + $0x4] sm:$0xf]
      %v228 = vld [vmem:[%s204 + $0x8] sm:$0xf]
      %v231 = vunpack.c.l.b16 %v224
      %v232 = vunpack.c.l.b16 %v225
      %v233 = vpack.c.b16 %v232, %v231
      %v237 = vunpack.c.l.b16 %v226
      %v238 = vunpack.c.l.b16 %v227
      %v239 = vunpack.c.l.b16 %v228
      %v240 = vpack.c.b16 %v238, %v237
      %v241 = vpack.c.b16 %v239, %v239
      %vm243 = vcmask 195584
      %v245 = vsel %vm243, %v233, 0
      %vm247 = vcmask 1043456
      %v249 = vsel %vm247, %v241, 0
      %251 = vmatprep.subr.bf16.mxu0 0
      %252 = vmatpush1.bf16.msra.mxu0 0
      %253 = vmatprep.subr.bf16.mxu0 0
      %254 = vmatpush1.bf16.msra.mxu0 0
      %255 = vmatprep.subr.bf16.mxu0 0
      %256 = vmatpush1.bf16.msra.mxu0 0
      %257 = vmatprep.subr.bf16.mxu0 0
      %258 = vmatpush1.bf16.msra.mxu0 0
      %259 = vmatprep.subr.bf16.mxu0 0
      %260 = vmatpush1.bf16.msra.mxu0 0
      %261 = vmatprep.subr.bf16.mxu0 0
      %262 = vmatpush1.bf16.msra.mxu0 0
      %263 = vmatprep.subr.bf16.mxu0 0
      %264 = vmatpush1.bf16.msra.mxu0 %v249
      %265 = vmatprep.subr.bf16.mxu0 0
      %266 = vmatpush1.bf16.msra.mxu0 %v240
      %267 = vmatprep.subr.bf16.mxu0 0
      %268 = vmatpush2.bf16.msra.mxu0 0
      %269 = vmatprep.subr.bf16.mxu0 0
      %270 = vmatpush2.bf16.msra.mxu0 0
      %271 = vmatprep.subr.bf16.mxu0 0
      %272 = vmatpush2.bf16.msra.mxu0 0
      %273 = vmatprep.subr.bf16.mxu0 0
      %274 = vmatpush2.bf16.msra.mxu0 0
      %275 = vmatprep.subr.bf16.mxu0 0
      %276 = vmatpush2.bf16.msra.mxu0 0
      %277 = vmatprep.subr.bf16.mxu0 0
      %278 = vmatpush2.bf16.msra.mxu0 0
      %279 = vmatprep.subr.bf16.mxu0 0
      %280 = vmatpush2.bf16.msra.mxu0 0
      %281 = vmatprep.subr.bf16.mxu0 0
      %282 = vmatpush2.bf16.msra.mxu0 0
      %283 = vmatprep.mubr.bf16.mxu0 0
      %284 = vmatmul.mubr.bf16.gmra.mxu0 %v245
      %v285 = vpop.f32.mrf.mxu0
      %v286 = vadd.f32 0.0, %v285
      %v287 = vpop.f32.mrf.mxu0
      %v288 = vpop.f32.mrf.mxu0
      %v289 = vadd.f32 0.0, %v288
      %v290 = vpop.f32.mrf.mxu0
      %291 = vdwg.mxu0
      %v292 = vadd.f32 %v222, %v286
      %v293 = vadd.f32 %v223, %v289
      %vm294 = vcmask 130048
      %295 = vst.msk [vmem:[#allocation2] sm:$0xff] %vm294, %v292
      %296 = vst.msk [vmem:[#allocation2 + $0x8] sm:$0xff] %vm294, %v293
      %v297 = vld [vmem:[#allocation2] sm:$0xff]
      %v298 = vld [vmem:[#allocation2 + $0x8] sm:$0xff]
      %v299 = vld [vmem:[%s198 + $0x4] sm:$0xf]
      %v300 = vld [vmem:[%s198 + $0x8] sm:$0xf]
      %s301 = scalar_lea.vmem %s204, 12
      %v302 = vld [vmem:[%s301] sm:$0xf]
      %v303 = vld [vmem:[%s301 + $0x4] sm:$0xf]
      %v304 = vld [vmem:[%s301 + $0x8] sm:$0xf]
      %v307 = vunpack.c.l.b16 %v299
      %v308 = vunpack.c.l.b16 %v300
      %v309 = vpack.c.b16 %v308, %v307
      %v313 = vunpack.c.l.b16 %v302
      %v314 = vunpack.c.l.b16 %v303
      %v315 = vunpack.c.l.b16 %v304
      %v316 = vpack.c.b16 %v314, %v313
      %v317 = vpack.c.b16 %v315, %v315
      %v320 = vsel %vm243, %v309, 0
      %v323 = vsel %vm247, %v317, 0
      %325 = vmatprep.subr.bf16.mxu0 0
      %326 = vmatpush1.bf16.msra.mxu0 0
      %327 = vmatprep.subr.bf16.mxu0 0
      %328 = vmatpush1.bf16.msra.mxu0 0
      %329 = vmatprep.subr.bf16.mxu0 0
      %330 = vmatpush1.bf16.msra.mxu0 0
      %331 = vmatprep.subr.bf16.mxu0 0
      %332 = vmatpush1.bf16.msra.mxu0 0
      %333 = vmatprep.subr.bf16.mxu0 0
      %334 = vmatpush1.bf16.msra.mxu0 0
      %335 = vmatprep.subr.bf16.mxu0 0
      %336 = vmatpush1.bf16.msra.mxu0 0
      %337 = vmatprep.subr.bf16.mxu0 0
      %338 = vmatpush1.bf16.msra.mxu0 %v323
      %339 = vmatprep.subr.bf16.mxu0 0
      %340 = vmatpush1.bf16.msra.mxu0 %v316
      %341 = vmatprep.subr.bf16.mxu0 0
      %342 = vmatpush2.bf16.msra.mxu0 0
      %343 = vmatprep.subr.bf16.mxu0 0
      %344 = vmatpush2.bf16.msra.mxu0 0
      %345 = vmatprep.subr.bf16.mxu0 0
      %346 = vmatpush2.bf16.msra.mxu0 0
      %347 = vmatprep.subr.bf16.mxu0 0
      %348 = vmatpush2.bf16.msra.mxu0 0
      %349 = vmatprep.subr.bf16.mxu0 0
      %350 = vmatpush2.bf16.msra.mxu0 0
      %351 = vmatprep.subr.bf16.mxu0 0
      %352 = vmatpush2.bf16.msra.mxu0 0
      %353 = vmatprep.subr.bf16.mxu0 0
      %354 = vmatpush2.bf16.msra.mxu0 0
      %355 = vmatprep.subr.bf16.mxu0 0
      %356 = vmatpush2.bf16.msra.mxu0 0
      %357 = vmatprep.mubr.bf16.mxu0 0
      %358 = vmatmul.mubr.bf16.gmra.mxu0 %v320
      %v359 = vpop.f32.mrf.mxu0
      %v360 = vadd.f32 0.0, %v359
      %v361 = vpop.f32.mrf.mxu0
      %v362 = vpop.f32.mrf.mxu0
      %v363 = vadd.f32 0.0, %v362
      %v364 = vpop.f32.mrf.mxu0
      %365 = vdwg.mxu0
      %v366 = vadd.f32 %v297, %v360
      %v367 = vadd.f32 %v298, %v363
      %368 = vst.msk [vmem:[#allocation2] sm:$0xff] %vm294, %v366
      %369 = vst.msk [vmem:[#allocation2 + $0x8] sm:$0xff] %vm294, %v367
      %v370 = vld [vmem:[#allocation2] sm:$0xff]
      %v371 = vld [vmem:[#allocation2 + $0x8] sm:$0xff]
      %v372 = vld [vmem:[%s198 + $0x8] sm:$0xf]
      %v373 = vld [vmem:[%s198 + $0xc] sm:$0xf]
      %s374 = scalar_lea.vmem %s204, 24
      %v375 = vld [vmem:[%s374] sm:$0xf]
      %v376 = vld [vmem:[%s374 + $0x4] sm:$0xf]
      %v377 = vld [vmem:[%s374 + $0x8] sm:$0xf]
      %v380 = vunpack.c.l.b16 %v372
      %v381 = vunpack.c.l.b16 %v373
      %v382 = vpack.c.b16 %v381, %v380
      %v386 = vunpack.c.l.b16 %v375
      %v387 = vunpack.c.l.b16 %v376
      %v388 = vunpack.c.l.b16 %v377
      %v389 = vpack.c.b16 %v387, %v386
      %v390 = vpack.c.b16 %v388, %v388
      %v393 = vsel %vm243, %v382, 0
      %v396 = vsel %vm247, %v390, 0
      %398 = vmatprep.subr.bf16.mxu0 0
      %399 = vmatpush1.bf16.msra.mxu0 0
      %400 = vmatprep.subr.bf16.mxu0 0
      %401 = vmatpush1.bf16.msra.mxu0 0
      %402 = vmatprep.subr.bf16.mxu0 0
      %403 = vmatpush1.bf16.msra.mxu0 0
      %404 = vmatprep.subr.bf16.mxu0 0
      %405 = vmatpush1.bf16.msra.mxu0 0
      %406 = vmatprep.subr.bf16.mxu0 0
      %407 = vmatpush1.bf16.msra.mxu0 0
      %408 = vmatprep.subr.bf16.mxu0 0
      %409 = vmatpush1.bf16.msra.mxu0 0
      %410 = vmatprep.subr.bf16.mxu0 0
      %411 = vmatpush1.bf16.msra.mxu0 %v396
      %412 = vmatprep.subr.bf16.mxu0 0
      %413 = vmatpush1.bf16.msra.mxu0 %v389
      %414 = vmatprep.subr.bf16.mxu0 0
      %415 = vmatpush2.bf16.msra.mxu0 0
      %416 = vmatprep.subr.bf16.mxu0 0
      %417 = vmatpush2.bf16.msra.mxu0 0
      %418 = vmatprep.subr.bf16.mxu0 0
      %419 = vmatpush2.bf16.msra.mxu0 0
      %420 = vmatprep.subr.bf16.mxu0 0
      %421 = vmatpush2.bf16.msra.mxu0 0
      %422 = vmatprep.subr.bf16.mxu0 0
      %423 = vmatpush2.bf16.msra.mxu0 0
      %424 = vmatprep.subr.bf16.mxu0 0
      %425 = vmatpush2.bf16.msra.mxu0 0
      %426 = vmatprep.subr.bf16.mxu0 0
      %427 = vmatpush2.bf16.msra.mxu0 0
      %428 = vmatprep.subr.bf16.mxu0 0
      %429 = vmatpush2.bf16.msra.mxu0 0
      %430 = vmatprep.mubr.bf16.mxu0 0
      %431 = vmatmul.mubr.bf16.gmra.mxu0 %v393
      %v432 = vpop.f32.mrf.mxu0
      %v433 = vadd.f32 0.0, %v432
      %v434 = vpop.f32.mrf.mxu0
      %v435 = vpop.f32.mrf.mxu0
      %v436 = vadd.f32 0.0, %v435
      %v437 = vpop.f32.mrf.mxu0
      %438 = vdwg.mxu0
      %v439 = vadd.f32 %v370, %v433
      %v440 = vadd.f32 %v371, %v436
      %441 = vst.msk [vmem:[#allocation2] sm:$0xff] %vm294, %v439
      %442 = vst.msk [vmem:[#allocation2 + $0x8] sm:$0xff] %vm294, %v440
      %p443 = scmp.eq.s32.totalorder %s20, 2
      // Predicated region
      $region33: #{unet3d1d_forward.53} parent=27 // pred_check
        %p444 = pneg %p443
      $region34: #{unet3d1d_forward.53} parent=27 // pred_check_branch
        %446 = sbr.rel (%p444) target = $region36
      $region35: #{unet3d1d_forward.53} parent=27 // pred_region
        %v447 = vld [vmem:[#allocation2] sm:$0xff]
        %v448 = vld [vmem:[#allocation2 + $0x8] sm:$0xff]
        %v449 = vpack.c.bf16 %v448, %v447
        %v451 = vunpack.c.l.b16 %v449
        %v452 = vunpack.c.h.b16 %v449
        %v453 = vpack.c.b16 %v451, %v451
        %v454 = vpack.c.b16 %v452, %v452
        %vm457 = vcmask 125952
        %458 = vst.msk [vmem:[%s213] sm:$0xf] %vm457, %v453
        %459 = vst.msk [vmem:[%s213 + $0x4] sm:$0xf] %vm457, %v454
      $region36: #{unet3d1d_forward.53} parent=27 // pred_fallthru
        _
      %p460 = scmp.lt.s32.totalorder %s18, 3
      %s461 = scalar_select %p460, %s18, 3
      %p462 = scmp.lt.s32.totalorder %s19, 1
      %s463 = scalar_select %p462, %s19, 1
      %s464 = smul.addr %s463, 2
      %s465 = smul.addr %s461, 4
      %s466 = sadd.s32 %s464, %s465
      %s467 = smul.addr %s466, 4
      %s468 = scalar_lea.vmem %s2, %s467
      // Predicated region
      $region37: #{unet3d1d_forward.53} parent=27 // pred_check
        %p469 = pneg %p108
      $region38: #{unet3d1d_forward.53} parent=27 // pred_check_branch
        %471 = sbr.rel (%p469) target = $region40
      $region39: #{unet3d1d_forward.53} parent=27 // pred_region
        _
      $region40: #{unet3d1d_forward.53} parent=27 // pred_fallthru
        _
    $region28: #{unet3d1d_forward.53} parent=5 // pred_fallthru
      _
    %p472 = scmp.le.s32.totalorder 2, %s8
    // Predicated region
    $region41: #{unet3d1d_forward.53} parent=5 // pred_check
      %p473 = pneg %p472
    $region42: #{unet3d1d_forward.53} parent=5 // pred_check_branch
      %475 = sbr.rel (%p473) target = $region44
    $region43: #{unet3d1d_forward.53} parent=5 // pred_region
      %s476 = ssub.s32 %s8, 2
      // Predicated region
      $region45: #{unet3d1d_forward.53} parent=43 // pred_check
        %p477 = pneg %p114
      $region46: #{unet3d1d_forward.53} parent=43 // pred_check_branch
        %479 = sbr.rel (%p477) target = $region48
      $region47: #{unet3d1d_forward.53} parent=43 // pred_region
        %p480 = scmp.lt.s32.totalorder %s21, 3
        %s481 = scalar_select %p480, %s21, 3
        %p482 = scmp.lt.s32.totalorder %s22, 1
        %s483 = scalar_select %p482, %s22, 1
        %s484 = smul.addr %s483, 2
        %s485 = smul.addr %s481, 4
        %s486 = sadd.s32 %s484, %s485
        %s487 = smul.addr %s486, 4
        %s488 = scalar_lea.vmem %s2, %s487
      $region48: #{unet3d1d_forward.53} parent=43 // pred_fallthru
        _
    $region44: #{unet3d1d_forward.53} parent=5 // pred_fallthru
      _
  $region6: #{unet3d1d_forward.53} parent=0 // loop_footer
    %s12 = sadd.s32 1, %s8
  $region7: #{unet3d1d_forward.53} parent=0 // loop_footer_branch
    %7 = sbr.rel target = $region3
  $region8: #{unet3d1d_forward.53} parent=0 // loop_exit
    _

// kernel: mul.113
$region0: #{mul.113}
  #allocation0 [shape = 's32[1]{0}', space=sflag, size = 0x4, scoped, tag = 'scoped memory for mul.113']
  %s0 = inlined_call_operand.vmem [shape: f32[2,16], index: 0, kind: input, shape index: {}]
  %s1 = inlined_call_operand.vmem [shape: f32[2,16], index: 1, kind: input, shape index: {}]
  %s2 = inlined_call_operand.vmem [shape: f32[2,16], index: 2, kind: output, shape index: {}]
  %v3 = vld [vmem:[%s0] sm:$0x3]
  %v4 = vld [vmem:[%s1] sm:$0x3]
  %5 = xla_tuple %v3, %v4
  %6 = xla_tuple %5
  %v7 = vmul.f32 %v3, %v4
  %8 = xla_tuple %v7
  %9 = vst [vmem:[%s2] sm:$0x3] %v7

// kernel: unet3d1d_forward.54
$region0: #{unet3d1d_forward.54}
  #allocation0 [shape = 'u32[]', space=smem, size = 0x4, offset = 0x4, fixed_abs, tag = 'smem constant byte address 0x4 - core index']
  #allocation1 [shape = 'u32[144,128]{1,0:T(1,128)}', space=vmem, size = 0x12000, scoped, tag = 'internal scratch']
  %s0 = inlined_call_operand.vmem [shape: bf16[2,8,256], index: 0, kind: input, shape index: {}]
  %s1 = inlined_call_operand.vmem [shape: f32[2,2,256], index: 1, kind: output, shape index: {}]
  %s2 = sld [smem:[#allocation0]]
  $region41: #{unet3d1d_forward.54} parent=0
    _
  %s4 = ssub.s32 1, %s2
  %s5 = scalar_select 0, %s4, %s2
  loop: start=0, step=1, limit=4
  $region2: #{unet3d1d_forward.54} parent=0 // loop_pre_header
    _
  $region3: #{unet3d1d_forward.54} parent=0 // loop_header
    %s7 = sphi 0, %s11
    %p8 = scmp.ge.s32.totalorder %s7, 4
    %s14 = sphi 0, %s26
    %s15 = sphi 0, %s22
    %s16 = sphi 0, %s14
    %s17 = sphi 0, %s15
    %s18 = sphi 0, %s16
    %s19 = sphi 0, %s17
    %s31 = sphi 0, %s33
    %s34 = sphi 0, %s31
    %s35 = sphi 0, %s34
    %s51 = sphi 0, %s35
    %s57 = sphi 0, %s59
    %s60 = sphi 0, %s57
    %s61 = sphi 0, %s60
    %s77 = sphi 0, %s61
  $region4: #{unet3d1d_forward.54} parent=0 // loop_header_branch
    %10 = sbr.rel (%p8) target = $region8
  $region5: #{unet3d1d_forward.54} parent=0 // loop_body
    %s12 = ssub.s32 %s7, 1
    %s13 = ssub.s32 %s7, 2
    %s20 = sadd.s32 1, %s15
    %p21 = scmp.ge.s32.totalorder %s20, 1
    %s22 = scalar_select %p21, 0, %s20
    %s23 = sadd.s32 1, %s14
    %s24 = scalar_select %p21, %s23, %s14
    %p25 = scmp.ge.s32.totalorder %s24, 2
    %s26 = scalar_select %p25, 0, %s24
    %s27 = ssub.s32 %s14, %s26
    %s28 = ssub.s32 %s15, %s22
    %s29 = sor.u32 %s27, %s28
    %p30 = scmp.eq.s32.totalorder %s29, 0
    %s32 = sadd.s32 %s31, 1
    %s33 = scalar_select %p30, %s31, %s32
    %p36 = pneg %p30
    %p37 = scmp.eq.s32.totalorder %s7, 1
    %p38 = por %p36, %p37
    %p39 = scmp.ne.s32.totalorder %s31, %s34
    %p40 = scmp.eq.s32.totalorder %s7, 0
    %p41 = por %p39, %p40
    %p42 = scmp.ne.s32.totalorder %s31, %s34
    %p43 = scmp.eq.s32.totalorder %s12, 1
    %p44 = por %p42, %p43
    %p45 = scmp.ne.s32.totalorder %s34, %s35
    %p46 = scmp.eq.s32.totalorder %s12, 0
    %p47 = por %p45, %p46
    %p48 = scmp.ne.s32.totalorder %s34, %s35
    %p49 = scmp.eq.s32.totalorder %s13, 1
    %p50 = por %p48, %p49
    %p52 = scmp.ne.s32.totalorder %s35, %s51
    %p53 = scmp.eq.s32.totalorder %s13, 0
    %p54 = por %p52, %p53
    %s55 = ssub.s32 %s14, %s26
    %p56 = scmp.eq.s32.totalorder %s55, 0
    %s58 = sadd.s32 %s57, 1
    %s59 = scalar_select %p56, %s57, %s58
    %p62 = pneg %p56
    %p63 = scmp.eq.s32.totalorder %s7, 1
    %p64 = por %p62, %p63
    %p65 = scmp.ne.s32.totalorder %s57, %s60
    %p66 = scmp.eq.s32.totalorder %s7, 0
    %p67 = por %p65, %p66
    %p68 = scmp.ne.s32.totalorder %s57, %s60
    %p69 = scmp.eq.s32.totalorder %s12, 1
    %p70 = por %p68, %p69
    %p71 = scmp.ne.s32.totalorder %s60, %s61
    %p72 = scmp.eq.s32.totalorder %s12, 0
    %p73 = por %p71, %p72
    %p74 = scmp.ne.s32.totalorder %s60, %s61
    %p75 = scmp.eq.s32.totalorder %s13, 1
    %p76 = por %p74, %p75
    %p78 = scmp.ne.s32.totalorder %s61, %s77
    %p79 = scmp.eq.s32.totalorder %s13, 0
    %p80 = por %p78, %p79
    %p81 = scmp.le.s32.totalorder 1, %s7
    %p82 = scmp.lt.s32.totalorder %s7, 3
    %p83 = pnand %p81, %p82
    %p84 = pneg %p83
    // Predicated region
    $region9: #{unet3d1d_forward.54} parent=5 // pred_check
      _
    $region10: #{unet3d1d_forward.54} parent=5 // pred_check_branch
      %86 = sbr.rel (%p83) target = $region12
    $region11: #{unet3d1d_forward.54} parent=5 // pred_region
      %s87 = ssub.s32 %s7, 1
    $region12: #{unet3d1d_forward.54} parent=5 // pred_fallthru
      _
    %p88 = scmp.lt.s32.totalorder %s7, 2
    // Predicated region
    $region13: #{unet3d1d_forward.54} parent=5 // pred_check
      %p89 = pneg %p88
    $region14: #{unet3d1d_forward.54} parent=5 // pred_check_branch
      %91 = sbr.rel (%p89) target = $region16
    $region15: #{unet3d1d_forward.54} parent=5 // pred_region
      // Predicated region
      $region17: #{unet3d1d_forward.54} parent=15 // pred_check
        %p92 = pneg %p41
      $region18: #{unet3d1d_forward.54} parent=15 // pred_check_branch
        %94 = sbr.rel (%p92) target = $region20
      $region19: #{unet3d1d_forward.54} parent=15 // pred_region
        %p95 = scmp.lt.s32.totalorder %s14, 1
        %s96 = scalar_select %p95, %s14, 1
        %p97 = scmp.lt.s32.totalorder %s15, 0
        %s98 = scalar_select %p97, %s15, 0
        %s99 = smul.addr %s98, 2
        %s100 = smul.addr %s96, 2
        %s101 = sadd.s32 %s99, %s100
        %s102 = smul.addr %s101, 4
        %s103 = scalar_lea.vmem %s0, %s102
      $region20: #{unet3d1d_forward.54} parent=15 // pred_fallthru
        _
    $region16: #{unet3d1d_forward.54} parent=5 // pred_fallthru
      _
    %p104 = scmp.le.s32.totalorder 1, %s7
    %p105 = scmp.lt.s32.totalorder %s7, 3
    %p106 = pnand %p104, %p105
    %p107 = pneg %p106
    // Predicated region
    $region21: #{unet3d1d_forward.54} parent=5 // pred_check
      _
    $region22: #{unet3d1d_forward.54} parent=5 // pred_check_branch
      %109 = sbr.rel (%p106) target = $region24
    $region23: #{unet3d1d_forward.54} parent=5 // pred_region
      %s110 = ssub.s32 %s7, 1
      %p111 = scmp.lt.s32.totalorder %s16, 1
      %s112 = scalar_select %p111, %s16, 1
      %p113 = scmp.lt.s32.totalorder %s17, 0
      %s114 = scalar_select %p113, %s17, 0
      %s115 = smul.addr %s114, 2
      %s116 = smul.addr %s112, 2
      %s117 = sadd.s32 %s115, %s116
      %s118 = smul.addr %s117, 4
      %s119 = scalar_lea.vmem %s0, %s118
      %p120 = pneg %p47
      %p121 = pneg %p44
      %p122 = pneg %p73
      %p123 = pneg %p70
      %p124 = scmp.lt.s32.totalorder %s16, 1
      %s125 = scalar_select %p124, %s16, 1
      %s126 = smul.addr %s125, 2
      %s127 = smul.addr %s126, 2
      %s128 = scalar_lea.vmem %s1, %s127
      %p129 = scmp.lt.s32.totalorder %s16, 1
      %s130 = scalar_select %p129, %s16, 1
      %p131 = scmp.lt.s32.totalorder %s17, 0
      %s132 = scalar_select %p131, %s17, 0
      %s133 = smul.addr %s132, 2
      %s134 = smul.addr %s130, 2
      %s135 = sadd.s32 %s133, %s134
      %s136 = smul.addr %s135, 4
      %s137 = scalar_lea.vmem %s0, %s136
      %p138 = scmp.lt.s32.totalorder %s16, 1
      %s139 = scalar_select %p138, %s16, 1
      %s140 = smul.addr %s139, 2
      %s141 = smul.addr %s140, 2
      %s142 = scalar_lea.vmem %s1, %s141
      %p143 = scmp.eq.s32.totalorder %s17, 0
      // Predicated region
      $region25: #{unet3d1d_forward.54} parent=23 // pred_check
        %p144 = pneg %p143
      $region26: #{unet3d1d_forward.54} parent=23 // pred_check_branch
        %146 = sbr.rel (%p144) target = $region28
      $region27: #{unet3d1d_forward.54} parent=23 // pred_region
        %147 = vst [vmem:[%s142] sm:$0xf] 0.0
      $region28: #{unet3d1d_forward.54} parent=23 // pred_fallthru
        _
      %v148 = vld [vmem:[%s137] sm:$0xff]
      %v149 = vunpack.c.l.bf16 %v148
      %v150 = vunpack.c.h.bf16 %v148
      %v151 = vrot.slane %v149, 4
      %v152 = vadd.f32 %v149, %v151
      %v153 = vrot.slane %v152, 2
      %v154 = vadd.f32 %v152, %v153
      %v155 = vrot.slane %v154, 1
      %v156 = vadd.f32 %v154, %v155
      %v157 = vrot.slane %v150, 4
      %v158 = vadd.f32 %v150, %v157
      %v159 = vrot.slane %v158, 2
      %v160 = vadd.f32 %v158, %v159
      %v161 = vrot.slane %v160, 1
      %v162 = vadd.f32 %v160, %v161
      %v163 = vmul.f32 %v149, %v149
      %v164 = vmul.f32 %v150, %v150
      %v165 = vrot.slane %v163, 4
      %v166 = vadd.f32 %v163, %v165
      %v167 = vrot.slane %v166, 2
      %v168 = vadd.f32 %v166, %v167
      %v169 = vrot.slane %v168, 1
      %v170 = vadd.f32 %v168, %v169
      %v171 = vrot.slane %v164, 4
      %v172 = vadd.f32 %v164, %v171
      %v173 = vrot.slane %v172, 2
      %v174 = vadd.f32 %v172, %v173
      %v175 = vrot.slane %v174, 1
      %v176 = vadd.f32 %v174, %v175
      %v177 = vld [vmem:[%s142] sm:$0xf]
      %vm178 = vcmask 1040384
      %v179 = vsel %vm178, %v156, %v170
      %v180 = vsel %vm178, %v162, %v176
      %v183 = vcombine.low %v179, %v180
      %v185 = vunpack.c.l.s4 1983009808
      %v186 = vunpack.c.0.s8 %v185
      %v187 = vlaneseq
      %v188 = vshrl.u32 %v187, 7
      %v189 = vsub.s32 %v186, %v188
      %v190 = vrot.slane %v183, %v189
      %v192 = vadd.f32 %v177, %v190
      %193 = vst [vmem:[%s142] sm:$0xf] %v192
      %p194 = scmp.lt.s32.totalorder %s16, 1
      %s195 = scalar_select %p194, %s16, 1
      %s196 = smul.addr %s195, 2
      %s197 = smul.addr %s196, 2
      %s198 = scalar_lea.vmem %s1, %s197
      // Predicated region
      $region29: #{unet3d1d_forward.54} parent=23 // pred_check
        %p199 = pneg %p70
      $region30: #{unet3d1d_forward.54} parent=23 // pred_check_branch
        %201 = sbr.rel (%p199) target = $region32
      $region31: #{unet3d1d_forward.54} parent=23 // pred_region
        _
      $region32: #{unet3d1d_forward.54} parent=23 // pred_fallthru
        _
    $region24: #{unet3d1d_forward.54} parent=5 // pred_fallthru
      _
    %p202 = scmp.le.s32.totalorder 2, %s7
    // Predicated region
    $region33: #{unet3d1d_forward.54} parent=5 // pred_check
      %p203 = pneg %p202
    $region34: #{unet3d1d_forward.54} parent=5 // pred_check_branch
      %205 = sbr.rel (%p203) target = $region36
    $region35: #{unet3d1d_forward.54} parent=5 // pred_region
      %s206 = ssub.s32 %s7, 2
      // Predicated region
      $region37: #{unet3d1d_forward.54} parent=35 // pred_check
        %p207 = pneg %p76
      $region38: #{unet3d1d_forward.54} parent=35 // pred_check_branch
        %209 = sbr.rel (%p207) target = $region40
      $region39: #{unet3d1d_forward.54} parent=35 // pred_region
        %p210 = scmp.lt.s32.totalorder %s18, 1
        %s211 = scalar_select %p210, %s18, 1
        %s212 = smul.addr %s211, 2
        %s213 = smul.addr %s212, 2
        %s214 = scalar_lea.vmem %s1, %s213
      $region40: #{unet3d1d_forward.54} parent=35 // pred_fallthru
        _
    $region36: #{unet3d1d_forward.54} parent=5 // pred_fallthru
      _
  $region6: #{unet3d1d_forward.54} parent=0 // loop_footer
    %s11 = sadd.s32 1, %s7
  $region7: #{unet3d1d_forward.54} parent=0 // loop_footer_branch
    %6 = sbr.rel target = $region3
  $region8: #{unet3d1d_forward.54} parent=0 // loop_exit
    _

// kernel: unet3d1d_forward.55
$region0: #{unet3d1d_forward.55}
  #allocation0 [shape = 'u32[]', space=smem, size = 0x4, offset = 0x4, fixed_abs, tag = 'smem constant byte address 0x4 - core index']
  #allocation1 [shape = 'u32[144,128]{1,0:T(1,128)}', space=vmem, size = 0x12000, scoped, tag = 'internal scratch']
  %s0 = inlined_call_operand.vmem [shape: bf16[2,8,256], index: 0, kind: input, shape index: {}]
  %s1 = inlined_call_operand.vmem [shape: f32[2,1,256], index: 1, kind: input, shape index: {}]
  %s2 = inlined_call_operand.vmem [shape: f32[2,1,256], index: 2, kind: input, shape index: {}]
  %s3 = inlined_call_operand.vmem [shape: bf16[2,8,256], index: 3, kind: output, shape index: {}]
  %s4 = sld [smem:[#allocation0]]
  $region45: #{unet3d1d_forward.55} parent=0
    _
  %s6 = ssub.s32 1, %s4
  %s7 = scalar_select 0, %s6, %s4
  loop: start=0, step=1, limit=4
  $region2: #{unet3d1d_forward.55} parent=0 // loop_pre_header
    _
  $region3: #{unet3d1d_forward.55} parent=0 // loop_header
    %s9 = sphi 0, %s13
    %p10 = scmp.ge.s32.totalorder %s9, 4
    %s16 = sphi 0, %s28
    %s17 = sphi 0, %s24
    %s18 = sphi 0, %s16
    %s19 = sphi 0, %s17
    %s20 = sphi 0, %s18
    %s21 = sphi 0, %s19
    %s33 = sphi 0, %s35
    %s36 = sphi 0, %s33
    %s37 = sphi 0, %s36
    %s53 = sphi 0, %s37
    %s59 = sphi 0, %s61
    %s62 = sphi 0, %s59
    %s63 = sphi 0, %s62
    %s79 = sphi 0, %s63
    %s85 = sphi 0, %s87
    %s88 = sphi 0, %s85
    %s89 = sphi 0, %s88
    %s105 = sphi 0, %s89
    %s113 = sphi 0, %s115
    %s116 = sphi 0, %s113
    %s117 = sphi 0, %s116
    %s133 = sphi 0, %s117
  $region4: #{unet3d1d_forward.55} parent=0 // loop_header_branch
    %12 = sbr.rel (%p10) target = $region8
  $region5: #{unet3d1d_forward.55} parent=0 // loop_body
    %s14 = ssub.s32 %s9, 1
    %s15 = ssub.s32 %s9, 2
    %s22 = sadd.s32 1, %s17
    %p23 = scmp.ge.s32.totalorder %s22, 1
    %s24 = scalar_select %p23, 0, %s22
    %s25 = sadd.s32 1, %s16
    %s26 = scalar_select %p23, %s25, %s16
    %p27 = scmp.ge.s32.totalorder %s26, 2
    %s28 = scalar_select %p27, 0, %s26
    %s29 = ssub.s32 %s16, %s28
    %s30 = ssub.s32 %s17, %s24
    %s31 = sor.u32 %s29, %s30
    %p32 = scmp.eq.s32.totalorder %s31, 0
    %s34 = sadd.s32 %s33, 1
    %s35 = scalar_select %p32, %s33, %s34
    %p38 = pneg %p32
    %p39 = scmp.eq.s32.totalorder %s9, 1
    %p40 = por %p38, %p39
    %p41 = scmp.ne.s32.totalorder %s33, %s36
    %p42 = scmp.eq.s32.totalorder %s9, 0
    %p43 = por %p41, %p42
    %p44 = scmp.ne.s32.totalorder %s33, %s36
    %p45 = scmp.eq.s32.totalorder %s14, 1
    %p46 = por %p44, %p45
    %p47 = scmp.ne.s32.totalorder %s36, %s37
    %p48 = scmp.eq.s32.totalorder %s14, 0
    %p49 = por %p47, %p48
    %p50 = scmp.ne.s32.totalorder %s36, %s37
    %p51 = scmp.eq.s32.totalorder %s15, 1
    %p52 = por %p50, %p51
    %p54 = scmp.ne.s32.totalorder %s37, %s53
    %p55 = scmp.eq.s32.totalorder %s15, 0
    %p56 = por %p54, %p55
    %s57 = ssub.s32 %s16, %s28
    %p58 = scmp.eq.s32.totalorder %s57, 0
    %s60 = sadd.s32 %s59, 1
    %s61 = scalar_select %p58, %s59, %s60
    %p64 = pneg %p58
    %p65 = scmp.eq.s32.totalorder %s9, 1
    %p66 = por %p64, %p65
    %p67 = scmp.ne.s32.totalorder %s59, %s62
    %p68 = scmp.eq.s32.totalorder %s9, 0
    %p69 = por %p67, %p68
    %p70 = scmp.ne.s32.totalorder %s59, %s62
    %p71 = scmp.eq.s32.totalorder %s14, 1
    %p72 = por %p70, %p71
    %p73 = scmp.ne.s32.totalorder %s62, %s63
    %p74 = scmp.eq.s32.totalorder %s14, 0
    %p75 = por %p73, %p74
    %p76 = scmp.ne.s32.totalorder %s62, %s63
    %p77 = scmp.eq.s32.totalorder %s15, 1
    %p78 = por %p76, %p77
    %p80 = scmp.ne.s32.totalorder %s63, %s79
    %p81 = scmp.eq.s32.totalorder %s15, 0
    %p82 = por %p80, %p81
    %s83 = ssub.s32 %s16, %s28
    %p84 = scmp.eq.s32.totalorder %s83, 0
    %s86 = sadd.s32 %s85, 1
    %s87 = scalar_select %p84, %s85, %s86
    %p90 = pneg %p84
    %p91 = scmp.eq.s32.totalorder %s9, 1
    %p92 = por %p90, %p91
    %p93 = scmp.ne.s32.totalorder %s85, %s88
    %p94 = scmp.eq.s32.totalorder %s9, 0
    %p95 = por %p93, %p94
    %p96 = scmp.ne.s32.totalorder %s85, %s88
    %p97 = scmp.eq.s32.totalorder %s14, 1
    %p98 = por %p96, %p97
    %p99 = scmp.ne.s32.totalorder %s88, %s89
    %p100 = scmp.eq.s32.totalorder %s14, 0
    %p101 = por %p99, %p100
    %p102 = scmp.ne.s32.totalorder %s88, %s89
    %p103 = scmp.eq.s32.totalorder %s15, 1
    %p104 = por %p102, %p103
    %p106 = scmp.ne.s32.totalorder %s89, %s105
    %p107 = scmp.eq.s32.totalorder %s15, 0
    %p108 = por %p106, %p107
    %s109 = ssub.s32 %s16, %s28
    %s110 = ssub.s32 %s17, %s24
    %s111 = sor.u32 %s109, %s110
    %p112 = scmp.eq.s32.totalorder %s111, 0
    %s114 = sadd.s32 %s113, 1
    %s115 = scalar_select %p112, %s113, %s114
    %p118 = pneg %p112
    %p119 = scmp.eq.s32.totalorder %s9, 1
    %p120 = por %p118, %p119
    %p121 = scmp.ne.s32.totalorder %s113, %s116
    %p122 = scmp.eq.s32.totalorder %s9, 0
    %p123 = por %p121, %p122
    %p124 = scmp.ne.s32.totalorder %s113, %s116
    %p125 = scmp.eq.s32.totalorder %s14, 1
    %p126 = por %p124, %p125
    %p127 = scmp.ne.s32.totalorder %s116, %s117
    %p128 = scmp.eq.s32.totalorder %s14, 0
    %p129 = por %p127, %p128
    %p130 = scmp.ne.s32.totalorder %s116, %s117
    %p131 = scmp.eq.s32.totalorder %s15, 1
    %p132 = por %p130, %p131
    %p134 = scmp.ne.s32.totalorder %s117, %s133
    %p135 = scmp.eq.s32.totalorder %s15, 0
    %p136 = por %p134, %p135
    %p137 = scmp.le.s32.totalorder 1, %s9
    %p138 = scmp.lt.s32.totalorder %s9, 3
    %p139 = pnand %p137, %p138
    %p140 = pneg %p139
    // Predicated region
    $region9: #{unet3d1d_forward.55} parent=5 // pred_check
      _
    $region10: #{unet3d1d_forward.55} parent=5 // pred_check_branch
      %142 = sbr.rel (%p139) target = $region12
    $region11: #{unet3d1d_forward.55} parent=5 // pred_region
      %s143 = ssub.s32 %s9, 1
    $region12: #{unet3d1d_forward.55} parent=5 // pred_fallthru
      _
    %p144 = scmp.lt.s32.totalorder %s9, 2
    // Predicated region
    $region13: #{unet3d1d_forward.55} parent=5 // pred_check
      %p145 = pneg %p144
    $region14: #{unet3d1d_forward.55} parent=5 // pred_check_branch
      %147 = sbr.rel (%p145) target = $region16
    $region15: #{unet3d1d_forward.55} parent=5 // pred_region
      // Predicated region
      $region17: #{unet3d1d_forward.55} parent=15 // pred_check
        %p148 = pneg %p43
      $region18: #{unet3d1d_forward.55} parent=15 // pred_check_branch
        %150 = sbr.rel (%p148) target = $region20
      $region19: #{unet3d1d_forward.55} parent=15 // pred_region
        %p151 = scmp.lt.s32.totalorder %s16, 1
        %s152 = scalar_select %p151, %s16, 1
        %p153 = scmp.lt.s32.totalorder %s17, 0
        %s154 = scalar_select %p153, %s17, 0
        %s155 = smul.addr %s154, 2
        %s156 = smul.addr %s152, 2
        %s157 = sadd.s32 %s155, %s156
        %s158 = smul.addr %s157, 4
        %s159 = scalar_lea.vmem %s0, %s158
      $region20: #{unet3d1d_forward.55} parent=15 // pred_fallthru
        _
      // Predicated region
      $region21: #{unet3d1d_forward.55} parent=15 // pred_check
        %p160 = pneg %p69
      $region22: #{unet3d1d_forward.55} parent=15 // pred_check_branch
        %162 = sbr.rel (%p160) target = $region24
      $region23: #{unet3d1d_forward.55} parent=15 // pred_region
        %p163 = scmp.lt.s32.totalorder %s16, 1
        %s164 = scalar_select %p163, %s16, 1
        %s165 = smul.addr %s164, 2
        %s166 = scalar_lea.vmem %s1, %s165
      $region24: #{unet3d1d_forward.55} parent=15 // pred_fallthru
        _
      // Predicated region
      $region25: #{unet3d1d_forward.55} parent=15 // pred_check
        %p167 = pneg %p95
      $region26: #{unet3d1d_forward.55} parent=15 // pred_check_branch
        %169 = sbr.rel (%p167) target = $region28
      $region27: #{unet3d1d_forward.55} parent=15 // pred_region
        %p170 = scmp.lt.s32.totalorder %s16, 1
        %s171 = scalar_select %p170, %s16, 1
        %s172 = smul.addr %s171, 2
        %s173 = scalar_lea.vmem %s2, %s172
      $region28: #{unet3d1d_forward.55} parent=15 // pred_fallthru
        _
    $region16: #{unet3d1d_forward.55} parent=5 // pred_fallthru
      _
    %p174 = scmp.le.s32.totalorder 1, %s9
    %p175 = scmp.lt.s32.totalorder %s9, 3
    %p176 = pnand %p174, %p175
    %p177 = pneg %p176
    // Predicated region
    $region29: #{unet3d1d_forward.55} parent=5 // pred_check
      _
    $region30: #{unet3d1d_forward.55} parent=5 // pred_check_branch
      %179 = sbr.rel (%p176) target = $region32
    $region31: #{unet3d1d_forward.55} parent=5 // pred_region
      %s180 = ssub.s32 %s9, 1
      %p181 = scmp.lt.s32.totalorder %s18, 1
      %s182 = scalar_select %p181, %s18, 1
      %p183 = scmp.lt.s32.totalorder %s19, 0
      %s184 = scalar_select %p183, %s19, 0
      %s185 = smul.addr %s184, 2
      %s186 = smul.addr %s182, 2
      %s187 = sadd.s32 %s185, %s186
      %s188 = smul.addr %s187, 4
      %s189 = scalar_lea.vmem %s0, %s188
      %p190 = pneg %p49
      %p191 = pneg %p46
      %p192 = scmp.lt.s32.totalorder %s18, 1
      %s193 = scalar_select %p192, %s18, 1
      %s194 = smul.addr %s193, 2
      %s195 = scalar_lea.vmem %s1, %s194
      %p196 = pneg %p75
      %p197 = pneg %p72
      %p198 = scmp.lt.s32.totalorder %s18, 1
      %s199 = scalar_select %p198, %s18, 1
      %s200 = smul.addr %s199, 2
      %s201 = scalar_lea.vmem %s2, %s200
      %p202 = pneg %p101
      %p203 = pneg %p98
      %p204 = pneg %p129
      %p205 = pneg %p126
      %p206 = scmp.lt.s32.totalorder %s18, 1
      %s207 = scalar_select %p206, %s18, 1
      %p208 = scmp.lt.s32.totalorder %s19, 0
      %s209 = scalar_select %p208, %s19, 0
      %s210 = smul.addr %s209, 2
      %s211 = smul.addr %s207, 2
      %s212 = sadd.s32 %s210, %s211
      %s213 = smul.addr %s212, 4
      %s214 = scalar_lea.vmem %s3, %s213
      %p215 = scmp.lt.s32.totalorder %s18, 1
      %s216 = scalar_select %p215, %s18, 1
      %p217 = scmp.lt.s32.totalorder %s19, 0
      %s218 = scalar_select %p217, %s19, 0
      %s219 = smul.addr %s218, 2
      %s220 = smul.addr %s216, 2
      %s221 = sadd.s32 %s219, %s220
      %s222 = smul.addr %s221, 4
      %s223 = scalar_lea.vmem %s0, %s222
      %p224 = scmp.lt.s32.totalorder %s18, 1
      %s225 = scalar_select %p224, %s18, 1
      %s226 = smul.addr %s225, 2
      %s227 = scalar_lea.vmem %s1, %s226
      %p228 = scmp.lt.s32.totalorder %s18, 1
      %s229 = scalar_select %p228, %s18, 1
      %s230 = smul.addr %s229, 2
      %s231 = scalar_lea.vmem %s2, %s230
      %p232 = scmp.lt.s32.totalorder %s18, 1
      %s233 = scalar_select %p232, %s18, 1
      %p234 = scmp.lt.s32.totalorder %s19, 0
      %s235 = scalar_select %p234, %s19, 0
      %s236 = smul.addr %s235, 2
      %s237 = smul.addr %s233, 2
      %s238 = sadd.s32 %s236, %s237
      %s239 = smul.addr %s238, 4
      %s240 = scalar_lea.vmem %s3, %s239
      %v241 = vld [vmem:[%s223] sm:$0xff]
      %v242 = vunpack.c.l.bf16 %v241
      %v243 = vunpack.c.h.bf16 %v241
      %v244 = vld [vmem:[%s227] sm:$0x3]
      %v246 = vlaneseq
      %v247 = vshrl.u32 %v246, 7
      %v248 = vsub.s32 0, %v247
      %v249 = vrot.slane %v244, %v248
      %v250 = vlaneseq
      %v251 = vshrl.u32 %v250, 7
      %v252 = vsub.s32 1, %v251
      %v253 = vrot.slane %v244, %v252
      %v256 = vmul.f32 %v242, %v249
      %v257 = vmul.f32 %v243, %v253
      %v258 = vld [vmem:[%s231] sm:$0x3]
      %v260 = vlaneseq
      %v261 = vshrl.u32 %v260, 7
      %v262 = vsub.s32 0, %v261
      %v263 = vrot.slane %v258, %v262
      %v264 = vlaneseq
      %v265 = vshrl.u32 %v264, 7
      %v266 = vsub.s32 1, %v265
      %v267 = vrot.slane %v258, %v266
      %v270 = vadd.f32 %v256, %v263
      %v271 = vadd.f32 %v257, %v267
      %vm272 = vcmp.ge.f32.partialorder %v270, 0.0
      %vm273 = vcmp.ge.f32.partialorder %v271, 0.0
      %v274 = vmul.f32 %v270, 0.2
      %v275 = vmul.f32 %v271, 0.2
      %v276 = vsel %vm272, %v270, %v274
      %v277 = vsel %vm273, %v271, %v275
      %v278 = vpack.c.bf16 %v276, %v276
      %v279 = vpack.c.bf16 %v277, %v277
      %v282 = vunpack.c.l.b16 %v278
      %v283 = vunpack.c.l.b16 %v279
      %v284 = vpack.c.b16 %v283, %v282
      %286 = vst [vmem:[%s240] sm:$0xff] %v284
      %p287 = scmp.lt.s32.totalorder %s18, 1
      %s288 = scalar_select %p287, %s18, 1
      %p289 = scmp.lt.s32.totalorder %s19, 0
      %s290 = scalar_select %p289, %s19, 0
      %s291 = smul.addr %s290, 2
      %s292 = smul.addr %s288, 2
      %s293 = sadd.s32 %s291, %s292
      %s294 = smul.addr %s293, 4
      %s295 = scalar_lea.vmem %s3, %s294
      // Predicated region
      $region33: #{unet3d1d_forward.55} parent=31 // pred_check
        %p296 = pneg %p126
      $region34: #{unet3d1d_forward.55} parent=31 // pred_check_branch
        %298 = sbr.rel (%p296) target = $region36
      $region35: #{unet3d1d_forward.55} parent=31 // pred_region
        _
      $region36: #{unet3d1d_forward.55} parent=31 // pred_fallthru
        _
    $region32: #{unet3d1d_forward.55} parent=5 // pred_fallthru
      _
    %p299 = scmp.le.s32.totalorder 2, %s9
    // Predicated region
    $region37: #{unet3d1d_forward.55} parent=5 // pred_check
      %p300 = pneg %p299
    $region38: #{unet3d1d_forward.55} parent=5 // pred_check_branch
      %302 = sbr.rel (%p300) target = $region40
    $region39: #{unet3d1d_forward.55} parent=5 // pred_region
      %s303 = ssub.s32 %s9, 2
      // Predicated region
      $region41: #{unet3d1d_forward.55} parent=39 // pred_check
        %p304 = pneg %p132
      $region42: #{unet3d1d_forward.55} parent=39 // pred_check_branch
        %306 = sbr.rel (%p304) target = $region44
      $region43: #{unet3d1d_forward.55} parent=39 // pred_region
        %p307 = scmp.lt.s32.totalorder %s20, 1
        %s308 = scalar_select %p307, %s20, 1
        %p309 = scmp.lt.s32.totalorder %s21, 0
        %s310 = scalar_select %p309, %s21, 0
        %s311 = smul.addr %s310, 2
        %s312 = smul.addr %s308, 2
        %s313 = sadd.s32 %s311, %s312
        %s314 = smul.addr %s313, 4
        %s315 = scalar_lea.vmem %s3, %s314
      $region44: #{unet3d1d_forward.55} parent=39 // pred_fallthru
        _
    $region40: #{unet3d1d_forward.55} parent=5 // pred_fallthru
      _
  $region6: #{unet3d1d_forward.55} parent=0 // loop_footer
    %s13 = sadd.s32 1, %s9
  $region7: #{unet3d1d_forward.55} parent=0 // loop_footer_branch
    %8 = sbr.rel target = $region3
  $region8: #{unet3d1d_forward.55} parent=0 // loop_exit
    _

// kernel: unet3d1d_forward.59
$region0: #{unet3d1d_forward.59}
  #allocation0 [shape = 'u32[]', space=smem, size = 0x4, offset = 0x4, fixed_abs, tag = 'smem constant byte address 0x4 - core index']
  #allocation1 [shape = 'u32[144,128]{1,0:T(1,128)}', space=vmem, size = 0x12000, scoped, tag = 'internal scratch']
  %s0 = inlined_call_operand.vmem [shape: bf16[4,2,4,16], index: 0, kind: input, shape index: {}]
  %s1 = inlined_call_operand.vmem [shape: bf16[16,64], index: 1, kind: input, shape index: {}]
  %s2 = inlined_call_operand.vmem [shape: bf16[4,2,2,2,2,2,16], index: 2, kind: output, shape index: {}]
  %s3 = sld [smem:[#allocation0]]
  $region41: #{unet3d1d_forward.59} parent=0
    _
  %s5 = ssub.s32 1, %s3
  %s6 = scalar_select 0, %s5, %s3
  loop: start=0, step=1, limit=10
  $region2: #{unet3d1d_forward.59} parent=0 // loop_pre_header
    _
  $region3: #{unet3d1d_forward.59} parent=0 // loop_header
    %s8 = sphi 0, %s12
    %p9 = scmp.ge.s32.totalorder %s8, 10
    %s15 = sphi 0, %s27
    %s16 = sphi 0, %s23
    %s17 = sphi 0, %s15
    %s18 = sphi 0, %s16
    %s19 = sphi 0, %s17
    %s20 = sphi 0, %s18
    %s32 = sphi 0, %s34
    %s35 = sphi 0, %s32
    %s36 = sphi 0, %s35
    %s52 = sphi 0, %s36
    %s56 = sphi 0, %s56
    %s58 = sphi 0, %s56
    %s59 = sphi 0, %s58
    %s73 = sphi 0, %s59
    %s81 = sphi 0, %s83
    %s84 = sphi 0, %s81
    %s85 = sphi 0, %s84
    %s101 = sphi 0, %s85
  $region4: #{unet3d1d_forward.59} parent=0 // loop_header_branch
    %11 = sbr.rel (%p9) target = $region8
  $region5: #{unet3d1d_forward.59} parent=0 // loop_body
    %s13 = ssub.s32 %s8, 1
    %s14 = ssub.s32 %s8, 2
    %s21 = sadd.s32 1, %s16
    %p22 = scmp.ge.s32.totalorder %s21, 2
    %s23 = scalar_select %p22, 0, %s21
    %s24 = sadd.s32 1, %s15
    %s25 = scalar_select %p22, %s24, %s15
    %p26 = scmp.ge.s32.totalorder %s25, 4
    %s27 = scalar_select %p26, 0, %s25
    %s28 = ssub.s32 %s15, %s27
    %s29 = ssub.s32 %s16, %s23
    %s30 = sor.u32 %s28, %s29
    %p31 = scmp.eq.s32.totalorder %s30, 0
    %s33 = sadd.s32 %s32, 1
    %s34 = scalar_select %p31, %s32, %s33
    %p37 = pneg %p31
    %p38 = scmp.eq.s32.totalorder %s8, 7
    %p39 = por %p37, %p38
    %p40 = scmp.ne.s32.totalorder %s32, %s35
    %p41 = scmp.eq.s32.totalorder %s8, 0
    %p42 = por %p40, %p41
    %p43 = scmp.ne.s32.totalorder %s32, %s35
    %p44 = scmp.eq.s32.totalorder %s13, 7
    %p45 = por %p43, %p44
    %p46 = scmp.ne.s32.totalorder %s35, %s36
    %p47 = scmp.eq.s32.totalorder %s13, 0
    %p48 = por %p46, %p47
    %p49 = scmp.ne.s32.totalorder %s35, %s36
    %p50 = scmp.eq.s32.totalorder %s14, 7
    %p51 = por %p49, %p50
    %p53 = scmp.ne.s32.totalorder %s36, %s52
    %p54 = scmp.eq.s32.totalorder %s14, 0
    %p55 = por %p53, %p54
    %s57 = sadd.s32 %s56, 1
    %p60 = scmp.eq.s32.totalorder %s8, 7
    %p61 = scmp.ne.s32.totalorder %s56, %s58
    %p62 = scmp.eq.s32.totalorder %s8, 0
    %p63 = por %p61, %p62
    %p64 = scmp.ne.s32.totalorder %s56, %s58
    %p65 = scmp.eq.s32.totalorder %s13, 7
    %p66 = por %p64, %p65
    %p67 = scmp.ne.s32.totalorder %s58, %s59
    %p68 = scmp.eq.s32.totalorder %s13, 0
    %p69 = por %p67, %p68
    %p70 = scmp.ne.s32.totalorder %s58, %s59
    %p71 = scmp.eq.s32.totalorder %s14, 7
    %p72 = por %p70, %p71
    %p74 = scmp.ne.s32.totalorder %s59, %s73
    %p75 = scmp.eq.s32.totalorder %s14, 0
    %p76 = por %p74, %p75
    %s77 = ssub.s32 %s15, %s27
    %s78 = ssub.s32 %s16, %s23
    %s79 = sor.u32 %s77, %s78
    %p80 = scmp.eq.s32.totalorder %s79, 0
    %s82 = sadd.s32 %s81, 1
    %s83 = scalar_select %p80, %s81, %s82
    %p86 = pneg %p80
    %p87 = scmp.eq.s32.totalorder %s8, 7
    %p88 = por %p86, %p87
    %p89 = scmp.ne.s32.totalorder %s81, %s84
    %p90 = scmp.eq.s32.totalorder %s8, 0
    %p91 = por %p89, %p90
    %p92 = scmp.ne.s32.totalorder %s81, %s84
    %p93 = scmp.eq.s32.totalorder %s13, 7
    %p94 = por %p92, %p93
    %p95 = scmp.ne.s32.totalorder %s84, %s85
    %p96 = scmp.eq.s32.totalorder %s13, 0
    %p97 = por %p95, %p96
    %p98 = scmp.ne.s32.totalorder %s84, %s85
    %p99 = scmp.eq.s32.totalorder %s14, 7
    %p100 = por %p98, %p99
    %p102 = scmp.ne.s32.totalorder %s85, %s101
    %p103 = scmp.eq.s32.totalorder %s14, 0
    %p104 = por %p102, %p103
    %p105 = scmp.le.s32.totalorder 1, %s8
    %p106 = scmp.lt.s32.totalorder %s8, 9
    %p107 = pnand %p105, %p106
    %p108 = pneg %p107
    // Predicated region
    $region9: #{unet3d1d_forward.59} parent=5 // pred_check
      _
    $region10: #{unet3d1d_forward.59} parent=5 // pred_check_branch
      %110 = sbr.rel (%p107) target = $region12
    $region11: #{unet3d1d_forward.59} parent=5 // pred_region
      %s111 = ssub.s32 %s8, 1
      // Predicated region
      $region13: #{unet3d1d_forward.59} parent=11 // pred_check
        %p112 = pneg %p69
      $region14: #{unet3d1d_forward.59} parent=11 // pred_check_branch
        %114 = sbr.rel (%p112) target = $region16
      $region15: #{unet3d1d_forward.59} parent=11 // pred_region
        _
      $region16: #{unet3d1d_forward.59} parent=11 // pred_fallthru
        _
    $region12: #{unet3d1d_forward.59} parent=5 // pred_fallthru
      _
    %p115 = scmp.lt.s32.totalorder %s8, 8
    // Predicated region
    $region17: #{unet3d1d_forward.59} parent=5 // pred_check
      %p116 = pneg %p115
    $region18: #{unet3d1d_forward.59} parent=5 // pred_check_branch
      %118 = sbr.rel (%p116) target = $region20
    $region19: #{unet3d1d_forward.59} parent=5 // pred_region
      // Predicated region
      $region21: #{unet3d1d_forward.59} parent=19 // pred_check
        %p119 = pneg %p42
      $region22: #{unet3d1d_forward.59} parent=19 // pred_check_branch
        %121 = sbr.rel (%p119) target = $region24
      $region23: #{unet3d1d_forward.59} parent=19 // pred_region
        %p122 = scmp.lt.s32.totalorder %s15, 3
        %s123 = scalar_select %p122, %s15, 3
        %p124 = scmp.lt.s32.totalorder %s16, 1
        %s125 = scalar_select %p124, %s16, 1
        %s126 = smul.addr %s123, 2
        %s127 = sadd.s32 %s125, %s126
        %s128 = smul.addr %s127, 2
        %s129 = scalar_lea.vmem %s0, %s128
      $region24: #{unet3d1d_forward.59} parent=19 // pred_fallthru
        _
    $region20: #{unet3d1d_forward.59} parent=5 // pred_fallthru
      _
    %p130 = scmp.le.s32.totalorder 1, %s8
    %p131 = scmp.lt.s32.totalorder %s8, 9
    %p132 = pnand %p130, %p131
    %p133 = pneg %p132
    // Predicated region
    $region25: #{unet3d1d_forward.59} parent=5 // pred_check
      _
    $region26: #{unet3d1d_forward.59} parent=5 // pred_check_branch
      %135 = sbr.rel (%p132) target = $region28
    $region27: #{unet3d1d_forward.59} parent=5 // pred_region
      %s136 = ssub.s32 %s8, 1
      %p137 = scmp.lt.s32.totalorder %s17, 3
      %s138 = scalar_select %p137, %s17, 3
      %p139 = scmp.lt.s32.totalorder %s18, 1
      %s140 = scalar_select %p139, %s18, 1
      %s141 = smul.addr %s138, 2
      %s142 = sadd.s32 %s140, %s141
      %s143 = smul.addr %s142, 2
      %s144 = scalar_lea.vmem %s0, %s143
      %p145 = pneg %p48
      %p146 = pneg %p45
      %p147 = pneg %p69
      %p148 = pneg %p66
      %p149 = pneg %p97
      %p150 = pneg %p94
      %p151 = scmp.lt.s32.totalorder %s17, 3
      %s152 = scalar_select %p151, %s17, 3
      %p153 = scmp.lt.s32.totalorder %s18, 1
      %s154 = scalar_select %p153, %s18, 1
      %s155 = smul.addr %s154, 8
      %s156 = smul.addr %s152, 16
      %s157 = sadd.s32 %s155, %s156
      %s158 = scalar_lea.vmem %s2, %s157
      %p159 = scmp.lt.s32.totalorder %s17, 3
      %s160 = scalar_select %p159, %s17, 3
      %p161 = scmp.lt.s32.totalorder %s18, 1
      %s162 = scalar_select %p161, %s18, 1
      %s163 = smul.addr %s160, 2
      %s164 = sadd.s32 %s162, %s163
      %s165 = smul.addr %s164, 2
      %s166 = scalar_lea.vmem %s0, %s165
      %p167 = scmp.lt.s32.totalorder %s17, 3
      %s168 = scalar_select %p167, %s17, 3
      %p169 = scmp.lt.s32.totalorder %s18, 1
      %s170 = scalar_select %p169, %s18, 1
      %s171 = smul.addr %s170, 8
      %s172 = smul.addr %s168, 16
      %s173 = sadd.s32 %s171, %s172
      %s174 = scalar_lea.vmem %s2, %s173
      %v176 = vld [vmem:[%s166] sm:$0x3]
      %v177 = vld [vmem:[%s1] sm:$0xf]
      %v178 = vld [vmem:[%s1 + $0x4] sm:$0xf]
      %v181 = vunpack.c.l.b16 %v177
      %v182 = vunpack.c.l.b16 %v178
      %v183 = vpack.c.b16 %v182, %v181
      %vm185 = vcmask 130048
      %v187 = vsel %vm185, %v176, 0
      %189 = vmatprep.subr.bf16.mxu0 0
      %190 = vmatpush1.bf16.msra.mxu0 0
      %191 = vmatprep.subr.bf16.mxu0 0
      %192 = vmatpush1.bf16.msra.mxu0 0
      %193 = vmatprep.subr.bf16.mxu0 0
      %194 = vmatpush1.bf16.msra.mxu0 0
      %195 = vmatprep.subr.bf16.mxu0 0
      %196 = vmatpush1.bf16.msra.mxu0 0
      %197 = vmatprep.subr.bf16.mxu0 0
      %198 = vmatpush1.bf16.msra.mxu0 0
      %199 = vmatprep.subr.bf16.mxu0 0
      %200 = vmatpush1.bf16.msra.mxu0 0
      %201 = vmatprep.subr.bf16.mxu0 0
      %202 = vmatpush1.bf16.msra.mxu0 0
      %203 = vmatprep.subr.bf16.mxu0 0
      %204 = vmatpush1.bf16.msra.mxu0 %v183
      %205 = vmatprep.subr.bf16.mxu0 0
      %206 = vmatpush2.bf16.msra.mxu0 0
      %207 = vmatprep.subr.bf16.mxu0 0
      %208 = vmatpush2.bf16.msra.mxu0 0
      %209 = vmatprep.subr.bf16.mxu0 0
      %210 = vmatpush2.bf16.msra.mxu0 0
      %211 = vmatprep.subr.bf16.mxu0 0
      %212 = vmatpush2.bf16.msra.mxu0 0
      %213 = vmatprep.subr.bf16.mxu0 0
      %214 = vmatpush2.bf16.msra.mxu0 0
      %215 = vmatprep.subr.bf16.mxu0 0
      %216 = vmatpush2.bf16.msra.mxu0 0
      %217 = vmatprep.subr.bf16.mxu0 0
      %218 = vmatpush2.bf16.msra.mxu0 0
      %219 = vmatprep.subr.bf16.mxu0 0
      %220 = vmatpush2.bf16.msra.mxu0 0
      %221 = vmatprep.mubr.bf16.mxu0 0
      %222 = vmatmul.mubr.bf16.gmra.mxu0 %v187
      %v223 = vpop.f32.mrf.mxu0
      %v224 = vadd.f32 0.0, %v223
      %v225 = vpop.f32.mrf.mxu0
      %v226 = vpop.f32.mrf.mxu0
      %v227 = vpop.f32.mrf.mxu0
      %228 = vdwg.mxu0
      %v231 = vunpack.c.l.s4 1983009808
      %v232 = vunpack.c.0.s8 %v231
      %v233 = vlaneseq
      %v234 = vshrl.u32 %v233, 7
      %v235 = vsub.s32 %v232, %v234
      %v236 = vrot.slane %v224, %v235
      %v237 = vcombine.high %v236, %v236
      %v240 = vpack.c.bf16 %v236, %v236
      %v241 = vpack.c.bf16 %v237, %v237
      %vm242 = vcmask 122880
      %243 = vst.msk [vmem:[%s174] sm:$0x1] %vm242, %v240
      %244 = vst.msk [vmem:[%s174 + $0x2] sm:$0x1] %vm242, %v241
      %v248 = vunpack.c.l.s4 1966171168
      %v249 = vunpack.c.0.s8 %v248
      %v250 = vlaneseq
      %v251 = vshrl.u32 %v250, 7
      %v252 = vsub.s32 %v249, %v251
      %v253 = vrot.slane %v240, %v252
      %v255 = vunpack.c.l.s4 1966171168
      %v256 = vunpack.c.0.s8 %v255
      %v257 = vlaneseq
      %v258 = vshrl.u32 %v257, 7
      %v259 = vsub.s32 %v256, %v258
      %v260 = vrot.slane %v253, %v259
      %v262 = vunpack.c.l.s4 1966171168
      %v263 = vunpack.c.0.s8 %v262
      %v264 = vlaneseq
      %v265 = vshrl.u32 %v264, 7
      %v266 = vsub.s32 %v263, %v265
      %v267 = vrot.slane %v241, %v266
      %v269 = vunpack.c.l.s4 1966171168
      %v270 = vunpack.c.0.s8 %v269
      %v271 = vlaneseq
      %v272 = vshrl.u32 %v271, 7
      %v273 = vsub.s32 %v270, %v272
      %v274 = vrot.slane %v267, %v273
      %275 = vrot.lane.b32.xlu0 %v260, 112
      %v276 = vpop.permute.xlu0 %275
      %277 = vrot.lane.b32.xlu0 %v274, 112
      %v278 = vpop.permute.xlu0 %277
      %s281 = scalar_lea.vmem %s174, 1
      %282 = vst.msk [vmem:[%s281] sm:$0x1] %vm242, %v276
      %283 = vst.msk [vmem:[%s281 + $0x2] sm:$0x1] %vm242, %v278
      %284 = vrot.lane.b32.xlu0 %v260, 96
      %v285 = vpop.permute.xlu0 %284
      %286 = vrot.lane.b32.xlu0 %v274, 96
      %v287 = vpop.permute.xlu0 %286
      %s290 = scalar_lea.vmem %s174, 4
      %291 = vst.msk [vmem:[%s290] sm:$0x1] %vm242, %v285
      %292 = vst.msk [vmem:[%s290 + $0x2] sm:$0x1] %vm242, %v287
      %293 = vrot.lane.b32.xlu0 %v260, 80
      %v294 = vpop.permute.xlu0 %293
      %295 = vrot.lane.b32.xlu0 %v274, 80
      %v296 = vpop.permute.xlu0 %295
      %s299 = scalar_lea.vmem %s174, 5
      %300 = vst.msk [vmem:[%s299] sm:$0x1] %vm242, %v294
      %301 = vst.msk [vmem:[%s299 + $0x2] sm:$0x1] %vm242, %v296
      %p302 = scmp.lt.s32.totalorder %s17, 3
      %s303 = scalar_select %p302, %s17, 3
      %p304 = scmp.lt.s32.totalorder %s18, 1
      %s305 = scalar_select %p304, %s18, 1
      %s306 = smul.addr %s305, 8
      %s307 = smul.addr %s303, 16
      %s308 = sadd.s32 %s306, %s307
      %s309 = scalar_lea.vmem %s2, %s308
      // Predicated region
      $region29: #{unet3d1d_forward.59} parent=27 // pred_check
        %p310 = pneg %p94
      $region30: #{unet3d1d_forward.59} parent=27 // pred_check_branch
        %312 = sbr.rel (%p310) target = $region32
      $region31: #{unet3d1d_forward.59} parent=27 // pred_region
        _
      $region32: #{unet3d1d_forward.59} parent=27 // pred_fallthru
        _
    $region28: #{unet3d1d_forward.59} parent=5 // pred_fallthru
      _
    %p313 = scmp.le.s32.totalorder 2, %s8
    // Predicated region
    $region33: #{unet3d1d_forward.59} parent=5 // pred_check
      %p314 = pneg %p313
    $region34: #{unet3d1d_forward.59} parent=5 // pred_check_branch
      %316 = sbr.rel (%p314) target = $region36
    $region35: #{unet3d1d_forward.59} parent=5 // pred_region
      %s317 = ssub.s32 %s8, 2
      // Predicated region
      $region37: #{unet3d1d_forward.59} parent=35 // pred_check
        %p318 = pneg %p100
      $region38: #{unet3d1d_forward.59} parent=35 // pred_check_branch
        %320 = sbr.rel (%p318) target = $region40
      $region39: #{unet3d1d_forward.59} parent=35 // pred_region
        %p321 = scmp.lt.s32.totalorder %s19, 3
        %s322 = scalar_select %p321, %s19, 3
        %p323 = scmp.lt.s32.totalorder %s20, 1
        %s324 = scalar_select %p323, %s20, 1
        %s325 = smul.addr %s324, 8
        %s326 = smul.addr %s322, 16
        %s327 = sadd.s32 %s325, %s326
        %s328 = scalar_lea.vmem %s2, %s327
      $region40: #{unet3d1d_forward.59} parent=35 // pred_fallthru
        _
    $region36: #{unet3d1d_forward.59} parent=5 // pred_fallthru
      _
  $region6: #{unet3d1d_forward.59} parent=0 // loop_footer
    %s12 = sadd.s32 1, %s8
  $region7: #{unet3d1d_forward.59} parent=0 // loop_footer_branch
    %7 = sbr.rel target = $region3
  $region8: #{unet3d1d_forward.59} parent=0 // loop_exit
    _

// kernel: unet3d1d_forward.56
$region0: #{unet3d1d_forward.56}
  #allocation0 [shape = 'u32[]', space=smem, size = 0x4, offset = 0x4, fixed_abs, tag = 'smem constant byte address 0x4 - core index']
  #allocation1 [shape = 'u32[144,128]{1,0:T(1,128)}', space=vmem, size = 0x12000, scoped, tag = 'internal scratch']
  #allocation2 [shape = 'f32[16,16]{1,0:T(8,128)}', space=vmem, size = 0x2000, scoped, tag = 'scratch operand']
  %s0 = inlined_call_operand.vmem [shape: bf16[4,4,32,48], index: 0, kind: input, shape index: {}]
  %s1 = inlined_call_operand.vmem [shape: bf16[3,3,48,16], index: 1, kind: input, shape index: {}]
  %s2 = inlined_call_operand.vmem [shape: bf16[4,2,16,16], index: 2, kind: output, shape index: {}]
  %s3 = sld [smem:[#allocation0]]
  $region49: #{unet3d1d_forward.56} parent=0
    _
  %s5 = ssub.s32 1, %s3
  %s6 = scalar_select 0, %s5, %s3
  loop: start=0, step=1, limit=26
  $region2: #{unet3d1d_forward.56} parent=0 // loop_pre_header
    _
  $region3: #{unet3d1d_forward.56} parent=0 // loop_header
    %s8 = sphi 0, %s12
    %p9 = scmp.ge.s32.totalorder %s8, 26
    %s15 = sphi 0, %s34
    %s16 = sphi 0, %s30
    %s17 = sphi 0, %s26
    %s18 = sphi 0, %s15
    %s19 = sphi 0, %s16
    %s20 = sphi 0, %s17
    %s21 = sphi 0, %s18
    %s22 = sphi 0, %s19
    %s23 = sphi 0, %s20
    %s41 = sphi 0, %s43
    %s44 = sphi 0, %s41
    %s45 = sphi 0, %s44
    %s61 = sphi 0, %s45
    %s67 = sphi 0, %s69
    %s70 = sphi 0, %s67
    %s71 = sphi 0, %s70
    %s87 = sphi 0, %s71
    %s95 = sphi 0, %s97
    %s98 = sphi 0, %s95
    %s99 = sphi 0, %s98
    %s115 = sphi 0, %s99
  $region4: #{unet3d1d_forward.56} parent=0 // loop_header_branch
    %11 = sbr.rel (%p9) target = $region8
  $region5: #{unet3d1d_forward.56} parent=0 // loop_body
    %s13 = ssub.s32 %s8, 1
    %s14 = ssub.s32 %s8, 2
    %s24 = sadd.s32 1, %s17
    %p25 = scmp.ge.s32.totalorder %s24, 3
    %s26 = scalar_select %p25, 0, %s24
    %s27 = sadd.s32 1, %s16
    %s28 = scalar_select %p25, %s27, %s16
    %p29 = scmp.ge.s32.totalorder %s28, 2
    %s30 = scalar_select %p29, 0, %s28
    %s31 = sadd.s32 1, %s15
    %s32 = scalar_select %p29, %s31, %s15
    %p33 = scmp.ge.s32.totalorder %s32, 4
    %s34 = scalar_select %p33, 0, %s32
    %s35 = sadd.s32 %s16, %s17
    %s36 = sadd.s32 %s30, %s26
    %s37 = ssub.s32 %s15, %s34
    %s38 = ssub.s32 %s35, %s36
    %s39 = sor.u32 %s37, %s38
    %p40 = scmp.eq.s32.totalorder %s39, 0
    %s42 = sadd.s32 %s41, 1
    %s43 = scalar_select %p40, %s41, %s42
    %p46 = pneg %p40
    %p47 = scmp.eq.s32.totalorder %s8, 23
    %p48 = por %p46, %p47
    %p49 = scmp.ne.s32.totalorder %s41, %s44
    %p50 = scmp.eq.s32.totalorder %s8, 0
    %p51 = por %p49, %p50
    %p52 = scmp.ne.s32.totalorder %s41, %s44
    %p53 = scmp.eq.s32.totalorder %s13, 23
    %p54 = por %p52, %p53
    %p55 = scmp.ne.s32.totalorder %s44, %s45
    %p56 = scmp.eq.s32.totalorder %s13, 0
    %p57 = por %p55, %p56
    %p58 = scmp.ne.s32.totalorder %s44, %s45
    %p59 = scmp.eq.s32.totalorder %s14, 23
    %p60 = por %p58, %p59
    %p62 = scmp.ne.s32.totalorder %s45, %s61
    %p63 = scmp.eq.s32.totalorder %s14, 0
    %p64 = por %p62, %p63
    %s65 = ssub.s32 %s17, %s26
    %p66 = scmp.eq.s32.totalorder %s65, 0
    %s68 = sadd.s32 %s67, 1
    %s69 = scalar_select %p66, %s67, %s68
    %p72 = pneg %p66
    %p73 = scmp.eq.s32.totalorder %s8, 23
    %p74 = por %p72, %p73
    %p75 = scmp.ne.s32.totalorder %s67, %s70
    %p76 = scmp.eq.s32.totalorder %s8, 0
    %p77 = por %p75, %p76
    %p78 = scmp.ne.s32.totalorder %s67, %s70
    %p79 = scmp.eq.s32.totalorder %s13, 23
    %p80 = por %p78, %p79
    %p81 = scmp.ne.s32.totalorder %s70, %s71
    %p82 = scmp.eq.s32.totalorder %s13, 0
    %p83 = por %p81, %p82
    %p84 = scmp.ne.s32.totalorder %s70, %s71
    %p85 = scmp.eq.s32.totalorder %s14, 23
    %p86 = por %p84, %p85
    %p88 = scmp.ne.s32.totalorder %s71, %s87
    %p89 = scmp.eq.s32.totalorder %s14, 0
    %p90 = por %p88, %p89
    %s91 = ssub.s32 %s15, %s34
    %s92 = ssub.s32 %s16, %s30
    %s93 = sor.u32 %s91, %s92
    %p94 = scmp.eq.s32.totalorder %s93, 0
    %s96 = sadd.s32 %s95, 1
    %s97 = scalar_select %p94, %s95, %s96
    %p100 = pneg %p94
    %p101 = scmp.eq.s32.totalorder %s8, 23
    %p102 = por %p100, %p101
    %p103 = scmp.ne.s32.totalorder %s95, %s98
    %p104 = scmp.eq.s32.totalorder %s8, 0
    %p105 = por %p103, %p104
    %p106 = scmp.ne.s32.totalorder %s95, %s98
    %p107 = scmp.eq.s32.totalorder %s13, 23
    %p108 = por %p106, %p107
    %p109 = scmp.ne.s32.totalorder %s98, %s99
    %p110 = scmp.eq.s32.totalorder %s13, 0
    %p111 = por %p109, %p110
    %p112 = scmp.ne.s32.totalorder %s98, %s99
    %p113 = scmp.eq.s32.totalorder %s14, 23
    %p114 = por %p112, %p113
    %p116 = scmp.ne.s32.totalorder %s99, %s115
    %p117 = scmp.eq.s32.totalorder %s14, 0
    %p118 = por %p116, %p117
    %p119 = scmp.le.s32.totalorder 1, %s8
    %p120 = scmp.lt.s32.totalorder %s8, 25
    %p121 = pnand %p119, %p120
    %p122 = pneg %p121
    // Predicated region
    $region9: #{unet3d1d_forward.56} parent=5 // pred_check
      _
    $region10: #{unet3d1d_forward.56} parent=5 // pred_check_branch
      %124 = sbr.rel (%p121) target = $region12
    $region11: #{unet3d1d_forward.56} parent=5 // pred_region
      %s125 = ssub.s32 %s8, 1
    $region12: #{unet3d1d_forward.56} parent=5 // pred_fallthru
      _
    %p126 = scmp.lt.s32.totalorder %s8, 24
    // Predicated region
    $region13: #{unet3d1d_forward.56} parent=5 // pred_check
      %p127 = pneg %p126
    $region14: #{unet3d1d_forward.56} parent=5 // pred_check_branch
      %129 = sbr.rel (%p127) target = $region16
    $region15: #{unet3d1d_forward.56} parent=5 // pred_region
      // Predicated region
      $region17: #{unet3d1d_forward.56} parent=15 // pred_check
        %p130 = pneg %p51
      $region18: #{unet3d1d_forward.56} parent=15 // pred_check_branch
        %132 = sbr.rel (%p130) target = $region20
      $region19: #{unet3d1d_forward.56} parent=15 // pred_region
        %s133 = sadd.s32 %s16, %s17
        %p134 = scmp.lt.s32.totalorder %s15, 3
        %s135 = scalar_select %p134, %s15, 3
        %p136 = scmp.lt.s32.totalorder %s133, 3
        %s137 = scalar_select %p136, %s133, 3
        %s138 = smul.addr %s137, 4
        %s139 = smul.addr %s135, 16
        %s140 = sadd.s32 %s138, %s139
        %s141 = smul.addr %s140, 4
        %s142 = scalar_lea.vmem %s0, %s141
        %s143 = sadd.s32 %s16, %s17
      $region20: #{unet3d1d_forward.56} parent=15 // pred_fallthru
        _
      // Predicated region
      $region21: #{unet3d1d_forward.56} parent=15 // pred_check
        %p144 = pneg %p77
      $region22: #{unet3d1d_forward.56} parent=15 // pred_check_branch
        %146 = sbr.rel (%p144) target = $region24
      $region23: #{unet3d1d_forward.56} parent=15 // pred_region
        %p147 = scmp.lt.s32.totalorder %s17, 2
        %s148 = scalar_select %p147, %s17, 2
        %s149 = smul.addr %s148, 18
        %s150 = smul.addr %s149, 4
        %s151 = scalar_lea.vmem %s1, %s150
      $region24: #{unet3d1d_forward.56} parent=15 // pred_fallthru
        _
    $region16: #{unet3d1d_forward.56} parent=5 // pred_fallthru
      _
    %p152 = scmp.le.s32.totalorder 1, %s8
    %p153 = scmp.lt.s32.totalorder %s8, 25
    %p154 = pnand %p152, %p153
    %p155 = pneg %p154
    // Predicated region
    $region25: #{unet3d1d_forward.56} parent=5 // pred_check
      _
    $region26: #{unet3d1d_forward.56} parent=5 // pred_check_branch
      %157 = sbr.rel (%p154) target = $region28
    $region27: #{unet3d1d_forward.56} parent=5 // pred_region
      %s158 = ssub.s32 %s8, 1
      %s159 = sadd.s32 %s19, %s20
      %p160 = scmp.lt.s32.totalorder %s18, 3
      %s161 = scalar_select %p160, %s18, 3
      %p162 = scmp.lt.s32.totalorder %s159, 3
      %s163 = scalar_select %p162, %s159, 3
      %s164 = smul.addr %s163, 4
      %s165 = smul.addr %s161, 16
      %s166 = sadd.s32 %s164, %s165
      %s167 = smul.addr %s166, 4
      %s168 = scalar_lea.vmem %s0, %s167
      %p169 = pneg %p57
      %p170 = pneg %p54
      %p171 = scmp.lt.s32.totalorder %s20, 2
      %s172 = scalar_select %p171, %s20, 2
      %s173 = smul.addr %s172, 18
      %s174 = smul.addr %s173, 4
      %s175 = scalar_lea.vmem %s1, %s174
      %p176 = pneg %p83
      %p177 = pneg %p80
      %p178 = pneg %p111
      %p179 = pneg %p108
      %p180 = scmp.lt.s32.totalorder %s18, 3
      %s181 = scalar_select %p180, %s18, 3
      %p182 = scmp.lt.s32.totalorder %s19, 1
      %s183 = scalar_select %p182, %s19, 1
      %s184 = smul.addr %s183, 2
      %s185 = smul.addr %s181, 4
      %s186 = sadd.s32 %s184, %s185
      %s187 = smul.addr %s186, 4
      %s188 = scalar_lea.vmem %s2, %s187
      %s189 = sadd.s32 %s19, %s20
      %p190 = scmp.lt.s32.totalorder %s18, 3
      %s191 = scalar_select %p190, %s18, 3
      %p192 = scmp.lt.s32.totalorder %s189, 3
      %s193 = scalar_select %p192, %s189, 3
      %s194 = smul.addr %s193, 4
      %s195 = smul.addr %s191, 16
      %s196 = sadd.s32 %s194, %s195
      %s197 = smul.addr %s196, 4
      %s198 = scalar_lea.vmem %s0, %s197
      %s199 = sadd.s32 %s19, %s20
      %p200 = scmp.lt.s32.totalorder %s20, 2
      %s201 = scalar_select %p200, %s20, 2
      %s202 = smul.addr %s201, 18
      %s203 = smul.addr %s202, 4
      %s204 = scalar_lea.vmem %s1, %s203
      %p205 = scmp.lt.s32.totalorder %s18, 3
      %s206 = scalar_select %p205, %s18, 3
      %p207 = scmp.lt.s32.totalorder %s19, 1
      %s208 = scalar_select %p207, %s19, 1
      %s209 = smul.addr %s208, 2
      %s210 = smul.addr %s206, 4
      %s211 = sadd.s32 %s209, %s210
      %s212 = smul.addr %s211, 4
      %s213 = scalar_lea.vmem %s2, %s212
      %p215 = scmp.eq.s32.totalorder %s20, 0
      // Predicated region
      $region29: #{unet3d1d_forward.56} parent=27 // pred_check
        %p216 = pneg %p215
      $region30: #{unet3d1d_forward.56} parent=27 // pred_check_branch
        %218 = sbr.rel (%p216) target = $region32
      $region31: #{unet3d1d_forward.56} parent=27 // pred_region
        %vm219 = vcmask 130048
        %220 = vst.msk [vmem:[#allocation2] sm:$0xff] %vm219, 0.0
        %221 = vst.msk [vmem:[#allocation2 + $0x8] sm:$0xff] %vm219, 0.0
      $region32: #{unet3d1d_forward.56} parent=27 // pred_fallthru
        _
      %v222 = vld [vmem:[#allocation2] sm:$0xff]
      %v223 = vld [vmem:[#allocation2 + $0x8] sm:$0xff]
      %v224 = vld [vmem:[%s198] sm:$0xf]
      %v225 = vld [vmem:[%s198 + $0x4] sm:$0xf]
      %v226 = vld [vmem:[%s204] sm:$0xf]
      %v227 = vld [vmem:[%s204 + $0x4] sm:$0xf]
      %v228 = vld [vmem:[%s204 + $0x8] sm:$0xf]
      %v229 = vld [vmem:[%s204 + $0xc] sm:$0xf]
      %v230 = vld [vmem:[%s204 + $0x10] sm:$0xf]
      %v231 = vld [vmem:[%s204 + $0x14] sm:$0xf]
      %v234 = vunpack.c.l.b16 %v224
      %v235 = vunpack.c.l.b16 %v225
      %v236 = vpack.c.b16 %v235, %v234
      %v243 = vunpack.c.l.b16 %v226
      %v244 = vunpack.c.l.b16 %v227
      %v245 = vunpack.c.l.b16 %v228
      %v246 = vunpack.c.l.b16 %v229
      %v247 = vunpack.c.l.b16 %v230
      %v248 = vunpack.c.l.b16 %v231
      %v249 = vpack.c.b16 %v244, %v243
      %v250 = vpack.c.b16 %v246, %v245
      %v251 = vpack.c.b16 %v248, %v247
      %vm255 = vcmask 392192
      %v257 = vsel %vm255, %v236, 0
      %259 = vmatprep.subr.bf16.mxu0 0
      %260 = vmatpush1.bf16.msra.mxu0 0
      %261 = vmatprep.subr.bf16.mxu0 0
      %262 = vmatpush1.bf16.msra.mxu0 0
      %263 = vmatprep.subr.bf16.mxu0 0
      %264 = vmatpush1.bf16.msra.mxu0 0
      %265 = vmatprep.subr.bf16.mxu0 0
      %266 = vmatpush1.bf16.msra.mxu0 0
      %267 = vmatprep.subr.bf16.mxu0 0
      %268 = vmatpush1.bf16.msra.mxu0 0
      %269 = vmatprep.subr.bf16.mxu0 0
      %270 = vmatpush1.bf16.msra.mxu0 %v251
      %271 = vmatprep.subr.bf16.mxu0 0
      %272 = vmatpush1.bf16.msra.mxu0 %v250
      %273 = vmatprep.subr.bf16.mxu0 0
      %274 = vmatpush1.bf16.msra.mxu0 %v249
      %275 = vmatprep.subr.bf16.mxu0 0
      %276 = vmatpush2.bf16.msra.mxu0 0
      %277 = vmatprep.subr.bf16.mxu0 0
      %278 = vmatpush2.bf16.msra.mxu0 0
      %279 = vmatprep.subr.bf16.mxu0 0
      %280 = vmatpush2.bf16.msra.mxu0 0
      %281 = vmatprep.subr.bf16.mxu0 0
      %282 = vmatpush2.bf16.msra.mxu0 0
      %283 = vmatprep.subr.bf16.mxu0 0
      %284 = vmatpush2.bf16.msra.mxu0 0
      %285 = vmatprep.subr.bf16.mxu0 0
      %286 = vmatpush2.bf16.msra.mxu0 0
      %287 = vmatprep.subr.bf16.mxu0 0
      %288 = vmatpush2.bf16.msra.mxu0 0
      %289 = vmatprep.subr.bf16.mxu0 0
      %290 = vmatpush2.bf16.msra.mxu0 0
      %291 = vmatprep.mubr.bf16.mxu0 0
      %292 = vmatmul.mubr.bf16.gmra.mxu0 %v257
      %v293 = vpop.f32.mrf.mxu0
      %v294 = vadd.f32 0.0, %v293
      %v295 = vpop.f32.mrf.mxu0
      %v296 = vpop.f32.mrf.mxu0
      %v297 = vadd.f32 0.0, %v296
      %v298 = vpop.f32.mrf.mxu0
      %299 = vdwg.mxu0
      %v300 = vadd.f32 %v222, %v294
      %v301 = vadd.f32 %v223, %v297
      %vm302 = vcmask 130048
      %303 = vst.msk [vmem:[#allocation2] sm:$0xff] %vm302, %v300
      %304 = vst.msk [vmem:[#allocation2 + $0x8] sm:$0xff] %vm302, %v301
      %v305 = vld [vmem:[#allocation2] sm:$0xff]
      %v306 = vld [vmem:[#allocation2 + $0x8] sm:$0xff]
      %v307 = vld [vmem:[%s198 + $0x4] sm:$0xf]
      %v308 = vld [vmem:[%s198 + $0x8] sm:$0xf]
      %s309 = scalar_lea.vmem %s204, 24
      %v310 = vld [vmem:[%s309] sm:$0xf]
      %v311 = vld [vmem:[%s309 + $0x4] sm:$0xf]
      %v312 = vld [vmem:[%s309 + $0x8] sm:$0xf]
      %v313 = vld [vmem:[%s309 + $0xc] sm:$0xf]
      %v314 = vld [vmem:[%s309 + $0x10] sm:$0xf]
      %v315 = vld [vmem:[%s309 + $0x14] sm:$0xf]
      %v318 = vunpack.c.l.b16 %v307
      %v319 = vunpack.c.l.b16 %v308
      %v320 = vpack.c.b16 %v319, %v318
      %v327 = vunpack.c.l.b16 %v310
      %v328 = vunpack.c.l.b16 %v311
      %v329 = vunpack.c.l.b16 %v312
      %v330 = vunpack.c.l.b16 %v313
      %v331 = vunpack.c.l.b16 %v314
      %v332 = vunpack.c.l.b16 %v315
      %v333 = vpack.c.b16 %v328, %v327
      %v334 = vpack.c.b16 %v330, %v329
      %v335 = vpack.c.b16 %v332, %v331
      %v340 = vsel %vm255, %v320, 0
      %342 = vmatprep.subr.bf16.mxu0 0
      %343 = vmatpush1.bf16.msra.mxu0 0
      %344 = vmatprep.subr.bf16.mxu0 0
      %345 = vmatpush1.bf16.msra.mxu0 0
      %346 = vmatprep.subr.bf16.mxu0 0
      %347 = vmatpush1.bf16.msra.mxu0 0
      %348 = vmatprep.subr.bf16.mxu0 0
      %349 = vmatpush1.bf16.msra.mxu0 0
      %350 = vmatprep.subr.bf16.mxu0 0
      %351 = vmatpush1.bf16.msra.mxu0 0
      %352 = vmatprep.subr.bf16.mxu0 0
      %353 = vmatpush1.bf16.msra.mxu0 %v335
      %354 = vmatprep.subr.bf16.mxu0 0
      %355 = vmatpush1.bf16.msra.mxu0 %v334
      %356 = vmatprep.subr.bf16.mxu0 0
      %357 = vmatpush1.bf16.msra.mxu0 %v333
      %358 = vmatprep.subr.bf16.mxu0 0
      %359 = vmatpush2.bf16.msra.mxu0 0
      %360 = vmatprep.subr.bf16.mxu0 0
      %361 = vmatpush2.bf16.msra.mxu0 0
      %362 = vmatprep.subr.bf16.mxu0 0
      %363 = vmatpush2.bf16.msra.mxu0 0
      %364 = vmatprep.subr.bf16.mxu0 0
      %365 = vmatpush2.bf16.msra.mxu0 0
      %366 = vmatprep.subr.bf16.mxu0 0
      %367 = vmatpush2.bf16.msra.mxu0 0
      %368 = vmatprep.subr.bf16.mxu0 0
      %369 = vmatpush2.bf16.msra.mxu0 0
      %370 = vmatprep.subr.bf16.mxu0 0
      %371 = vmatpush2.bf16.msra.mxu0 0
      %372 = vmatprep.subr.bf16.mxu0 0
      %373 = vmatpush2.bf16.msra.mxu0 0
      %374 = vmatprep.mubr.bf16.mxu0 0
      %375 = vmatmul.mubr.bf16.gmra.mxu0 %v340
      %v376 = vpop.f32.mrf.mxu0
      %v377 = vadd.f32 0.0, %v376
      %v378 = vpop.f32.mrf.mxu0
      %v379 = vpop.f32.mrf.mxu0
      %v380 = vadd.f32 0.0, %v379
      %v381 = vpop.f32.mrf.mxu0
      %382 = vdwg.mxu0
      %v383 = vadd.f32 %v305, %v377
      %v384 = vadd.f32 %v306, %v380
      %385 = vst.msk [vmem:[#allocation2] sm:$0xff] %vm302, %v383
      %386 = vst.msk [vmem:[#allocation2 + $0x8] sm:$0xff] %vm302, %v384
      %v387 = vld [vmem:[#allocation2] sm:$0xff]
      %v388 = vld [vmem:[#allocation2 + $0x8] sm:$0xff]
      %v389 = vld [vmem:[%s198 + $0x8] sm:$0xf]
      %v390 = vld [vmem:[%s198 + $0xc] sm:$0xf]
      %s391 = scalar_lea.vmem %s204, 48
      %v392 = vld [vmem:[%s391] sm:$0xf]
      %v393 = vld [vmem:[%s391 + $0x4] sm:$0xf]
      %v394 = vld [vmem:[%s391 + $0x8] sm:$0xf]
      %v395 = vld [vmem:[%s391 + $0xc] sm:$0xf]
      %v396 = vld [vmem:[%s391 + $0x10] sm:$0xf]
      %v397 = vld [vmem:[%s391 + $0x14] sm:$0xf]
      %v400 = vunpack.c.l.b16 %v389
      %v401 = vunpack.c.l.b16 %v390
      %v402 = vpack.c.b16 %v401, %v400
      %v409 = vunpack.c.l.b16 %v392
      %v410 = vunpack.c.l.b16 %v393
      %v411 = vunpack.c.l.b16 %v394
      %v412 = vunpack.c.l.b16 %v395
      %v413 = vunpack.c.l.b16 %v396
      %v414 = vunpack.c.l.b16 %v397
      %v415 = vpack.c.b16 %v410, %v409
      %v416 = vpack.c.b16 %v412, %v411
      %v417 = vpack.c.b16 %v414, %v413
      %v422 = vsel %vm255, %v402, 0
      %424 = vmatprep.subr.bf16.mxu0 0
      %425 = vmatpush1.bf16.msra.mxu0 0
      %426 = vmatprep.subr.bf16.mxu0 0
      %427 = vmatpush1.bf16.msra.mxu0 0
      %428 = vmatprep.subr.bf16.mxu0 0
      %429 = vmatpush1.bf16.msra.mxu0 0
      %430 = vmatprep.subr.bf16.mxu0 0
      %431 = vmatpush1.bf16.msra.mxu0 0
      %432 = vmatprep.subr.bf16.mxu0 0
      %433 = vmatpush1.bf16.msra.mxu0 0
      %434 = vmatprep.subr.bf16.mxu0 0
      %435 = vmatpush1.bf16.msra.mxu0 %v417
      %436 = vmatprep.subr.bf16.mxu0 0
      %437 = vmatpush1.bf16.msra.mxu0 %v416
      %438 = vmatprep.subr.bf16.mxu0 0
      %439 = vmatpush1.bf16.msra.mxu0 %v415
      %440 = vmatprep.subr.bf16.mxu0 0
      %441 = vmatpush2.bf16.msra.mxu0 0
      %442 = vmatprep.subr.bf16.mxu0 0
      %443 = vmatpush2.bf16.msra.mxu0 0
      %444 = vmatprep.subr.bf16.mxu0 0
      %445 = vmatpush2.bf16.msra.mxu0 0
      %446 = vmatprep.subr.bf16.mxu0 0
      %447 = vmatpush2.bf16.msra.mxu0 0
      %448 = vmatprep.subr.bf16.mxu0 0
      %449 = vmatpush2.bf16.msra.mxu0 0
      %450 = vmatprep.subr.bf16.mxu0 0
      %451 = vmatpush2.bf16.msra.mxu0 0
      %452 = vmatprep.subr.bf16.mxu0 0
      %453 = vmatpush2.bf16.msra.mxu0 0
      %454 = vmatprep.subr.bf16.mxu0 0
      %455 = vmatpush2.bf16.msra.mxu0 0
      %456 = vmatprep.mubr.bf16.mxu0 0
      %457 = vmatmul.mubr.bf16.gmra.mxu0 %v422
      %v458 = vpop.f32.mrf.mxu0
      %v459 = vadd.f32 0.0, %v458
      %v460 = vpop.f32.mrf.mxu0
      %v461 = vpop.f32.mrf.mxu0
      %v462 = vadd.f32 0.0, %v461
      %v463 = vpop.f32.mrf.mxu0
      %464 = vdwg.mxu0
      %v465 = vadd.f32 %v387, %v459
      %v466 = vadd.f32 %v388, %v462
      %467 = vst.msk [vmem:[#allocation2] sm:$0xff] %vm302, %v465
      %468 = vst.msk [vmem:[#allocation2 + $0x8] sm:$0xff] %vm302, %v466
      %p469 = scmp.eq.s32.totalorder %s20, 2
      // Predicated region
      $region33: #{unet3d1d_forward.56} parent=27 // pred_check
        %p470 = pneg %p469
      $region34: #{unet3d1d_forward.56} parent=27 // pred_check_branch
        %472 = sbr.rel (%p470) target = $region36
      $region35: #{unet3d1d_forward.56} parent=27 // pred_region
        %v473 = vld [vmem:[#allocation2] sm:$0xff]
        %v474 = vld [vmem:[#allocation2 + $0x8] sm:$0xff]
        %v475 = vpack.c.bf16 %v474, %v473
        %v477 = vunpack.c.l.b16 %v475
        %v478 = vunpack.c.h.b16 %v475
        %v479 = vpack.c.b16 %v477, %v477
        %v480 = vpack.c.b16 %v478, %v478
        %vm483 = vcmask 125952
        %484 = vst.msk [vmem:[%s213] sm:$0xf] %vm483, %v479
        %485 = vst.msk [vmem:[%s213 + $0x4] sm:$0xf] %vm483, %v480
      $region36: #{unet3d1d_forward.56} parent=27 // pred_fallthru
        _
      %p486 = scmp.lt.s32.totalorder %s18, 3
      %s487 = scalar_select %p486, %s18, 3
      %p488 = scmp.lt.s32.totalorder %s19, 1
      %s489 = scalar_select %p488, %s19, 1
      %s490 = smul.addr %s489, 2
      %s491 = smul.addr %s487, 4
      %s492 = sadd.s32 %s490, %s491
      %s493 = smul.addr %s492, 4
      %s494 = scalar_lea.vmem %s2, %s493
      // Predicated region
      $region37: #{unet3d1d_forward.56} parent=27 // pred_check
        %p495 = pneg %p108
      $region38: #{unet3d1d_forward.56} parent=27 // pred_check_branch
        %497 = sbr.rel (%p495) target = $region40
      $region39: #{unet3d1d_forward.56} parent=27 // pred_region
        _
      $region40: #{unet3d1d_forward.56} parent=27 // pred_fallthru
        _
    $region28: #{unet3d1d_forward.56} parent=5 // pred_fallthru
      _
    %p498 = scmp.le.s32.totalorder 2, %s8
    // Predicated region
    $region41: #{unet3d1d_forward.56} parent=5 // pred_check
      %p499 = pneg %p498
    $region42: #{unet3d1d_forward.56} parent=5 // pred_check_branch
      %501 = sbr.rel (%p499) target = $region44
    $region43: #{unet3d1d_forward.56} parent=5 // pred_region
      %s502 = ssub.s32 %s8, 2
      // Predicated region
      $region45: #{unet3d1d_forward.56} parent=43 // pred_check
        %p503 = pneg %p114
      $region46: #{unet3d1d_forward.56} parent=43 // pred_check_branch
        %505 = sbr.rel (%p503) target = $region48
      $region47: #{unet3d1d_forward.56} parent=43 // pred_region
        %p506 = scmp.lt.s32.totalorder %s21, 3
        %s507 = scalar_select %p506, %s21, 3
        %p508 = scmp.lt.s32.totalorder %s22, 1
        %s509 = scalar_select %p508, %s22, 1
        %s510 = smul.addr %s509, 2
        %s511 = smul.addr %s507, 4
        %s512 = sadd.s32 %s510, %s511
        %s513 = smul.addr %s512, 4
        %s514 = scalar_lea.vmem %s2, %s513
      $region48: #{unet3d1d_forward.56} parent=43 // pred_fallthru
        _
    $region44: #{unet3d1d_forward.56} parent=5 // pred_fallthru
      _
  $region6: #{unet3d1d_forward.56} parent=0 // loop_footer
    %s12 = sadd.s32 1, %s8
  $region7: #{unet3d1d_forward.56} parent=0 // loop_footer_branch
    %7 = sbr.rel target = $region3
  $region8: #{unet3d1d_forward.56} parent=0 // loop_exit
    _

// kernel: unet3d1d_forward.62
$region0: #{unet3d1d_forward.62}
  #allocation0 [shape = 'u32[]', space=smem, size = 0x4, offset = 0x4, fixed_abs, tag = 'smem constant byte address 0x4 - core index']
  #allocation1 [shape = 'u32[144,128]{1,0:T(1,128)}', space=vmem, size = 0x12000, scoped, tag = 'internal scratch']
  #allocation2 [shape = 'f32[32,8]{1,0:T(8,128)}', space=vmem, size = 0x4000, scoped, tag = 'scratch operand']
  %s0 = inlined_call_operand.vmem [shape: bf16[4,6,48,48], index: 0, kind: input, shape index: {}]
  %s1 = inlined_call_operand.vmem [shape: bf16[3,3,48,8], index: 1, kind: input, shape index: {}]
  %s2 = inlined_call_operand.vmem [shape: bf16[4,4,32,8], index: 2, kind: output, shape index: {}]
  %s3 = sld [smem:[#allocation0]]
  $region49: #{unet3d1d_forward.62} parent=0
    _
  %s5 = ssub.s32 1, %s3
  %s6 = scalar_select 0, %s5, %s3
  loop: start=0, step=1, limit=50
  $region2: #{unet3d1d_forward.62} parent=0 // loop_pre_header
    _
  $region3: #{unet3d1d_forward.62} parent=0 // loop_header
    %s8 = sphi 0, %s12
    %p9 = scmp.ge.s32.totalorder %s8, 50
    %s15 = sphi 0, %s34
    %s16 = sphi 0, %s30
    %s17 = sphi 0, %s26
    %s18 = sphi 0, %s15
    %s19 = sphi 0, %s16
    %s20 = sphi 0, %s17
    %s21 = sphi 0, %s18
    %s22 = sphi 0, %s19
    %s23 = sphi 0, %s20
    %s41 = sphi 0, %s43
    %s44 = sphi 0, %s41
    %s45 = sphi 0, %s44
    %s61 = sphi 0, %s45
    %s67 = sphi 0, %s69
    %s70 = sphi 0, %s67
    %s71 = sphi 0, %s70
    %s87 = sphi 0, %s71
    %s95 = sphi 0, %s97
    %s98 = sphi 0, %s95
    %s99 = sphi 0, %s98
    %s115 = sphi 0, %s99
  $region4: #{unet3d1d_forward.62} parent=0 // loop_header_branch
    %11 = sbr.rel (%p9) target = $region8
  $region5: #{unet3d1d_forward.62} parent=0 // loop_body
    %s13 = ssub.s32 %s8, 1
    %s14 = ssub.s32 %s8, 2
    %s24 = sadd.s32 1, %s17
    %p25 = scmp.ge.s32.totalorder %s24, 3
    %s26 = scalar_select %p25, 0, %s24
    %s27 = sadd.s32 1, %s16
    %s28 = scalar_select %p25, %s27, %s16
    %p29 = scmp.ge.s32.totalorder %s28, 4
    %s30 = scalar_select %p29, 0, %s28
    %s31 = sadd.s32 1, %s15
    %s32 = scalar_select %p29, %s31, %s15
    %p33 = scmp.ge.s32.totalorder %s32, 4
    %s34 = scalar_select %p33, 0, %s32
    %s35 = sadd.s32 %s16, %s17
    %s36 = sadd.s32 %s30, %s26
    %s37 = ssub.s32 %s15, %s34
    %s38 = ssub.s32 %s35, %s36
    %s39 = sor.u32 %s37, %s38
    %p40 = scmp.eq.s32.totalorder %s39, 0
    %s42 = sadd.s32 %s41, 1
    %s43 = scalar_select %p40, %s41, %s42
    %p46 = pneg %p40
    %p47 = scmp.eq.s32.totalorder %s8, 47
    %p48 = por %p46, %p47
    %p49 = scmp.ne.s32.totalorder %s41, %s44
    %p50 = scmp.eq.s32.totalorder %s8, 0
    %p51 = por %p49, %p50
    %p52 = scmp.ne.s32.totalorder %s41, %s44
    %p53 = scmp.eq.s32.totalorder %s13, 47
    %p54 = por %p52, %p53
    %p55 = scmp.ne.s32.totalorder %s44, %s45
    %p56 = scmp.eq.s32.totalorder %s13, 0
    %p57 = por %p55, %p56
    %p58 = scmp.ne.s32.totalorder %s44, %s45
    %p59 = scmp.eq.s32.totalorder %s14, 47
    %p60 = por %p58, %p59
    %p62 = scmp.ne.s32.totalorder %s45, %s61
    %p63 = scmp.eq.s32.totalorder %s14, 0
    %p64 = por %p62, %p63
    %s65 = ssub.s32 %s17, %s26
    %p66 = scmp.eq.s32.totalorder %s65, 0
    %s68 = sadd.s32 %s67, 1
    %s69 = scalar_select %p66, %s67, %s68
    %p72 = pneg %p66
    %p73 = scmp.eq.s32.totalorder %s8, 47
    %p74 = por %p72, %p73
    %p75 = scmp.ne.s32.totalorder %s67, %s70
    %p76 = scmp.eq.s32.totalorder %s8, 0
    %p77 = por %p75, %p76
    %p78 = scmp.ne.s32.totalorder %s67, %s70
    %p79 = scmp.eq.s32.totalorder %s13, 47
    %p80 = por %p78, %p79
    %p81 = scmp.ne.s32.totalorder %s70, %s71
    %p82 = scmp.eq.s32.totalorder %s13, 0
    %p83 = por %p81, %p82
    %p84 = scmp.ne.s32.totalorder %s70, %s71
    %p85 = scmp.eq.s32.totalorder %s14, 47
    %p86 = por %p84, %p85
    %p88 = scmp.ne.s32.totalorder %s71, %s87
    %p89 = scmp.eq.s32.totalorder %s14, 0
    %p90 = por %p88, %p89
    %s91 = ssub.s32 %s15, %s34
    %s92 = ssub.s32 %s16, %s30
    %s93 = sor.u32 %s91, %s92
    %p94 = scmp.eq.s32.totalorder %s93, 0
    %s96 = sadd.s32 %s95, 1
    %s97 = scalar_select %p94, %s95, %s96
    %p100 = pneg %p94
    %p101 = scmp.eq.s32.totalorder %s8, 47
    %p102 = por %p100, %p101
    %p103 = scmp.ne.s32.totalorder %s95, %s98
    %p104 = scmp.eq.s32.totalorder %s8, 0
    %p105 = por %p103, %p104
    %p106 = scmp.ne.s32.totalorder %s95, %s98
    %p107 = scmp.eq.s32.totalorder %s13, 47
    %p108 = por %p106, %p107
    %p109 = scmp.ne.s32.totalorder %s98, %s99
    %p110 = scmp.eq.s32.totalorder %s13, 0
    %p111 = por %p109, %p110
    %p112 = scmp.ne.s32.totalorder %s98, %s99
    %p113 = scmp.eq.s32.totalorder %s14, 47
    %p114 = por %p112, %p113
    %p116 = scmp.ne.s32.totalorder %s99, %s115
    %p117 = scmp.eq.s32.totalorder %s14, 0
    %p118 = por %p116, %p117
    %p119 = scmp.le.s32.totalorder 1, %s8
    %p120 = scmp.lt.s32.totalorder %s8, 49
    %p121 = pnand %p119, %p120
    %p122 = pneg %p121
    // Predicated region
    $region9: #{unet3d1d_forward.62} parent=5 // pred_check
      _
    $region10: #{unet3d1d_forward.62} parent=5 // pred_check_branch
      %124 = sbr.rel (%p121) target = $region12
    $region11: #{unet3d1d_forward.62} parent=5 // pred_region
      %s125 = ssub.s32 %s8, 1
    $region12: #{unet3d1d_forward.62} parent=5 // pred_fallthru
      _
    %p126 = scmp.lt.s32.totalorder %s8, 48
    // Predicated region
    $region13: #{unet3d1d_forward.62} parent=5 // pred_check
      %p127 = pneg %p126
    $region14: #{unet3d1d_forward.62} parent=5 // pred_check_branch
      %129 = sbr.rel (%p127) target = $region16
    $region15: #{unet3d1d_forward.62} parent=5 // pred_region
      // Predicated region
      $region17: #{unet3d1d_forward.62} parent=15 // pred_check
        %p130 = pneg %p51
      $region18: #{unet3d1d_forward.62} parent=15 // pred_check_branch
        %132 = sbr.rel (%p130) target = $region20
      $region19: #{unet3d1d_forward.62} parent=15 // pred_region
        %s133 = sadd.s32 %s16, %s17
        %p134 = scmp.lt.s32.totalorder %s15, 3
        %s135 = scalar_select %p134, %s15, 3
        %p136 = scmp.lt.s32.totalorder %s133, 5
        %s137 = scalar_select %p136, %s133, 5
        %s138 = smul.addr %s137, 6
        %s139 = smul.addr %s135, 36
        %s140 = sadd.s32 %s138, %s139
        %s141 = smul.addr %s140, 4
        %s142 = scalar_lea.vmem %s0, %s141
        %s143 = sadd.s32 %s16, %s17
      $region20: #{unet3d1d_forward.62} parent=15 // pred_fallthru
        _
      // Predicated region
      $region21: #{unet3d1d_forward.62} parent=15 // pred_check
        %p144 = pneg %p77
      $region22: #{unet3d1d_forward.62} parent=15 // pred_check_branch
        %146 = sbr.rel (%p144) target = $region24
      $region23: #{unet3d1d_forward.62} parent=15 // pred_region
        %p147 = scmp.lt.s32.totalorder %s17, 2
        %s148 = scalar_select %p147, %s17, 2
        %s149 = smul.addr %s148, 18
        %s150 = smul.addr %s149, 4
        %s151 = scalar_lea.vmem %s1, %s150
      $region24: #{unet3d1d_forward.62} parent=15 // pred_fallthru
        _
    $region16: #{unet3d1d_forward.62} parent=5 // pred_fallthru
      _
    %p152 = scmp.le.s32.totalorder 1, %s8
    %p153 = scmp.lt.s32.totalorder %s8, 49
    %p154 = pnand %p152, %p153
    %p155 = pneg %p154
    // Predicated region
    $region25: #{unet3d1d_forward.62} parent=5 // pred_check
      _
    $region26: #{unet3d1d_forward.62} parent=5 // pred_check_branch
      %157 = sbr.rel (%p154) target = $region28
    $region27: #{unet3d1d_forward.62} parent=5 // pred_region
      %s158 = ssub.s32 %s8, 1
      %s159 = sadd.s32 %s19, %s20
      %p160 = scmp.lt.s32.totalorder %s18, 3
      %s161 = scalar_select %p160, %s18, 3
      %p162 = scmp.lt.s32.totalorder %s159, 5
      %s163 = scalar_select %p162, %s159, 5
      %s164 = smul.addr %s163, 6
      %s165 = smul.addr %s161, 36
      %s166 = sadd.s32 %s164, %s165
      %s167 = smul.addr %s166, 4
      %s168 = scalar_lea.vmem %s0, %s167
      %p169 = pneg %p57
      %p170 = pneg %p54
      %p171 = scmp.lt.s32.totalorder %s20, 2
      %s172 = scalar_select %p171, %s20, 2
      %s173 = smul.addr %s172, 18
      %s174 = smul.addr %s173, 4
      %s175 = scalar_lea.vmem %s1, %s174
      %p176 = pneg %p83
      %p177 = pneg %p80
      %p178 = pneg %p111
      %p179 = pneg %p108
      %p180 = scmp.lt.s32.totalorder %s18, 3
      %s181 = scalar_select %p180, %s18, 3
      %p182 = scmp.lt.s32.totalorder %s19, 3
      %s183 = scalar_select %p182, %s19, 3
      %s184 = smul.addr %s183, 4
      %s185 = smul.addr %s181, 16
      %s186 = sadd.s32 %s184, %s185
      %s187 = smul.addr %s186, 4
      %s188 = scalar_lea.vmem %s2, %s187
      %s189 = sadd.s32 %s19, %s20
      %p190 = scmp.lt.s32.totalorder %s18, 3
      %s191 = scalar_select %p190, %s18, 3
      %p192 = scmp.lt.s32.totalorder %s189, 5
      %s193 = scalar_select %p192, %s189, 5
      %s194 = smul.addr %s193, 6
      %s195 = smul.addr %s191, 36
      %s196 = sadd.s32 %s194, %s195
      %s197 = smul.addr %s196, 4
      %s198 = scalar_lea.vmem %s0, %s197
      %s199 = sadd.s32 %s19, %s20
      %p200 = scmp.lt.s32.totalorder %s20, 2
      %s201 = scalar_select %p200, %s20, 2
      %s202 = smul.addr %s201, 18
      %s203 = smul.addr %s202, 4
      %s204 = scalar_lea.vmem %s1, %s203
      %p205 = scmp.lt.s32.totalorder %s18, 3
      %s206 = scalar_select %p205, %s18, 3
      %p207 = scmp.lt.s32.totalorder %s19, 3
      %s208 = scalar_select %p207, %s19, 3
      %s209 = smul.addr %s208, 4
      %s210 = smul.addr %s206, 16
      %s211 = sadd.s32 %s209, %s210
      %s212 = smul.addr %s211, 4
      %s213 = scalar_lea.vmem %s2, %s212
      %p215 = scmp.eq.s32.totalorder %s20, 0
      // Predicated region
      $region29: #{unet3d1d_forward.62} parent=27 // pred_check
        %p216 = pneg %p215
      $region30: #{unet3d1d_forward.62} parent=27 // pred_check_branch
        %218 = sbr.rel (%p216) target = $region32
      $region31: #{unet3d1d_forward.62} parent=27 // pred_region
        %vm219 = vcmask 64512
        %220 = vst.msk [vmem:[#allocation2] sm:$0xff] %vm219, 0.0
        %221 = vst.msk [vmem:[#allocation2 + $0x8] sm:$0xff] %vm219, 0.0
        %222 = vst.msk [vmem:[#allocation2 + $0x10] sm:$0xff] %vm219, 0.0
        %223 = vst.msk [vmem:[#allocation2 + $0x18] sm:$0xff] %vm219, 0.0
      $region32: #{unet3d1d_forward.62} parent=27 // pred_fallthru
        _
      %v224 = vld [vmem:[#allocation2] sm:$0xff]
      %v225 = vld [vmem:[#allocation2 + $0x8] sm:$0xff]
      %v226 = vld [vmem:[#allocation2 + $0x10] sm:$0xff]
      %v227 = vld [vmem:[#allocation2 + $0x18] sm:$0xff]
      %v228 = vld [vmem:[%s198] sm:$0xf]
      %v229 = vld [vmem:[%s198 + $0x4] sm:$0xf]
      %v230 = vld [vmem:[%s198 + $0x8] sm:$0xf]
      %v231 = vld [vmem:[%s198 + $0xc] sm:$0xf]
      %v232 = vld [vmem:[%s204] sm:$0xf]
      %v233 = vld [vmem:[%s204 + $0x4] sm:$0xf]
      %v234 = vld [vmem:[%s204 + $0x8] sm:$0xf]
      %v235 = vld [vmem:[%s204 + $0xc] sm:$0xf]
      %v236 = vld [vmem:[%s204 + $0x10] sm:$0xf]
      %v237 = vld [vmem:[%s204 + $0x14] sm:$0xf]
      %v242 = vunpack.c.l.b16 %v228
      %v243 = vunpack.c.l.b16 %v229
      %v244 = vunpack.c.l.b16 %v230
      %v245 = vunpack.c.l.b16 %v231
      %v246 = vpack.c.b16 %v243, %v242
      %v247 = vpack.c.b16 %v245, %v244
      %v254 = vunpack.c.l.b16 %v232
      %v255 = vunpack.c.l.b16 %v233
      %v256 = vunpack.c.l.b16 %v234
      %v257 = vunpack.c.l.b16 %v235
      %v258 = vunpack.c.l.b16 %v236
      %v259 = vunpack.c.l.b16 %v237
      %v260 = vpack.c.b16 %v255, %v254
      %v261 = vpack.c.b16 %v257, %v256
      %v262 = vpack.c.b16 %v259, %v258
      %vm266 = vcmask 392192
      %v268 = vsel %vm266, %v246, 0
      %v271 = vsel %vm266, %v247, 0
      %273 = vmatprep.subr.bf16.mxu0 0
      %274 = vmatpush1.bf16.msra.mxu0 0
      %275 = vmatprep.subr.bf16.mxu0 0
      %276 = vmatpush1.bf16.msra.mxu0 0
      %277 = vmatprep.subr.bf16.mxu0 0
      %278 = vmatpush1.bf16.msra.mxu0 0
      %279 = vmatprep.subr.bf16.mxu0 0
      %280 = vmatpush1.bf16.msra.mxu0 0
      %281 = vmatprep.subr.bf16.mxu0 0
      %282 = vmatpush1.bf16.msra.mxu0 0
      %283 = vmatprep.subr.bf16.mxu0 0
      %284 = vmatpush1.bf16.msra.mxu0 %v262
      %285 = vmatprep.subr.bf16.mxu0 0
      %286 = vmatpush1.bf16.msra.mxu0 %v261
      %287 = vmatprep.subr.bf16.mxu0 0
      %288 = vmatpush1.bf16.msra.mxu0 %v260
      %289 = vmatprep.subr.bf16.mxu0 0
      %290 = vmatpush2.bf16.msra.mxu0 0
      %291 = vmatprep.subr.bf16.mxu0 0
      %292 = vmatpush2.bf16.msra.mxu0 0
      %293 = vmatprep.subr.bf16.mxu0 0
      %294 = vmatpush2.bf16.msra.mxu0 0
      %295 = vmatprep.subr.bf16.mxu0 0
      %296 = vmatpush2.bf16.msra.mxu0 0
      %297 = vmatprep.subr.bf16.mxu0 0
      %298 = vmatpush2.bf16.msra.mxu0 0
      %299 = vmatprep.subr.bf16.mxu0 0
      %300 = vmatpush2.bf16.msra.mxu0 0
      %301 = vmatprep.subr.bf16.mxu0 0
      %302 = vmatpush2.bf16.msra.mxu0 0
      %303 = vmatprep.subr.bf16.mxu0 0
      %304 = vmatpush2.bf16.msra.mxu0 0
      %305 = vmatprep.mubr.bf16.mxu0 0
      %306 = vmatmul.mubr.bf16.gmra.mxu0 %v268
      %v307 = vpop.f32.mrf.mxu0
      %v308 = vadd.f32 0.0, %v307
      %v309 = vpop.f32.mrf.mxu0
      %v310 = vpop.f32.mrf.mxu0
      %v311 = vadd.f32 0.0, %v310
      %v312 = vpop.f32.mrf.mxu0
      %313 = vmatprep.mubr.bf16.mxu0 0
      %314 = vmatmul.mubr.bf16.gmra.mxu0 %v271
      %v315 = vpop.f32.mrf.mxu0
      %v316 = vadd.f32 0.0, %v315
      %v317 = vpop.f32.mrf.mxu0
      %v318 = vpop.f32.mrf.mxu0
      %v319 = vadd.f32 0.0, %v318
      %v320 = vpop.f32.mrf.mxu0
      %321 = vdwg.mxu0
      %v322 = vadd.f32 %v224, %v308
      %v323 = vadd.f32 %v225, %v311
      %v324 = vadd.f32 %v226, %v316
      %v325 = vadd.f32 %v227, %v319
      %vm326 = vcmask 64512
      %327 = vst.msk [vmem:[#allocation2] sm:$0xff] %vm326, %v322
      %328 = vst.msk [vmem:[#allocation2 + $0x8] sm:$0xff] %vm326, %v323
      %329 = vst.msk [vmem:[#allocation2 + $0x10] sm:$0xff] %vm326, %v324
      %330 = vst.msk [vmem:[#allocation2 + $0x18] sm:$0xff] %vm326, %v325
      %v331 = vld [vmem:[#allocation2] sm:$0xff]
      %v332 = vld [vmem:[#allocation2 + $0x8] sm:$0xff]
      %v333 = vld [vmem:[#allocation2 + $0x10] sm:$0xff]
      %v334 = vld [vmem:[#allocation2 + $0x18] sm:$0xff]
      %v335 = vld [vmem:[%s198 + $0x4] sm:$0xf]
      %v336 = vld [vmem:[%s198 + $0x8] sm:$0xf]
      %v337 = vld [vmem:[%s198 + $0xc] sm:$0xf]
      %v338 = vld [vmem:[%s198 + $0x10] sm:$0xf]
      %s339 = scalar_lea.vmem %s204, 24
      %v340 = vld [vmem:[%s339] sm:$0xf]
      %v341 = vld [vmem:[%s339 + $0x4] sm:$0xf]
      %v342 = vld [vmem:[%s339 + $0x8] sm:$0xf]
      %v343 = vld [vmem:[%s339 + $0xc] sm:$0xf]
      %v344 = vld [vmem:[%s339 + $0x10] sm:$0xf]
      %v345 = vld [vmem:[%s339 + $0x14] sm:$0xf]
      %v350 = vunpack.c.l.b16 %v335
      %v351 = vunpack.c.l.b16 %v336
      %v352 = vunpack.c.l.b16 %v337
      %v353 = vunpack.c.l.b16 %v338
      %v354 = vpack.c.b16 %v351, %v350
      %v355 = vpack.c.b16 %v353, %v352
      %v362 = vunpack.c.l.b16 %v340
      %v363 = vunpack.c.l.b16 %v341
      %v364 = vunpack.c.l.b16 %v342
      %v365 = vunpack.c.l.b16 %v343
      %v366 = vunpack.c.l.b16 %v344
      %v367 = vunpack.c.l.b16 %v345
      %v368 = vpack.c.b16 %v363, %v362
      %v369 = vpack.c.b16 %v365, %v364
      %v370 = vpack.c.b16 %v367, %v366
      %v375 = vsel %vm266, %v354, 0
      %v378 = vsel %vm266, %v355, 0
      %380 = vmatprep.subr.bf16.mxu0 0
      %381 = vmatpush1.bf16.msra.mxu0 0
      %382 = vmatprep.subr.bf16.mxu0 0
      %383 = vmatpush1.bf16.msra.mxu0 0
      %384 = vmatprep.subr.bf16.mxu0 0
      %385 = vmatpush1.bf16.msra.mxu0 0
      %386 = vmatprep.subr.bf16.mxu0 0
      %387 = vmatpush1.bf16.msra.mxu0 0
      %388 = vmatprep.subr.bf16.mxu0 0
      %389 = vmatpush1.bf16.msra.mxu0 0
      %390 = vmatprep.subr.bf16.mxu0 0
      %391 = vmatpush1.bf16.msra.mxu0 %v370
      %392 = vmatprep.subr.bf16.mxu0 0
      %393 = vmatpush1.bf16.msra.mxu0 %v369
      %394 = vmatprep.subr.bf16.mxu0 0
      %395 = vmatpush1.bf16.msra.mxu0 %v368
      %396 = vmatprep.subr.bf16.mxu0 0
      %397 = vmatpush2.bf16.msra.mxu0 0
      %398 = vmatprep.subr.bf16.mxu0 0
      %399 = vmatpush2.bf16.msra.mxu0 0
      %400 = vmatprep.subr.bf16.mxu0 0
      %401 = vmatpush2.bf16.msra.mxu0 0
      %402 = vmatprep.subr.bf16.mxu0 0
      %403 = vmatpush2.bf16.msra.mxu0 0
      %404 = vmatprep.subr.bf16.mxu0 0
      %405 = vmatpush2.bf16.msra.mxu0 0
      %406 = vmatprep.subr.bf16.mxu0 0
      %407 = vmatpush2.bf16.msra.mxu0 0
      %408 = vmatprep.subr.bf16.mxu0 0
      %409 = vmatpush2.bf16.msra.mxu0 0
      %410 = vmatprep.subr.bf16.mxu0 0
      %411 = vmatpush2.bf16.msra.mxu0 0
      %412 = vmatprep.mubr.bf16.mxu0 0
      %413 = vmatmul.mubr.bf16.gmra.mxu0 %v375
      %v414 = vpop.f32.mrf.mxu0
      %v415 = vadd.f32 0.0, %v414
      %v416 = vpop.f32.mrf.mxu0
      %v417 = vpop.f32.mrf.mxu0
      %v418 = vadd.f32 0.0, %v417
      %v419 = vpop.f32.mrf.mxu0
      %420 = vmatprep.mubr.bf16.mxu0 0
      %421 = vmatmul.mubr.bf16.gmra.mxu0 %v378
      %v422 = vpop.f32.mrf.mxu0
      %v423 = vadd.f32 0.0, %v422
      %v424 = vpop.f32.mrf.mxu0
      %v425 = vpop.f32.mrf.mxu0
      %v426 = vadd.f32 0.0, %v425
      %v427 = vpop.f32.mrf.mxu0
      %428 = vdwg.mxu0
      %v429 = vadd.f32 %v331, %v415
      %v430 = vadd.f32 %v332, %v418
      %v431 = vadd.f32 %v333, %v423
      %v432 = vadd.f32 %v334, %v426
      %433 = vst.msk [vmem:[#allocation2] sm:$0xff] %vm326, %v429
      %434 = vst.msk [vmem:[#allocation2 + $0x8] sm:$0xff] %vm326, %v430
      %435 = vst.msk [vmem:[#allocation2 + $0x10] sm:$0xff] %vm326, %v431
      %436 = vst.msk [vmem:[#allocation2 + $0x18] sm:$0xff] %vm326, %v432
      %v437 = vld [vmem:[#allocation2] sm:$0xff]
      %v438 = vld [vmem:[#allocation2 + $0x8] sm:$0xff]
      %v439 = vld [vmem:[#allocation2 + $0x10] sm:$0xff]
      %v440 = vld [vmem:[#allocation2 + $0x18] sm:$0xff]
      %v441 = vld [vmem:[%s198 + $0x8] sm:$0xf]
      %v442 = vld [vmem:[%s198 + $0xc] sm:$0xf]
      %v443 = vld [vmem:[%s198 + $0x10] sm:$0xf]
      %v444 = vld [vmem:[%s198 + $0x14] sm:$0xf]
      %s445 = scalar_lea.vmem %s204, 48
      %v446 = vld [vmem:[%s445] sm:$0xf]
      %v447 = vld [vmem:[%s445 + $0x4] sm:$0xf]
      %v448 = vld [vmem:[%s445 + $0x8] sm:$0xf]
      %v449 = vld [vmem:[%s445 + $0xc] sm:$0xf]
      %v450 = vld [vmem:[%s445 + $0x10] sm:$0xf]
      %v451 = vld [vmem:[%s445 + $0x14] sm:$0xf]
      %v456 = vunpack.c.l.b16 %v441
      %v457 = vunpack.c.l.b16 %v442
      %v458 = vunpack.c.l.b16 %v443
      %v459 = vunpack.c.l.b16 %v444
      %v460 = vpack.c.b16 %v457, %v456
      %v461 = vpack.c.b16 %v459, %v458
      %v468 = vunpack.c.l.b16 %v446
      %v469 = vunpack.c.l.b16 %v447
      %v470 = vunpack.c.l.b16 %v448
      %v471 = vunpack.c.l.b16 %v449
      %v472 = vunpack.c.l.b16 %v450
      %v473 = vunpack.c.l.b16 %v451
      %v474 = vpack.c.b16 %v469, %v468
      %v475 = vpack.c.b16 %v471, %v470
      %v476 = vpack.c.b16 %v473, %v472
      %v481 = vsel %vm266, %v460, 0
      %v484 = vsel %vm266, %v461, 0
      %486 = vmatprep.subr.bf16.mxu0 0
      %487 = vmatpush1.bf16.msra.mxu0 0
      %488 = vmatprep.subr.bf16.mxu0 0
      %489 = vmatpush1.bf16.msra.mxu0 0
      %490 = vmatprep.subr.bf16.mxu0 0
      %491 = vmatpush1.bf16.msra.mxu0 0
      %492 = vmatprep.subr.bf16.mxu0 0
      %493 = vmatpush1.bf16.msra.mxu0 0
      %494 = vmatprep.subr.bf16.mxu0 0
      %495 = vmatpush1.bf16.msra.mxu0 0
      %496 = vmatprep.subr.bf16.mxu0 0
      %497 = vmatpush1.bf16.msra.mxu0 %v476
      %498 = vmatprep.subr.bf16.mxu0 0
      %499 = vmatpush1.bf16.msra.mxu0 %v475
      %500 = vmatprep.subr.bf16.mxu0 0
      %501 = vmatpush1.bf16.msra.mxu0 %v474
      %502 = vmatprep.subr.bf16.mxu0 0
      %503 = vmatpush2.bf16.msra.mxu0 0
      %504 = vmatprep.subr.bf16.mxu0 0
      %505 = vmatpush2.bf16.msra.mxu0 0
      %506 = vmatprep.subr.bf16.mxu0 0
      %507 = vmatpush2.bf16.msra.mxu0 0
      %508 = vmatprep.subr.bf16.mxu0 0
      %509 = vmatpush2.bf16.msra.mxu0 0
      %510 = vmatprep.subr.bf16.mxu0 0
      %511 = vmatpush2.bf16.msra.mxu0 0
      %512 = vmatprep.subr.bf16.mxu0 0
      %513 = vmatpush2.bf16.msra.mxu0 0
      %514 = vmatprep.subr.bf16.mxu0 0
      %515 = vmatpush2.bf16.msra.mxu0 0
      %516 = vmatprep.subr.bf16.mxu0 0
      %517 = vmatpush2.bf16.msra.mxu0 0
      %518 = vmatprep.mubr.bf16.mxu0 0
      %519 = vmatmul.mubr.bf16.gmra.mxu0 %v481
      %v520 = vpop.f32.mrf.mxu0
      %v521 = vadd.f32 0.0, %v520
      %v522 = vpop.f32.mrf.mxu0
      %v523 = vpop.f32.mrf.mxu0
      %v524 = vadd.f32 0.0, %v523
      %v525 = vpop.f32.mrf.mxu0
      %526 = vmatprep.mubr.bf16.mxu0 0
      %527 = vmatmul.mubr.bf16.gmra.mxu0 %v484
      %v528 = vpop.f32.mrf.mxu0
      %v529 = vadd.f32 0.0, %v528
      %v530 = vpop.f32.mrf.mxu0
      %v531 = vpop.f32.mrf.mxu0
      %v532 = vadd.f32 0.0, %v531
      %v533 = vpop.f32.mrf.mxu0
      %534 = vdwg.mxu0
      %v535 = vadd.f32 %v437, %v521
      %v536 = vadd.f32 %v438, %v524
      %v537 = vadd.f32 %v439, %v529
      %v538 = vadd.f32 %v440, %v532
      %539 = vst.msk [vmem:[#allocation2] sm:$0xff] %vm326, %v535
      %540 = vst.msk [vmem:[#allocation2 + $0x8] sm:$0xff] %vm326, %v536
      %541 = vst.msk [vmem:[#allocation2 + $0x10] sm:$0xff] %vm326, %v537
      %542 = vst.msk [vmem:[#allocation2 + $0x18] sm:$0xff] %vm326, %v538
      %p543 = scmp.eq.s32.totalorder %s20, 2
      // Predicated region
      $region33: #{unet3d1d_forward.62} parent=27 // pred_check
        %p544 = pneg %p543
      $region34: #{unet3d1d_forward.62} parent=27 // pred_check_branch
        %546 = sbr.rel (%p544) target = $region36
      $region35: #{unet3d1d_forward.62} parent=27 // pred_region
        %v547 = vld [vmem:[#allocation2] sm:$0xff]
        %v548 = vld [vmem:[#allocation2 + $0x8] sm:$0xff]
        %v549 = vld [vmem:[#allocation2 + $0x10] sm:$0xff]
        %v550 = vld [vmem:[#allocation2 + $0x18] sm:$0xff]
        %v551 = vpack.c.bf16 %v548, %v547
        %v552 = vpack.c.bf16 %v550, %v549
        %v555 = vunpack.c.l.b16 %v551
        %v556 = vunpack.c.h.b16 %v551
        %v557 = vunpack.c.l.b16 %v552
        %v558 = vunpack.c.h.b16 %v552
        %v559 = vpack.c.b16 %v555, %v555
        %v560 = vpack.c.b16 %v556, %v556
        %v561 = vpack.c.b16 %v557, %v557
        %v562 = vpack.c.b16 %v558, %v558
        %vm567 = vcmask 60416
        %568 = vst.msk [vmem:[%s213] sm:$0xf] %vm567, %v559
        %569 = vst.msk [vmem:[%s213 + $0x4] sm:$0xf] %vm567, %v560
        %570 = vst.msk [vmem:[%s213 + $0x8] sm:$0xf] %vm567, %v561
        %571 = vst.msk [vmem:[%s213 + $0xc] sm:$0xf] %vm567, %v562
      $region36: #{unet3d1d_forward.62} parent=27 // pred_fallthru
        _
      %p572 = scmp.lt.s32.totalorder %s18, 3
      %s573 = scalar_select %p572, %s18, 3
      %p574 = scmp.lt.s32.totalorder %s19, 3
      %s575 = scalar_select %p574, %s19, 3
      %s576 = smul.addr %s575, 4
      %s577 = smul.addr %s573, 16
      %s578 = sadd.s32 %s576, %s577
      %s579 = smul.addr %s578, 4
      %s580 = scalar_lea.vmem %s2, %s579
      // Predicated region
      $region37: #{unet3d1d_forward.62} parent=27 // pred_check
        %p581 = pneg %p108
      $region38: #{unet3d1d_forward.62} parent=27 // pred_check_branch
        %583 = sbr.rel (%p581) target = $region40
      $region39: #{unet3d1d_forward.62} parent=27 // pred_region
        _
      $region40: #{unet3d1d_forward.62} parent=27 // pred_fallthru
        _
    $region28: #{unet3d1d_forward.62} parent=5 // pred_fallthru
      _
    %p584 = scmp.le.s32.totalorder 2, %s8
    // Predicated region
    $region41: #{unet3d1d_forward.62} parent=5 // pred_check
      %p585 = pneg %p584
    $region42: #{unet3d1d_forward.62} parent=5 // pred_check_branch
      %587 = sbr.rel (%p585) target = $region44
    $region43: #{unet3d1d_forward.62} parent=5 // pred_region
      %s588 = ssub.s32 %s8, 2
      // Predicated region
      $region45: #{unet3d1d_forward.62} parent=43 // pred_check
        %p589 = pneg %p114
      $region46: #{unet3d1d_forward.62} parent=43 // pred_check_branch
        %591 = sbr.rel (%p589) target = $region48
      $region47: #{unet3d1d_forward.62} parent=43 // pred_region
        %p592 = scmp.lt.s32.totalorder %s21, 3
        %s593 = scalar_select %p592, %s21, 3
        %p594 = scmp.lt.s32.totalorder %s22, 3
        %s595 = scalar_select %p594, %s22, 3
        %s596 = smul.addr %s595, 4
        %s597 = smul.addr %s593, 16
        %s598 = sadd.s32 %s596, %s597
        %s599 = smul.addr %s598, 4
        %s600 = scalar_lea.vmem %s2, %s599
      $region48: #{unet3d1d_forward.62} parent=43 // pred_fallthru
        _
    $region44: #{unet3d1d_forward.62} parent=5 // pred_fallthru
      _
  $region6: #{unet3d1d_forward.62} parent=0 // loop_footer
    %s12 = sadd.s32 1, %s8
  $region7: #{unet3d1d_forward.62} parent=0 // loop_footer_branch
    %7 = sbr.rel target = $region3
  $region8: #{unet3d1d_forward.62} parent=0 // loop_exit
    _

// kernel: unet3d1d_forward.68
$region0: #{unet3d1d_forward.68}
  #allocation0 [shape = 'u32[]', space=smem, size = 0x4, offset = 0x4, fixed_abs, tag = 'smem constant byte address 0x4 - core index']
  #allocation1 [shape = 'u32[144,128]{1,0:T(1,128)}', space=vmem, size = 0x12000, scoped, tag = 'internal scratch']
  %s0 = inlined_call_operand.vmem [shape: bf16[4,4,16,8], index: 0, kind: input, shape index: {}]
  %s1 = inlined_call_operand.vmem [shape: bf16[8,32], index: 1, kind: input, shape index: {}]
  %s2 = inlined_call_operand.vmem [shape: bf16[4,4,2,4,2,4,8], index: 2, kind: output, shape index: {}]
  %s3 = sld [smem:[#allocation0]]
  $region41: #{unet3d1d_forward.68} parent=0
    _
  %s5 = ssub.s32 1, %s3
  %s6 = scalar_select 0, %s5, %s3
  loop: start=0, step=1, limit=18
  $region2: #{unet3d1d_forward.68} parent=0 // loop_pre_header
    _
  $region3: #{unet3d1d_forward.68} parent=0 // loop_header
    %s8 = sphi 0, %s12
    %p9 = scmp.ge.s32.totalorder %s8, 18
    %s15 = sphi 0, %s27
    %s16 = sphi 0, %s23
    %s17 = sphi 0, %s15
    %s18 = sphi 0, %s16
    %s19 = sphi 0, %s17
    %s20 = sphi 0, %s18
    %s32 = sphi 0, %s34
    %s35 = sphi 0, %s32
    %s36 = sphi 0, %s35
    %s52 = sphi 0, %s36
    %s56 = sphi 0, %s56
    %s58 = sphi 0, %s56
    %s59 = sphi 0, %s58
    %s73 = sphi 0, %s59
    %s81 = sphi 0, %s83
    %s84 = sphi 0, %s81
    %s85 = sphi 0, %s84
    %s101 = sphi 0, %s85
  $region4: #{unet3d1d_forward.68} parent=0 // loop_header_branch
    %11 = sbr.rel (%p9) target = $region8
  $region5: #{unet3d1d_forward.68} parent=0 // loop_body
    %s13 = ssub.s32 %s8, 1
    %s14 = ssub.s32 %s8, 2
    %s21 = sadd.s32 1, %s16
    %p22 = scmp.ge.s32.totalorder %s21, 4
    %s23 = scalar_select %p22, 0, %s21
    %s24 = sadd.s32 1, %s15
    %s25 = scalar_select %p22, %s24, %s15
    %p26 = scmp.ge.s32.totalorder %s25, 4
    %s27 = scalar_select %p26, 0, %s25
    %s28 = ssub.s32 %s15, %s27
    %s29 = ssub.s32 %s16, %s23
    %s30 = sor.u32 %s28, %s29
    %p31 = scmp.eq.s32.totalorder %s30, 0
    %s33 = sadd.s32 %s32, 1
    %s34 = scalar_select %p31, %s32, %s33
    %p37 = pneg %p31
    %p38 = scmp.eq.s32.totalorder %s8, 15
    %p39 = por %p37, %p38
    %p40 = scmp.ne.s32.totalorder %s32, %s35
    %p41 = scmp.eq.s32.totalorder %s8, 0
    %p42 = por %p40, %p41
    %p43 = scmp.ne.s32.totalorder %s32, %s35
    %p44 = scmp.eq.s32.totalorder %s13, 15
    %p45 = por %p43, %p44
    %p46 = scmp.ne.s32.totalorder %s35, %s36
    %p47 = scmp.eq.s32.totalorder %s13, 0
    %p48 = por %p46, %p47
    %p49 = scmp.ne.s32.totalorder %s35, %s36
    %p50 = scmp.eq.s32.totalorder %s14, 15
    %p51 = por %p49, %p50
    %p53 = scmp.ne.s32.totalorder %s36, %s52
    %p54 = scmp.eq.s32.totalorder %s14, 0
    %p55 = por %p53, %p54
    %s57 = sadd.s32 %s56, 1
    %p60 = scmp.eq.s32.totalorder %s8, 15
    %p61 = scmp.ne.s32.totalorder %s56, %s58
    %p62 = scmp.eq.s32.totalorder %s8, 0
    %p63 = por %p61, %p62
    %p64 = scmp.ne.s32.totalorder %s56, %s58
    %p65 = scmp.eq.s32.totalorder %s13, 15
    %p66 = por %p64, %p65
    %p67 = scmp.ne.s32.totalorder %s58, %s59
    %p68 = scmp.eq.s32.totalorder %s13, 0
    %p69 = por %p67, %p68
    %p70 = scmp.ne.s32.totalorder %s58, %s59
    %p71 = scmp.eq.s32.totalorder %s14, 15
    %p72 = por %p70, %p71
    %p74 = scmp.ne.s32.totalorder %s59, %s73
    %p75 = scmp.eq.s32.totalorder %s14, 0
    %p76 = por %p74, %p75
    %s77 = ssub.s32 %s15, %s27
    %s78 = ssub.s32 %s16, %s23
    %s79 = sor.u32 %s77, %s78
    %p80 = scmp.eq.s32.totalorder %s79, 0
    %s82 = sadd.s32 %s81, 1
    %s83 = scalar_select %p80, %s81, %s82
    %p86 = pneg %p80
    %p87 = scmp.eq.s32.totalorder %s8, 15
    %p88 = por %p86, %p87
    %p89 = scmp.ne.s32.totalorder %s81, %s84
    %p90 = scmp.eq.s32.totalorder %s8, 0
    %p91 = por %p89, %p90
    %p92 = scmp.ne.s32.totalorder %s81, %s84
    %p93 = scmp.eq.s32.totalorder %s13, 15
    %p94 = por %p92, %p93
    %p95 = scmp.ne.s32.totalorder %s84, %s85
    %p96 = scmp.eq.s32.totalorder %s13, 0
    %p97 = por %p95, %p96
    %p98 = scmp.ne.s32.totalorder %s84, %s85
    %p99 = scmp.eq.s32.totalorder %s14, 15
    %p100 = por %p98, %p99
    %p102 = scmp.ne.s32.totalorder %s85, %s101
    %p103 = scmp.eq.s32.totalorder %s14, 0
    %p104 = por %p102, %p103
    %p105 = scmp.le.s32.totalorder 1, %s8
    %p106 = scmp.lt.s32.totalorder %s8, 17
    %p107 = pnand %p105, %p106
    %p108 = pneg %p107
    // Predicated region
    $region9: #{unet3d1d_forward.68} parent=5 // pred_check
      _
    $region10: #{unet3d1d_forward.68} parent=5 // pred_check_branch
      %110 = sbr.rel (%p107) target = $region12
    $region11: #{unet3d1d_forward.68} parent=5 // pred_region
      %s111 = ssub.s32 %s8, 1
      // Predicated region
      $region13: #{unet3d1d_forward.68} parent=11 // pred_check
        %p112 = pneg %p69
      $region14: #{unet3d1d_forward.68} parent=11 // pred_check_branch
        %114 = sbr.rel (%p112) target = $region16
      $region15: #{unet3d1d_forward.68} parent=11 // pred_region
        _
      $region16: #{unet3d1d_forward.68} parent=11 // pred_fallthru
        _
    $region12: #{unet3d1d_forward.68} parent=5 // pred_fallthru
      _
    %p115 = scmp.lt.s32.totalorder %s8, 16
    // Predicated region
    $region17: #{unet3d1d_forward.68} parent=5 // pred_check
      %p116 = pneg %p115
    $region18: #{unet3d1d_forward.68} parent=5 // pred_check_branch
      %118 = sbr.rel (%p116) target = $region20
    $region19: #{unet3d1d_forward.68} parent=5 // pred_region
      // Predicated region
      $region21: #{unet3d1d_forward.68} parent=19 // pred_check
        %p119 = pneg %p42
      $region22: #{unet3d1d_forward.68} parent=19 // pred_check_branch
        %121 = sbr.rel (%p119) target = $region24
      $region23: #{unet3d1d_forward.68} parent=19 // pred_region
        %p122 = scmp.lt.s32.totalorder %s15, 3
        %s123 = scalar_select %p122, %s15, 3
        %p124 = scmp.lt.s32.totalorder %s16, 3
        %s125 = scalar_select %p124, %s16, 3
        %s126 = smul.addr %s125, 2
        %s127 = smul.addr %s123, 8
        %s128 = sadd.s32 %s126, %s127
        %s129 = smul.addr %s128, 4
        %s130 = scalar_lea.vmem %s0, %s129
      $region24: #{unet3d1d_forward.68} parent=19 // pred_fallthru
        _
    $region20: #{unet3d1d_forward.68} parent=5 // pred_fallthru
      _
    %p131 = scmp.le.s32.totalorder 1, %s8
    %p132 = scmp.lt.s32.totalorder %s8, 17
    %p133 = pnand %p131, %p132
    %p134 = pneg %p133
    // Predicated region
    $region25: #{unet3d1d_forward.68} parent=5 // pred_check
      _
    $region26: #{unet3d1d_forward.68} parent=5 // pred_check_branch
      %136 = sbr.rel (%p133) target = $region28
    $region27: #{unet3d1d_forward.68} parent=5 // pred_region
      %s137 = ssub.s32 %s8, 1
      %p138 = scmp.lt.s32.totalorder %s17, 3
      %s139 = scalar_select %p138, %s17, 3
      %p140 = scmp.lt.s32.totalorder %s18, 3
      %s141 = scalar_select %p140, %s18, 3
      %s142 = smul.addr %s141, 2
      %s143 = smul.addr %s139, 8
      %s144 = sadd.s32 %s142, %s143
      %s145 = smul.addr %s144, 4
      %s146 = scalar_lea.vmem %s0, %s145
      %p147 = pneg %p48
      %p148 = pneg %p45
      %p149 = pneg %p69
      %p150 = pneg %p66
      %p151 = pneg %p97
      %p152 = pneg %p94
      %p153 = scmp.lt.s32.totalorder %s17, 3
      %s154 = scalar_select %p153, %s17, 3
      %p155 = scmp.lt.s32.totalorder %s18, 3
      %s156 = scalar_select %p155, %s18, 3
      %s157 = smul.addr %s156, 16
      %s158 = smul.addr %s154, 64
      %s159 = sadd.s32 %s157, %s158
      %s160 = smul.addr %s159, 2
      %s161 = scalar_lea.vmem %s2, %s160
      %p162 = scmp.lt.s32.totalorder %s17, 3
      %s163 = scalar_select %p162, %s17, 3
      %p164 = scmp.lt.s32.totalorder %s18, 3
      %s165 = scalar_select %p164, %s18, 3
      %s166 = smul.addr %s165, 2
      %s167 = smul.addr %s163, 8
      %s168 = sadd.s32 %s166, %s167
      %s169 = smul.addr %s168, 4
      %s170 = scalar_lea.vmem %s0, %s169
      %p171 = scmp.lt.s32.totalorder %s17, 3
      %s172 = scalar_select %p171, %s17, 3
      %p173 = scmp.lt.s32.totalorder %s18, 3
      %s174 = scalar_select %p173, %s18, 3
      %s175 = smul.addr %s174, 16
      %s176 = smul.addr %s172, 64
      %s177 = sadd.s32 %s175, %s176
      %s178 = smul.addr %s177, 2
      %s179 = scalar_lea.vmem %s2, %s178
      %v181 = vld [vmem:[%s170] sm:$0xf]
      %v182 = vld [vmem:[%s170 + $0x4] sm:$0xf]
      %v183 = vld [vmem:[%s1] sm:$0xf]
      %v186 = vunpack.c.l.b16 %v181
      %v187 = vunpack.c.l.b16 %v182
      %v188 = vpack.c.b16 %v187, %v186
      %vm189 = vcmask 64512
      %v191 = vsel %vm189, %v188, 0
      %vm193 = vcmask 1043456
      %v195 = vsel %vm193, %v183, 0
      %197 = vmatprep.subr.bf16.mxu0 0
      %198 = vmatpush1.bf16.msra.mxu0 0
      %199 = vmatprep.subr.bf16.mxu0 0
      %200 = vmatpush1.bf16.msra.mxu0 0
      %201 = vmatprep.subr.bf16.mxu0 0
      %202 = vmatpush1.bf16.msra.mxu0 0
      %203 = vmatprep.subr.bf16.mxu0 0
      %204 = vmatpush1.bf16.msra.mxu0 0
      %205 = vmatprep.subr.bf16.mxu0 0
      %206 = vmatpush1.bf16.msra.mxu0 0
      %207 = vmatprep.subr.bf16.mxu0 0
      %208 = vmatpush1.bf16.msra.mxu0 0
      %209 = vmatprep.subr.bf16.mxu0 0
      %210 = vmatpush1.bf16.msra.mxu0 0
      %211 = vmatprep.subr.bf16.mxu0 0
      %212 = vmatpush1.bf16.msra.mxu0 %v195
      %213 = vmatprep.subr.bf16.mxu0 0
      %214 = vmatpush2.bf16.msra.mxu0 0
      %215 = vmatprep.subr.bf16.mxu0 0
      %216 = vmatpush2.bf16.msra.mxu0 0
      %217 = vmatprep.subr.bf16.mxu0 0
      %218 = vmatpush2.bf16.msra.mxu0 0
      %219 = vmatprep.subr.bf16.mxu0 0
      %220 = vmatpush2.bf16.msra.mxu0 0
      %221 = vmatprep.subr.bf16.mxu0 0
      %222 = vmatpush2.bf16.msra.mxu0 0
      %223 = vmatprep.subr.bf16.mxu0 0
      %224 = vmatpush2.bf16.msra.mxu0 0
      %225 = vmatprep.subr.bf16.mxu0 0
      %226 = vmatpush2.bf16.msra.mxu0 0
      %227 = vmatprep.subr.bf16.mxu0 0
      %228 = vmatpush2.bf16.msra.mxu0 0
      %229 = vmatprep.mubr.bf16.mxu0 0
      %230 = vmatmul.mubr.bf16.gmra.mxu0 %v191
      %v231 = vpop.f32.mrf.mxu0
      %v232 = vadd.f32 0.0, %v231
      %v233 = vpop.f32.mrf.mxu0
      %v234 = vpop.f32.mrf.mxu0
      %v235 = vadd.f32 0.0, %v234
      %v236 = vpop.f32.mrf.mxu0
      %237 = vdwg.mxu0
      %v240 = vcombine.high %v232, %v232
      %v241 = vcombine.high %v235, %v235
      %v244 = vpack.c.bf16 %v232, %v232
      %v245 = vpack.c.bf16 %v240, %v240
      %v246 = vpack.c.bf16 %v235, %v235
      %v247 = vpack.c.bf16 %v241, %v241
      %vm248 = vcmask 58368
      %249 = vst.msk [vmem:[%s179] sm:$0x3] %vm248, %v244
      %250 = vst.msk [vmem:[%s179 + $0x4] sm:$0x3] %vm248, %v245
      %251 = vst.msk [vmem:[%s179 + $0x8] sm:$0x3] %vm248, %v246
      %252 = vst.msk [vmem:[%s179 + $0xc] sm:$0x3] %vm248, %v247
      %v258 = vunpack.c.l.s4 1983009808
      %v259 = vunpack.c.0.s8 %v258
      %v260 = vlaneseq
      %v261 = vshrl.u32 %v260, 7
      %v262 = vsub.s32 %v259, %v261
      %v263 = vrot.slane %v244, %v262
      %v265 = vunpack.c.l.s4 1983009808
      %v266 = vunpack.c.0.s8 %v265
      %v267 = vlaneseq
      %v268 = vshrl.u32 %v267, 7
      %v269 = vsub.s32 %v266, %v268
      %v270 = vrot.slane %v245, %v269
      %v272 = vunpack.c.l.s4 1983009808
      %v273 = vunpack.c.0.s8 %v272
      %v274 = vlaneseq
      %v275 = vshrl.u32 %v274, 7
      %v276 = vsub.s32 %v273, %v275
      %v277 = vrot.slane %v246, %v276
      %v279 = vunpack.c.l.s4 1983009808
      %v280 = vunpack.c.0.s8 %v279
      %v281 = vlaneseq
      %v282 = vshrl.u32 %v281, 7
      %v283 = vsub.s32 %v280, %v282
      %v284 = vrot.slane %v247, %v283
      %285 = vrot.lane.b32.xlu0 %v263, 120
      %v286 = vpop.permute.xlu0 %285
      %287 = vrot.lane.b32.xlu0 %v270, 120
      %v288 = vpop.permute.xlu0 %287
      %289 = vrot.lane.b32.xlu0 %v277, 120
      %v290 = vpop.permute.xlu0 %289
      %291 = vrot.lane.b32.xlu0 %v284, 120
      %v292 = vpop.permute.xlu0 %291
      %s297 = scalar_lea.vmem %s179, 2
      %298 = vst.msk [vmem:[%s297] sm:$0x3] %vm248, %v286
      %299 = vst.msk [vmem:[%s297 + $0x4] sm:$0x3] %vm248, %v288
      %300 = vst.msk [vmem:[%s297 + $0x8] sm:$0x3] %vm248, %v290
      %301 = vst.msk [vmem:[%s297 + $0xc] sm:$0x3] %vm248, %v292
      %302 = vrot.lane.b32.xlu0 %v263, 112
      %v303 = vpop.permute.xlu0 %302
      %304 = vrot.lane.b32.xlu0 %v270, 112
      %v305 = vpop.permute.xlu0 %304
      %306 = vrot.lane.b32.xlu0 %v277, 112
      %v307 = vpop.permute.xlu0 %306
      %308 = vrot.lane.b32.xlu0 %v284, 112
      %v309 = vpop.permute.xlu0 %308
      %s314 = scalar_lea.vmem %s179, 16
      %315 = vst.msk [vmem:[%s314] sm:$0x3] %vm248, %v303
      %316 = vst.msk [vmem:[%s314 + $0x4] sm:$0x3] %vm248, %v305
      %317 = vst.msk [vmem:[%s314 + $0x8] sm:$0x3] %vm248, %v307
      %318 = vst.msk [vmem:[%s314 + $0xc] sm:$0x3] %vm248, %v309
      %319 = vrot.lane.b32.xlu0 %v263, 104
      %v320 = vpop.permute.xlu0 %319
      %321 = vrot.lane.b32.xlu0 %v270, 104
      %v322 = vpop.permute.xlu0 %321
      %323 = vrot.lane.b32.xlu0 %v277, 104
      %v324 = vpop.permute.xlu0 %323
      %325 = vrot.lane.b32.xlu0 %v284, 104
      %v326 = vpop.permute.xlu0 %325
      %s331 = scalar_lea.vmem %s179, 18
      %332 = vst.msk [vmem:[%s331] sm:$0x3] %vm248, %v320
      %333 = vst.msk [vmem:[%s331 + $0x4] sm:$0x3] %vm248, %v322
      %334 = vst.msk [vmem:[%s331 + $0x8] sm:$0x3] %vm248, %v324
      %335 = vst.msk [vmem:[%s331 + $0xc] sm:$0x3] %vm248, %v326
      %p336 = scmp.lt.s32.totalorder %s17, 3
      %s337 = scalar_select %p336, %s17, 3
      %p338 = scmp.lt.s32.totalorder %s18, 3
      %s339 = scalar_select %p338, %s18, 3
      %s340 = smul.addr %s339, 16
      %s341 = smul.addr %s337, 64
      %s342 = sadd.s32 %s340, %s341
      %s343 = smul.addr %s342, 2
      %s344 = scalar_lea.vmem %s2, %s343
      // Predicated region
      $region29: #{unet3d1d_forward.68} parent=27 // pred_check
        %p345 = pneg %p94
      $region30: #{unet3d1d_forward.68} parent=27 // pred_check_branch
        %347 = sbr.rel (%p345) target = $region32
      $region31: #{unet3d1d_forward.68} parent=27 // pred_region
        _
      $region32: #{unet3d1d_forward.68} parent=27 // pred_fallthru
        _
    $region28: #{unet3d1d_forward.68} parent=5 // pred_fallthru
      _
    %p348 = scmp.le.s32.totalorder 2, %s8
    // Predicated region
    $region33: #{unet3d1d_forward.68} parent=5 // pred_check
      %p349 = pneg %p348
    $region34: #{unet3d1d_forward.68} parent=5 // pred_check_branch
      %351 = sbr.rel (%p349) target = $region36
    $region35: #{unet3d1d_forward.68} parent=5 // pred_region
      %s352 = ssub.s32 %s8, 2
      // Predicated region
      $region37: #{unet3d1d_forward.68} parent=35 // pred_check
        %p353 = pneg %p100
      $region38: #{unet3d1d_forward.68} parent=35 // pred_check_branch
        %355 = sbr.rel (%p353) target = $region40
      $region39: #{unet3d1d_forward.68} parent=35 // pred_region
        %p356 = scmp.lt.s32.totalorder %s19, 3
        %s357 = scalar_select %p356, %s19, 3
        %p358 = scmp.lt.s32.totalorder %s20, 3
        %s359 = scalar_select %p358, %s20, 3
        %s360 = smul.addr %s359, 16
        %s361 = smul.addr %s357, 64
        %s362 = sadd.s32 %s360, %s361
        %s363 = smul.addr %s362, 2
        %s364 = scalar_lea.vmem %s2, %s363
      $region40: #{unet3d1d_forward.68} parent=35 // pred_fallthru
        _
    $region36: #{unet3d1d_forward.68} parent=5 // pred_fallthru
      _
  $region6: #{unet3d1d_forward.68} parent=0 // loop_footer
    %s12 = sadd.s32 1, %s8
  $region7: #{unet3d1d_forward.68} parent=0 // loop_footer_branch
    %7 = sbr.rel target = $region3
  $region8: #{unet3d1d_forward.68} parent=0 // loop_exit
    _

// kernel: unet3d1d_forward.71
$region0: #{unet3d1d_forward.71}
  #allocation0 [shape = 'u32[]', space=smem, size = 0x4, offset = 0x4, fixed_abs, tag = 'smem constant byte address 0x4 - core index']
  #allocation1 [shape = 'u32[144,128]{1,0:T(1,128)}', space=vmem, size = 0x12000, scoped, tag = 'internal scratch']
  #allocation2 [shape = 'f32[64,4]{1,0:T(8,128)}', space=vmem, size = 0x8000, scoped, tag = 'scratch operand']
  %s0 = inlined_call_operand.vmem [shape: bf16[4,10,80,24], index: 0, kind: input, shape index: {}]
  %s1 = inlined_call_operand.vmem [shape: bf16[3,3,24,4], index: 1, kind: input, shape index: {}]
  %s2 = inlined_call_operand.vmem [shape: bf16[4,8,64,4], index: 2, kind: output, shape index: {}]
  %s3 = sld [smem:[#allocation0]]
  $region49: #{unet3d1d_forward.71} parent=0
    _
  %s5 = ssub.s32 1, %s3
  %s6 = scalar_select 0, %s5, %s3
  loop: start=0, step=1, limit=98
  $region2: #{unet3d1d_forward.71} parent=0 // loop_pre_header
    _
  $region3: #{unet3d1d_forward.71} parent=0 // loop_header
    %s8 = sphi 0, %s12
    %p9 = scmp.ge.s32.totalorder %s8, 98
    %s15 = sphi 0, %s34
    %s16 = sphi 0, %s30
    %s17 = sphi 0, %s26
    %s18 = sphi 0, %s15
    %s19 = sphi 0, %s16
    %s20 = sphi 0, %s17
    %s21 = sphi 0, %s18
    %s22 = sphi 0, %s19
    %s23 = sphi 0, %s20
    %s41 = sphi 0, %s43
    %s44 = sphi 0, %s41
    %s45 = sphi 0, %s44
    %s61 = sphi 0, %s45
    %s67 = sphi 0, %s69
    %s70 = sphi 0, %s67
    %s71 = sphi 0, %s70
    %s87 = sphi 0, %s71
    %s95 = sphi 0, %s97
    %s98 = sphi 0, %s95
    %s99 = sphi 0, %s98
    %s115 = sphi 0, %s99
  $region4: #{unet3d1d_forward.71} parent=0 // loop_header_branch
    %11 = sbr.rel (%p9) target = $region8
  $region5: #{unet3d1d_forward.71} parent=0 // loop_body
    %s13 = ssub.s32 %s8, 1
    %s14 = ssub.s32 %s8, 2
    %s24 = sadd.s32 1, %s17
    %p25 = scmp.ge.s32.totalorder %s24, 3
    %s26 = scalar_select %p25, 0, %s24
    %s27 = sadd.s32 1, %s16
    %s28 = scalar_select %p25, %s27, %s16
    %p29 = scmp.ge.s32.totalorder %s28, 8
    %s30 = scalar_select %p29, 0, %s28
    %s31 = sadd.s32 1, %s15
    %s32 = scalar_select %p29, %s31, %s15
    %p33 = scmp.ge.s32.totalorder %s32, 4
    %s34 = scalar_select %p33, 0, %s32
    %s35 = sadd.s32 %s16, %s17
    %s36 = sadd.s32 %s30, %s26
    %s37 = ssub.s32 %s15, %s34
    %s38 = ssub.s32 %s35, %s36
    %s39 = sor.u32 %s37, %s38
    %p40 = scmp.eq.s32.totalorder %s39, 0
    %s42 = sadd.s32 %s41, 1
    %s43 = scalar_select %p40, %s41, %s42
    %p46 = pneg %p40
    %p47 = scmp.eq.s32.totalorder %s8, 95
    %p48 = por %p46, %p47
    %p49 = scmp.ne.s32.totalorder %s41, %s44
    %p50 = scmp.eq.s32.totalorder %s8, 0
    %p51 = por %p49, %p50
    %p52 = scmp.ne.s32.totalorder %s41, %s44
    %p53 = scmp.eq.s32.totalorder %s13, 95
    %p54 = por %p52, %p53
    %p55 = scmp.ne.s32.totalorder %s44, %s45
    %p56 = scmp.eq.s32.totalorder %s13, 0
    %p57 = por %p55, %p56
    %p58 = scmp.ne.s32.totalorder %s44, %s45
    %p59 = scmp.eq.s32.totalorder %s14, 95
    %p60 = por %p58, %p59
    %p62 = scmp.ne.s32.totalorder %s45, %s61
    %p63 = scmp.eq.s32.totalorder %s14, 0
    %p64 = por %p62, %p63
    %s65 = ssub.s32 %s17, %s26
    %p66 = scmp.eq.s32.totalorder %s65, 0
    %s68 = sadd.s32 %s67, 1
    %s69 = scalar_select %p66, %s67, %s68
    %p72 = pneg %p66
    %p73 = scmp.eq.s32.totalorder %s8, 95
    %p74 = por %p72, %p73
    %p75 = scmp.ne.s32.totalorder %s67, %s70
    %p76 = scmp.eq.s32.totalorder %s8, 0
    %p77 = por %p75, %p76
    %p78 = scmp.ne.s32.totalorder %s67, %s70
    %p79 = scmp.eq.s32.totalorder %s13, 95
    %p80 = por %p78, %p79
    %p81 = scmp.ne.s32.totalorder %s70, %s71
    %p82 = scmp.eq.s32.totalorder %s13, 0
    %p83 = por %p81, %p82
    %p84 = scmp.ne.s32.totalorder %s70, %s71
    %p85 = scmp.eq.s32.totalorder %s14, 95
    %p86 = por %p84, %p85
    %p88 = scmp.ne.s32.totalorder %s71, %s87
    %p89 = scmp.eq.s32.totalorder %s14, 0
    %p90 = por %p88, %p89
    %s91 = ssub.s32 %s15, %s34
    %s92 = ssub.s32 %s16, %s30
    %s93 = sor.u32 %s91, %s92
    %p94 = scmp.eq.s32.totalorder %s93, 0
    %s96 = sadd.s32 %s95, 1
    %s97 = scalar_select %p94, %s95, %s96
    %p100 = pneg %p94
    %p101 = scmp.eq.s32.totalorder %s8, 95
    %p102 = por %p100, %p101
    %p103 = scmp.ne.s32.totalorder %s95, %s98
    %p104 = scmp.eq.s32.totalorder %s8, 0
    %p105 = por %p103, %p104
    %p106 = scmp.ne.s32.totalorder %s95, %s98
    %p107 = scmp.eq.s32.totalorder %s13, 95
    %p108 = por %p106, %p107
    %p109 = scmp.ne.s32.totalorder %s98, %s99
    %p110 = scmp.eq.s32.totalorder %s13, 0
    %p111 = por %p109, %p110
    %p112 = scmp.ne.s32.totalorder %s98, %s99
    %p113 = scmp.eq.s32.totalorder %s14, 95
    %p114 = por %p112, %p113
    %p116 = scmp.ne.s32.totalorder %s99, %s115
    %p117 = scmp.eq.s32.totalorder %s14, 0
    %p118 = por %p116, %p117
    %p119 = scmp.le.s32.totalorder 1, %s8
    %p120 = scmp.lt.s32.totalorder %s8, 97
    %p121 = pnand %p119, %p120
    %p122 = pneg %p121
    // Predicated region
    $region9: #{unet3d1d_forward.71} parent=5 // pred_check
      _
    $region10: #{unet3d1d_forward.71} parent=5 // pred_check_branch
      %124 = sbr.rel (%p121) target = $region12
    $region11: #{unet3d1d_forward.71} parent=5 // pred_region
      %s125 = ssub.s32 %s8, 1
    $region12: #{unet3d1d_forward.71} parent=5 // pred_fallthru
      _
    %p126 = scmp.lt.s32.totalorder %s8, 96
    // Predicated region
    $region13: #{unet3d1d_forward.71} parent=5 // pred_check
      %p127 = pneg %p126
    $region14: #{unet3d1d_forward.71} parent=5 // pred_check_branch
      %129 = sbr.rel (%p127) target = $region16
    $region15: #{unet3d1d_forward.71} parent=5 // pred_region
      // Predicated region
      $region17: #{unet3d1d_forward.71} parent=15 // pred_check
        %p130 = pneg %p51
      $region18: #{unet3d1d_forward.71} parent=15 // pred_check_branch
        %132 = sbr.rel (%p130) target = $region20
      $region19: #{unet3d1d_forward.71} parent=15 // pred_region
        %s133 = sadd.s32 %s16, %s17
        %p134 = scmp.lt.s32.totalorder %s15, 3
        %s135 = scalar_select %p134, %s15, 3
        %p136 = scmp.lt.s32.totalorder %s133, 9
        %s137 = scalar_select %p136, %s133, 9
        %s138 = smul.addr %s137, 10
        %s139 = smul.addr %s135, 100
        %s140 = sadd.s32 %s138, %s139
        %s141 = smul.addr %s140, 4
        %s142 = scalar_lea.vmem %s0, %s141
        %s143 = sadd.s32 %s16, %s17
      $region20: #{unet3d1d_forward.71} parent=15 // pred_fallthru
        _
      // Predicated region
      $region21: #{unet3d1d_forward.71} parent=15 // pred_check
        %p144 = pneg %p77
      $region22: #{unet3d1d_forward.71} parent=15 // pred_check_branch
        %146 = sbr.rel (%p144) target = $region24
      $region23: #{unet3d1d_forward.71} parent=15 // pred_region
        %p147 = scmp.lt.s32.totalorder %s17, 2
        %s148 = scalar_select %p147, %s17, 2
        %s149 = smul.addr %s148, 9
        %s150 = smul.addr %s149, 4
        %s151 = scalar_lea.vmem %s1, %s150
      $region24: #{unet3d1d_forward.71} parent=15 // pred_fallthru
        _
    $region16: #{unet3d1d_forward.71} parent=5 // pred_fallthru
      _
    %p152 = scmp.le.s32.totalorder 1, %s8
    %p153 = scmp.lt.s32.totalorder %s8, 97
    %p154 = pnand %p152, %p153
    %p155 = pneg %p154
    // Predicated region
    $region25: #{unet3d1d_forward.71} parent=5 // pred_check
      _
    $region26: #{unet3d1d_forward.71} parent=5 // pred_check_branch
      %157 = sbr.rel (%p154) target = $region28
    $region27: #{unet3d1d_forward.71} parent=5 // pred_region
      %s158 = ssub.s32 %s8, 1
      %s159 = sadd.s32 %s19, %s20
      %p160 = scmp.lt.s32.totalorder %s18, 3
      %s161 = scalar_select %p160, %s18, 3
      %p162 = scmp.lt.s32.totalorder %s159, 9
      %s163 = scalar_select %p162, %s159, 9
      %s164 = smul.addr %s163, 10
      %s165 = smul.addr %s161, 100
      %s166 = sadd.s32 %s164, %s165
      %s167 = smul.addr %s166, 4
      %s168 = scalar_lea.vmem %s0, %s167
      %p169 = pneg %p57
      %p170 = pneg %p54
      %p171 = scmp.lt.s32.totalorder %s20, 2
      %s172 = scalar_select %p171, %s20, 2
      %s173 = smul.addr %s172, 9
      %s174 = smul.addr %s173, 4
      %s175 = scalar_lea.vmem %s1, %s174
      %p176 = pneg %p83
      %p177 = pneg %p80
      %p178 = pneg %p111
      %p179 = pneg %p108
      %p180 = scmp.lt.s32.totalorder %s18, 3
      %s181 = scalar_select %p180, %s18, 3
      %p182 = scmp.lt.s32.totalorder %s19, 7
      %s183 = scalar_select %p182, %s19, 7
      %s184 = smul.addr %s183, 8
      %s185 = smul.addr %s181, 64
      %s186 = sadd.s32 %s184, %s185
      %s187 = smul.addr %s186, 4
      %s188 = scalar_lea.vmem %s2, %s187
      %s189 = sadd.s32 %s19, %s20
      %p190 = scmp.lt.s32.totalorder %s18, 3
      %s191 = scalar_select %p190, %s18, 3
      %p192 = scmp.lt.s32.totalorder %s189, 9
      %s193 = scalar_select %p192, %s189, 9
      %s194 = smul.addr %s193, 10
      %s195 = smul.addr %s191, 100
      %s196 = sadd.s32 %s194, %s195
      %s197 = smul.addr %s196, 4
      %s198 = scalar_lea.vmem %s0, %s197
      %s199 = sadd.s32 %s19, %s20
      %p200 = scmp.lt.s32.totalorder %s20, 2
      %s201 = scalar_select %p200, %s20, 2
      %s202 = smul.addr %s201, 9
      %s203 = smul.addr %s202, 4
      %s204 = scalar_lea.vmem %s1, %s203
      %p205 = scmp.lt.s32.totalorder %s18, 3
      %s206 = scalar_select %p205, %s18, 3
      %p207 = scmp.lt.s32.totalorder %s19, 7
      %s208 = scalar_select %p207, %s19, 7
      %s209 = smul.addr %s208, 8
      %s210 = smul.addr %s206, 64
      %s211 = sadd.s32 %s209, %s210
      %s212 = smul.addr %s211, 4
      %s213 = scalar_lea.vmem %s2, %s212
      %p215 = scmp.eq.s32.totalorder %s20, 0
      // Predicated region
      $region29: #{unet3d1d_forward.71} parent=27 // pred_check
        %p216 = pneg %p215
      $region30: #{unet3d1d_forward.71} parent=27 // pred_check_branch
        %218 = sbr.rel (%p216) target = $region32
      $region31: #{unet3d1d_forward.71} parent=27 // pred_region
        %vm219 = vcmask 31744
        %220 = vst.msk [vmem:[#allocation2] sm:$0xff] %vm219, 0.0
        %221 = vst.msk [vmem:[#allocation2 + $0x8] sm:$0xff] %vm219, 0.0
        %222 = vst.msk [vmem:[#allocation2 + $0x10] sm:$0xff] %vm219, 0.0
        %223 = vst.msk [vmem:[#allocation2 + $0x18] sm:$0xff] %vm219, 0.0
        %224 = vst.msk [vmem:[#allocation2 + $0x20] sm:$0xff] %vm219, 0.0
        %225 = vst.msk [vmem:[#allocation2 + $0x28] sm:$0xff] %vm219, 0.0
        %226 = vst.msk [vmem:[#allocation2 + $0x30] sm:$0xff] %vm219, 0.0
        %227 = vst.msk [vmem:[#allocation2 + $0x38] sm:$0xff] %vm219, 0.0
      $region32: #{unet3d1d_forward.71} parent=27 // pred_fallthru
        _
      %v228 = vld [vmem:[#allocation2] sm:$0xff]
      %v229 = vld [vmem:[#allocation2 + $0x8] sm:$0xff]
      %v230 = vld [vmem:[#allocation2 + $0x10] sm:$0xff]
      %v231 = vld [vmem:[#allocation2 + $0x18] sm:$0xff]
      %v232 = vld [vmem:[#allocation2 + $0x20] sm:$0xff]
      %v233 = vld [vmem:[#allocation2 + $0x28] sm:$0xff]
      %v234 = vld [vmem:[#allocation2 + $0x30] sm:$0xff]
      %v235 = vld [vmem:[#allocation2 + $0x38] sm:$0xff]
      %v236 = vld [vmem:[%s198] sm:$0xf]
      %v237 = vld [vmem:[%s198 + $0x4] sm:$0xf]
      %v238 = vld [vmem:[%s198 + $0x8] sm:$0xf]
      %v239 = vld [vmem:[%s198 + $0xc] sm:$0xf]
      %v240 = vld [vmem:[%s198 + $0x10] sm:$0xf]
      %v241 = vld [vmem:[%s198 + $0x14] sm:$0xf]
      %v242 = vld [vmem:[%s198 + $0x18] sm:$0xf]
      %v243 = vld [vmem:[%s198 + $0x1c] sm:$0xf]
      %v244 = vld [vmem:[%s204] sm:$0xf]
      %v245 = vld [vmem:[%s204 + $0x4] sm:$0xf]
      %v246 = vld [vmem:[%s204 + $0x8] sm:$0xf]
      %v255 = vunpack.c.l.b16 %v236
      %v256 = vunpack.c.l.b16 %v237
      %v257 = vunpack.c.l.b16 %v238
      %v258 = vunpack.c.l.b16 %v239
      %v259 = vunpack.c.l.b16 %v240
      %v260 = vunpack.c.l.b16 %v241
      %v261 = vunpack.c.l.b16 %v242
      %v262 = vunpack.c.l.b16 %v243
      %v263 = vpack.c.b16 %v256, %v255
      %v264 = vpack.c.b16 %v258, %v257
      %v265 = vpack.c.b16 %v260, %v259
      %v266 = vpack.c.b16 %v262, %v261
      %v270 = vunpack.c.l.b16 %v244
      %v271 = vunpack.c.l.b16 %v245
      %v272 = vunpack.c.l.b16 %v246
      %v273 = vpack.c.b16 %v271, %v270
      %v274 = vpack.c.b16 %v272, %v272
      %vm276 = vcmask 195584
      %v278 = vsel %vm276, %v263, 0
      %v281 = vsel %vm276, %v264, 0
      %v284 = vsel %vm276, %v265, 0
      %v287 = vsel %vm276, %v266, 0
      %vm289 = vcmask 1043456
      %v291 = vsel %vm289, %v274, 0
      %293 = vmatprep.subr.bf16.mxu0 0
      %294 = vmatpush1.bf16.msra.mxu0 0
      %295 = vmatprep.subr.bf16.mxu0 0
      %296 = vmatpush1.bf16.msra.mxu0 0
      %297 = vmatprep.subr.bf16.mxu0 0
      %298 = vmatpush1.bf16.msra.mxu0 0
      %299 = vmatprep.subr.bf16.mxu0 0
      %300 = vmatpush1.bf16.msra.mxu0 0
      %301 = vmatprep.subr.bf16.mxu0 0
      %302 = vmatpush1.bf16.msra.mxu0 0
      %303 = vmatprep.subr.bf16.mxu0 0
      %304 = vmatpush1.bf16.msra.mxu0 0
      %305 = vmatprep.subr.bf16.mxu0 0
      %306 = vmatpush1.bf16.msra.mxu0 %v291
      %307 = vmatprep.subr.bf16.mxu0 0
      %308 = vmatpush1.bf16.msra.mxu0 %v273
      %309 = vmatprep.subr.bf16.mxu0 0
      %310 = vmatpush2.bf16.msra.mxu0 0
      %311 = vmatprep.subr.bf16.mxu0 0
      %312 = vmatpush2.bf16.msra.mxu0 0
      %313 = vmatprep.subr.bf16.mxu0 0
      %314 = vmatpush2.bf16.msra.mxu0 0
      %315 = vmatprep.subr.bf16.mxu0 0
      %316 = vmatpush2.bf16.msra.mxu0 0
      %317 = vmatprep.subr.bf16.mxu0 0
      %318 = vmatpush2.bf16.msra.mxu0 0
      %319 = vmatprep.subr.bf16.mxu0 0
      %320 = vmatpush2.bf16.msra.mxu0 0
      %321 = vmatprep.subr.bf16.mxu0 0
      %322 = vmatpush2.bf16.msra.mxu0 0
      %323 = vmatprep.subr.bf16.mxu0 0
      %324 = vmatpush2.bf16.msra.mxu0 0
      %325 = vmatprep.mubr.bf16.mxu0 0
      %326 = vmatmul.mubr.bf16.gmra.mxu0 %v278
      %v327 = vpop.f32.mrf.mxu0
      %v328 = vadd.f32 0.0, %v327
      %v329 = vpop.f32.mrf.mxu0
      %v330 = vpop.f32.mrf.mxu0
      %v331 = vadd.f32 0.0, %v330
      %v332 = vpop.f32.mrf.mxu0
      %333 = vmatprep.mubr.bf16.mxu0 0
      %334 = vmatmul.mubr.bf16.gmra.mxu0 %v281
      %v335 = vpop.f32.mrf.mxu0
      %v336 = vadd.f32 0.0, %v335
      %v337 = vpop.f32.mrf.mxu0
      %v338 = vpop.f32.mrf.mxu0
      %v339 = vadd.f32 0.0, %v338
      %v340 = vpop.f32.mrf.mxu0
      %341 = vmatprep.mubr.bf16.mxu0 0
      %342 = vmatmul.mubr.bf16.gmra.mxu0 %v284
      %v343 = vpop.f32.mrf.mxu0
      %v344 = vadd.f32 0.0, %v343
      %v345 = vpop.f32.mrf.mxu0
      %v346 = vpop.f32.mrf.mxu0
      %v347 = vadd.f32 0.0, %v346
      %v348 = vpop.f32.mrf.mxu0
      %349 = vmatprep.mubr.bf16.mxu0 0
      %350 = vmatmul.mubr.bf16.gmra.mxu0 %v287
      %v351 = vpop.f32.mrf.mxu0
      %v352 = vadd.f32 0.0, %v351
      %v353 = vpop.f32.mrf.mxu0
      %v354 = vpop.f32.mrf.mxu0
      %v355 = vadd.f32 0.0, %v354
      %v356 = vpop.f32.mrf.mxu0
      %357 = vdwg.mxu0
      %v358 = vadd.f32 %v228, %v328
      %v359 = vadd.f32 %v229, %v331
      %v360 = vadd.f32 %v230, %v336
      %v361 = vadd.f32 %v231, %v339
      %v362 = vadd.f32 %v232, %v344
      %v363 = vadd.f32 %v233, %v347
      %v364 = vadd.f32 %v234, %v352
      %v365 = vadd.f32 %v235, %v355
      %vm366 = vcmask 31744
      %367 = vst.msk [vmem:[#allocation2] sm:$0xff] %vm366, %v358
      %368 = vst.msk [vmem:[#allocation2 + $0x8] sm:$0xff] %vm366, %v359
      %369 = vst.msk [vmem:[#allocation2 + $0x10] sm:$0xff] %vm366, %v360
      %370 = vst.msk [vmem:[#allocation2 + $0x18] sm:$0xff] %vm366, %v361
      %371 = vst.msk [vmem:[#allocation2 + $0x20] sm:$0xff] %vm366, %v362
      %372 = vst.msk [vmem:[#allocation2 + $0x28] sm:$0xff] %vm366, %v363
      %373 = vst.msk [vmem:[#allocation2 + $0x30] sm:$0xff] %vm366, %v364
      %374 = vst.msk [vmem:[#allocation2 + $0x38] sm:$0xff] %vm366, %v365
      %v375 = vld [vmem:[#allocation2] sm:$0xff]
      %v376 = vld [vmem:[#allocation2 + $0x8] sm:$0xff]
      %v377 = vld [vmem:[#allocation2 + $0x10] sm:$0xff]
      %v378 = vld [vmem:[#allocation2 + $0x18] sm:$0xff]
      %v379 = vld [vmem:[#allocation2 + $0x20] sm:$0xff]
      %v380 = vld [vmem:[#allocation2 + $0x28] sm:$0xff]
      %v381 = vld [vmem:[#allocation2 + $0x30] sm:$0xff]
      %v382 = vld [vmem:[#allocation2 + $0x38] sm:$0xff]
      %v383 = vld [vmem:[%s198 + $0x4] sm:$0xf]
      %v384 = vld [vmem:[%s198 + $0x8] sm:$0xf]
      %v385 = vld [vmem:[%s198 + $0xc] sm:$0xf]
      %v386 = vld [vmem:[%s198 + $0x10] sm:$0xf]
      %v387 = vld [vmem:[%s198 + $0x14] sm:$0xf]
      %v388 = vld [vmem:[%s198 + $0x18] sm:$0xf]
      %v389 = vld [vmem:[%s198 + $0x1c] sm:$0xf]
      %v390 = vld [vmem:[%s198 + $0x20] sm:$0xf]
      %s391 = scalar_lea.vmem %s204, 12
      %v392 = vld [vmem:[%s391] sm:$0xf]
      %v393 = vld [vmem:[%s391 + $0x4] sm:$0xf]
      %v394 = vld [vmem:[%s391 + $0x8] sm:$0xf]
      %v403 = vunpack.c.l.b16 %v383
      %v404 = vunpack.c.l.b16 %v384
      %v405 = vunpack.c.l.b16 %v385
      %v406 = vunpack.c.l.b16 %v386
      %v407 = vunpack.c.l.b16 %v387
      %v408 = vunpack.c.l.b16 %v388
      %v409 = vunpack.c.l.b16 %v389
      %v410 = vunpack.c.l.b16 %v390
      %v411 = vpack.c.b16 %v404, %v403
      %v412 = vpack.c.b16 %v406, %v405
      %v413 = vpack.c.b16 %v408, %v407
      %v414 = vpack.c.b16 %v410, %v409
      %v418 = vunpack.c.l.b16 %v392
      %v419 = vunpack.c.l.b16 %v393
      %v420 = vunpack.c.l.b16 %v394
      %v421 = vpack.c.b16 %v419, %v418
      %v422 = vpack.c.b16 %v420, %v420
      %v425 = vsel %vm276, %v411, 0
      %v428 = vsel %vm276, %v412, 0
      %v431 = vsel %vm276, %v413, 0
      %v434 = vsel %vm276, %v414, 0
      %v437 = vsel %vm289, %v422, 0
      %439 = vmatprep.subr.bf16.mxu0 0
      %440 = vmatpush1.bf16.msra.mxu0 0
      %441 = vmatprep.subr.bf16.mxu0 0
      %442 = vmatpush1.bf16.msra.mxu0 0
      %443 = vmatprep.subr.bf16.mxu0 0
      %444 = vmatpush1.bf16.msra.mxu0 0
      %445 = vmatprep.subr.bf16.mxu0 0
      %446 = vmatpush1.bf16.msra.mxu0 0
      %447 = vmatprep.subr.bf16.mxu0 0
      %448 = vmatpush1.bf16.msra.mxu0 0
      %449 = vmatprep.subr.bf16.mxu0 0
      %450 = vmatpush1.bf16.msra.mxu0 0
      %451 = vmatprep.subr.bf16.mxu0 0
      %452 = vmatpush1.bf16.msra.mxu0 %v437
      %453 = vmatprep.subr.bf16.mxu0 0
      %454 = vmatpush1.bf16.msra.mxu0 %v421
      %455 = vmatprep.subr.bf16.mxu0 0
      %456 = vmatpush2.bf16.msra.mxu0 0
      %457 = vmatprep.subr.bf16.mxu0 0
      %458 = vmatpush2.bf16.msra.mxu0 0
      %459 = vmatprep.subr.bf16.mxu0 0
      %460 = vmatpush2.bf16.msra.mxu0 0
      %461 = vmatprep.subr.bf16.mxu0 0
      %462 = vmatpush2.bf16.msra.mxu0 0
      %463 = vmatprep.subr.bf16.mxu0 0
      %464 = vmatpush2.bf16.msra.mxu0 0
      %465 = vmatprep.subr.bf16.mxu0 0
      %466 = vmatpush2.bf16.msra.mxu0 0
      %467 = vmatprep.subr.bf16.mxu0 0
      %468 = vmatpush2.bf16.msra.mxu0 0
      %469 = vmatprep.subr.bf16.mxu0 0
      %470 = vmatpush2.bf16.msra.mxu0 0
      %471 = vmatprep.mubr.bf16.mxu0 0
      %472 = vmatmul.mubr.bf16.gmra.mxu0 %v425
      %v473 = vpop.f32.mrf.mxu0
      %v474 = vadd.f32 0.0, %v473
      %v475 = vpop.f32.mrf.mxu0
      %v476 = vpop.f32.mrf.mxu0
      %v477 = vadd.f32 0.0, %v476
      %v478 = vpop.f32.mrf.mxu0
      %479 = vmatprep.mubr.bf16.mxu0 0
      %480 = vmatmul.mubr.bf16.gmra.mxu0 %v428
      %v481 = vpop.f32.mrf.mxu0
      %v482 = vadd.f32 0.0, %v481
      %v483 = vpop.f32.mrf.mxu0
      %v484 = vpop.f32.mrf.mxu0
      %v485 = vadd.f32 0.0, %v484
      %v486 = vpop.f32.mrf.mxu0
      %487 = vmatprep.mubr.bf16.mxu0 0
      %488 = vmatmul.mubr.bf16.gmra.mxu0 %v431
      %v489 = vpop.f32.mrf.mxu0
      %v490 = vadd.f32 0.0, %v489
      %v491 = vpop.f32.mrf.mxu0
      %v492 = vpop.f32.mrf.mxu0
      %v493 = vadd.f32 0.0, %v492
      %v494 = vpop.f32.mrf.mxu0
      %495 = vmatprep.mubr.bf16.mxu0 0
      %496 = vmatmul.mubr.bf16.gmra.mxu0 %v434
      %v497 = vpop.f32.mrf.mxu0
      %v498 = vadd.f32 0.0, %v497
      %v499 = vpop.f32.mrf.mxu0
      %v500 = vpop.f32.mrf.mxu0
      %v501 = vadd.f32 0.0, %v500
      %v502 = vpop.f32.mrf.mxu0
      %503 = vdwg.mxu0
      %v504 = vadd.f32 %v375, %v474
      %v505 = vadd.f32 %v376, %v477
      %v506 = vadd.f32 %v377, %v482
      %v507 = vadd.f32 %v378, %v485
      %v508 = vadd.f32 %v379, %v490
      %v509 = vadd.f32 %v380, %v493
      %v510 = vadd.f32 %v381, %v498
      %v511 = vadd.f32 %v382, %v501
      %512 = vst.msk [vmem:[#allocation2] sm:$0xff] %vm366, %v504
      %513 = vst.msk [vmem:[#allocation2 + $0x8] sm:$0xff] %vm366, %v505
      %514 = vst.msk [vmem:[#allocation2 + $0x10] sm:$0xff] %vm366, %v506
      %515 = vst.msk [vmem:[#allocation2 + $0x18] sm:$0xff] %vm366, %v507
      %516 = vst.msk [vmem:[#allocation2 + $0x20] sm:$0xff] %vm366, %v508
      %517 = vst.msk [vmem:[#allocation2 + $0x28] sm:$0xff] %vm366, %v509
      %518 = vst.msk [vmem:[#allocation2 + $0x30] sm:$0xff] %vm366, %v510
      %519 = vst.msk [vmem:[#allocation2 + $0x38] sm:$0xff] %vm366, %v511
      %v520 = vld [vmem:[#allocation2] sm:$0xff]
      %v521 = vld [vmem:[#allocation2 + $0x8] sm:$0xff]
      %v522 = vld [vmem:[#allocation2 + $0x10] sm:$0xff]
      %v523 = vld [vmem:[#allocation2 + $0x18] sm:$0xff]
      %v524 = vld [vmem:[#allocation2 + $0x20] sm:$0xff]
      %v525 = vld [vmem:[#allocation2 + $0x28] sm:$0xff]
      %v526 = vld [vmem:[#allocation2 + $0x30] sm:$0xff]
      %v527 = vld [vmem:[#allocation2 + $0x38] sm:$0xff]
      %v528 = vld [vmem:[%s198 + $0x8] sm:$0xf]
      %v529 = vld [vmem:[%s198 + $0xc] sm:$0xf]
      %v530 = vld [vmem:[%s198 + $0x10] sm:$0xf]
      %v531 = vld [vmem:[%s198 + $0x14] sm:$0xf]
      %v532 = vld [vmem:[%s198 + $0x18] sm:$0xf]
      %v533 = vld [vmem:[%s198 + $0x1c] sm:$0xf]
      %v534 = vld [vmem:[%s198 + $0x20] sm:$0xf]
      %v535 = vld [vmem:[%s198 + $0x24] sm:$0xf]
      %s536 = scalar_lea.vmem %s204, 24
      %v537 = vld [vmem:[%s536] sm:$0xf]
      %v538 = vld [vmem:[%s536 + $0x4] sm:$0xf]
      %v539 = vld [vmem:[%s536 + $0x8] sm:$0xf]
      %v548 = vunpack.c.l.b16 %v528
      %v549 = vunpack.c.l.b16 %v529
      %v550 = vunpack.c.l.b16 %v530
      %v551 = vunpack.c.l.b16 %v531
      %v552 = vunpack.c.l.b16 %v532
      %v553 = vunpack.c.l.b16 %v533
      %v554 = vunpack.c.l.b16 %v534
      %v555 = vunpack.c.l.b16 %v535
      %v556 = vpack.c.b16 %v549, %v548
      %v557 = vpack.c.b16 %v551, %v550
      %v558 = vpack.c.b16 %v553, %v552
      %v559 = vpack.c.b16 %v555, %v554
      %v563 = vunpack.c.l.b16 %v537
      %v564 = vunpack.c.l.b16 %v538
      %v565 = vunpack.c.l.b16 %v539
      %v566 = vpack.c.b16 %v564, %v563
      %v567 = vpack.c.b16 %v565, %v565
      %v570 = vsel %vm276, %v556, 0
      %v573 = vsel %vm276, %v557, 0
      %v576 = vsel %vm276, %v558, 0
      %v579 = vsel %vm276, %v559, 0
      %v582 = vsel %vm289, %v567, 0
      %584 = vmatprep.subr.bf16.mxu0 0
      %585 = vmatpush1.bf16.msra.mxu0 0
      %586 = vmatprep.subr.bf16.mxu0 0
      %587 = vmatpush1.bf16.msra.mxu0 0
      %588 = vmatprep.subr.bf16.mxu0 0
      %589 = vmatpush1.bf16.msra.mxu0 0
      %590 = vmatprep.subr.bf16.mxu0 0
      %591 = vmatpush1.bf16.msra.mxu0 0
      %592 = vmatprep.subr.bf16.mxu0 0
      %593 = vmatpush1.bf16.msra.mxu0 0
      %594 = vmatprep.subr.bf16.mxu0 0
      %595 = vmatpush1.bf16.msra.mxu0 0
      %596 = vmatprep.subr.bf16.mxu0 0
      %597 = vmatpush1.bf16.msra.mxu0 %v582
      %598 = vmatprep.subr.bf16.mxu0 0
      %599 = vmatpush1.bf16.msra.mxu0 %v566
      %600 = vmatprep.subr.bf16.mxu0 0
      %601 = vmatpush2.bf16.msra.mxu0 0
      %602 = vmatprep.subr.bf16.mxu0 0
      %603 = vmatpush2.bf16.msra.mxu0 0
      %604 = vmatprep.subr.bf16.mxu0 0
      %605 = vmatpush2.bf16.msra.mxu0 0
      %606 = vmatprep.subr.bf16.mxu0 0
      %607 = vmatpush2.bf16.msra.mxu0 0
      %608 = vmatprep.subr.bf16.mxu0 0
      %609 = vmatpush2.bf16.msra.mxu0 0
      %610 = vmatprep.subr.bf16.mxu0 0
      %611 = vmatpush2.bf16.msra.mxu0 0
      %612 = vmatprep.subr.bf16.mxu0 0
      %613 = vmatpush2.bf16.msra.mxu0 0
      %614 = vmatprep.subr.bf16.mxu0 0
      %615 = vmatpush2.bf16.msra.mxu0 0
      %616 = vmatprep.mubr.bf16.mxu0 0
      %617 = vmatmul.mubr.bf16.gmra.mxu0 %v570
      %v618 = vpop.f32.mrf.mxu0
      %v619 = vadd.f32 0.0, %v618
      %v620 = vpop.f32.mrf.mxu0
      %v621 = vpop.f32.mrf.mxu0
      %v622 = vadd.f32 0.0, %v621
      %v623 = vpop.f32.mrf.mxu0
      %624 = vmatprep.mubr.bf16.mxu0 0
      %625 = vmatmul.mubr.bf16.gmra.mxu0 %v573
      %v626 = vpop.f32.mrf.mxu0
      %v627 = vadd.f32 0.0, %v626
      %v628 = vpop.f32.mrf.mxu0
      %v629 = vpop.f32.mrf.mxu0
      %v630 = vadd.f32 0.0, %v629
      %v631 = vpop.f32.mrf.mxu0
      %632 = vmatprep.mubr.bf16.mxu0 0
      %633 = vmatmul.mubr.bf16.gmra.mxu0 %v576
      %v634 = vpop.f32.mrf.mxu0
      %v635 = vadd.f32 0.0, %v634
      %v636 = vpop.f32.mrf.mxu0
      %v637 = vpop.f32.mrf.mxu0
      %v638 = vadd.f32 0.0, %v637
      %v639 = vpop.f32.mrf.mxu0
      %640 = vmatprep.mubr.bf16.mxu0 0
      %641 = vmatmul.mubr.bf16.gmra.mxu0 %v579
      %v642 = vpop.f32.mrf.mxu0
      %v643 = vadd.f32 0.0, %v642
      %v644 = vpop.f32.mrf.mxu0
      %v645 = vpop.f32.mrf.mxu0
      %v646 = vadd.f32 0.0, %v645
      %v647 = vpop.f32.mrf.mxu0
      %648 = vdwg.mxu0
      %v649 = vadd.f32 %v520, %v619
      %v650 = vadd.f32 %v521, %v622
      %v651 = vadd.f32 %v522, %v627
      %v652 = vadd.f32 %v523, %v630
      %v653 = vadd.f32 %v524, %v635
      %v654 = vadd.f32 %v525, %v638
      %v655 = vadd.f32 %v526, %v643
      %v656 = vadd.f32 %v527, %v646
      %657 = vst.msk [vmem:[#allocation2] sm:$0xff] %vm366, %v649
      %658 = vst.msk [vmem:[#allocation2 + $0x8] sm:$0xff] %vm366, %v650
      %659 = vst.msk [vmem:[#allocation2 + $0x10] sm:$0xff] %vm366, %v651
      %660 = vst.msk [vmem:[#allocation2 + $0x18] sm:$0xff] %vm366, %v652
      %661 = vst.msk [vmem:[#allocation2 + $0x20] sm:$0xff] %vm366, %v653
      %662 = vst.msk [vmem:[#allocation2 + $0x28] sm:$0xff] %vm366, %v654
      %663 = vst.msk [vmem:[#allocation2 + $0x30] sm:$0xff] %vm366, %v655
      %664 = vst.msk [vmem:[#allocation2 + $0x38] sm:$0xff] %vm366, %v656
      %p665 = scmp.eq.s32.totalorder %s20, 2
      // Predicated region
      $region33: #{unet3d1d_forward.71} parent=27 // pred_check
        %p666 = pneg %p665
      $region34: #{unet3d1d_forward.71} parent=27 // pred_check_branch
        %668 = sbr.rel (%p666) target = $region36
      $region35: #{unet3d1d_forward.71} parent=27 // pred_region
        %v669 = vld [vmem:[#allocation2] sm:$0xff]
        %v670 = vld [vmem:[#allocation2 + $0x8] sm:$0xff]
        %v671 = vld [vmem:[#allocation2 + $0x10] sm:$0xff]
        %v672 = vld [vmem:[#allocation2 + $0x18] sm:$0xff]
        %v673 = vld [vmem:[#allocation2 + $0x20] sm:$0xff]
        %v674 = vld [vmem:[#allocation2 + $0x28] sm:$0xff]
        %v675 = vld [vmem:[#allocation2 + $0x30] sm:$0xff]
        %v676 = vld [vmem:[#allocation2 + $0x38] sm:$0xff]
        %v677 = vpack.c.bf16 %v670, %v669
        %v678 = vpack.c.bf16 %v672, %v671
        %v679 = vpack.c.bf16 %v674, %v673
        %v680 = vpack.c.bf16 %v676, %v675
        %v685 = vunpack.c.l.b16 %v677
        %v686 = vunpack.c.h.b16 %v677
        %v687 = vunpack.c.l.b16 %v678
        %v688 = vunpack.c.h.b16 %v678
        %v689 = vunpack.c.l.b16 %v679
        %v690 = vunpack.c.h.b16 %v679
        %v691 = vunpack.c.l.b16 %v680
        %v692 = vunpack.c.h.b16 %v680
        %v693 = vpack.c.b16 %v685, %v685
        %v694 = vpack.c.b16 %v686, %v686
        %v695 = vpack.c.b16 %v687, %v687
        %v696 = vpack.c.b16 %v688, %v688
        %v697 = vpack.c.b16 %v689, %v689
        %v698 = vpack.c.b16 %v690, %v690
        %v699 = vpack.c.b16 %v691, %v691
        %v700 = vpack.c.b16 %v692, %v692
        %vm709 = vcmask 27648
        %710 = vst.msk [vmem:[%s213] sm:$0xf] %vm709, %v693
        %711 = vst.msk [vmem:[%s213 + $0x4] sm:$0xf] %vm709, %v694
        %712 = vst.msk [vmem:[%s213 + $0x8] sm:$0xf] %vm709, %v695
        %713 = vst.msk [vmem:[%s213 + $0xc] sm:$0xf] %vm709, %v696
        %714 = vst.msk [vmem:[%s213 + $0x10] sm:$0xf] %vm709, %v697
        %715 = vst.msk [vmem:[%s213 + $0x14] sm:$0xf] %vm709, %v698
        %716 = vst.msk [vmem:[%s213 + $0x18] sm:$0xf] %vm709, %v699
        %717 = vst.msk [vmem:[%s213 + $0x1c] sm:$0xf] %vm709, %v700
      $region36: #{unet3d1d_forward.71} parent=27 // pred_fallthru
        _
      %p718 = scmp.lt.s32.totalorder %s18, 3
      %s719 = scalar_select %p718, %s18, 3
      %p720 = scmp.lt.s32.totalorder %s19, 7
      %s721 = scalar_select %p720, %s19, 7
      %s722 = smul.addr %s721, 8
      %s723 = smul.addr %s719, 64
      %s724 = sadd.s32 %s722, %s723
      %s725 = smul.addr %s724, 4
      %s726 = scalar_lea.vmem %s2, %s725
      // Predicated region
      $region37: #{unet3d1d_forward.71} parent=27 // pred_check
        %p727 = pneg %p108
      $region38: #{unet3d1d_forward.71} parent=27 // pred_check_branch
        %729 = sbr.rel (%p727) target = $region40
      $region39: #{unet3d1d_forward.71} parent=27 // pred_region
        _
      $region40: #{unet3d1d_forward.71} parent=27 // pred_fallthru
        _
    $region28: #{unet3d1d_forward.71} parent=5 // pred_fallthru
      _
    %p730 = scmp.le.s32.totalorder 2, %s8
    // Predicated region
    $region41: #{unet3d1d_forward.71} parent=5 // pred_check
      %p731 = pneg %p730
    $region42: #{unet3d1d_forward.71} parent=5 // pred_check_branch
      %733 = sbr.rel (%p731) target = $region44
    $region43: #{unet3d1d_forward.71} parent=5 // pred_region
      %s734 = ssub.s32 %s8, 2
      // Predicated region
      $region45: #{unet3d1d_forward.71} parent=43 // pred_check
        %p735 = pneg %p114
      $region46: #{unet3d1d_forward.71} parent=43 // pred_check_branch
        %737 = sbr.rel (%p735) target = $region48
      $region47: #{unet3d1d_forward.71} parent=43 // pred_region
        %p738 = scmp.lt.s32.totalorder %s21, 3
        %s739 = scalar_select %p738, %s21, 3
        %p740 = scmp.lt.s32.totalorder %s22, 7
        %s741 = scalar_select %p740, %s22, 7
        %s742 = smul.addr %s741, 8
        %s743 = smul.addr %s739, 64
        %s744 = sadd.s32 %s742, %s743
        %s745 = smul.addr %s744, 4
        %s746 = scalar_lea.vmem %s2, %s745
      $region48: #{unet3d1d_forward.71} parent=43 // pred_fallthru
        _
    $region44: #{unet3d1d_forward.71} parent=5 // pred_fallthru
      _
  $region6: #{unet3d1d_forward.71} parent=0 // loop_footer
    %s12 = sadd.s32 1, %s8
  $region7: #{unet3d1d_forward.71} parent=0 // loop_footer_branch
    %7 = sbr.rel target = $region3
  $region8: #{unet3d1d_forward.71} parent=0 // loop_exit
    _

// kernel: unet3d1d_forward.77
$region0: #{unet3d1d_forward.77}
  #allocation0 [shape = 'u32[]', space=smem, size = 0x4, offset = 0x4, fixed_abs, tag = 'smem constant byte address 0x4 - core index']
  #allocation1 [shape = 'u32[144,128]{1,0:T(1,128)}', space=vmem, size = 0x12000, scoped, tag = 'internal scratch']
  %s0 = inlined_call_operand.vmem [shape: bf16[4,512,4], index: 0, kind: input, shape index: {}]
  %s1 = inlined_call_operand.vmem [shape: bf16[4,2], index: 1, kind: input, shape index: {}]
  %s2 = inlined_call_operand.vmem [shape: f32[1,2], index: 2, kind: input, shape index: {}]
  %s3 = inlined_call_operand.vmem [shape: bf16[4,512,2], index: 3, kind: output, shape index: {}]
  %s4 = sld [smem:[#allocation0]]
  $region45: #{unet3d1d_forward.77} parent=0
    _
  %s6 = ssub.s32 1, %s4
  %s7 = scalar_select 0, %s6, %s4
  loop: start=0, step=1, limit=6
  $region2: #{unet3d1d_forward.77} parent=0 // loop_pre_header
    _
  $region3: #{unet3d1d_forward.77} parent=0 // loop_header
    %s9 = sphi 0, %s13
    %p10 = scmp.ge.s32.totalorder %s9, 6
    %s19 = sphi 0, %s21
    %s22 = sphi 0, %s19
    %s23 = sphi 0, %s22
    %s39 = sphi 0, %s23
    %s43 = sphi 0, %s43
    %s45 = sphi 0, %s43
    %s46 = sphi 0, %s45
    %s60 = sphi 0, %s46
    %s64 = sphi 0, %s64
    %s66 = sphi 0, %s64
    %s67 = sphi 0, %s66
    %s81 = sphi 0, %s67
    %s87 = sphi 0, %s89
    %s90 = sphi 0, %s87
    %s91 = sphi 0, %s90
    %s107 = sphi 0, %s91
  $region4: #{unet3d1d_forward.77} parent=0 // loop_header_branch
    %12 = sbr.rel (%p10) target = $region8
  $region5: #{unet3d1d_forward.77} parent=0 // loop_body
    %s14 = ssub.s32 %s9, 1
    %s15 = ssub.s32 %s9, 2
    %s16 = sadd.s32 %s9, 1
    %s17 = ssub.s32 %s9, %s16
    %p18 = scmp.eq.s32.totalorder %s17, 0
    %s20 = sadd.s32 %s19, 1
    %s21 = scalar_select %p18, %s19, %s20
    %p24 = pneg %p18
    %p25 = scmp.eq.s32.totalorder %s9, 3
    %p26 = por %p24, %p25
    %p27 = scmp.ne.s32.totalorder %s19, %s22
    %p28 = scmp.eq.s32.totalorder %s9, 0
    %p29 = por %p27, %p28
    %p30 = scmp.ne.s32.totalorder %s19, %s22
    %p31 = scmp.eq.s32.totalorder %s14, 3
    %p32 = por %p30, %p31
    %p33 = scmp.ne.s32.totalorder %s22, %s23
    %p34 = scmp.eq.s32.totalorder %s14, 0
    %p35 = por %p33, %p34
    %p36 = scmp.ne.s32.totalorder %s22, %s23
    %p37 = scmp.eq.s32.totalorder %s15, 3
    %p38 = por %p36, %p37
    %p40 = scmp.ne.s32.totalorder %s23, %s39
    %p41 = scmp.eq.s32.totalorder %s15, 0
    %p42 = por %p40, %p41
    %s44 = sadd.s32 %s43, 1
    %p47 = scmp.eq.s32.totalorder %s9, 3
    %p48 = scmp.ne.s32.totalorder %s43, %s45
    %p49 = scmp.eq.s32.totalorder %s9, 0
    %p50 = por %p48, %p49
    %p51 = scmp.ne.s32.totalorder %s43, %s45
    %p52 = scmp.eq.s32.totalorder %s14, 3
    %p53 = por %p51, %p52
    %p54 = scmp.ne.s32.totalorder %s45, %s46
    %p55 = scmp.eq.s32.totalorder %s14, 0
    %p56 = por %p54, %p55
    %p57 = scmp.ne.s32.totalorder %s45, %s46
    %p58 = scmp.eq.s32.totalorder %s15, 3
    %p59 = por %p57, %p58
    %p61 = scmp.ne.s32.totalorder %s46, %s60
    %p62 = scmp.eq.s32.totalorder %s15, 0
    %p63 = por %p61, %p62
    %s65 = sadd.s32 %s64, 1
    %p68 = scmp.eq.s32.totalorder %s9, 3
    %p69 = scmp.ne.s32.totalorder %s64, %s66
    %p70 = scmp.eq.s32.totalorder %s9, 0
    %p71 = por %p69, %p70
    %p72 = scmp.ne.s32.totalorder %s64, %s66
    %p73 = scmp.eq.s32.totalorder %s14, 3
    %p74 = por %p72, %p73
    %p75 = scmp.ne.s32.totalorder %s66, %s67
    %p76 = scmp.eq.s32.totalorder %s14, 0
    %p77 = por %p75, %p76
    %p78 = scmp.ne.s32.totalorder %s66, %s67
    %p79 = scmp.eq.s32.totalorder %s15, 3
    %p80 = por %p78, %p79
    %p82 = scmp.ne.s32.totalorder %s67, %s81
    %p83 = scmp.eq.s32.totalorder %s15, 0
    %p84 = por %p82, %p83
    %s85 = ssub.s32 %s9, %s16
    %p86 = scmp.eq.s32.totalorder %s85, 0
    %s88 = sadd.s32 %s87, 1
    %s89 = scalar_select %p86, %s87, %s88
    %p92 = pneg %p86
    %p93 = scmp.eq.s32.totalorder %s9, 3
    %p94 = por %p92, %p93
    %p95 = scmp.ne.s32.totalorder %s87, %s90
    %p96 = scmp.eq.s32.totalorder %s9, 0
    %p97 = por %p95, %p96
    %p98 = scmp.ne.s32.totalorder %s87, %s90
    %p99 = scmp.eq.s32.totalorder %s14, 3
    %p100 = por %p98, %p99
    %p101 = scmp.ne.s32.totalorder %s90, %s91
    %p102 = scmp.eq.s32.totalorder %s14, 0
    %p103 = por %p101, %p102
    %p104 = scmp.ne.s32.totalorder %s90, %s91
    %p105 = scmp.eq.s32.totalorder %s15, 3
    %p106 = por %p104, %p105
    %p108 = scmp.ne.s32.totalorder %s91, %s107
    %p109 = scmp.eq.s32.totalorder %s15, 0
    %p110 = por %p108, %p109
    %p111 = scmp.le.s32.totalorder 1, %s9
    %p112 = scmp.lt.s32.totalorder %s9, 5
    %p113 = pnand %p111, %p112
    %p114 = pneg %p113
    // Predicated region
    $region9: #{unet3d1d_forward.77} parent=5 // pred_check
      _
    $region10: #{unet3d1d_forward.77} parent=5 // pred_check_branch
      %116 = sbr.rel (%p113) target = $region12
    $region11: #{unet3d1d_forward.77} parent=5 // pred_region
      %s117 = ssub.s32 %s9, 1
      // Predicated region
      $region13: #{unet3d1d_forward.77} parent=11 // pred_check
        %p118 = pneg %p56
      $region14: #{unet3d1d_forward.77} parent=11 // pred_check_branch
        %120 = sbr.rel (%p118) target = $region16
      $region15: #{unet3d1d_forward.77} parent=11 // pred_region
        _
      $region16: #{unet3d1d_forward.77} parent=11 // pred_fallthru
        _
      // Predicated region
      $region17: #{unet3d1d_forward.77} parent=11 // pred_check
        %p121 = pneg %p77
      $region18: #{unet3d1d_forward.77} parent=11 // pred_check_branch
        %123 = sbr.rel (%p121) target = $region20
      $region19: #{unet3d1d_forward.77} parent=11 // pred_region
        _
      $region20: #{unet3d1d_forward.77} parent=11 // pred_fallthru
        _
    $region12: #{unet3d1d_forward.77} parent=5 // pred_fallthru
      _
    %p124 = scmp.lt.s32.totalorder %s9, 4
    // Predicated region
    $region21: #{unet3d1d_forward.77} parent=5 // pred_check
      %p125 = pneg %p124
    $region22: #{unet3d1d_forward.77} parent=5 // pred_check_branch
      %127 = sbr.rel (%p125) target = $region24
    $region23: #{unet3d1d_forward.77} parent=5 // pred_region
      // Predicated region
      $region25: #{unet3d1d_forward.77} parent=23 // pred_check
        %p128 = pneg %p29
      $region26: #{unet3d1d_forward.77} parent=23 // pred_check_branch
        %130 = sbr.rel (%p128) target = $region28
      $region27: #{unet3d1d_forward.77} parent=23 // pred_region
        %p131 = scmp.lt.s32.totalorder %s9, 3
        %s132 = scalar_select %p131, %s9, 3
        %s133 = smul.addr %s132, 64
        %s134 = smul.addr %s133, 4
        %s135 = scalar_lea.vmem %s0, %s134
      $region28: #{unet3d1d_forward.77} parent=23 // pred_fallthru
        _
    $region24: #{unet3d1d_forward.77} parent=5 // pred_fallthru
      _
    %p136 = scmp.le.s32.totalorder 1, %s9
    %p137 = scmp.lt.s32.totalorder %s9, 5
    %p138 = pnand %p136, %p137
    %p139 = pneg %p138
    // Predicated region
    $region29: #{unet3d1d_forward.77} parent=5 // pred_check
      _
    $region30: #{unet3d1d_forward.77} parent=5 // pred_check_branch
      %141 = sbr.rel (%p138) target = $region32
    $region31: #{unet3d1d_forward.77} parent=5 // pred_region
      %s142 = ssub.s32 %s9, 1
      %p143 = scmp.lt.s32.totalorder %s14, 3
      %s144 = scalar_select %p143, %s14, 3
      %s145 = smul.addr %s144, 64
      %s146 = smul.addr %s145, 4
      %s147 = scalar_lea.vmem %s0, %s146
      %p148 = pneg %p35
      %p149 = pneg %p32
      %p150 = pneg %p56
      %p151 = pneg %p53
      %p152 = pneg %p77
      %p153 = pneg %p74
      %p154 = pneg %p103
      %p155 = pneg %p100
      %p156 = scmp.lt.s32.totalorder %s14, 3
      %s157 = scalar_select %p156, %s14, 3
      %s158 = smul.addr %s157, 64
      %s159 = smul.addr %s158, 4
      %s160 = scalar_lea.vmem %s3, %s159
      %p161 = scmp.lt.s32.totalorder %s14, 3
      %s162 = scalar_select %p161, %s14, 3
      %s163 = smul.addr %s162, 64
      %s164 = smul.addr %s163, 4
      %s165 = scalar_lea.vmem %s0, %s164
      %p166 = scmp.lt.s32.totalorder %s14, 3
      %s167 = scalar_select %p166, %s14, 3
      %s168 = smul.addr %s167, 64
      %s169 = smul.addr %s168, 4
      %s170 = scalar_lea.vmem %s3, %s169
      %v172 = vld [vmem:[%s165] sm:$0xf]
      %v173 = vld [vmem:[%s165 + $0x4] sm:$0xf]
      %v174 = vld [vmem:[%s165 + $0x8] sm:$0xf]
      %v175 = vld [vmem:[%s165 + $0xc] sm:$0xf]
      %v176 = vld [vmem:[%s165 + $0x10] sm:$0xf]
      %v177 = vld [vmem:[%s165 + $0x14] sm:$0xf]
      %v178 = vld [vmem:[%s165 + $0x18] sm:$0xf]
      %v179 = vld [vmem:[%s165 + $0x1c] sm:$0xf]
      %v180 = vld [vmem:[%s165 + $0x20] sm:$0xf]
      %v181 = vld [vmem:[%s165 + $0x24] sm:$0xf]
      %v182 = vld [vmem:[%s165 + $0x28] sm:$0xf]
      %v183 = vld [vmem:[%s165 + $0x2c] sm:$0xf]
      %v184 = vld [vmem:[%s165 + $0x30] sm:$0xf]
      %v185 = vld [vmem:[%s165 + $0x34] sm:$0xf]
      %v186 = vld [vmem:[%s165 + $0x38] sm:$0xf]
      %v187 = vld [vmem:[%s165 + $0x3c] sm:$0xf]
      %v188 = vld [vmem:[%s165 + $0x40] sm:$0xf]
      %v189 = vld [vmem:[%s165 + $0x44] sm:$0xf]
      %v190 = vld [vmem:[%s165 + $0x48] sm:$0xf]
      %v191 = vld [vmem:[%s165 + $0x4c] sm:$0xf]
      %v192 = vld [vmem:[%s165 + $0x50] sm:$0xf]
      %v193 = vld [vmem:[%s165 + $0x54] sm:$0xf]
      %v194 = vld [vmem:[%s165 + $0x58] sm:$0xf]
      %v195 = vld [vmem:[%s165 + $0x5c] sm:$0xf]
      %v196 = vld [vmem:[%s165 + $0x60] sm:$0xf]
      %v197 = vld [vmem:[%s165 + $0x64] sm:$0xf]
      %v198 = vld [vmem:[%s165 + $0x68] sm:$0xf]
      %v199 = vld [vmem:[%s165 + $0x6c] sm:$0xf]
      %v200 = vld [vmem:[%s165 + $0x70] sm:$0xf]
      %v201 = vld [vmem:[%s165 + $0x74] sm:$0xf]
      %v202 = vld [vmem:[%s165 + $0x78] sm:$0xf]
      %v203 = vld [vmem:[%s165 + $0x7c] sm:$0xf]
      %v204 = vld [vmem:[%s165 + $0x80] sm:$0xf]
      %v205 = vld [vmem:[%s165 + $0x84] sm:$0xf]
      %v206 = vld [vmem:[%s165 + $0x88] sm:$0xf]
      %v207 = vld [vmem:[%s165 + $0x8c] sm:$0xf]
      %v208 = vld [vmem:[%s165 + $0x90] sm:$0xf]
      %v209 = vld [vmem:[%s165 + $0x94] sm:$0xf]
      %v210 = vld [vmem:[%s165 + $0x98] sm:$0xf]
      %v211 = vld [vmem:[%s165 + $0x9c] sm:$0xf]
      %v212 = vld [vmem:[%s165 + $0xa0] sm:$0xf]
      %v213 = vld [vmem:[%s165 + $0xa4] sm:$0xf]
      %v214 = vld [vmem:[%s165 + $0xa8] sm:$0xf]
      %v215 = vld [vmem:[%s165 + $0xac] sm:$0xf]
      %v216 = vld [vmem:[%s165 + $0xb0] sm:$0xf]
      %v217 = vld [vmem:[%s165 + $0xb4] sm:$0xf]
      %v218 = vld [vmem:[%s165 + $0xb8] sm:$0xf]
      %v219 = vld [vmem:[%s165 + $0xbc] sm:$0xf]
      %v220 = vld [vmem:[%s165 + $0xc0] sm:$0xf]
      %v221 = vld [vmem:[%s165 + $0xc4] sm:$0xf]
      %v222 = vld [vmem:[%s165 + $0xc8] sm:$0xf]
      %v223 = vld [vmem:[%s165 + $0xcc] sm:$0xf]
      %v224 = vld [vmem:[%s165 + $0xd0] sm:$0xf]
      %v225 = vld [vmem:[%s165 + $0xd4] sm:$0xf]
      %v226 = vld [vmem:[%s165 + $0xd8] sm:$0xf]
      %v227 = vld [vmem:[%s165 + $0xdc] sm:$0xf]
      %v228 = vld [vmem:[%s165 + $0xe0] sm:$0xf]
      %v229 = vld [vmem:[%s165 + $0xe4] sm:$0xf]
      %v230 = vld [vmem:[%s165 + $0xe8] sm:$0xf]
      %v231 = vld [vmem:[%s165 + $0xec] sm:$0xf]
      %v232 = vld [vmem:[%s165 + $0xf0] sm:$0xf]
      %v233 = vld [vmem:[%s165 + $0xf4] sm:$0xf]
      %v234 = vld [vmem:[%s165 + $0xf8] sm:$0xf]
      %v235 = vld [vmem:[%s165 + $0xfc] sm:$0xf]
      %v236 = vld [vmem:[%s1] sm:$0x3]
      %v237 = vld [vmem:[%s2] sm:$0x1]
      %v239 = vlaneseq
      %v240 = vshrl.u32 %v239, 7
      %v241 = vsub.s32 0, %v240
      %v242 = vrot.slane %v237, %v241
      %v308 = vunpack.c.l.b16 %v172
      %v309 = vunpack.c.l.b16 %v173
      %v310 = vunpack.c.l.b16 %v174
      %v311 = vunpack.c.l.b16 %v175
      %v312 = vunpack.c.l.b16 %v176
      %v313 = vunpack.c.l.b16 %v177
      %v314 = vunpack.c.l.b16 %v178
      %v315 = vunpack.c.l.b16 %v179
      %v316 = vunpack.c.l.b16 %v180
      %v317 = vunpack.c.l.b16 %v181
      %v318 = vunpack.c.l.b16 %v182
      %v319 = vunpack.c.l.b16 %v183
      %v320 = vunpack.c.l.b16 %v184
      %v321 = vunpack.c.l.b16 %v185
      %v322 = vunpack.c.l.b16 %v186
      %v323 = vunpack.c.l.b16 %v187
      %v324 = vunpack.c.l.b16 %v188
      %v325 = vunpack.c.l.b16 %v189
      %v326 = vunpack.c.l.b16 %v190
      %v327 = vunpack.c.l.b16 %v191
      %v328 = vunpack.c.l.b16 %v192
      %v329 = vunpack.c.l.b16 %v193
      %v330 = vunpack.c.l.b16 %v194
      %v331 = vunpack.c.l.b16 %v195
      %v332 = vunpack.c.l.b16 %v196
      %v333 = vunpack.c.l.b16 %v197
      %v334 = vunpack.c.l.b16 %v198
      %v335 = vunpack.c.l.b16 %v199
      %v336 = vunpack.c.l.b16 %v200
      %v337 = vunpack.c.l.b16 %v201
      %v338 = vunpack.c.l.b16 %v202
      %v339 = vunpack.c.l.b16 %v203
      %v340 = vunpack.c.l.b16 %v204
      %v341 = vunpack.c.l.b16 %v205
      %v342 = vunpack.c.l.b16 %v206
      %v343 = vunpack.c.l.b16 %v207
      %v344 = vunpack.c.l.b16 %v208
      %v345 = vunpack.c.l.b16 %v209
      %v346 = vunpack.c.l.b16 %v210
      %v347 = vunpack.c.l.b16 %v211
      %v348 = vunpack.c.l.b16 %v212
      %v349 = vunpack.c.l.b16 %v213
      %v350 = vunpack.c.l.b16 %v214
      %v351 = vunpack.c.l.b16 %v215
      %v352 = vunpack.c.l.b16 %v216
      %v353 = vunpack.c.l.b16 %v217
      %v354 = vunpack.c.l.b16 %v218
      %v355 = vunpack.c.l.b16 %v219
      %v356 = vunpack.c.l.b16 %v220
      %v357 = vunpack.c.l.b16 %v221
      %v358 = vunpack.c.l.b16 %v222
      %v359 = vunpack.c.l.b16 %v223
      %v360 = vunpack.c.l.b16 %v224
      %v361 = vunpack.c.l.b16 %v225
      %v362 = vunpack.c.l.b16 %v226
      %v363 = vunpack.c.l.b16 %v227
      %v364 = vunpack.c.l.b16 %v228
      %v365 = vunpack.c.l.b16 %v229
      %v366 = vunpack.c.l.b16 %v230
      %v367 = vunpack.c.l.b16 %v231
      %v368 = vunpack.c.l.b16 %v232
      %v369 = vunpack.c.l.b16 %v233
      %v370 = vunpack.c.l.b16 %v234
      %v371 = vunpack.c.l.b16 %v235
      %v372 = vpack.c.b16 %v309, %v308
      %v373 = vpack.c.b16 %v311, %v310
      %v374 = vpack.c.b16 %v313, %v312
      %v375 = vpack.c.b16 %v315, %v314
      %v376 = vpack.c.b16 %v317, %v316
      %v377 = vpack.c.b16 %v319, %v318
      %v378 = vpack.c.b16 %v321, %v320
      %v379 = vpack.c.b16 %v323, %v322
      %v380 = vpack.c.b16 %v325, %v324
      %v381 = vpack.c.b16 %v327, %v326
      %v382 = vpack.c.b16 %v329, %v328
      %v383 = vpack.c.b16 %v331, %v330
      %v384 = vpack.c.b16 %v333, %v332
      %v385 = vpack.c.b16 %v335, %v334
      %v386 = vpack.c.b16 %v337, %v336
      %v387 = vpack.c.b16 %v339, %v338
      %v388 = vpack.c.b16 %v341, %v340
      %v389 = vpack.c.b16 %v343, %v342
      %v390 = vpack.c.b16 %v345, %v344
      %v391 = vpack.c.b16 %v347, %v346
      %v392 = vpack.c.b16 %v349, %v348
      %v393 = vpack.c.b16 %v351, %v350
      %v394 = vpack.c.b16 %v353, %v352
      %v395 = vpack.c.b16 %v355, %v354
      %v396 = vpack.c.b16 %v357, %v356
      %v397 = vpack.c.b16 %v359, %v358
      %v398 = vpack.c.b16 %v361, %v360
      %v399 = vpack.c.b16 %v363, %v362
      %v400 = vpack.c.b16 %v365, %v364
      %v401 = vpack.c.b16 %v367, %v366
      %v402 = vpack.c.b16 %v369, %v368
      %v403 = vpack.c.b16 %v371, %v370
      %vm404 = vcmask 31744
      %v406 = vsel %vm404, %v372, 0
      %v409 = vsel %vm404, %v373, 0
      %v412 = vsel %vm404, %v374, 0
      %v415 = vsel %vm404, %v375, 0
      %v418 = vsel %vm404, %v376, 0
      %v421 = vsel %vm404, %v377, 0
      %v424 = vsel %vm404, %v378, 0
      %v427 = vsel %vm404, %v379, 0
      %v430 = vsel %vm404, %v380, 0
      %v433 = vsel %vm404, %v381, 0
      %v436 = vsel %vm404, %v382, 0
      %v439 = vsel %vm404, %v383, 0
      %v442 = vsel %vm404, %v384, 0
      %v445 = vsel %vm404, %v385, 0
      %v448 = vsel %vm404, %v386, 0
      %v451 = vsel %vm404, %v387, 0
      %v454 = vsel %vm404, %v388, 0
      %v457 = vsel %vm404, %v389, 0
      %v460 = vsel %vm404, %v390, 0
      %v463 = vsel %vm404, %v391, 0
      %v466 = vsel %vm404, %v392, 0
      %v469 = vsel %vm404, %v393, 0
      %v472 = vsel %vm404, %v394, 0
      %v475 = vsel %vm404, %v395, 0
      %v478 = vsel %vm404, %v396, 0
      %v481 = vsel %vm404, %v397, 0
      %v484 = vsel %vm404, %v398, 0
      %v487 = vsel %vm404, %v399, 0
      %v490 = vsel %vm404, %v400, 0
      %v493 = vsel %vm404, %v401, 0
      %v496 = vsel %vm404, %v402, 0
      %v499 = vsel %vm404, %v403, 0
      %vm501 = vcmask 1041408
      %v503 = vsel %vm501, %v236, 0
      %505 = vmatprep.subr.bf16.mxu0 0
      %506 = vmatpush1.bf16.msra.mxu0 0
      %507 = vmatprep.subr.bf16.mxu0 0
      %508 = vmatpush1.bf16.msra.mxu0 0
      %509 = vmatprep.subr.bf16.mxu0 0
      %510 = vmatpush1.bf16.msra.mxu0 0
      %511 = vmatprep.subr.bf16.mxu0 0
      %512 = vmatpush1.bf16.msra.mxu0 0
      %513 = vmatprep.subr.bf16.mxu0 0
      %514 = vmatpush1.bf16.msra.mxu0 0
      %515 = vmatprep.subr.bf16.mxu0 0
      %516 = vmatpush1.bf16.msra.mxu0 0
      %517 = vmatprep.subr.bf16.mxu0 0
      %518 = vmatpush1.bf16.msra.mxu0 0
      %519 = vmatprep.subr.bf16.mxu0 0
      %520 = vmatpush1.bf16.msra.mxu0 %v503
      %521 = vmatprep.subr.bf16.mxu0 0
      %522 = vmatpush2.bf16.msra.mxu0 0
      %523 = vmatprep.subr.bf16.mxu0 0
      %524 = vmatpush2.bf16.msra.mxu0 0
      %525 = vmatprep.subr.bf16.mxu0 0
      %526 = vmatpush2.bf16.msra.mxu0 0
      %527 = vmatprep.subr.bf16.mxu0 0
      %528 = vmatpush2.bf16.msra.mxu0 0
      %529 = vmatprep.subr.bf16.mxu0 0
      %530 = vmatpush2.bf16.msra.mxu0 0
      %531 = vmatprep.subr.bf16.mxu0 0
      %532 = vmatpush2.bf16.msra.mxu0 0
      %533 = vmatprep.subr.bf16.mxu0 0
      %534 = vmatpush2.bf16.msra.mxu0 0
      %535 = vmatprep.subr.bf16.mxu0 0
      %536 = vmatpush2.bf16.msra.mxu0 0
      %537 = vmatprep.mubr.bf16.mxu0 0
      %538 = vmatmul.mubr.bf16.gmra.mxu0 %v406
      %v539 = vpop.f32.mrf.mxu0
      %v540 = vadd.f32 %v242, %v539
      %v541 = vpop.f32.mrf.mxu0
      %v542 = vpop.f32.mrf.mxu0
      %v543 = vadd.f32 %v242, %v542
      %v544 = vpop.f32.mrf.mxu0
      %545 = vmatprep.mubr.bf16.mxu0 0
      %546 = vmatmul.mubr.bf16.gmra.mxu0 %v409
      %v547 = vpop.f32.mrf.mxu0
      %v548 = vadd.f32 %v242, %v547
      %v549 = vpop.f32.mrf.mxu0
      %v550 = vpop.f32.mrf.mxu0
      %v551 = vadd.f32 %v242, %v550
      %v552 = vpop.f32.mrf.mxu0
      %553 = vmatprep.mubr.bf16.mxu0 0
      %554 = vmatmul.mubr.bf16.gmra.mxu0 %v412
      %v555 = vpop.f32.mrf.mxu0
      %v556 = vadd.f32 %v242, %v555
      %v557 = vpop.f32.mrf.mxu0
      %v558 = vpop.f32.mrf.mxu0
      %v559 = vadd.f32 %v242, %v558
      %v560 = vpop.f32.mrf.mxu0
      %561 = vmatprep.mubr.bf16.mxu0 0
      %562 = vmatmul.mubr.bf16.gmra.mxu0 %v415
      %v563 = vpop.f32.mrf.mxu0
      %v564 = vadd.f32 %v242, %v563
      %v565 = vpop.f32.mrf.mxu0
      %v566 = vpop.f32.mrf.mxu0
      %v567 = vadd.f32 %v242, %v566
      %v568 = vpop.f32.mrf.mxu0
      %569 = vmatprep.mubr.bf16.mxu0 0
      %570 = vmatmul.mubr.bf16.gmra.mxu0 %v418
      %v571 = vpop.f32.mrf.mxu0
      %v572 = vadd.f32 %v242, %v571
      %v573 = vpop.f32.mrf.mxu0
      %v574 = vpop.f32.mrf.mxu0
      %v575 = vadd.f32 %v242, %v574
      %v576 = vpop.f32.mrf.mxu0
      %577 = vmatprep.mubr.bf16.mxu0 0
      %578 = vmatmul.mubr.bf16.gmra.mxu0 %v421
      %v579 = vpop.f32.mrf.mxu0
      %v580 = vadd.f32 %v242, %v579
      %v581 = vpop.f32.mrf.mxu0
      %v582 = vpop.f32.mrf.mxu0
      %v583 = vadd.f32 %v242, %v582
      %v584 = vpop.f32.mrf.mxu0
      %585 = vmatprep.mubr.bf16.mxu0 0
      %586 = vmatmul.mubr.bf16.gmra.mxu0 %v424
      %v587 = vpop.f32.mrf.mxu0
      %v588 = vadd.f32 %v242, %v587
      %v589 = vpop.f32.mrf.mxu0
      %v590 = vpop.f32.mrf.mxu0
      %v591 = vadd.f32 %v242, %v590
      %v592 = vpop.f32.mrf.mxu0
      %593 = vmatprep.mubr.bf16.mxu0 0
      %594 = vmatmul.mubr.bf16.gmra.mxu0 %v427
      %v595 = vpop.f32.mrf.mxu0
      %v596 = vadd.f32 %v242, %v595
      %v597 = vpop.f32.mrf.mxu0
      %v598 = vpop.f32.mrf.mxu0
      %v599 = vadd.f32 %v242, %v598
      %v600 = vpop.f32.mrf.mxu0
      %601 = vmatprep.mubr.bf16.mxu0 0
      %602 = vmatmul.mubr.bf16.gmra.mxu0 %v430
      %v603 = vpop.f32.mrf.mxu0
      %v604 = vadd.f32 %v242, %v603
      %v605 = vpop.f32.mrf.mxu0
      %v606 = vpop.f32.mrf.mxu0
      %v607 = vadd.f32 %v242, %v606
      %v608 = vpop.f32.mrf.mxu0
      %609 = vmatprep.mubr.bf16.mxu0 0
      %610 = vmatmul.mubr.bf16.gmra.mxu0 %v433
      %v611 = vpop.f32.mrf.mxu0
      %v612 = vadd.f32 %v242, %v611
      %v613 = vpop.f32.mrf.mxu0
      %v614 = vpop.f32.mrf.mxu0
      %v615 = vadd.f32 %v242, %v614
      %v616 = vpop.f32.mrf.mxu0
      %617 = vmatprep.mubr.bf16.mxu0 0
      %618 = vmatmul.mubr.bf16.gmra.mxu0 %v436
      %v619 = vpop.f32.mrf.mxu0
      %v620 = vadd.f32 %v242, %v619
      %v621 = vpop.f32.mrf.mxu0
      %v622 = vpop.f32.mrf.mxu0
      %v623 = vadd.f32 %v242, %v622
      %v624 = vpop.f32.mrf.mxu0
      %625 = vmatprep.mubr.bf16.mxu0 0
      %626 = vmatmul.mubr.bf16.gmra.mxu0 %v439
      %v627 = vpop.f32.mrf.mxu0
      %v628 = vadd.f32 %v242, %v627
      %v629 = vpop.f32.mrf.mxu0
      %v630 = vpop.f32.mrf.mxu0
      %v631 = vadd.f32 %v242, %v630
      %v632 = vpop.f32.mrf.mxu0
      %633 = vmatprep.mubr.bf16.mxu0 0
      %634 = vmatmul.mubr.bf16.gmra.mxu0 %v442
      %v635 = vpop.f32.mrf.mxu0
      %v636 = vadd.f32 %v242, %v635
      %v637 = vpop.f32.mrf.mxu0
      %v638 = vpop.f32.mrf.mxu0
      %v639 = vadd.f32 %v242, %v638
      %v640 = vpop.f32.mrf.mxu0
      %641 = vmatprep.mubr.bf16.mxu0 0
      %642 = vmatmul.mubr.bf16.gmra.mxu0 %v445
      %v643 = vpop.f32.mrf.mxu0
      %v644 = vadd.f32 %v242, %v643
      %v645 = vpop.f32.mrf.mxu0
      %v646 = vpop.f32.mrf.mxu0
      %v647 = vadd.f32 %v242, %v646
      %v648 = vpop.f32.mrf.mxu0
      %649 = vmatprep.mubr.bf16.mxu0 0
      %650 = vmatmul.mubr.bf16.gmra.mxu0 %v448
      %v651 = vpop.f32.mrf.mxu0
      %v652 = vadd.f32 %v242, %v651
      %v653 = vpop.f32.mrf.mxu0
      %v654 = vpop.f32.mrf.mxu0
      %v655 = vadd.f32 %v242, %v654
      %v656 = vpop.f32.mrf.mxu0
      %657 = vmatprep.mubr.bf16.mxu0 0
      %658 = vmatmul.mubr.bf16.gmra.mxu0 %v451
      %v659 = vpop.f32.mrf.mxu0
      %v660 = vadd.f32 %v242, %v659
      %v661 = vpop.f32.mrf.mxu0
      %v662 = vpop.f32.mrf.mxu0
      %v663 = vadd.f32 %v242, %v662
      %v664 = vpop.f32.mrf.mxu0
      %665 = vmatprep.mubr.bf16.mxu0 0
      %666 = vmatmul.mubr.bf16.gmra.mxu0 %v454
      %v667 = vpop.f32.mrf.mxu0
      %v668 = vadd.f32 %v242, %v667
      %v669 = vpop.f32.mrf.mxu0
      %v670 = vpop.f32.mrf.mxu0
      %v671 = vadd.f32 %v242, %v670
      %v672 = vpop.f32.mrf.mxu0
      %673 = vmatprep.mubr.bf16.mxu0 0
      %674 = vmatmul.mubr.bf16.gmra.mxu0 %v457
      %v675 = vpop.f32.mrf.mxu0
      %v676 = vadd.f32 %v242, %v675
      %v677 = vpop.f32.mrf.mxu0
      %v678 = vpop.f32.mrf.mxu0
      %v679 = vadd.f32 %v242, %v678
      %v680 = vpop.f32.mrf.mxu0
      %681 = vmatprep.mubr.bf16.mxu0 0
      %682 = vmatmul.mubr.bf16.gmra.mxu0 %v460
      %v683 = vpop.f32.mrf.mxu0
      %v684 = vadd.f32 %v242, %v683
      %v685 = vpop.f32.mrf.mxu0
      %v686 = vpop.f32.mrf.mxu0
      %v687 = vadd.f32 %v242, %v686
      %v688 = vpop.f32.mrf.mxu0
      %689 = vmatprep.mubr.bf16.mxu0 0
      %690 = vmatmul.mubr.bf16.gmra.mxu0 %v463
      %v691 = vpop.f32.mrf.mxu0
      %v692 = vadd.f32 %v242, %v691
      %v693 = vpop.f32.mrf.mxu0
      %v694 = vpop.f32.mrf.mxu0
      %v695 = vadd.f32 %v242, %v694
      %v696 = vpop.f32.mrf.mxu0
      %697 = vmatprep.mubr.bf16.mxu0 0
      %698 = vmatmul.mubr.bf16.gmra.mxu0 %v466
      %v699 = vpop.f32.mrf.mxu0
      %v700 = vadd.f32 %v242, %v699
      %v701 = vpop.f32.mrf.mxu0
      %v702 = vpop.f32.mrf.mxu0
      %v703 = vadd.f32 %v242, %v702
      %v704 = vpop.f32.mrf.mxu0
      %705 = vmatprep.mubr.bf16.mxu0 0
      %706 = vmatmul.mubr.bf16.gmra.mxu0 %v469
      %v707 = vpop.f32.mrf.mxu0
      %v708 = vadd.f32 %v242, %v707
      %v709 = vpop.f32.mrf.mxu0
      %v710 = vpop.f32.mrf.mxu0
      %v711 = vadd.f32 %v242, %v710
      %v712 = vpop.f32.mrf.mxu0
      %713 = vmatprep.mubr.bf16.mxu0 0
      %714 = vmatmul.mubr.bf16.gmra.mxu0 %v472
      %v715 = vpop.f32.mrf.mxu0
      %v716 = vadd.f32 %v242, %v715
      %v717 = vpop.f32.mrf.mxu0
      %v718 = vpop.f32.mrf.mxu0
      %v719 = vadd.f32 %v242, %v718
      %v720 = vpop.f32.mrf.mxu0
      %721 = vmatprep.mubr.bf16.mxu0 0
      %722 = vmatmul.mubr.bf16.gmra.mxu0 %v475
      %v723 = vpop.f32.mrf.mxu0
      %v724 = vadd.f32 %v242, %v723
      %v725 = vpop.f32.mrf.mxu0
      %v726 = vpop.f32.mrf.mxu0
      %v727 = vadd.f32 %v242, %v726
      %v728 = vpop.f32.mrf.mxu0
      %729 = vmatprep.mubr.bf16.mxu0 0
      %730 = vmatmul.mubr.bf16.gmra.mxu0 %v478
      %v731 = vpop.f32.mrf.mxu0
      %v732 = vadd.f32 %v242, %v731
      %v733 = vpop.f32.mrf.mxu0
      %v734 = vpop.f32.mrf.mxu0
      %v735 = vadd.f32 %v242, %v734
      %v736 = vpop.f32.mrf.mxu0
      %737 = vmatprep.mubr.bf16.mxu0 0
      %738 = vmatmul.mubr.bf16.gmra.mxu0 %v481
      %v739 = vpop.f32.mrf.mxu0
      %v740 = vadd.f32 %v242, %v739
      %v741 = vpop.f32.mrf.mxu0
      %v742 = vpop.f32.mrf.mxu0
      %v743 = vadd.f32 %v242, %v742
      %v744 = vpop.f32.mrf.mxu0
      %745 = vmatprep.mubr.bf16.mxu0 0
      %746 = vmatmul.mubr.bf16.gmra.mxu0 %v484
      %v747 = vpop.f32.mrf.mxu0
      %v748 = vadd.f32 %v242, %v747
      %v749 = vpop.f32.mrf.mxu0
      %v750 = vpop.f32.mrf.mxu0
      %v751 = vadd.f32 %v242, %v750
      %v752 = vpop.f32.mrf.mxu0
      %753 = vmatprep.mubr.bf16.mxu0 0
      %754 = vmatmul.mubr.bf16.gmra.mxu0 %v487
      %v755 = vpop.f32.mrf.mxu0
      %v756 = vadd.f32 %v242, %v755
      %v757 = vpop.f32.mrf.mxu0
      %v758 = vpop.f32.mrf.mxu0
      %v759 = vadd.f32 %v242, %v758
      %v760 = vpop.f32.mrf.mxu0
      %761 = vmatprep.mubr.bf16.mxu0 0
      %762 = vmatmul.mubr.bf16.gmra.mxu0 %v490
      %v763 = vpop.f32.mrf.mxu0
      %v764 = vadd.f32 %v242, %v763
      %v765 = vpop.f32.mrf.mxu0
      %v766 = vpop.f32.mrf.mxu0
      %v767 = vadd.f32 %v242, %v766
      %v768 = vpop.f32.mrf.mxu0
      %769 = vmatprep.mubr.bf16.mxu0 0
      %770 = vmatmul.mubr.bf16.gmra.mxu0 %v493
      %v771 = vpop.f32.mrf.mxu0
      %v772 = vadd.f32 %v242, %v771
      %v773 = vpop.f32.mrf.mxu0
      %v774 = vpop.f32.mrf.mxu0
      %v775 = vadd.f32 %v242, %v774
      %v776 = vpop.f32.mrf.mxu0
      %777 = vmatprep.mubr.bf16.mxu0 0
      %778 = vmatmul.mubr.bf16.gmra.mxu0 %v496
      %v779 = vpop.f32.mrf.mxu0
      %v780 = vadd.f32 %v242, %v779
      %v781 = vpop.f32.mrf.mxu0
      %v782 = vpop.f32.mrf.mxu0
      %v783 = vadd.f32 %v242, %v782
      %v784 = vpop.f32.mrf.mxu0
      %785 = vmatprep.mubr.bf16.mxu0 0
      %786 = vmatmul.mubr.bf16.gmra.mxu0 %v499
      %v787 = vpop.f32.mrf.mxu0
      %v788 = vadd.f32 %v242, %v787
      %v789 = vpop.f32.mrf.mxu0
      %v790 = vpop.f32.mrf.mxu0
      %v791 = vadd.f32 %v242, %v790
      %v792 = vpop.f32.mrf.mxu0
      %793 = vdwg.mxu0
      %v794 = vpack.c.bf16 %v543, %v540
      %v795 = vpack.c.bf16 %v551, %v548
      %v796 = vpack.c.bf16 %v559, %v556
      %v797 = vpack.c.bf16 %v567, %v564
      %v798 = vpack.c.bf16 %v575, %v572
      %v799 = vpack.c.bf16 %v583, %v580
      %v800 = vpack.c.bf16 %v591, %v588
      %v801 = vpack.c.bf16 %v599, %v596
      %v802 = vpack.c.bf16 %v607, %v604
      %v803 = vpack.c.bf16 %v615, %v612
      %v804 = vpack.c.bf16 %v623, %v620
      %v805 = vpack.c.bf16 %v631, %v628
      %v806 = vpack.c.bf16 %v639, %v636
      %v807 = vpack.c.bf16 %v647, %v644
      %v808 = vpack.c.bf16 %v655, %v652
      %v809 = vpack.c.bf16 %v663, %v660
      %v810 = vpack.c.bf16 %v671, %v668
      %v811 = vpack.c.bf16 %v679, %v676
      %v812 = vpack.c.bf16 %v687, %v684
      %v813 = vpack.c.bf16 %v695, %v692
      %v814 = vpack.c.bf16 %v703, %v700
      %v815 = vpack.c.bf16 %v711, %v708
      %v816 = vpack.c.bf16 %v719, %v716
      %v817 = vpack.c.bf16 %v727, %v724
      %v818 = vpack.c.bf16 %v735, %v732
      %v819 = vpack.c.bf16 %v743, %v740
      %v820 = vpack.c.bf16 %v751, %v748
      %v821 = vpack.c.bf16 %v759, %v756
      %v822 = vpack.c.bf16 %v767, %v764
      %v823 = vpack.c.bf16 %v775, %v772
      %v824 = vpack.c.bf16 %v783, %v780
      %v825 = vpack.c.bf16 %v791, %v788
      %v858 = vunpack.c.l.b16 %v794
      %v859 = vunpack.c.h.b16 %v794
      %v860 = vunpack.c.l.b16 %v795
      %v861 = vunpack.c.h.b16 %v795
      %v862 = vunpack.c.l.b16 %v796
      %v863 = vunpack.c.h.b16 %v796
      %v864 = vunpack.c.l.b16 %v797
      %v865 = vunpack.c.h.b16 %v797
      %v866 = vunpack.c.l.b16 %v798
      %v867 = vunpack.c.h.b16 %v798
      %v868 = vunpack.c.l.b16 %v799
      %v869 = vunpack.c.h.b16 %v799
      %v870 = vunpack.c.l.b16 %v800
      %v871 = vunpack.c.h.b16 %v800
      %v872 = vunpack.c.l.b16 %v801
      %v873 = vunpack.c.h.b16 %v801
      %v874 = vunpack.c.l.b16 %v802
      %v875 = vunpack.c.h.b16 %v802
      %v876 = vunpack.c.l.b16 %v803
      %v877 = vunpack.c.h.b16 %v803
      %v878 = vunpack.c.l.b16 %v804
      %v879 = vunpack.c.h.b16 %v804
      %v880 = vunpack.c.l.b16 %v805
      %v881 = vunpack.c.h.b16 %v805
      %v882 = vunpack.c.l.b16 %v806
      %v883 = vunpack.c.h.b16 %v806
      %v884 = vunpack.c.l.b16 %v807
      %v885 = vunpack.c.h.b16 %v807
      %v886 = vunpack.c.l.b16 %v808
      %v887 = vunpack.c.h.b16 %v808
      %v888 = vunpack.c.l.b16 %v809
      %v889 = vunpack.c.h.b16 %v809
      %v890 = vunpack.c.l.b16 %v810
      %v891 = vunpack.c.h.b16 %v810
      %v892 = vunpack.c.l.b16 %v811
      %v893 = vunpack.c.h.b16 %v811
      %v894 = vunpack.c.l.b16 %v812
      %v895 = vunpack.c.h.b16 %v812
      %v896 = vunpack.c.l.b16 %v813
      %v897 = vunpack.c.h.b16 %v813
      %v898 = vunpack.c.l.b16 %v814
      %v899 = vunpack.c.h.b16 %v814
      %v900 = vunpack.c.l.b16 %v815
      %v901 = vunpack.c.h.b16 %v815
      %v902 = vunpack.c.l.b16 %v816
      %v903 = vunpack.c.h.b16 %v816
      %v904 = vunpack.c.l.b16 %v817
      %v905 = vunpack.c.h.b16 %v817
      %v906 = vunpack.c.l.b16 %v818
      %v907 = vunpack.c.h.b16 %v818
      %v908 = vunpack.c.l.b16 %v819
      %v909 = vunpack.c.h.b16 %v819
      %v910 = vunpack.c.l.b16 %v820
      %v911 = vunpack.c.h.b16 %v820
      %v912 = vunpack.c.l.b16 %v821
      %v913 = vunpack.c.h.b16 %v821
      %v914 = vunpack.c.l.b16 %v822
      %v915 = vunpack.c.h.b16 %v822
      %v916 = vunpack.c.l.b16 %v823
      %v917 = vunpack.c.h.b16 %v823
      %v918 = vunpack.c.l.b16 %v824
      %v919 = vunpack.c.h.b16 %v824
      %v920 = vunpack.c.l.b16 %v825
      %v921 = vunpack.c.h.b16 %v825
      %v922 = vpack.c.b16 %v858, %v858
      %v923 = vpack.c.b16 %v859, %v859
      %v924 = vpack.c.b16 %v860, %v860
      %v925 = vpack.c.b16 %v861, %v861
      %v926 = vpack.c.b16 %v862, %v862
      %v927 = vpack.c.b16 %v863, %v863
      %v928 = vpack.c.b16 %v864, %v864
      %v929 = vpack.c.b16 %v865, %v865
      %v930 = vpack.c.b16 %v866, %v866
      %v931 = vpack.c.b16 %v867, %v867
      %v932 = vpack.c.b16 %v868, %v868
      %v933 = vpack.c.b16 %v869, %v869
      %v934 = vpack.c.b16 %v870, %v870
      %v935 = vpack.c.b16 %v871, %v871
      %v936 = vpack.c.b16 %v872, %v872
      %v937 = vpack.c.b16 %v873, %v873
      %v938 = vpack.c.b16 %v874, %v874
      %v939 = vpack.c.b16 %v875, %v875
      %v940 = vpack.c.b16 %v876, %v876
      %v941 = vpack.c.b16 %v877, %v877
      %v942 = vpack.c.b16 %v878, %v878
      %v943 = vpack.c.b16 %v879, %v879
      %v944 = vpack.c.b16 %v880, %v880
      %v945 = vpack.c.b16 %v881, %v881
      %v946 = vpack.c.b16 %v882, %v882
      %v947 = vpack.c.b16 %v883, %v883
      %v948 = vpack.c.b16 %v884, %v884
      %v949 = vpack.c.b16 %v885, %v885
      %v950 = vpack.c.b16 %v886, %v886
      %v951 = vpack.c.b16 %v887, %v887
      %v952 = vpack.c.b16 %v888, %v888
      %v953 = vpack.c.b16 %v889, %v889
      %v954 = vpack.c.b16 %v890, %v890
      %v955 = vpack.c.b16 %v891, %v891
      %v956 = vpack.c.b16 %v892, %v892
      %v957 = vpack.c.b16 %v893, %v893
      %v958 = vpack.c.b16 %v894, %v894
      %v959 = vpack.c.b16 %v895, %v895
      %v960 = vpack.c.b16 %v896, %v896
      %v961 = vpack.c.b16 %v897, %v897
      %v962 = vpack.c.b16 %v898, %v898
      %v963 = vpack.c.b16 %v899, %v899
      %v964 = vpack.c.b16 %v900, %v900
      %v965 = vpack.c.b16 %v901, %v901
      %v966 = vpack.c.b16 %v902, %v902
      %v967 = vpack.c.b16 %v903, %v903
      %v968 = vpack.c.b16 %v904, %v904
      %v969 = vpack.c.b16 %v905, %v905
      %v970 = vpack.c.b16 %v906, %v906
      %v971 = vpack.c.b16 %v907, %v907
      %v972 = vpack.c.b16 %v908, %v908
      %v973 = vpack.c.b16 %v909, %v909
      %v974 = vpack.c.b16 %v910, %v910
      %v975 = vpack.c.b16 %v911, %v911
      %v976 = vpack.c.b16 %v912, %v912
      %v977 = vpack.c.b16 %v913, %v913
      %v978 = vpack.c.b16 %v914, %v914
      %v979 = vpack.c.b16 %v915, %v915
      %v980 = vpack.c.b16 %v916, %v916
      %v981 = vpack.c.b16 %v917, %v917
      %v982 = vpack.c.b16 %v918, %v918
      %v983 = vpack.c.b16 %v919, %v919
      %v984 = vpack.c.b16 %v920, %v920
      %v985 = vpack.c.b16 %v921, %v921
      %vm1050 = vcmask 11264
      %1051 = vst.msk [vmem:[%s170] sm:$0xf] %vm1050, %v922
      %1052 = vst.msk [vmem:[%s170 + $0x4] sm:$0xf] %vm1050, %v923
      %1053 = vst.msk [vmem:[%s170 + $0x8] sm:$0xf] %vm1050, %v924
      %1054 = vst.msk [vmem:[%s170 + $0xc] sm:$0xf] %vm1050, %v925
      %1055 = vst.msk [vmem:[%s170 + $0x10] sm:$0xf] %vm1050, %v926
      %1056 = vst.msk [vmem:[%s170 + $0x14] sm:$0xf] %vm1050, %v927
      %1057 = vst.msk [vmem:[%s170 + $0x18] sm:$0xf] %vm1050, %v928
      %1058 = vst.msk [vmem:[%s170 + $0x1c] sm:$0xf] %vm1050, %v929
      %1059 = vst.msk [vmem:[%s170 + $0x20] sm:$0xf] %vm1050, %v930
      %1060 = vst.msk [vmem:[%s170 + $0x24] sm:$0xf] %vm1050, %v931
      %1061 = vst.msk [vmem:[%s170 + $0x28] sm:$0xf] %vm1050, %v932
      %1062 = vst.msk [vmem:[%s170 + $0x2c] sm:$0xf] %vm1050, %v933
      %1063 = vst.msk [vmem:[%s170 + $0x30] sm:$0xf] %vm1050, %v934
      %1064 = vst.msk [vmem:[%s170 + $0x34] sm:$0xf] %vm1050, %v935
      %1065 = vst.msk [vmem:[%s170 + $0x38] sm:$0xf] %vm1050, %v936
      %1066 = vst.msk [vmem:[%s170 + $0x3c] sm:$0xf] %vm1050, %v937
      %1067 = vst.msk [vmem:[%s170 + $0x40] sm:$0xf] %vm1050, %v938
      %1068 = vst.msk [vmem:[%s170 + $0x44] sm:$0xf] %vm1050, %v939
      %1069 = vst.msk [vmem:[%s170 + $0x48] sm:$0xf] %vm1050, %v940
      %1070 = vst.msk [vmem:[%s170 + $0x4c] sm:$0xf] %vm1050, %v941
      %1071 = vst.msk [vmem:[%s170 + $0x50] sm:$0xf] %vm1050, %v942
      %1072 = vst.msk [vmem:[%s170 + $0x54] sm:$0xf] %vm1050, %v943
      %1073 = vst.msk [vmem:[%s170 + $0x58] sm:$0xf] %vm1050, %v944
      %1074 = vst.msk [vmem:[%s170 + $0x5c] sm:$0xf] %vm1050, %v945
      %1075 = vst.msk [vmem:[%s170 + $0x60] sm:$0xf] %vm1050, %v946
      %1076 = vst.msk [vmem:[%s170 + $0x64] sm:$0xf] %vm1050, %v947
      %1077 = vst.msk [vmem:[%s170 + $0x68] sm:$0xf] %vm1050, %v948
      %1078 = vst.msk [vmem:[%s170 + $0x6c] sm:$0xf] %vm1050, %v949
      %1079 = vst.msk [vmem:[%s170 + $0x70] sm:$0xf] %vm1050, %v950
      %1080 = vst.msk [vmem:[%s170 + $0x74] sm:$0xf] %vm1050, %v951
      %1081 = vst.msk [vmem:[%s170 + $0x78] sm:$0xf] %vm1050, %v952
      %1082 = vst.msk [vmem:[%s170 + $0x7c] sm:$0xf] %vm1050, %v953
      %1083 = vst.msk [vmem:[%s170 + $0x80] sm:$0xf] %vm1050, %v954
      %1084 = vst.msk [vmem:[%s170 + $0x84] sm:$0xf] %vm1050, %v955
      %1085 = vst.msk [vmem:[%s170 + $0x88] sm:$0xf] %vm1050, %v956
      %1086 = vst.msk [vmem:[%s170 + $0x8c] sm:$0xf] %vm1050, %v957
      %1087 = vst.msk [vmem:[%s170 + $0x90] sm:$0xf] %vm1050, %v958
      %1088 = vst.msk [vmem:[%s170 + $0x94] sm:$0xf] %vm1050, %v959
      %1089 = vst.msk [vmem:[%s170 + $0x98] sm:$0xf] %vm1050, %v960
      %1090 = vst.msk [vmem:[%s170 + $0x9c] sm:$0xf] %vm1050, %v961
      %1091 = vst.msk [vmem:[%s170 + $0xa0] sm:$0xf] %vm1050, %v962
      %1092 = vst.msk [vmem:[%s170 + $0xa4] sm:$0xf] %vm1050, %v963
      %1093 = vst.msk [vmem:[%s170 + $0xa8] sm:$0xf] %vm1050, %v964
      %1094 = vst.msk [vmem:[%s170 + $0xac] sm:$0xf] %vm1050, %v965
      %1095 = vst.msk [vmem:[%s170 + $0xb0] sm:$0xf] %vm1050, %v966
      %1096 = vst.msk [vmem:[%s170 + $0xb4] sm:$0xf] %vm1050, %v967
      %1097 = vst.msk [vmem:[%s170 + $0xb8] sm:$0xf] %vm1050, %v968
      %1098 = vst.msk [vmem:[%s170 + $0xbc] sm:$0xf] %vm1050, %v969
      %1099 = vst.msk [vmem:[%s170 + $0xc0] sm:$0xf] %vm1050, %v970
      %1100 = vst.msk [vmem:[%s170 + $0xc4] sm:$0xf] %vm1050, %v971
      %1101 = vst.msk [vmem:[%s170 + $0xc8] sm:$0xf] %vm1050, %v972
      %1102 = vst.msk [vmem:[%s170 + $0xcc] sm:$0xf] %vm1050, %v973
      %1103 = vst.msk [vmem:[%s170 + $0xd0] sm:$0xf] %vm1050, %v974
      %1104 = vst.msk [vmem:[%s170 + $0xd4] sm:$0xf] %vm1050, %v975
      %1105 = vst.msk [vmem:[%s170 + $0xd8] sm:$0xf] %vm1050, %v976
      %1106 = vst.msk [vmem:[%s170 + $0xdc] sm:$0xf] %vm1050, %v977
      %1107 = vst.msk [vmem:[%s170 + $0xe0] sm:$0xf] %vm1050, %v978
      %1108 = vst.msk [vmem:[%s170 + $0xe4] sm:$0xf] %vm1050, %v979
      %1109 = vst.msk [vmem:[%s170 + $0xe8] sm:$0xf] %vm1050, %v980
      %1110 = vst.msk [vmem:[%s170 + $0xec] sm:$0xf] %vm1050, %v981
      %1111 = vst.msk [vmem:[%s170 + $0xf0] sm:$0xf] %vm1050, %v982
      %1112 = vst.msk [vmem:[%s170 + $0xf4] sm:$0xf] %vm1050, %v983
      %1113 = vst.msk [vmem:[%s170 + $0xf8] sm:$0xf] %vm1050, %v984
      %1114 = vst.msk [vmem:[%s170 + $0xfc] sm:$0xf] %vm1050, %v985
      %p1115 = scmp.lt.s32.totalorder %s14, 3
      %s1116 = scalar_select %p1115, %s14, 3
      %s1117 = smul.addr %s1116, 64
      %s1118 = smul.addr %s1117, 4
      %s1119 = scalar_lea.vmem %s3, %s1118
      // Predicated region
      $region33: #{unet3d1d_forward.77} parent=31 // pred_check
        %p1120 = pneg %p100
      $region34: #{unet3d1d_forward.77} parent=31 // pred_check_branch
        %1122 = sbr.rel (%p1120) target = $region36
      $region35: #{unet3d1d_forward.77} parent=31 // pred_region
        _
      $region36: #{unet3d1d_forward.77} parent=31 // pred_fallthru
        _
    $region32: #{unet3d1d_forward.77} parent=5 // pred_fallthru
      _
    %p1123 = scmp.le.s32.totalorder 2, %s9
    // Predicated region
    $region37: #{unet3d1d_forward.77} parent=5 // pred_check
      %p1124 = pneg %p1123
    $region38: #{unet3d1d_forward.77} parent=5 // pred_check_branch
      %1126 = sbr.rel (%p1124) target = $region40
    $region39: #{unet3d1d_forward.77} parent=5 // pred_region
      %s1127 = ssub.s32 %s9, 2
      // Predicated region
      $region41: #{unet3d1d_forward.77} parent=39 // pred_check
        %p1128 = pneg %p106
      $region42: #{unet3d1d_forward.77} parent=39 // pred_check_branch
        %1130 = sbr.rel (%p1128) target = $region44
      $region43: #{unet3d1d_forward.77} parent=39 // pred_region
        %p1131 = scmp.lt.s32.totalorder %s15, 3
        %s1132 = scalar_select %p1131, %s15, 3
        %s1133 = smul.addr %s1132, 64
        %s1134 = smul.addr %s1133, 4
        %s1135 = scalar_lea.vmem %s3, %s1134
      $region44: #{unet3d1d_forward.77} parent=39 // pred_fallthru
        _
    $region40: #{unet3d1d_forward.77} parent=5 // pred_fallthru
      _
  $region6: #{unet3d1d_forward.77} parent=0 // loop_footer
    %s13 = sadd.s32 1, %s9
  $region7: #{unet3d1d_forward.77} parent=0 // loop_footer_branch
    %8 = sbr.rel target = $region3
  $region8: #{unet3d1d_forward.77} parent=0 // loop_exit
    _

</llo_original>
